<compile_context>
chip_gen: v7x
topology: tpu7x:2x2x1
jax: 0.10.0
libtpu: 0.0.40
codegen_flags: <defaults>
</compile_context>

<pallas_src>
import math
import functools

import jax
import jax.numpy as jnp
from jax.experimental import pallas as pl
from jax.experimental.pallas import tpu as pltpu


def _round_up(x, m):
    return ((x + m - 1) // m) * m


# ----------------------------- Pallas kernels -------------------------------

def _fused_matmul_bn_act_kernel(*refs, do_bn, act, has_res, eps):
    """K-tiled matmul with fused BatchNorm / activation / residual epilogue.

    refs = (a, b, gamma, beta, gmat[, residual], out, acc)
      a:     (M, tk)  bf16   im2col patches tile
      b:     (tk, Np) bf16   reordered weight tile (K = kh*kw*Cin fast axis)
      gamma: (1, Np)  f32    per (pre-shuffle) channel scale (1.0 in padding)
      beta:  (1, Np)  f32    per (pre-shuffle) channel shift (0.0 in padding)
      gmat:  (Np, Np) f32    stat pooling matrix (already carries 1/count);
                             identity/M for plain BN, group-of-4 pooling for the
                             BN that PyTorch applies after PixelShuffle(2)
      residual (optional): (M, Np) f32 added after the epilogue (ResidualBlock)
      out:   (M, Np)  f32
      acc:   (M, Np)  f32 VMEM scratch accumulator
    """
    if has_res:
        a_ref, b_ref, g_ref, bt_ref, gmat_ref, r_ref, o_ref, acc_ref = refs
    else:
        a_ref, b_ref, g_ref, bt_ref, gmat_ref, o_ref, acc_ref = refs
        r_ref = None

    k = pl.program_id(0)

    @pl.when(k == 0)
    def _():
        acc_ref[...] = jnp.zeros_like(acc_ref)

    acc_ref[...] += jnp.dot(a_ref[...], b_ref[...],
                            preferred_element_type=jnp.float32)

    @pl.when(k == pl.num_programs(0) - 1)
    def _():
        x = acc_ref[...]
        if do_bn:
            # training-mode batch stats over all rows (N*H*W); gmat pools
            # channel groups and divides by the element count.
            s = jnp.sum(x, axis=0, keepdims=True)                       # (1, Np)
            mean = jnp.dot(s, gmat_ref[...],
                           preferred_element_type=jnp.float32)          # (1, Np)
            d = x - mean
            var = jnp.dot(jnp.sum(d * d, axis=0, keepdims=True), gmat_ref[...],
                          preferred_element_type=jnp.float32)
            x = d * jax.lax.rsqrt(var + eps) * g_ref[...] + bt_ref[...]
        if act == "relu":
            x = jnp.maximum(x, 0.0)
        elif act == "tanh":
            x = jnp.tanh(x)
        if r_ref is not None:
            x = x + r_ref[...]
        o_ref[...] = x


def fused_conv_matmul(A, B, gamma, beta, *, do_bn=True, act="none", group=1,
                      residual=None, eps=1e-5):
    """(M,K)@(K,Cout) with fused BN/act/residual. Returns (M, Cout) f32."""
    M, K = A.shape
    Cout = B.shape[1]
    Kp = _round_up(K, 128)      # MXU/layout friendly contraction dim
    Np = _round_up(Cout, 128)   # lane-dense output stores (avoid vst.msk)

    A = jnp.pad(A, ((0, 0), (0, Kp - K)))
    B = jnp.pad(B, ((0, Kp - K), (0, Np - Cout)))
    g = jnp.pad(gamma.astype(jnp.float32), (0, Np - gamma.shape[0]),
                constant_values=1.0)
    bt = jnp.pad(beta.astype(jnp.float32), (0, Np - beta.shape[0]))

    # Stat-pooling matrix: block of 1/(M*group) where channels share a
    # pixel-shuffle group (group=1 -> identity/M = plain BatchNorm).
    gid = jnp.arange(Np) // group
    gmat = (gid[:, None] == gid[None, :]).astype(jnp.float32) / float(M * group)

    A16 = A.astype(jnp.bfloat16)   # bf16 MXU operands, f32 accumulation
    B16 = B.astype(jnp.bfloat16)

    # K grid axis ("arbitrary") with resident f32 accumulator: a single step at
    # these toy sizes, but keeps VMEM bounded at production channel counts.
    if Kp <= 512:
        tk = Kp
    elif Kp % 512 == 0:
        tk = 512
    elif Kp % 256 == 0:
        tk = 256
    else:
        tk = 128
    nk = Kp // tk

    inputs = [A16, B16, g.reshape(1, Np), bt.reshape(1, Np), gmat]
    in_specs = [
        pl.BlockSpec((M, tk), lambda k: (0, k)),
        pl.BlockSpec((tk, Np), lambda k: (k, 0)),
        pl.BlockSpec((1, Np), lambda k: (0, 0)),
        pl.BlockSpec((1, Np), lambda k: (0, 0)),
        pl.BlockSpec((Np, Np), lambda k: (0, 0)),
    ]
    has_res = residual is not None
    if has_res:
        r = jnp.pad(residual, ((0, 0), (0, Np - residual.shape[1])))
        inputs.append(r)
        in_specs.append(pl.BlockSpec((M, Np), lambda k: (0, 0)))

    kern = functools.partial(_fused_matmul_bn_act_kernel,
                             do_bn=do_bn, act=act, has_res=has_res, eps=eps)
    out = pl.pallas_call(
        kern,
        out_shape=jax.ShapeDtypeStruct((M, Np), jnp.float32),
        grid=(nk,),
        in_specs=in_specs,
        out_specs=pl.BlockSpec((M, Np), lambda k: (0, 0)),
        scratch_shapes=[pltpu.VMEM((M, Np), jnp.float32)],
        compiler_params=pltpu.CompilerParams(
            dimension_semantics=("arbitrary",)),
    )(*inputs)
    # TODO(synk): at production activation sizes the whole-batch BN block should
    # become a two-pass row-tiled ("parallel") scheme to respect v7x VMEM and
    # use both TensorCores; at this config the full block is < 1 MiB.
    return out[:, :Cout]


def _memory_kernel(z_ref, m_ref, w_ref, logw_ref, zhat_ref):
    """Euclidean soft addressing + softmax readout, all samples in one step.

    z: (N, HW, C) f32;  m: (N, Mp, C) f32 (slots pre-transposed, padded slots
    hold a large constant so their softmax weight underflows to exactly 0).
    """
    z = z_ref[...]
    m = m_ref[...]
    z16 = z.astype(jnp.bfloat16)
    m16 = m.astype(jnp.bfloat16)
    cross = jnp.einsum("nhc,nmc->nhm", z16, m16,
                       preferred_element_type=jnp.float32)        # (N, HW, Mp)
    z2 = jnp.sum(z * z, axis=2, keepdims=True)                     # (N, HW, 1)
    m2 = jnp.sum(m * m, axis=2)[:, None, :]                        # (N, 1, Mp)
    sim = 2.0 * cross - z2 - m2                                    # -||z - m||^2
    smax = jnp.max(sim, axis=2, keepdims=True)
    p = jnp.exp(sim - smax)
    ssum = jnp.sum(p, axis=2, keepdims=True)
    w = p / ssum
    w_ref[...] = w                                                 # softmax
    logw_ref[...] = (sim - smax) - jnp.log(ssum)                   # log_softmax
    zhat_ref[...] = jnp.einsum("nhm,nmc->nhc", w.astype(jnp.bfloat16), m16,
                               preferred_element_type=jnp.float32)


def pallas_memory(z_flat, mem_sel_t):
    """z_flat: (N, HW, C); mem_sel_t: (N, Mp, C) -> (w, log_w, z_hat_flat)."""
    N, HW, C = z_flat.shape
    Mp = mem_sel_t.shape[1]
    return pl.pallas_call(
        _memory_kernel,
        out_shape=(jax.ShapeDtypeStruct((N, HW, Mp), jnp.float32),
                   jax.ShapeDtypeStruct((N, HW, Mp), jnp.float32),
                   jax.ShapeDtypeStruct((N, HW, C), jnp.float32)),
        grid=(1,),
        in_specs=[pl.BlockSpec((N, HW, C), lambda i: (0, 0, 0)),
                  pl.BlockSpec((N, Mp, C), lambda i: (0, 0, 0))],
        out_specs=(pl.BlockSpec((N, HW, Mp), lambda i: (0, 0, 0)),
                   pl.BlockSpec((N, HW, Mp), lambda i: (0, 0, 0)),
                   pl.BlockSpec((N, HW, C), lambda i: (0, 0, 0))),
        compiler_params=pltpu.CompilerParams(
            dimension_semantics=("arbitrary",)),
    )(z_flat, mem_sel_t)


# --------------------------- glue (reshapes / params) -----------------------

def conv2d_im2col(x_nhwc, w_oihw, stride, refl_pad):
    """Reflection-pad im2col; keeps Cin as the fast K axis (no large-activation
    transpose) and reorders only the tiny weight tensor."""
    N, H, W, Cin = x_nhwc.shape
    Cout, _, kh, kw = w_oihw.shape
    xp = x_nhwc
    if refl_pad > 0:
        xp = jnp.pad(x_nhwc,
                     ((0, 0), (refl_pad, refl_pad), (refl_pad, refl_pad), (0, 0)),
                     mode="reflect")
    Hp, Wp = xp.shape[1], xp.shape[2]
    Hout = (Hp - kh) // stride + 1
    Wout = (Wp - kw) // stride + 1
    cols = []
    for ki in range(kh):
        for kj in range(kw):
            cols.append(xp[:, ki:ki + stride * Hout:stride,
                           kj:kj + stride * Wout:stride, :])
    patches = jnp.stack(cols, axis=3)                 # (N,Hout,Wout,kh*kw,Cin)
    A = patches.reshape(N * Hout * Wout, kh * kw * Cin)
    Bm = jnp.transpose(w_oihw, (2, 3, 1, 0)).reshape(kh * kw * Cin, Cout)
    return A, Bm, (N, Hout, Wout, Cout)


def conv_bn_act(x_nhwc, w_oihw, gamma, beta, *, stride, pad, do_bn=True,
                act="none", group=1, residual_nhwc=None):
    A, Bm, (N, Ho, Wo, Cout) = conv2d_im2col(x_nhwc, w_oihw, stride, pad)
    res2d = None
    if residual_nhwc is not None:
        res2d = residual_nhwc.reshape(N * Ho * Wo, Cout)
    y2d = fused_conv_matmul(A, Bm, gamma, beta, do_bn=do_bn, act=act,
                            group=group, residual=res2d)
    return y2d.reshape(N, Ho, Wo, Cout)


def pixel_shuffle_nhwc(x, r):
    # TODO(synk): pure data rearrangement kept in XLA glue; could be folded into
    # the conv kernel's store pattern via a strided out index_map.
    N, H, W, C4 = x.shape
    C = C4 // (r * r)
    x = x.reshape(N, H, W, C, r, r)
    x = jnp.transpose(x, (0, 1, 4, 2, 5, 3))
    return x.reshape(N, H * r, W * r, C)


def residual_block(x_nhwc, p):
    h = conv_bn_act(x_nhwc, p["w1"], p["g1"], p["b1"], stride=1, pad=1, act="relu")
    # second conv: fused BN (no act) + residual add, all in one kernel epilogue
    h = conv_bn_act(h, p["w2"], p["g2"], p["b2"], stride=1, pad=1, act="none",
                    residual_nhwc=x_nhwc)
    return h


def upsample_stage(x_nhwc, p):
    # PyTorch order is conv -> PixelShuffle(2) -> BN -> ReLU.  Pooling the batch
    # stats over groups of 4 pre-shuffle channels (and repeating gamma/beta 4x)
    # makes BN+ReLU before the shuffle mathematically identical, so it can be
    # fused into the conv kernel's epilogue.
    gamma4 = jnp.repeat(p["g"], 4)
    beta4 = jnp.repeat(p["b"], 4)
    h = conv_bn_act(x_nhwc, p["w"], gamma4, beta4, stride=1, pad=1,
                    act="relu", group=4)
    return pixel_shuffle_nhwc(h, 2)


def xavier_normal_conv(key, cout, cin, kh, kw, gain=0.02):
    fan_in = cin * kh * kw
    fan_out = cout * kh * kw
    std = gain * math.sqrt(2.0 / (fan_in + fan_out))
    return std * jax.random.normal(key, (cout, cin, kh, kw), dtype=jnp.float32)


def spectral_norm_weight(w, key, eps=1e-12):
    # one power iteration, as in torch.nn.utils.spectral_norm (training step)
    # TODO(synk): torch keeps a persistent `u` buffer; init-time use only here.
    co = w.shape[0]
    wm = w.reshape(co, -1)
    u = jax.random.normal(key, (co,), dtype=jnp.float32)
    u = u / (jnp.linalg.norm(u) + eps)
    v = wm.T @ u
    v = v / (jnp.linalg.norm(v) + eps)
    u = wm @ v
    u = u / (jnp.linalg.norm(u) + eps)
    sigma = jnp.dot(u, wm @ v)
    return w / sigma


def init_params(key, c_dim, conv_dim, z_dim, n_downsample, mem_dim, num_cls, gain=0.02):
    kiter = iter(jax.random.split(key, 256))
    nk = lambda: next(kiter)

    def conv_sn(cout, cin, k):
        return spectral_norm_weight(xavier_normal_conv(nk(), cout, cin, k, k, gain), nk())

    def bn(c):
        g = 1.0 + gain * jax.random.normal(nk(), (c,), dtype=jnp.float32)
        return g, jnp.zeros((c,), jnp.float32)

    def resblock(c):
        w1 = conv_sn(c, c, 3); g1, b1 = bn(c)
        w2 = conv_sn(c, c, 3); g2, b2 = bn(c)
        return dict(w1=w1, g1=g1, b1=b1, w2=w2, g2=g2, b2=b2)

    P = {}
    P["e0_w"] = conv_sn(conv_dim, c_dim, 7)
    P["e0_g"], P["e0_b"] = bn(conv_dim)
    curr = conv_dim
    downs = []
    for i in range(n_downsample):
        out = min(z_dim, curr * 2)
        if i == n_downsample - 1:
            out = z_dim
        w = conv_sn(out, curr, 3)
        g, b = bn(out)
        downs.append(dict(w=w, g=g, b=b))
        curr = out
    P["enc_down"] = downs
    P["enc_res"] = [resblock(curr) for _ in range(3)]

    # MemoryClsEuclideanRW parameter: (1, z_dim, mem_dim, num_cls), N(0, 0.02)
    P["memory"] = 0.02 * jax.random.normal(nk(), (1, z_dim, mem_dim, num_cls),
                                           dtype=jnp.float32)

    P["dec_res"] = [resblock(curr) for _ in range(3)]
    ups = []
    for i in reversed(range(n_downsample)):
        cdim = min(z_dim, conv_dim * 2 ** (i + 1))
        if i == n_downsample - 1:
            cdim = z_dim
        out = min(z_dim, conv_dim * 2 ** i)
        w = conv_sn(out * 4, cdim, 3)
        g, b = bn(out)
        ups.append(dict(w=w, g=g, b=b))
    P["dec_up"] = ups
    P["final_w"] = xavier_normal_conv(nk(), c_dim, conv_dim, 7, 7, gain)  # no spectral norm
    return P


# ------------------------------- forward pass --------------------------------

def generator_forward(x_nchw, cls, P):
    """norm='batch', no_memory=False path: returns (dec, w, log_w) like PyTorch."""
    h = jnp.transpose(x_nchw, (0, 2, 3, 1)).astype(jnp.float32)  # -> NHWC

    # encoder
    h = conv_bn_act(h, P["e0_w"], P["e0_g"], P["e0_b"], stride=1, pad=3, act="relu")
    for st in P["enc_down"]:
        h = conv_bn_act(h, st["w"], st["g"], st["b"], stride=2, pad=1, act="relu")
    for rb in P["enc_res"]:
        h = residual_block(h, rb)
    enc = h

    # memory read (Euclidean soft addressing + softmax readout) in one kernel
    N, H, W, C = enc.shape
    HW = H * W
    mem_dim = P["memory"].shape[2]
    z_flat = enc.reshape(N, HW, C)                               # row = h*W + w
    # (num_cls, mem_dim, C) gathered by cls -> (N, mem_dim, C), slots padded to
    # a 128-lane multiple with a large constant (padded softmax weight == 0).
    mem_sel_t = jnp.transpose(P["memory"][0], (2, 1, 0))[cls]
    Mp = _round_up(mem_dim, 128)
    mem_sel_p = jnp.pad(mem_sel_t, ((0, 0), (0, Mp - mem_dim), (0, 0)),
                        constant_values=1e4)
    w_p, logw_p, zhat_flat = pallas_memory(z_flat, mem_sel_p)
    w = w_p[:, :, :mem_dim]
    log_w = logw_p[:, :, :mem_dim]
    h = zhat_flat.reshape(N, H, W, C)

    # decoder
    for rb in P["dec_res"]:
        h = residual_block(h, rb)
    for st in P["dec_up"]:
        h = upsample_stage(h, st)
    Cd = P["final_w"].shape[0]
    ones = jnp.ones((Cd,), jnp.float32)
    zeros = jnp.zeros((Cd,), jnp.float32)
    h = conv_bn_act(h, P["final_w"], ones, zeros, stride=1, pad=3,
                    do_bn=False, act="tanh")

    dec = jnp.transpose(h, (0, 3, 1, 2))  # back to NCHW
    return dec, w, log_w


# ----------------------------------- main ------------------------------------

if __name__ == "__main__":
    # small config consistent with the module's constructor
    c_dim, conv_dim, z_dim = 1, 8, 32
    n_downsample, mem_dim, num_cls = 2, 16, 4

    key = jax.random.PRNGKey(0)
    kp, kx, kc = jax.random.split(key, 3)
    params = init_params(kp, c_dim, conv_dim, z_dim, n_downsample, mem_dim, num_cls)

    x = jax.random.normal(kx, (2, c_dim, 16, 16), dtype=jnp.float32)
    cls = jax.random.randint(kc, (2,), 0, num_cls)

    fwd = jax.jit(generator_forward)
    dec, w, log_w = fwd(x, cls, params)
    jax.block_until_ready((dec, w, log_w))

    # shape checks: 16x16 input, 2 downsamples -> 4x4 latent with 16 spatial tokens
    assert dec.shape == (2, c_dim, 16, 16)
    assert w.shape == (2, 16, mem_dim)
    assert log_w.shape == (2, 16, mem_dim)
    assert bool(jnp.all(jnp.isfinite(dec))) and bool(jnp.all(jnp.isfinite(w)))
    assert bool(jnp.all(jnp.isfinite(log_w)))
    # TODO(synk): spectral-norm power iteration / BatchNorm running-stat updates are
    # training-time parameter bookkeeping and are done in plain JAX glue, not in-kernel.
    print("KERNEL_OK")
</pallas_src>

<mosaic_0001>
module attributes {stable_mosaic.version = 11 : i64} {
  func.func @_fused_matmul_bn_act_kernel(%arg0: i32, %arg1: memref<512x128xbf16, #tpu.memory_space<vmem>>, %arg2: memref<128x128xbf16, #tpu.memory_space<vmem>>, %arg3: memref<1x128xf32, #tpu.memory_space<vmem>>, %arg4: memref<1x128xf32, #tpu.memory_space<vmem>>, %arg5: memref<128x128xf32, #tpu.memory_space<vmem>>, %arg6: memref<512x128xf32, #tpu.memory_space<vmem>>, %arg7: memref<512x128xf32, #tpu.memory_space<vmem>>) attributes {dimension_semantics = [#tpu.dimension_semantics<arbitrary>], iteration_bounds = array<i64: 1>, scalar_prefetch = 0 : i64, scratch_operands = 1 : i64, tpu.core_type = #tpu.core_type<tc>, window_params = [{transform_indices = @transform_0, window_bounds = array<i64: 512, 128>}, {transform_indices = @transform_1, window_bounds = array<i64: 128, 128>}, {pipeline_mode = #tpu.pipeline_mode<synchronous>, transform_indices = @transform_2, window_bounds = array<i64: 1, 128>}, {pipeline_mode = #tpu.pipeline_mode<synchronous>, transform_indices = @transform_3, window_bounds = array<i64: 1, 128>}, {pipeline_mode = #tpu.pipeline_mode<synchronous>, transform_indices = @transform_4, window_bounds = array<i64: 128, 128>}, {pipeline_mode = #tpu.pipeline_mode<synchronous>, transform_indices = @transform_5, window_bounds = array<i64: 512, 128>}]} {
    %c0_i32 = arith.constant 0 : i32
    %0 = arith.cmpi eq, %arg0, %c0_i32 : i32
    %1 = arith.extui %0 : i1 to i32
    %c0_i32_0 = arith.constant 0 : i32
    %2 = arith.cmpi ne, %1, %c0_i32_0 : i32
    scf.if %2 {
      %cst_10 = arith.constant 0.000000e+00 : f32
      %12 = vector.broadcast %cst_10 : f32 to vector<512x128xf32>
      %c0_11 = arith.constant 0 : index
      %c0_12 = arith.constant 0 : index
      %13 = vector.load %arg7[%c0_11, %c0_12] : memref<512x128xf32, #tpu.memory_space<vmem>>, vector<512x128xf32>
      tpu.vector_store %arg7[%c0_11, %c0_12], %12 {strides = array<i32>} : memref<512x128xf32, #tpu.memory_space<vmem>>, vector<512x128xf32>,
    } else {
    }
    %c0 = arith.constant 0 : index
    %c0_1 = arith.constant 0 : index
    %3 = vector.load %arg7[%c0, %c0_1] : memref<512x128xf32, #tpu.memory_space<vmem>>, vector<512x128xf32>
    %c0_2 = arith.constant 0 : index
    %c0_3 = arith.constant 0 : index
    %4 = vector.load %arg1[%c0_2, %c0_3] : memref<512x128xbf16, #tpu.memory_space<vmem>>, vector<512x128xbf16>
    %c0_4 = arith.constant 0 : index
    %c0_5 = arith.constant 0 : index
    %5 = vector.load %arg2[%c0_4, %c0_5] : memref<128x128xbf16, #tpu.memory_space<vmem>>, vector<128x128xbf16>
    %cst = arith.constant dense<0.000000e+00> : vector<512x128xf32>
    %6 = tpu.matmul %4, %5, %cst {dimension_numbers = #tpu.dot_dimension_numbers<[1], [0], [0], [1], [0, 0, 1, 1], [], []>} : vector<512x128xbf16>, vector<128x128xbf16>, vector<512x128xf32> -> vector<512x128xf32>
    %7 = arith.addf %3, %6 : vector<512x128xf32>
    %c0_6 = arith.constant 0 : index
    %c0_7 = arith.constant 0 : index
    %8 = vector.load %arg7[%c0_6, %c0_7] : memref<512x128xf32, #tpu.memory_space<vmem>>, vector<512x128xf32>
    tpu.vector_store %arg7[%c0_6, %c0_7], %7 {strides = array<i32>} : memref<512x128xf32, #tpu.memory_space<vmem>>, vector<512x128xf32>,
    %c0_i32_8 = arith.constant 0 : i32
    %9 = arith.cmpi eq, %arg0, %c0_i32_8 : i32
    %10 = arith.extui %9 : i1 to i32
    %c0_i32_9 = arith.constant 0 : i32
    %11 = arith.cmpi ne, %10, %c0_i32_9 : i32
    scf.if %11 {
      %c0_10 = arith.constant 0 : index
      %c0_11 = arith.constant 0 : index
      %12 = vector.load %arg7[%c0_10, %c0_11] : memref<512x128xf32, #tpu.memory_space<vmem>>, vector<512x128xf32>
      %cst_12 = arith.constant dense<0.000000e+00> : vector<128xf32>
      %13 = vector.multi_reduction <add>, %12, %cst_12 [0] : vector<512x128xf32> to vector<128xf32>
      %14 = vector.shape_cast %13 : vector<128xf32> to vector<1x128xf32>
      %c0_13 = arith.constant 0 : index
      %c0_14 = arith.constant 0 : index
      %15 = vector.load %arg5[%c0_13, %c0_14] : memref<128x128xf32, #tpu.memory_space<vmem>>, vector<128x128xf32>
      %cst_15 = arith.constant dense<0.000000e+00> : vector<1x128xf32>
      %16 = tpu.matmul %14, %15, %cst_15 {dimension_numbers = #tpu.dot_dimension_numbers<[1], [0], [0], [1], [0, 0, 1, 1], [], []>} : vector<1x128xf32>, vector<128x128xf32>, vector<1x128xf32> -> vector<1x128xf32>
      %17 = vector.broadcast %16 : vector<1x128xf32> to vector<512x128xf32>
      %18 = arith.subf %12, %17 : vector<512x128xf32>
      %19 = arith.mulf %18, %18 : vector<512x128xf32>
      %cst_16 = arith.constant dense<0.000000e+00> : vector<128xf32>
      %20 = vector.multi_reduction <add>, %19, %cst_16 [0] : vector<512x128xf32> to vector<128xf32>
      %21 = vector.shape_cast %20 : vector<128xf32> to vector<1x128xf32>
      %c0_17 = arith.constant 0 : index
      %c0_18 = arith.constant 0 : index
      %22 = vector.load %arg5[%c0_17, %c0_18] : memref<128x128xf32, #tpu.memory_space<vmem>>, vector<128x128xf32>
      %cst_19 = arith.constant dense<0.000000e+00> : vector<1x128xf32>
      %23 = tpu.matmul %21, %22, %cst_19 {dimension_numbers = #tpu.dot_dimension_numbers<[1], [0], [0], [1], [0, 0, 1, 1], [], []>} : vector<1x128xf32>, vector<128x128xf32>, vector<1x128xf32> -> vector<1x128xf32>
      %cst_20 = arith.constant 9.99999974E-6 : f32
      %24 = vector.broadcast %cst_20 : f32 to vector<1x128xf32>
      %25 = arith.addf %23, %24 : vector<1x128xf32>
      %26 = math.rsqrt %25 : vector<1x128xf32>
      %27 = vector.broadcast %26 : vector<1x128xf32> to vector<512x128xf32>
      %28 = arith.mulf %18, %27 : vector<512x128xf32>
      %c0_21 = arith.constant 0 : index
      %c0_22 = arith.constant 0 : index
      %29 = vector.load %arg3[%c0_21, %c0_22] : memref<1x128xf32, #tpu.memory_space<vmem>>, vector<1x128xf32>
      %30 = vector.broadcast %29 : vector<1x128xf32> to vector<512x128xf32>
      %31 = arith.mulf %28, %30 : vector<512x128xf32>
      %c0_23 = arith.constant 0 : index
      %c0_24 = arith.constant 0 : index
      %32 = vector.load %arg4[%c0_23, %c0_24] : memref<1x128xf32, #tpu.memory_space<vmem>>, vector<1x128xf32>
      %33 = vector.broadcast %32 : vector<1x128xf32> to vector<512x128xf32>
      %34 = arith.addf %31, %33 : vector<512x128xf32>
      %cst_25 = arith.constant 0.000000e+00 : f32
      %35 = vector.broadcast %cst_25 : f32 to vector<512x128xf32>
      %36 = arith.maximumf %34, %35 : vector<512x128xf32>
      %c0_26 = arith.constant 0 : index
      %c0_27 = arith.constant 0 : index
      %37 = vector.load %arg6[%c0_26, %c0_27] : memref<512x128xf32, #tpu.memory_space<vmem>>, vector<512x128xf32>
      tpu.vector_store %arg6[%c0_26, %c0_27], %36 {strides = array<i32>} : memref<512x128xf32, #tpu.memory_space<vmem>>, vector<512x128xf32>,
    } else {
    }
    return
  }
  func.func @transform_0(%arg0: i32) -> (i32, i32) {
    %c0_i32 = arith.constant 0 : i32
    %c0_i32_0 = arith.constant 0 : i32
    return %c0_i32, %arg0 : i32, i32
  }
  func.func @transform_1(%arg0: i32) -> (i32, i32) {
    %c0_i32 = arith.constant 0 : i32
    %c0_i32_0 = arith.constant 0 : i32
    return %arg0, %c0_i32 : i32, i32
  }
  func.func @transform_2(%arg0: i32) -> (i32, i32) {
    %c0_i32 = arith.constant 0 : i32
    %c0_i32_0 = arith.constant 0 : i32
    %c0_i32_1 = arith.constant 0 : i32
    return %c0_i32, %c0_i32_0 : i32, i32
  }
  func.func @transform_3(%arg0: i32) -> (i32, i32) {
    %c0_i32 = arith.constant 0 : i32
    %c0_i32_0 = arith.constant 0 : i32
    %c0_i32_1 = arith.constant 0 : i32
    return %c0_i32, %c0_i32_0 : i32, i32
  }
  func.func @transform_4(%arg0: i32) -> (i32, i32) {
    %c0_i32 = arith.constant 0 : i32
    %c0_i32_0 = arith.constant 0 : i32
    %c0_i32_1 = arith.constant 0 : i32
    return %c0_i32, %c0_i32_0 : i32, i32
  }
  func.func @transform_5(%arg0: i32) -> (i32, i32) {
    %c0_i32 = arith.constant 0 : i32
    %c0_i32_0 = arith.constant 0 : i32
    %c0_i32_1 = arith.constant 0 : i32
    return %c0_i32, %c0_i32_0 : i32, i32
  }
}

module attributes {stable_mosaic.version = 11 : i64} {
  func.func @_fused_matmul_bn_act_kernel(%arg0: i32, %arg1: memref<128x128xbf16, #tpu.memory_space<vmem>>, %arg2: memref<128x128xbf16, #tpu.memory_space<vmem>>, %arg3: memref<1x128xf32, #tpu.memory_space<vmem>>, %arg4: memref<1x128xf32, #tpu.memory_space<vmem>>, %arg5: memref<128x128xf32, #tpu.memory_space<vmem>>, %arg6: memref<128x128xf32, #tpu.memory_space<vmem>>, %arg7: memref<128x128xf32, #tpu.memory_space<vmem>>) attributes {dimension_semantics = [#tpu.dimension_semantics<arbitrary>], iteration_bounds = array<i64: 1>, scalar_prefetch = 0 : i64, scratch_operands = 1 : i64, tpu.core_type = #tpu.core_type<tc>, window_params = [{transform_indices = @transform_0, window_bounds = array<i64: 128, 128>}, {transform_indices = @transform_1, window_bounds = array<i64: 128, 128>}, {pipeline_mode = #tpu.pipeline_mode<synchronous>, transform_indices = @transform_2, window_bounds = array<i64: 1, 128>}, {pipeline_mode = #tpu.pipeline_mode<synchronous>, transform_indices = @transform_3, window_bounds = array<i64: 1, 128>}, {pipeline_mode = #tpu.pipeline_mode<synchronous>, transform_indices = @transform_4, window_bounds = array<i64: 128, 128>}, {pipeline_mode = #tpu.pipeline_mode<synchronous>, transform_indices = @transform_5, window_bounds = array<i64: 128, 128>}]} {
    %c0_i32 = arith.constant 0 : i32
    %0 = arith.cmpi eq, %arg0, %c0_i32 : i32
    %1 = arith.extui %0 : i1 to i32
    %c0_i32_0 = arith.constant 0 : i32
    %2 = arith.cmpi ne, %1, %c0_i32_0 : i32
    scf.if %2 {
      %cst_10 = arith.constant 0.000000e+00 : f32
      %12 = vector.broadcast %cst_10 : f32 to vector<128x128xf32>
      %c0_11 = arith.constant 0 : index
      %c0_12 = arith.constant 0 : index
      %13 = vector.load %arg7[%c0_11, %c0_12] : memref<128x128xf32, #tpu.memory_space<vmem>>, vector<128x128xf32>
      tpu.vector_store %arg7[%c0_11, %c0_12], %12 {strides = array<i32>} : memref<128x128xf32, #tpu.memory_space<vmem>>, vector<128x128xf32>,
    } else {
    }
    %c0 = arith.constant 0 : index
    %c0_1 = arith.constant 0 : index
    %3 = vector.load %arg7[%c0, %c0_1] : memref<128x128xf32, #tpu.memory_space<vmem>>, vector<128x128xf32>
    %c0_2 = arith.constant 0 : index
    %c0_3 = arith.constant 0 : index
    %4 = vector.load %arg1[%c0_2, %c0_3] : memref<128x128xbf16, #tpu.memory_space<vmem>>, vector<128x128xbf16>
    %c0_4 = arith.constant 0 : index
    %c0_5 = arith.constant 0 : index
    %5 = vector.load %arg2[%c0_4, %c0_5] : memref<128x128xbf16, #tpu.memory_space<vmem>>, vector<128x128xbf16>
    %cst = arith.constant dense<0.000000e+00> : vector<128x128xf32>
    %6 = tpu.matmul %4, %5, %cst {dimension_numbers = #tpu.dot_dimension_numbers<[1], [0], [0], [1], [0, 0, 1, 1], [], []>} : vector<128x128xbf16>, vector<128x128xbf16>, vector<128x128xf32> -> vector<128x128xf32>
    %7 = arith.addf %3, %6 : vector<128x128xf32>
    %c0_6 = arith.constant 0 : index
    %c0_7 = arith.constant 0 : index
    %8 = vector.load %arg7[%c0_6, %c0_7] : memref<128x128xf32, #tpu.memory_space<vmem>>, vector<128x128xf32>
    tpu.vector_store %arg7[%c0_6, %c0_7], %7 {strides = array<i32>} : memref<128x128xf32, #tpu.memory_space<vmem>>, vector<128x128xf32>,
    %c0_i32_8 = arith.constant 0 : i32
    %9 = arith.cmpi eq, %arg0, %c0_i32_8 : i32
    %10 = arith.extui %9 : i1 to i32
    %c0_i32_9 = arith.constant 0 : i32
    %11 = arith.cmpi ne, %10, %c0_i32_9 : i32
    scf.if %11 {
      %c0_10 = arith.constant 0 : index
      %c0_11 = arith.constant 0 : index
      %12 = vector.load %arg7[%c0_10, %c0_11] : memref<128x128xf32, #tpu.memory_space<vmem>>, vector<128x128xf32>
      %cst_12 = arith.constant dense<0.000000e+00> : vector<128xf32>
      %13 = vector.multi_reduction <add>, %12, %cst_12 [0] : vector<128x128xf32> to vector<128xf32>
      %14 = vector.shape_cast %13 : vector<128xf32> to vector<1x128xf32>
      %c0_13 = arith.constant 0 : index
      %c0_14 = arith.constant 0 : index
      %15 = vector.load %arg5[%c0_13, %c0_14] : memref<128x128xf32, #tpu.memory_space<vmem>>, vector<128x128xf32>
      %cst_15 = arith.constant dense<0.000000e+00> : vector<1x128xf32>
      %16 = tpu.matmul %14, %15, %cst_15 {dimension_numbers = #tpu.dot_dimension_numbers<[1], [0], [0], [1], [0, 0, 1, 1], [], []>} : vector<1x128xf32>, vector<128x128xf32>, vector<1x128xf32> -> vector<1x128xf32>
      %17 = vector.broadcast %16 : vector<1x128xf32> to vector<128x128xf32>
      %18 = arith.subf %12, %17 : vector<128x128xf32>
      %19 = arith.mulf %18, %18 : vector<128x128xf32>
      %cst_16 = arith.constant dense<0.000000e+00> : vector<128xf32>
      %20 = vector.multi_reduction <add>, %19, %cst_16 [0] : vector<128x128xf32> to vector<128xf32>
      %21 = vector.shape_cast %20 : vector<128xf32> to vector<1x128xf32>
      %c0_17 = arith.constant 0 : index
      %c0_18 = arith.constant 0 : index
      %22 = vector.load %arg5[%c0_17, %c0_18] : memref<128x128xf32, #tpu.memory_space<vmem>>, vector<128x128xf32>
      %cst_19 = arith.constant dense<0.000000e+00> : vector<1x128xf32>
      %23 = tpu.matmul %21, %22, %cst_19 {dimension_numbers = #tpu.dot_dimension_numbers<[1], [0], [0], [1], [0, 0, 1, 1], [], []>} : vector<1x128xf32>, vector<128x128xf32>, vector<1x128xf32> -> vector<1x128xf32>
      %cst_20 = arith.constant 9.99999974E-6 : f32
      %24 = vector.broadcast %cst_20 : f32 to vector<1x128xf32>
      %25 = arith.addf %23, %24 : vector<1x128xf32>
      %26 = math.rsqrt %25 : vector<1x128xf32>
      %27 = vector.broadcast %26 : vector<1x128xf32> to vector<128x128xf32>
      %28 = arith.mulf %18, %27 : vector<128x128xf32>
      %c0_21 = arith.constant 0 : index
      %c0_22 = arith.constant 0 : index
      %29 = vector.load %arg3[%c0_21, %c0_22] : memref<1x128xf32, #tpu.memory_space<vmem>>, vector<1x128xf32>
      %30 = vector.broadcast %29 : vector<1x128xf32> to vector<128x128xf32>
      %31 = arith.mulf %28, %30 : vector<128x128xf32>
      %c0_23 = arith.constant 0 : index
      %c0_24 = arith.constant 0 : index
      %32 = vector.load %arg4[%c0_23, %c0_24] : memref<1x128xf32, #tpu.memory_space<vmem>>, vector<1x128xf32>
      %33 = vector.broadcast %32 : vector<1x128xf32> to vector<128x128xf32>
      %34 = arith.addf %31, %33 : vector<128x128xf32>
      %cst_25 = arith.constant 0.000000e+00 : f32
      %35 = vector.broadcast %cst_25 : f32 to vector<128x128xf32>
      %36 = arith.maximumf %34, %35 : vector<128x128xf32>
      %c0_26 = arith.constant 0 : index
      %c0_27 = arith.constant 0 : index
      %37 = vector.load %arg6[%c0_26, %c0_27] : memref<128x128xf32, #tpu.memory_space<vmem>>, vector<128x128xf32>
      tpu.vector_store %arg6[%c0_26, %c0_27], %36 {strides = array<i32>} : memref<128x128xf32, #tpu.memory_space<vmem>>, vector<128x128xf32>,
    } else {
    }
    return
  }
  func.func @transform_0(%arg0: i32) -> (i32, i32) {
    %c0_i32 = arith.constant 0 : i32
    %c0_i32_0 = arith.constant 0 : i32
    return %c0_i32, %arg0 : i32, i32
  }
  func.func @transform_1(%arg0: i32) -> (i32, i32) {
    %c0_i32 = arith.constant 0 : i32
    %c0_i32_0 = arith.constant 0 : i32
    return %arg0, %c0_i32 : i32, i32
  }
  func.func @transform_2(%arg0: i32) -> (i32, i32) {
    %c0_i32 = arith.constant 0 : i32
    %c0_i32_0 = arith.constant 0 : i32
    %c0_i32_1 = arith.constant 0 : i32
    return %c0_i32, %c0_i32_0 : i32, i32
  }
  func.func @transform_3(%arg0: i32) -> (i32, i32) {
    %c0_i32 = arith.constant 0 : i32
    %c0_i32_0 = arith.constant 0 : i32
    %c0_i32_1 = arith.constant 0 : i32
    return %c0_i32, %c0_i32_0 : i32, i32
  }
  func.func @transform_4(%arg0: i32) -> (i32, i32) {
    %c0_i32 = arith.constant 0 : i32
    %c0_i32_0 = arith.constant 0 : i32
    %c0_i32_1 = arith.constant 0 : i32
    return %c0_i32, %c0_i32_0 : i32, i32
  }
  func.func @transform_5(%arg0: i32) -> (i32, i32) {
    %c0_i32 = arith.constant 0 : i32
    %c0_i32_0 = arith.constant 0 : i32
    %c0_i32_1 = arith.constant 0 : i32
    return %c0_i32, %c0_i32_0 : i32, i32
  }
}

module attributes {stable_mosaic.version = 11 : i64} {
  func.func @_fused_matmul_bn_act_kernel(%arg0: i32, %arg1: memref<32x256xbf16, #tpu.memory_space<vmem>>, %arg2: memref<256x128xbf16, #tpu.memory_space<vmem>>, %arg3: memref<1x128xf32, #tpu.memory_space<vmem>>, %arg4: memref<1x128xf32, #tpu.memory_space<vmem>>, %arg5: memref<128x128xf32, #tpu.memory_space<vmem>>, %arg6: memref<32x128xf32, #tpu.memory_space<vmem>>, %arg7: memref<32x128xf32, #tpu.memory_space<vmem>>) attributes {dimension_semantics = [#tpu.dimension_semantics<arbitrary>], iteration_bounds = array<i64: 1>, scalar_prefetch = 0 : i64, scratch_operands = 1 : i64, tpu.core_type = #tpu.core_type<tc>, window_params = [{transform_indices = @transform_0, window_bounds = array<i64: 32, 256>}, {transform_indices = @transform_1, window_bounds = array<i64: 256, 128>}, {pipeline_mode = #tpu.pipeline_mode<synchronous>, transform_indices = @transform_2, window_bounds = array<i64: 1, 128>}, {pipeline_mode = #tpu.pipeline_mode<synchronous>, transform_indices = @transform_3, window_bounds = array<i64: 1, 128>}, {pipeline_mode = #tpu.pipeline_mode<synchronous>, transform_indices = @transform_4, window_bounds = array<i64: 128, 128>}, {pipeline_mode = #tpu.pipeline_mode<synchronous>, transform_indices = @transform_5, window_bounds = array<i64: 32, 128>}]} {
    %c0_i32 = arith.constant 0 : i32
    %0 = arith.cmpi eq, %arg0, %c0_i32 : i32
    %1 = arith.extui %0 : i1 to i32
    %c0_i32_0 = arith.constant 0 : i32
    %2 = arith.cmpi ne, %1, %c0_i32_0 : i32
    scf.if %2 {
      %cst_10 = arith.constant 0.000000e+00 : f32
      %12 = vector.broadcast %cst_10 : f32 to vector<32x128xf32>
      %c0_11 = arith.constant 0 : index
      %c0_12 = arith.constant 0 : index
      %13 = vector.load %arg7[%c0_11, %c0_12] : memref<32x128xf32, #tpu.memory_space<vmem>>, vector<32x128xf32>
      tpu.vector_store %arg7[%c0_11, %c0_12], %12 {strides = array<i32>} : memref<32x128xf32, #tpu.memory_space<vmem>>, vector<32x128xf32>,
    } else {
    }
    %c0 = arith.constant 0 : index
    %c0_1 = arith.constant 0 : index
    %3 = vector.load %arg7[%c0, %c0_1] : memref<32x128xf32, #tpu.memory_space<vmem>>, vector<32x128xf32>
    %c0_2 = arith.constant 0 : index
    %c0_3 = arith.constant 0 : index
    %4 = vector.load %arg1[%c0_2, %c0_3] : memref<32x256xbf16, #tpu.memory_space<vmem>>, vector<32x256xbf16>
    %c0_4 = arith.constant 0 : index
    %c0_5 = arith.constant 0 : index
    %5 = vector.load %arg2[%c0_4, %c0_5] : memref<256x128xbf16, #tpu.memory_space<vmem>>, vector<256x128xbf16>
    %cst = arith.constant dense<0.000000e+00> : vector<32x128xf32>
    %6 = tpu.matmul %4, %5, %cst {dimension_numbers = #tpu.dot_dimension_numbers<[1], [0], [0], [1], [0, 0, 1, 1], [], []>} : vector<32x256xbf16>, vector<256x128xbf16>, vector<32x128xf32> -> vector<32x128xf32>
    %7 = arith.addf %3, %6 : vector<32x128xf32>
    %c0_6 = arith.constant 0 : index
    %c0_7 = arith.constant 0 : index
    %8 = vector.load %arg7[%c0_6, %c0_7] : memref<32x128xf32, #tpu.memory_space<vmem>>, vector<32x128xf32>
    tpu.vector_store %arg7[%c0_6, %c0_7], %7 {strides = array<i32>} : memref<32x128xf32, #tpu.memory_space<vmem>>, vector<32x128xf32>,
    %c0_i32_8 = arith.constant 0 : i32
    %9 = arith.cmpi eq, %arg0, %c0_i32_8 : i32
    %10 = arith.extui %9 : i1 to i32
    %c0_i32_9 = arith.constant 0 : i32
    %11 = arith.cmpi ne, %10, %c0_i32_9 : i32
    scf.if %11 {
      %c0_10 = arith.constant 0 : index
      %c0_11 = arith.constant 0 : index
      %12 = vector.load %arg7[%c0_10, %c0_11] : memref<32x128xf32, #tpu.memory_space<vmem>>, vector<32x128xf32>
      %cst_12 = arith.constant dense<0.000000e+00> : vector<128xf32>
      %13 = vector.multi_reduction <add>, %12, %cst_12 [0] : vector<32x128xf32> to vector<128xf32>
      %14 = vector.shape_cast %13 : vector<128xf32> to vector<1x128xf32>
      %c0_13 = arith.constant 0 : index
      %c0_14 = arith.constant 0 : index
      %15 = vector.load %arg5[%c0_13, %c0_14] : memref<128x128xf32, #tpu.memory_space<vmem>>, vector<128x128xf32>
      %cst_15 = arith.constant dense<0.000000e+00> : vector<1x128xf32>
      %16 = tpu.matmul %14, %15, %cst_15 {dimension_numbers = #tpu.dot_dimension_numbers<[1], [0], [0], [1], [0, 0, 1, 1], [], []>} : vector<1x128xf32>, vector<128x128xf32>, vector<1x128xf32> -> vector<1x128xf32>
      %17 = vector.broadcast %16 : vector<1x128xf32> to vector<32x128xf32>
      %18 = arith.subf %12, %17 : vector<32x128xf32>
      %19 = arith.mulf %18, %18 : vector<32x128xf32>
      %cst_16 = arith.constant dense<0.000000e+00> : vector<128xf32>
      %20 = vector.multi_reduction <add>, %19, %cst_16 [0] : vector<32x128xf32> to vector<128xf32>
      %21 = vector.shape_cast %20 : vector<128xf32> to vector<1x128xf32>
      %c0_17 = arith.constant 0 : index
      %c0_18 = arith.constant 0 : index
      %22 = vector.load %arg5[%c0_17, %c0_18] : memref<128x128xf32, #tpu.memory_space<vmem>>, vector<128x128xf32>
      %cst_19 = arith.constant dense<0.000000e+00> : vector<1x128xf32>
      %23 = tpu.matmul %21, %22, %cst_19 {dimension_numbers = #tpu.dot_dimension_numbers<[1], [0], [0], [1], [0, 0, 1, 1], [], []>} : vector<1x128xf32>, vector<128x128xf32>, vector<1x128xf32> -> vector<1x128xf32>
      %cst_20 = arith.constant 9.99999974E-6 : f32
      %24 = vector.broadcast %cst_20 : f32 to vector<1x128xf32>
      %25 = arith.addf %23, %24 : vector<1x128xf32>
      %26 = math.rsqrt %25 : vector<1x128xf32>
      %27 = vector.broadcast %26 : vector<1x128xf32> to vector<32x128xf32>
      %28 = arith.mulf %18, %27 : vector<32x128xf32>
      %c0_21 = arith.constant 0 : index
      %c0_22 = arith.constant 0 : index
      %29 = vector.load %arg3[%c0_21, %c0_22] : memref<1x128xf32, #tpu.memory_space<vmem>>, vector<1x128xf32>
      %30 = vector.broadcast %29 : vector<1x128xf32> to vector<32x128xf32>
      %31 = arith.mulf %28, %30 : vector<32x128xf32>
      %c0_23 = arith.constant 0 : index
      %c0_24 = arith.constant 0 : index
      %32 = vector.load %arg4[%c0_23, %c0_24] : memref<1x128xf32, #tpu.memory_space<vmem>>, vector<1x128xf32>
      %33 = vector.broadcast %32 : vector<1x128xf32> to vector<32x128xf32>
      %34 = arith.addf %31, %33 : vector<32x128xf32>
      %cst_25 = arith.constant 0.000000e+00 : f32
      %35 = vector.broadcast %cst_25 : f32 to vector<32x128xf32>
      %36 = arith.maximumf %34, %35 : vector<32x128xf32>
      %c0_26 = arith.constant 0 : index
      %c0_27 = arith.constant 0 : index
      %37 = vector.load %arg6[%c0_26, %c0_27] : memref<32x128xf32, #tpu.memory_space<vmem>>, vector<32x128xf32>
      tpu.vector_store %arg6[%c0_26, %c0_27], %36 {strides = array<i32>} : memref<32x128xf32, #tpu.memory_space<vmem>>, vector<32x128xf32>,
    } else {
    }
    return
  }
  func.func @transform_0(%arg0: i32) -> (i32, i32) {
    %c0_i32 = arith.constant 0 : i32
    %c0_i32_0 = arith.constant 0 : i32
    return %c0_i32, %arg0 : i32, i32
  }
  func.func @transform_1(%arg0: i32) -> (i32, i32) {
    %c0_i32 = arith.constant 0 : i32
    %c0_i32_0 = arith.constant 0 : i32
    return %arg0, %c0_i32 : i32, i32
  }
  func.func @transform_2(%arg0: i32) -> (i32, i32) {
    %c0_i32 = arith.constant 0 : i32
    %c0_i32_0 = arith.constant 0 : i32
    %c0_i32_1 = arith.constant 0 : i32
    return %c0_i32, %c0_i32_0 : i32, i32
  }
  func.func @transform_3(%arg0: i32) -> (i32, i32) {
    %c0_i32 = arith.constant 0 : i32
    %c0_i32_0 = arith.constant 0 : i32
    %c0_i32_1 = arith.constant 0 : i32
    return %c0_i32, %c0_i32_0 : i32, i32
  }
  func.func @transform_4(%arg0: i32) -> (i32, i32) {
    %c0_i32 = arith.constant 0 : i32
    %c0_i32_0 = arith.constant 0 : i32
    %c0_i32_1 = arith.constant 0 : i32
    return %c0_i32, %c0_i32_0 : i32, i32
  }
  func.func @transform_5(%arg0: i32) -> (i32, i32) {
    %c0_i32 = arith.constant 0 : i32
    %c0_i32_0 = arith.constant 0 : i32
    %c0_i32_1 = arith.constant 0 : i32
    return %c0_i32, %c0_i32_0 : i32, i32
  }
}

module attributes {stable_mosaic.version = 11 : i64} {
  func.func @_fused_matmul_bn_act_kernel(%arg0: i32, %arg1: memref<32x384xbf16, #tpu.memory_space<vmem>>, %arg2: memref<384x128xbf16, #tpu.memory_space<vmem>>, %arg3: memref<1x128xf32, #tpu.memory_space<vmem>>, %arg4: memref<1x128xf32, #tpu.memory_space<vmem>>, %arg5: memref<128x128xf32, #tpu.memory_space<vmem>>, %arg6: memref<32x128xf32, #tpu.memory_space<vmem>>, %arg7: memref<32x128xf32, #tpu.memory_space<vmem>>, %arg8: memref<32x128xf32, #tpu.memory_space<vmem>>) attributes {dimension_semantics = [#tpu.dimension_semantics<arbitrary>], iteration_bounds = array<i64: 1>, scalar_prefetch = 0 : i64, scratch_operands = 1 : i64, tpu.core_type = #tpu.core_type<tc>, window_params = [{transform_indices = @transform_0, window_bounds = array<i64: 32, 384>}, {transform_indices = @transform_1, window_bounds = array<i64: 384, 128>}, {pipeline_mode = #tpu.pipeline_mode<synchronous>, transform_indices = @transform_2, window_bounds = array<i64: 1, 128>}, {pipeline_mode = #tpu.pipeline_mode<synchronous>, transform_indices = @transform_3, window_bounds = array<i64: 1, 128>}, {pipeline_mode = #tpu.pipeline_mode<synchronous>, transform_indices = @transform_4, window_bounds = array<i64: 128, 128>}, {pipeline_mode = #tpu.pipeline_mode<synchronous>, transform_indices = @transform_5, window_bounds = array<i64: 32, 128>}, {pipeline_mode = #tpu.pipeline_mode<synchronous>, transform_indices = @transform_6, window_bounds = array<i64: 32, 128>}]} {
    %c0_i32 = arith.constant 0 : i32
    %0 = arith.cmpi eq, %arg0, %c0_i32 : i32
    %1 = arith.extui %0 : i1 to i32
    %c0_i32_0 = arith.constant 0 : i32
    %2 = arith.cmpi ne, %1, %c0_i32_0 : i32
    scf.if %2 {
      %cst_10 = arith.constant 0.000000e+00 : f32
      %12 = vector.broadcast %cst_10 : f32 to vector<32x128xf32>
      %c0_11 = arith.constant 0 : index
      %c0_12 = arith.constant 0 : index
      %13 = vector.load %arg8[%c0_11, %c0_12] : memref<32x128xf32, #tpu.memory_space<vmem>>, vector<32x128xf32>
      tpu.vector_store %arg8[%c0_11, %c0_12], %12 {strides = array<i32>} : memref<32x128xf32, #tpu.memory_space<vmem>>, vector<32x128xf32>,
    } else {
    }
    %c0 = arith.constant 0 : index
    %c0_1 = arith.constant 0 : index
    %3 = vector.load %arg8[%c0, %c0_1] : memref<32x128xf32, #tpu.memory_space<vmem>>, vector<32x128xf32>
    %c0_2 = arith.constant 0 : index
    %c0_3 = arith.constant 0 : index
    %4 = vector.load %arg1[%c0_2, %c0_3] : memref<32x384xbf16, #tpu.memory_space<vmem>>, vector<32x384xbf16>
    %c0_4 = arith.constant 0 : index
    %c0_5 = arith.constant 0 : index
    %5 = vector.load %arg2[%c0_4, %c0_5] : memref<384x128xbf16, #tpu.memory_space<vmem>>, vector<384x128xbf16>
    %cst = arith.constant dense<0.000000e+00> : vector<32x128xf32>
    %6 = tpu.matmul %4, %5, %cst {dimension_numbers = #tpu.dot_dimension_numbers<[1], [0], [0], [1], [0, 0, 1, 1], [], []>} : vector<32x384xbf16>, vector<384x128xbf16>, vector<32x128xf32> -> vector<32x128xf32>
    %7 = arith.addf %3, %6 : vector<32x128xf32>
    %c0_6 = arith.constant 0 : index
    %c0_7 = arith.constant 0 : index
    %8 = vector.load %arg8[%c0_6, %c0_7] : memref<32x128xf32, #tpu.memory_space<vmem>>, vector<32x128xf32>
    tpu.vector_store %arg8[%c0_6, %c0_7], %7 {strides = array<i32>} : memref<32x128xf32, #tpu.memory_space<vmem>>, vector<32x128xf32>,
    %c0_i32_8 = arith.constant 0 : i32
    %9 = arith.cmpi eq, %arg0, %c0_i32_8 : i32
    %10 = arith.extui %9 : i1 to i32
    %c0_i32_9 = arith.constant 0 : i32
    %11 = arith.cmpi ne, %10, %c0_i32_9 : i32
    scf.if %11 {
      %c0_10 = arith.constant 0 : index
      %c0_11 = arith.constant 0 : index
      %12 = vector.load %arg8[%c0_10, %c0_11] : memref<32x128xf32, #tpu.memory_space<vmem>>, vector<32x128xf32>
      %cst_12 = arith.constant dense<0.000000e+00> : vector<128xf32>
      %13 = vector.multi_reduction <add>, %12, %cst_12 [0] : vector<32x128xf32> to vector<128xf32>
      %14 = vector.shape_cast %13 : vector<128xf32> to vector<1x128xf32>
      %c0_13 = arith.constant 0 : index
      %c0_14 = arith.constant 0 : index
      %15 = vector.load %arg5[%c0_13, %c0_14] : memref<128x128xf32, #tpu.memory_space<vmem>>, vector<128x128xf32>
      %cst_15 = arith.constant dense<0.000000e+00> : vector<1x128xf32>
      %16 = tpu.matmul %14, %15, %cst_15 {dimension_numbers = #tpu.dot_dimension_numbers<[1], [0], [0], [1], [0, 0, 1, 1], [], []>} : vector<1x128xf32>, vector<128x128xf32>, vector<1x128xf32> -> vector<1x128xf32>
      %17 = vector.broadcast %16 : vector<1x128xf32> to vector<32x128xf32>
      %18 = arith.subf %12, %17 : vector<32x128xf32>
      %19 = arith.mulf %18, %18 : vector<32x128xf32>
      %cst_16 = arith.constant dense<0.000000e+00> : vector<128xf32>
      %20 = vector.multi_reduction <add>, %19, %cst_16 [0] : vector<32x128xf32> to vector<128xf32>
      %21 = vector.shape_cast %20 : vector<128xf32> to vector<1x128xf32>
      %c0_17 = arith.constant 0 : index
      %c0_18 = arith.constant 0 : index
      %22 = vector.load %arg5[%c0_17, %c0_18] : memref<128x128xf32, #tpu.memory_space<vmem>>, vector<128x128xf32>
      %cst_19 = arith.constant dense<0.000000e+00> : vector<1x128xf32>
      %23 = tpu.matmul %21, %22, %cst_19 {dimension_numbers = #tpu.dot_dimension_numbers<[1], [0], [0], [1], [0, 0, 1, 1], [], []>} : vector<1x128xf32>, vector<128x128xf32>, vector<1x128xf32> -> vector<1x128xf32>
      %cst_20 = arith.constant 9.99999974E-6 : f32
      %24 = vector.broadcast %cst_20 : f32 to vector<1x128xf32>
      %25 = arith.addf %23, %24 : vector<1x128xf32>
      %26 = math.rsqrt %25 : vector<1x128xf32>
      %27 = vector.broadcast %26 : vector<1x128xf32> to vector<32x128xf32>
      %28 = arith.mulf %18, %27 : vector<32x128xf32>
      %c0_21 = arith.constant 0 : index
      %c0_22 = arith.constant 0 : index
      %29 = vector.load %arg3[%c0_21, %c0_22] : memref<1x128xf32, #tpu.memory_space<vmem>>, vector<1x128xf32>
      %30 = vector.broadcast %29 : vector<1x128xf32> to vector<32x128xf32>
      %31 = arith.mulf %28, %30 : vector<32x128xf32>
      %c0_23 = arith.constant 0 : index
      %c0_24 = arith.constant 0 : index
      %32 = vector.load %arg4[%c0_23, %c0_24] : memref<1x128xf32, #tpu.memory_space<vmem>>, vector<1x128xf32>
      %33 = vector.broadcast %32 : vector<1x128xf32> to vector<32x128xf32>
      %34 = arith.addf %31, %33 : vector<32x128xf32>
      %c0_25 = arith.constant 0 : index
      %c0_26 = arith.constant 0 : index
      %35 = vector.load %arg6[%c0_25, %c0_26] : memref<32x128xf32, #tpu.memory_space<vmem>>, vector<32x128xf32>
      %36 = arith.addf %34, %35 : vector<32x128xf32>
      %c0_27 = arith.constant 0 : index
      %c0_28 = arith.constant 0 : index
      %37 = vector.load %arg7[%c0_27, %c0_28] : memref<32x128xf32, #tpu.memory_space<vmem>>, vector<32x128xf32>
      tpu.vector_store %arg7[%c0_27, %c0_28], %36 {strides = array<i32>} : memref<32x128xf32, #tpu.memory_space<vmem>>, vector<32x128xf32>,
    } else {
    }
    return
  }
  func.func @transform_0(%arg0: i32) -> (i32, i32) {
    %c0_i32 = arith.constant 0 : i32
    %c0_i32_0 = arith.constant 0 : i32
    return %c0_i32, %arg0 : i32, i32
  }
  func.func @transform_1(%arg0: i32) -> (i32, i32) {
    %c0_i32 = arith.constant 0 : i32
    %c0_i32_0 = arith.constant 0 : i32
    return %arg0, %c0_i32 : i32, i32
  }
  func.func @transform_2(%arg0: i32) -> (i32, i32) {
    %c0_i32 = arith.constant 0 : i32
    %c0_i32_0 = arith.constant 0 : i32
    %c0_i32_1 = arith.constant 0 : i32
    return %c0_i32, %c0_i32_0 : i32, i32
  }
  func.func @transform_3(%arg0: i32) -> (i32, i32) {
    %c0_i32 = arith.constant 0 : i32
    %c0_i32_0 = arith.constant 0 : i32
    %c0_i32_1 = arith.constant 0 : i32
    return %c0_i32, %c0_i32_0 : i32, i32
  }
  func.func @transform_4(%arg0: i32) -> (i32, i32) {
    %c0_i32 = arith.constant 0 : i32
    %c0_i32_0 = arith.constant 0 : i32
    %c0_i32_1 = arith.constant 0 : i32
    return %c0_i32, %c0_i32_0 : i32, i32
  }
  func.func @transform_5(%arg0: i32) -> (i32, i32) {
    %c0_i32 = arith.constant 0 : i32
    %c0_i32_0 = arith.constant 0 : i32
    %c0_i32_1 = arith.constant 0 : i32
    return %c0_i32, %c0_i32_0 : i32, i32
  }
  func.func @transform_6(%arg0: i32) -> (i32, i32) {
    %c0_i32 = arith.constant 0 : i32
    %c0_i32_0 = arith.constant 0 : i32
    %c0_i32_1 = arith.constant 0 : i32
    return %c0_i32, %c0_i32_0 : i32, i32
  }
}

module attributes {stable_mosaic.version = 11 : i64} {
  func.func @_fused_matmul_bn_act_kernel(%arg0: i32, %arg1: memref<32x384xbf16, #tpu.memory_space<vmem>>, %arg2: memref<384x128xbf16, #tpu.memory_space<vmem>>, %arg3: memref<1x128xf32, #tpu.memory_space<vmem>>, %arg4: memref<1x128xf32, #tpu.memory_space<vmem>>, %arg5: memref<128x128xf32, #tpu.memory_space<vmem>>, %arg6: memref<32x128xf32, #tpu.memory_space<vmem>>, %arg7: memref<32x128xf32, #tpu.memory_space<vmem>>) attributes {dimension_semantics = [#tpu.dimension_semantics<arbitrary>], iteration_bounds = array<i64: 1>, scalar_prefetch = 0 : i64, scratch_operands = 1 : i64, tpu.core_type = #tpu.core_type<tc>, window_params = [{transform_indices = @transform_0, window_bounds = array<i64: 32, 384>}, {transform_indices = @transform_1, window_bounds = array<i64: 384, 128>}, {pipeline_mode = #tpu.pipeline_mode<synchronous>, transform_indices = @transform_2, window_bounds = array<i64: 1, 128>}, {pipeline_mode = #tpu.pipeline_mode<synchronous>, transform_indices = @transform_3, window_bounds = array<i64: 1, 128>}, {pipeline_mode = #tpu.pipeline_mode<synchronous>, transform_indices = @transform_4, window_bounds = array<i64: 128, 128>}, {pipeline_mode = #tpu.pipeline_mode<synchronous>, transform_indices = @transform_5, window_bounds = array<i64: 32, 128>}]} {
    %c0_i32 = arith.constant 0 : i32
    %0 = arith.cmpi eq, %arg0, %c0_i32 : i32
    %1 = arith.extui %0 : i1 to i32
    %c0_i32_0 = arith.constant 0 : i32
    %2 = arith.cmpi ne, %1, %c0_i32_0 : i32
    scf.if %2 {
      %cst_10 = arith.constant 0.000000e+00 : f32
      %12 = vector.broadcast %cst_10 : f32 to vector<32x128xf32>
      %c0_11 = arith.constant 0 : index
      %c0_12 = arith.constant 0 : index
      %13 = vector.load %arg7[%c0_11, %c0_12] : memref<32x128xf32, #tpu.memory_space<vmem>>, vector<32x128xf32>
      tpu.vector_store %arg7[%c0_11, %c0_12], %12 {strides = array<i32>} : memref<32x128xf32, #tpu.memory_space<vmem>>, vector<32x128xf32>,
    } else {
    }
    %c0 = arith.constant 0 : index
    %c0_1 = arith.constant 0 : index
    %3 = vector.load %arg7[%c0, %c0_1] : memref<32x128xf32, #tpu.memory_space<vmem>>, vector<32x128xf32>
    %c0_2 = arith.constant 0 : index
    %c0_3 = arith.constant 0 : index
    %4 = vector.load %arg1[%c0_2, %c0_3] : memref<32x384xbf16, #tpu.memory_space<vmem>>, vector<32x384xbf16>
    %c0_4 = arith.constant 0 : index
    %c0_5 = arith.constant 0 : index
    %5 = vector.load %arg2[%c0_4, %c0_5] : memref<384x128xbf16, #tpu.memory_space<vmem>>, vector<384x128xbf16>
    %cst = arith.constant dense<0.000000e+00> : vector<32x128xf32>
    %6 = tpu.matmul %4, %5, %cst {dimension_numbers = #tpu.dot_dimension_numbers<[1], [0], [0], [1], [0, 0, 1, 1], [], []>} : vector<32x384xbf16>, vector<384x128xbf16>, vector<32x128xf32> -> vector<32x128xf32>
    %7 = arith.addf %3, %6 : vector<32x128xf32>
    %c0_6 = arith.constant 0 : index
    %c0_7 = arith.constant 0 : index
    %8 = vector.load %arg7[%c0_6, %c0_7] : memref<32x128xf32, #tpu.memory_space<vmem>>, vector<32x128xf32>
    tpu.vector_store %arg7[%c0_6, %c0_7], %7 {strides = array<i32>} : memref<32x128xf32, #tpu.memory_space<vmem>>, vector<32x128xf32>,
    %c0_i32_8 = arith.constant 0 : i32
    %9 = arith.cmpi eq, %arg0, %c0_i32_8 : i32
    %10 = arith.extui %9 : i1 to i32
    %c0_i32_9 = arith.constant 0 : i32
    %11 = arith.cmpi ne, %10, %c0_i32_9 : i32
    scf.if %11 {
      %c0_10 = arith.constant 0 : index
      %c0_11 = arith.constant 0 : index
      %12 = vector.load %arg7[%c0_10, %c0_11] : memref<32x128xf32, #tpu.memory_space<vmem>>, vector<32x128xf32>
      %cst_12 = arith.constant dense<0.000000e+00> : vector<128xf32>
      %13 = vector.multi_reduction <add>, %12, %cst_12 [0] : vector<32x128xf32> to vector<128xf32>
      %14 = vector.shape_cast %13 : vector<128xf32> to vector<1x128xf32>
      %c0_13 = arith.constant 0 : index
      %c0_14 = arith.constant 0 : index
      %15 = vector.load %arg5[%c0_13, %c0_14] : memref<128x128xf32, #tpu.memory_space<vmem>>, vector<128x128xf32>
      %cst_15 = arith.constant dense<0.000000e+00> : vector<1x128xf32>
      %16 = tpu.matmul %14, %15, %cst_15 {dimension_numbers = #tpu.dot_dimension_numbers<[1], [0], [0], [1], [0, 0, 1, 1], [], []>} : vector<1x128xf32>, vector<128x128xf32>, vector<1x128xf32> -> vector<1x128xf32>
      %17 = vector.broadcast %16 : vector<1x128xf32> to vector<32x128xf32>
      %18 = arith.subf %12, %17 : vector<32x128xf32>
      %19 = arith.mulf %18, %18 : vector<32x128xf32>
      %cst_16 = arith.constant dense<0.000000e+00> : vector<128xf32>
      %20 = vector.multi_reduction <add>, %19, %cst_16 [0] : vector<32x128xf32> to vector<128xf32>
      %21 = vector.shape_cast %20 : vector<128xf32> to vector<1x128xf32>
      %c0_17 = arith.constant 0 : index
      %c0_18 = arith.constant 0 : index
      %22 = vector.load %arg5[%c0_17, %c0_18] : memref<128x128xf32, #tpu.memory_space<vmem>>, vector<128x128xf32>
      %cst_19 = arith.constant dense<0.000000e+00> : vector<1x128xf32>
      %23 = tpu.matmul %21, %22, %cst_19 {dimension_numbers = #tpu.dot_dimension_numbers<[1], [0], [0], [1], [0, 0, 1, 1], [], []>} : vector<1x128xf32>, vector<128x128xf32>, vector<1x128xf32> -> vector<1x128xf32>
      %cst_20 = arith.constant 9.99999974E-6 : f32
      %24 = vector.broadcast %cst_20 : f32 to vector<1x128xf32>
      %25 = arith.addf %23, %24 : vector<1x128xf32>
      %26 = math.rsqrt %25 : vector<1x128xf32>
      %27 = vector.broadcast %26 : vector<1x128xf32> to vector<32x128xf32>
      %28 = arith.mulf %18, %27 : vector<32x128xf32>
      %c0_21 = arith.constant 0 : index
      %c0_22 = arith.constant 0 : index
      %29 = vector.load %arg3[%c0_21, %c0_22] : memref<1x128xf32, #tpu.memory_space<vmem>>, vector<1x128xf32>
      %30 = vector.broadcast %29 : vector<1x128xf32> to vector<32x128xf32>
      %31 = arith.mulf %28, %30 : vector<32x128xf32>
      %c0_23 = arith.constant 0 : index
      %c0_24 = arith.constant 0 : index
      %32 = vector.load %arg4[%c0_23, %c0_24] : memref<1x128xf32, #tpu.memory_space<vmem>>, vector<1x128xf32>
      %33 = vector.broadcast %32 : vector<1x128xf32> to vector<32x128xf32>
      %34 = arith.addf %31, %33 : vector<32x128xf32>
      %cst_25 = arith.constant 0.000000e+00 : f32
      %35 = vector.broadcast %cst_25 : f32 to vector<32x128xf32>
      %36 = arith.maximumf %34, %35 : vector<32x128xf32>
      %c0_26 = arith.constant 0 : index
      %c0_27 = arith.constant 0 : index
      %37 = vector.load %arg6[%c0_26, %c0_27] : memref<32x128xf32, #tpu.memory_space<vmem>>, vector<32x128xf32>
      tpu.vector_store %arg6[%c0_26, %c0_27], %36 {strides = array<i32>} : memref<32x128xf32, #tpu.memory_space<vmem>>, vector<32x128xf32>,
    } else {
    }
    return
  }
  func.func @transform_0(%arg0: i32) -> (i32, i32) {
    %c0_i32 = arith.constant 0 : i32
    %c0_i32_0 = arith.constant 0 : i32
    return %c0_i32, %arg0 : i32, i32
  }
  func.func @transform_1(%arg0: i32) -> (i32, i32) {
    %c0_i32 = arith.constant 0 : i32
    %c0_i32_0 = arith.constant 0 : i32
    return %arg0, %c0_i32 : i32, i32
  }
  func.func @transform_2(%arg0: i32) -> (i32, i32) {
    %c0_i32 = arith.constant 0 : i32
    %c0_i32_0 = arith.constant 0 : i32
    %c0_i32_1 = arith.constant 0 : i32
    return %c0_i32, %c0_i32_0 : i32, i32
  }
  func.func @transform_3(%arg0: i32) -> (i32, i32) {
    %c0_i32 = arith.constant 0 : i32
    %c0_i32_0 = arith.constant 0 : i32
    %c0_i32_1 = arith.constant 0 : i32
    return %c0_i32, %c0_i32_0 : i32, i32
  }
  func.func @transform_4(%arg0: i32) -> (i32, i32) {
    %c0_i32 = arith.constant 0 : i32
    %c0_i32_0 = arith.constant 0 : i32
    %c0_i32_1 = arith.constant 0 : i32
    return %c0_i32, %c0_i32_0 : i32, i32
  }
  func.func @transform_5(%arg0: i32) -> (i32, i32) {
    %c0_i32 = arith.constant 0 : i32
    %c0_i32_0 = arith.constant 0 : i32
    %c0_i32_1 = arith.constant 0 : i32
    return %c0_i32, %c0_i32_0 : i32, i32
  }
}

module attributes {stable_mosaic.version = 11 : i64} {
  func.func @_memory_kernel(%arg0: i32, %arg1: memref<2x16x32xf32, #tpu.memory_space<vmem>>, %arg2: memref<2x128x32xf32, #tpu.memory_space<vmem>>, %arg3: memref<2x16x128xf32, #tpu.memory_space<vmem>>, %arg4: memref<2x16x128xf32, #tpu.memory_space<vmem>>, %arg5: memref<2x16x32xf32, #tpu.memory_space<vmem>>) attributes {dimension_semantics = [#tpu.dimension_semantics<arbitrary>], iteration_bounds = array<i64: 1>, scalar_prefetch = 0 : i64, scratch_operands = 0 : i64, tpu.core_type = #tpu.core_type<tc>, window_params = [{pipeline_mode = #tpu.pipeline_mode<synchronous>, transform_indices = @transform_0, window_bounds = array<i64: 2, 16, 32>}, {pipeline_mode = #tpu.pipeline_mode<synchronous>, transform_indices = @transform_1, window_bounds = array<i64: 2, 128, 32>}, {pipeline_mode = #tpu.pipeline_mode<synchronous>, transform_indices = @transform_2, window_bounds = array<i64: 2, 16, 128>}, {pipeline_mode = #tpu.pipeline_mode<synchronous>, transform_indices = @transform_3, window_bounds = array<i64: 2, 16, 128>}, {pipeline_mode = #tpu.pipeline_mode<synchronous>, transform_indices = @transform_4, window_bounds = array<i64: 2, 16, 32>}]} {
    %c0 = arith.constant 0 : index
    %c0_0 = arith.constant 0 : index
    %c0_1 = arith.constant 0 : index
    %0 = vector.load %arg1[%c0, %c0_0, %c0_1] : memref<2x16x32xf32, #tpu.memory_space<vmem>>, vector<2x16x32xf32>
    %c0_2 = arith.constant 0 : index
    %c0_3 = arith.constant 0 : index
    %c0_4 = arith.constant 0 : index
    %1 = vector.load %arg2[%c0_2, %c0_3, %c0_4] : memref<2x128x32xf32, #tpu.memory_space<vmem>>, vector<2x128x32xf32>
    %2 = arith.truncf %0 : vector<2x16x32xf32> to vector<2x16x32xbf16>
    %3 = arith.truncf %1 : vector<2x128x32xf32> to vector<2x128x32xbf16>
    "tpu.trace_start"() <{level = 10 : i32, message = "nhc,nmc->nhm"}> : () -> ()
    %cst = arith.constant dense<0.000000e+00> : vector<2x16x128xf32>
    %4 = tpu.matmul %2, %3, %cst {dimension_numbers = #tpu.dot_dimension_numbers<[2], [2], [1], [1], [0, 0, 0, 1, 1, 1], [0], [0]>} : vector<2x16x32xbf16>, vector<2x128x32xbf16>, vector<2x16x128xf32> -> vector<2x16x128xf32>
    "tpu.trace_stop"() : () -> ()
    %5 = arith.mulf %0, %0 : vector<2x16x32xf32>
    %cst_5 = arith.constant dense<0.000000e+00> : vector<2x16xf32>
    %6 = vector.multi_reduction <add>, %5, %cst_5 [2] : vector<2x16x32xf32> to vector<2x16xf32>
    %7 = vector.shape_cast %6 : vector<2x16xf32> to vector<2x16x1xf32>
    %8 = arith.mulf %1, %1 : vector<2x128x32xf32>
    %cst_6 = arith.constant dense<0.000000e+00> : vector<2x128xf32>
    %9 = vector.multi_reduction <add>, %8, %cst_6 [2] : vector<2x128x32xf32> to vector<2x128xf32>
    %10 = vector.shape_cast %9 : vector<2x128xf32> to vector<2x1x128xf32>
    %cst_7 = arith.constant 2.000000e+00 : f32
    %11 = vector.broadcast %cst_7 : f32 to vector<2x16x128xf32>
    %12 = arith.mulf %11, %4 : vector<2x16x128xf32>
    %13 = vector.broadcast %7 : vector<2x16x1xf32> to vector<2x16x128xf32>
    %14 = arith.subf %12, %13 : vector<2x16x128xf32>
    %15 = vector.broadcast %10 : vector<2x1x128xf32> to vector<2x16x128xf32>
    %16 = arith.subf %14, %15 : vector<2x16x128xf32>
    %cst_8 = arith.constant dense<0xFF800000> : vector<2x16xf32>
    %17 = vector.multi_reduction <maximumf>, %16, %cst_8 [2] : vector<2x16x128xf32> to vector<2x16xf32>
    %18 = vector.shape_cast %17 : vector<2x16xf32> to vector<2x16x1xf32>
    %19 = vector.broadcast %18 : vector<2x16x1xf32> to vector<2x16x128xf32>
    %20 = arith.subf %16, %19 : vector<2x16x128xf32>
    %21 = math.exp %20 : vector<2x16x128xf32>
    %cst_9 = arith.constant dense<0.000000e+00> : vector<2x16xf32>
    %22 = vector.multi_reduction <add>, %21, %cst_9 [2] : vector<2x16x128xf32> to vector<2x16xf32>
    %23 = vector.shape_cast %22 : vector<2x16xf32> to vector<2x16x1xf32>
    %24 = vector.broadcast %23 : vector<2x16x1xf32> to vector<2x16x128xf32>
    %25 = arith.divf %21, %24 : vector<2x16x128xf32>
    %c0_10 = arith.constant 0 : index
    %c0_11 = arith.constant 0 : index
    %c0_12 = arith.constant 0 : index
    %26 = vector.load %arg3[%c0_10, %c0_11, %c0_12] : memref<2x16x128xf32, #tpu.memory_space<vmem>>, vector<2x16x128xf32>
    tpu.vector_store %arg3[%c0_10, %c0_11, %c0_12], %25 {strides = array<i32>} : memref<2x16x128xf32, #tpu.memory_space<vmem>>, vector<2x16x128xf32>,
    %27 = vector.broadcast %18 : vector<2x16x1xf32> to vector<2x16x128xf32>
    %28 = arith.subf %16, %27 : vector<2x16x128xf32>
    %29 = math.log %23 : vector<2x16x1xf32>
    %30 = vector.broadcast %29 : vector<2x16x1xf32> to vector<2x16x128xf32>
    %31 = arith.subf %28, %30 : vector<2x16x128xf32>
    %c0_13 = arith.constant 0 : index
    %c0_14 = arith.constant 0 : index
    %c0_15 = arith.constant 0 : index
    %32 = vector.load %arg4[%c0_13, %c0_14, %c0_15] : memref<2x16x128xf32, #tpu.memory_space<vmem>>, vector<2x16x128xf32>
    tpu.vector_store %arg4[%c0_13, %c0_14, %c0_15], %31 {strides = array<i32>} : memref<2x16x128xf32, #tpu.memory_space<vmem>>, vector<2x16x128xf32>,
    %33 = arith.truncf %25 : vector<2x16x128xf32> to vector<2x16x128xbf16>
    "tpu.trace_start"() <{level = 10 : i32, message = "nhm,nmc->nhc"}> : () -> ()
    %cst_16 = arith.constant dense<0.000000e+00> : vector<2x16x32xf32>
    %34 = tpu.matmul %33, %3, %cst_16 {dimension_numbers = #tpu.dot_dimension_numbers<[2], [1], [1], [2], [0, 0, 0, 1, 1, 2], [0], [0]>} : vector<2x16x128xbf16>, vector<2x128x32xbf16>, vector<2x16x32xf32> -> vector<2x16x32xf32>
    "tpu.trace_stop"() : () -> ()
    %c0_17 = arith.constant 0 : index
    %c0_18 = arith.constant 0 : index
    %c0_19 = arith.constant 0 : index
    %35 = vector.load %arg5[%c0_17, %c0_18, %c0_19] : memref<2x16x32xf32, #tpu.memory_space<vmem>>, vector<2x16x32xf32>
    tpu.vector_store %arg5[%c0_17, %c0_18, %c0_19], %34 {strides = array<i32>} : memref<2x16x32xf32, #tpu.memory_space<vmem>>, vector<2x16x32xf32>,
    return
  }
  func.func @transform_0(%arg0: i32) -> (i32, i32, i32) {
    %c0_i32 = arith.constant 0 : i32
    %c0_i32_0 = arith.constant 0 : i32
    %c0_i32_1 = arith.constant 0 : i32
    %c0_i32_2 = arith.constant 0 : i32
    return %c0_i32, %c0_i32_0, %c0_i32_1 : i32, i32, i32
  }
  func.func @transform_1(%arg0: i32) -> (i32, i32, i32) {
    %c0_i32 = arith.constant 0 : i32
    %c0_i32_0 = arith.constant 0 : i32
    %c0_i32_1 = arith.constant 0 : i32
    %c0_i32_2 = arith.constant 0 : i32
    return %c0_i32, %c0_i32_0, %c0_i32_1 : i32, i32, i32
  }
  func.func @transform_2(%arg0: i32) -> (i32, i32, i32) {
    %c0_i32 = arith.constant 0 : i32
    %c0_i32_0 = arith.constant 0 : i32
    %c0_i32_1 = arith.constant 0 : i32
    %c0_i32_2 = arith.constant 0 : i32
    return %c0_i32, %c0_i32_0, %c0_i32_1 : i32, i32, i32
  }
  func.func @transform_3(%arg0: i32) -> (i32, i32, i32) {
    %c0_i32 = arith.constant 0 : i32
    %c0_i32_0 = arith.constant 0 : i32
    %c0_i32_1 = arith.constant 0 : i32
    %c0_i32_2 = arith.constant 0 : i32
    return %c0_i32, %c0_i32_0, %c0_i32_1 : i32, i32, i32
  }
  func.func @transform_4(%arg0: i32) -> (i32, i32, i32) {
    %c0_i32 = arith.constant 0 : i32
    %c0_i32_0 = arith.constant 0 : i32
    %c0_i32_1 = arith.constant 0 : i32
    %c0_i32_2 = arith.constant 0 : i32
    return %c0_i32, %c0_i32_0, %c0_i32_1 : i32, i32, i32
  }
}

module attributes {stable_mosaic.version = 11 : i64} {
  func.func @_fused_matmul_bn_act_kernel(%arg0: i32, %arg1: memref<128x256xbf16, #tpu.memory_space<vmem>>, %arg2: memref<256x128xbf16, #tpu.memory_space<vmem>>, %arg3: memref<1x128xf32, #tpu.memory_space<vmem>>, %arg4: memref<1x128xf32, #tpu.memory_space<vmem>>, %arg5: memref<128x128xf32, #tpu.memory_space<vmem>>, %arg6: memref<128x128xf32, #tpu.memory_space<vmem>>, %arg7: memref<128x128xf32, #tpu.memory_space<vmem>>) attributes {dimension_semantics = [#tpu.dimension_semantics<arbitrary>], iteration_bounds = array<i64: 1>, scalar_prefetch = 0 : i64, scratch_operands = 1 : i64, tpu.core_type = #tpu.core_type<tc>, window_params = [{transform_indices = @transform_0, window_bounds = array<i64: 128, 256>}, {transform_indices = @transform_1, window_bounds = array<i64: 256, 128>}, {pipeline_mode = #tpu.pipeline_mode<synchronous>, transform_indices = @transform_2, window_bounds = array<i64: 1, 128>}, {pipeline_mode = #tpu.pipeline_mode<synchronous>, transform_indices = @transform_3, window_bounds = array<i64: 1, 128>}, {pipeline_mode = #tpu.pipeline_mode<synchronous>, transform_indices = @transform_4, window_bounds = array<i64: 128, 128>}, {pipeline_mode = #tpu.pipeline_mode<synchronous>, transform_indices = @transform_5, window_bounds = array<i64: 128, 128>}]} {
    %c0_i32 = arith.constant 0 : i32
    %0 = arith.cmpi eq, %arg0, %c0_i32 : i32
    %1 = arith.extui %0 : i1 to i32
    %c0_i32_0 = arith.constant 0 : i32
    %2 = arith.cmpi ne, %1, %c0_i32_0 : i32
    scf.if %2 {
      %cst_10 = arith.constant 0.000000e+00 : f32
      %12 = vector.broadcast %cst_10 : f32 to vector<128x128xf32>
      %c0_11 = arith.constant 0 : index
      %c0_12 = arith.constant 0 : index
      %13 = vector.load %arg7[%c0_11, %c0_12] : memref<128x128xf32, #tpu.memory_space<vmem>>, vector<128x128xf32>
      tpu.vector_store %arg7[%c0_11, %c0_12], %12 {strides = array<i32>} : memref<128x128xf32, #tpu.memory_space<vmem>>, vector<128x128xf32>,
    } else {
    }
    %c0 = arith.constant 0 : index
    %c0_1 = arith.constant 0 : index
    %3 = vector.load %arg7[%c0, %c0_1] : memref<128x128xf32, #tpu.memory_space<vmem>>, vector<128x128xf32>
    %c0_2 = arith.constant 0 : index
    %c0_3 = arith.constant 0 : index
    %4 = vector.load %arg1[%c0_2, %c0_3] : memref<128x256xbf16, #tpu.memory_space<vmem>>, vector<128x256xbf16>
    %c0_4 = arith.constant 0 : index
    %c0_5 = arith.constant 0 : index
    %5 = vector.load %arg2[%c0_4, %c0_5] : memref<256x128xbf16, #tpu.memory_space<vmem>>, vector<256x128xbf16>
    %cst = arith.constant dense<0.000000e+00> : vector<128x128xf32>
    %6 = tpu.matmul %4, %5, %cst {dimension_numbers = #tpu.dot_dimension_numbers<[1], [0], [0], [1], [0, 0, 1, 1], [], []>} : vector<128x256xbf16>, vector<256x128xbf16>, vector<128x128xf32> -> vector<128x128xf32>
    %7 = arith.addf %3, %6 : vector<128x128xf32>
    %c0_6 = arith.constant 0 : index
    %c0_7 = arith.constant 0 : index
    %8 = vector.load %arg7[%c0_6, %c0_7] : memref<128x128xf32, #tpu.memory_space<vmem>>, vector<128x128xf32>
    tpu.vector_store %arg7[%c0_6, %c0_7], %7 {strides = array<i32>} : memref<128x128xf32, #tpu.memory_space<vmem>>, vector<128x128xf32>,
    %c0_i32_8 = arith.constant 0 : i32
    %9 = arith.cmpi eq, %arg0, %c0_i32_8 : i32
    %10 = arith.extui %9 : i1 to i32
    %c0_i32_9 = arith.constant 0 : i32
    %11 = arith.cmpi ne, %10, %c0_i32_9 : i32
    scf.if %11 {
      %c0_10 = arith.constant 0 : index
      %c0_11 = arith.constant 0 : index
      %12 = vector.load %arg7[%c0_10, %c0_11] : memref<128x128xf32, #tpu.memory_space<vmem>>, vector<128x128xf32>
      %cst_12 = arith.constant dense<0.000000e+00> : vector<128xf32>
      %13 = vector.multi_reduction <add>, %12, %cst_12 [0] : vector<128x128xf32> to vector<128xf32>
      %14 = vector.shape_cast %13 : vector<128xf32> to vector<1x128xf32>
      %c0_13 = arith.constant 0 : index
      %c0_14 = arith.constant 0 : index
      %15 = vector.load %arg5[%c0_13, %c0_14] : memref<128x128xf32, #tpu.memory_space<vmem>>, vector<128x128xf32>
      %cst_15 = arith.constant dense<0.000000e+00> : vector<1x128xf32>
      %16 = tpu.matmul %14, %15, %cst_15 {dimension_numbers = #tpu.dot_dimension_numbers<[1], [0], [0], [1], [0, 0, 1, 1], [], []>} : vector<1x128xf32>, vector<128x128xf32>, vector<1x128xf32> -> vector<1x128xf32>
      %17 = vector.broadcast %16 : vector<1x128xf32> to vector<128x128xf32>
      %18 = arith.subf %12, %17 : vector<128x128xf32>
      %19 = arith.mulf %18, %18 : vector<128x128xf32>
      %cst_16 = arith.constant dense<0.000000e+00> : vector<128xf32>
      %20 = vector.multi_reduction <add>, %19, %cst_16 [0] : vector<128x128xf32> to vector<128xf32>
      %21 = vector.shape_cast %20 : vector<128xf32> to vector<1x128xf32>
      %c0_17 = arith.constant 0 : index
      %c0_18 = arith.constant 0 : index
      %22 = vector.load %arg5[%c0_17, %c0_18] : memref<128x128xf32, #tpu.memory_space<vmem>>, vector<128x128xf32>
      %cst_19 = arith.constant dense<0.000000e+00> : vector<1x128xf32>
      %23 = tpu.matmul %21, %22, %cst_19 {dimension_numbers = #tpu.dot_dimension_numbers<[1], [0], [0], [1], [0, 0, 1, 1], [], []>} : vector<1x128xf32>, vector<128x128xf32>, vector<1x128xf32> -> vector<1x128xf32>
      %cst_20 = arith.constant 9.99999974E-6 : f32
      %24 = vector.broadcast %cst_20 : f32 to vector<1x128xf32>
      %25 = arith.addf %23, %24 : vector<1x128xf32>
      %26 = math.rsqrt %25 : vector<1x128xf32>
      %27 = vector.broadcast %26 : vector<1x128xf32> to vector<128x128xf32>
      %28 = arith.mulf %18, %27 : vector<128x128xf32>
      %c0_21 = arith.constant 0 : index
      %c0_22 = arith.constant 0 : index
      %29 = vector.load %arg3[%c0_21, %c0_22] : memref<1x128xf32, #tpu.memory_space<vmem>>, vector<1x128xf32>
      %30 = vector.broadcast %29 : vector<1x128xf32> to vector<128x128xf32>
      %31 = arith.mulf %28, %30 : vector<128x128xf32>
      %c0_23 = arith.constant 0 : index
      %c0_24 = arith.constant 0 : index
      %32 = vector.load %arg4[%c0_23, %c0_24] : memref<1x128xf32, #tpu.memory_space<vmem>>, vector<1x128xf32>
      %33 = vector.broadcast %32 : vector<1x128xf32> to vector<128x128xf32>
      %34 = arith.addf %31, %33 : vector<128x128xf32>
      %cst_25 = arith.constant 0.000000e+00 : f32
      %35 = vector.broadcast %cst_25 : f32 to vector<128x128xf32>
      %36 = arith.maximumf %34, %35 : vector<128x128xf32>
      %c0_26 = arith.constant 0 : index
      %c0_27 = arith.constant 0 : index
      %37 = vector.load %arg6[%c0_26, %c0_27] : memref<128x128xf32, #tpu.memory_space<vmem>>, vector<128x128xf32>
      tpu.vector_store %arg6[%c0_26, %c0_27], %36 {strides = array<i32>} : memref<128x128xf32, #tpu.memory_space<vmem>>, vector<128x128xf32>,
    } else {
    }
    return
  }
  func.func @transform_0(%arg0: i32) -> (i32, i32) {
    %c0_i32 = arith.constant 0 : i32
    %c0_i32_0 = arith.constant 0 : i32
    return %c0_i32, %arg0 : i32, i32
  }
  func.func @transform_1(%arg0: i32) -> (i32, i32) {
    %c0_i32 = arith.constant 0 : i32
    %c0_i32_0 = arith.constant 0 : i32
    return %arg0, %c0_i32 : i32, i32
  }
  func.func @transform_2(%arg0: i32) -> (i32, i32) {
    %c0_i32 = arith.constant 0 : i32
    %c0_i32_0 = arith.constant 0 : i32
    %c0_i32_1 = arith.constant 0 : i32
    return %c0_i32, %c0_i32_0 : i32, i32
  }
  func.func @transform_3(%arg0: i32) -> (i32, i32) {
    %c0_i32 = arith.constant 0 : i32
    %c0_i32_0 = arith.constant 0 : i32
    %c0_i32_1 = arith.constant 0 : i32
    return %c0_i32, %c0_i32_0 : i32, i32
  }
  func.func @transform_4(%arg0: i32) -> (i32, i32) {
    %c0_i32 = arith.constant 0 : i32
    %c0_i32_0 = arith.constant 0 : i32
    %c0_i32_1 = arith.constant 0 : i32
    return %c0_i32, %c0_i32_0 : i32, i32
  }
  func.func @transform_5(%arg0: i32) -> (i32, i32) {
    %c0_i32 = arith.constant 0 : i32
    %c0_i32_0 = arith.constant 0 : i32
    %c0_i32_1 = arith.constant 0 : i32
    return %c0_i32, %c0_i32_0 : i32, i32
  }
}

module attributes {stable_mosaic.version = 11 : i64} {
  func.func @_fused_matmul_bn_act_kernel(%arg0: i32, %arg1: memref<512x512xbf16, #tpu.memory_space<vmem>>, %arg2: memref<512x128xbf16, #tpu.memory_space<vmem>>, %arg3: memref<1x128xf32, #tpu.memory_space<vmem>>, %arg4: memref<1x128xf32, #tpu.memory_space<vmem>>, %arg5: memref<128x128xf32, #tpu.memory_space<vmem>>, %arg6: memref<512x128xf32, #tpu.memory_space<vmem>>, %arg7: memref<512x128xf32, #tpu.memory_space<vmem>>) attributes {dimension_semantics = [#tpu.dimension_semantics<arbitrary>], iteration_bounds = array<i64: 1>, scalar_prefetch = 0 : i64, scratch_operands = 1 : i64, tpu.core_type = #tpu.core_type<tc>, window_params = [{transform_indices = @transform_0, window_bounds = array<i64: 512, 512>}, {transform_indices = @transform_1, window_bounds = array<i64: 512, 128>}, {pipeline_mode = #tpu.pipeline_mode<synchronous>, transform_indices = @transform_2, window_bounds = array<i64: 1, 128>}, {pipeline_mode = #tpu.pipeline_mode<synchronous>, transform_indices = @transform_3, window_bounds = array<i64: 1, 128>}, {pipeline_mode = #tpu.pipeline_mode<synchronous>, transform_indices = @transform_4, window_bounds = array<i64: 128, 128>}, {pipeline_mode = #tpu.pipeline_mode<synchronous>, transform_indices = @transform_5, window_bounds = array<i64: 512, 128>}]} {
    %c0_i32 = arith.constant 0 : i32
    %0 = arith.cmpi eq, %arg0, %c0_i32 : i32
    %1 = arith.extui %0 : i1 to i32
    %c0_i32_0 = arith.constant 0 : i32
    %2 = arith.cmpi ne, %1, %c0_i32_0 : i32
    scf.if %2 {
      %cst_10 = arith.constant 0.000000e+00 : f32
      %12 = vector.broadcast %cst_10 : f32 to vector<512x128xf32>
      %c0_11 = arith.constant 0 : index
      %c0_12 = arith.constant 0 : index
      %13 = vector.load %arg7[%c0_11, %c0_12] : memref<512x128xf32, #tpu.memory_space<vmem>>, vector<512x128xf32>
      tpu.vector_store %arg7[%c0_11, %c0_12], %12 {strides = array<i32>} : memref<512x128xf32, #tpu.memory_space<vmem>>, vector<512x128xf32>,
    } else {
    }
    %c0 = arith.constant 0 : index
    %c0_1 = arith.constant 0 : index
    %3 = vector.load %arg7[%c0, %c0_1] : memref<512x128xf32, #tpu.memory_space<vmem>>, vector<512x128xf32>
    %c0_2 = arith.constant 0 : index
    %c0_3 = arith.constant 0 : index
    %4 = vector.load %arg1[%c0_2, %c0_3] : memref<512x512xbf16, #tpu.memory_space<vmem>>, vector<512x512xbf16>
    %c0_4 = arith.constant 0 : index
    %c0_5 = arith.constant 0 : index
    %5 = vector.load %arg2[%c0_4, %c0_5] : memref<512x128xbf16, #tpu.memory_space<vmem>>, vector<512x128xbf16>
    %cst = arith.constant dense<0.000000e+00> : vector<512x128xf32>
    %6 = tpu.matmul %4, %5, %cst {dimension_numbers = #tpu.dot_dimension_numbers<[1], [0], [0], [1], [0, 0, 1, 1], [], []>} : vector<512x512xbf16>, vector<512x128xbf16>, vector<512x128xf32> -> vector<512x128xf32>
    %7 = arith.addf %3, %6 : vector<512x128xf32>
    %c0_6 = arith.constant 0 : index
    %c0_7 = arith.constant 0 : index
    %8 = vector.load %arg7[%c0_6, %c0_7] : memref<512x128xf32, #tpu.memory_space<vmem>>, vector<512x128xf32>
    tpu.vector_store %arg7[%c0_6, %c0_7], %7 {strides = array<i32>} : memref<512x128xf32, #tpu.memory_space<vmem>>, vector<512x128xf32>,
    %c0_i32_8 = arith.constant 0 : i32
    %9 = arith.cmpi eq, %arg0, %c0_i32_8 : i32
    %10 = arith.extui %9 : i1 to i32
    %c0_i32_9 = arith.constant 0 : i32
    %11 = arith.cmpi ne, %10, %c0_i32_9 : i32
    scf.if %11 {
      %c0_10 = arith.constant 0 : index
      %c0_11 = arith.constant 0 : index
      %12 = vector.load %arg7[%c0_10, %c0_11] : memref<512x128xf32, #tpu.memory_space<vmem>>, vector<512x128xf32>
      %13 = math.tanh %12 : vector<512x128xf32>
      %c0_12 = arith.constant 0 : index
      %c0_13 = arith.constant 0 : index
      %14 = vector.load %arg6[%c0_12, %c0_13] : memref<512x128xf32, #tpu.memory_space<vmem>>, vector<512x128xf32>
      tpu.vector_store %arg6[%c0_12, %c0_13], %13 {strides = array<i32>} : memref<512x128xf32, #tpu.memory_space<vmem>>, vector<512x128xf32>,
    } else {
    }
    return
  }
  func.func @transform_0(%arg0: i32) -> (i32, i32) {
    %c0_i32 = arith.constant 0 : i32
    %c0_i32_0 = arith.constant 0 : i32
    return %c0_i32, %arg0 : i32, i32
  }
  func.func @transform_1(%arg0: i32) -> (i32, i32) {
    %c0_i32 = arith.constant 0 : i32
    %c0_i32_0 = arith.constant 0 : i32
    return %arg0, %c0_i32 : i32, i32
  }
  func.func @transform_2(%arg0: i32) -> (i32, i32) {
    %c0_i32 = arith.constant 0 : i32
    %c0_i32_0 = arith.constant 0 : i32
    %c0_i32_1 = arith.constant 0 : i32
    return %c0_i32, %c0_i32_0 : i32, i32
  }
  func.func @transform_3(%arg0: i32) -> (i32, i32) {
    %c0_i32 = arith.constant 0 : i32
    %c0_i32_0 = arith.constant 0 : i32
    %c0_i32_1 = arith.constant 0 : i32
    return %c0_i32, %c0_i32_0 : i32, i32
  }
  func.func @transform_4(%arg0: i32) -> (i32, i32) {
    %c0_i32 = arith.constant 0 : i32
    %c0_i32_0 = arith.constant 0 : i32
    %c0_i32_1 = arith.constant 0 : i32
    return %c0_i32, %c0_i32_0 : i32, i32
  }
  func.func @transform_5(%arg0: i32) -> (i32, i32) {
    %c0_i32 = arith.constant 0 : i32
    %c0_i32_0 = arith.constant 0 : i32
    %c0_i32_1 = arith.constant 0 : i32
    return %c0_i32, %c0_i32_0 : i32, i32
  }
}

</mosaic_0001>

<llo_original>
// kernel: generator_forward.19
$region0: #{generator_forward.19}
  #allocation0 [shape = 'u32[]', space=smem, size = 0x4, offset = 0x4, fixed_abs, tag = 'smem constant byte address 0x4 - core index']
  #allocation1 [shape = 'u32[144,128]{1,0:T(1,128)}', space=vmem, size = 0x12000, scoped, tag = 'internal scratch']
  #allocation2 [shape = 'f32[512,128]{1,0:T(8,128)}', space=vmem, size = 0x40000, scoped, tag = 'scratch operand']
  %s0 = inlined_call_operand.vmem [shape: bf16[512,128], index: 0, kind: input, shape index: {}]
  %s1 = inlined_call_operand.vmem [shape: bf16[128,128], index: 1, kind: input, shape index: {}]
  %s2 = inlined_call_operand.vmem [shape: f32[1,128], index: 2, kind: input, shape index: {}]
  %s3 = inlined_call_operand.vmem [shape: f32[1,128], index: 3, kind: input, shape index: {}]
  %s4 = inlined_call_operand.vmem [shape: f32[128,128], index: 4, kind: input, shape index: {}]
  %s5 = inlined_call_operand.vmem [shape: f32[512,128], index: 5, kind: output, shape index: {}]
  %s6 = sld [smem:[#allocation0]]
  $region38: #{generator_forward.19} parent=0
    _
  %s8 = ssub.s32 1, %s6
  %s9 = scalar_select 0, %s8, %s6
  // Predicated region
  $region2: #{generator_forward.19} parent=0 // pred_check
    _
  $region3: #{generator_forward.19} parent=0 // pred_check_branch
    %11 = sbr.rel (0) target = $region5
  $region4: #{generator_forward.19} parent=0 // pred_region
    _
  $region5: #{generator_forward.19} parent=0 // pred_fallthru
    _
  // Predicated region
  $region6: #{generator_forward.19} parent=0 // pred_check
    _
  $region7: #{generator_forward.19} parent=0 // pred_check_branch
    %13 = sbr.rel (0) target = $region9
  $region8: #{generator_forward.19} parent=0 // pred_region
    _
  $region9: #{generator_forward.19} parent=0 // pred_fallthru
    _
  // Predicated region
  $region10: #{generator_forward.19} parent=0 // pred_check
    _
  $region11: #{generator_forward.19} parent=0 // pred_check_branch
    %15 = sbr.rel (0) target = $region13
  $region12: #{generator_forward.19} parent=0 // pred_region
    _
  $region13: #{generator_forward.19} parent=0 // pred_fallthru
    _
  // Predicated region
  $region14: #{generator_forward.19} parent=0 // pred_check
    _
  $region15: #{generator_forward.19} parent=0 // pred_check_branch
    %17 = sbr.rel (0) target = $region17
  $region16: #{generator_forward.19} parent=0 // pred_region
    _
  $region17: #{generator_forward.19} parent=0 // pred_fallthru
    _
  // Predicated region
  $region18: #{generator_forward.19} parent=0 // pred_check
    _
  $region19: #{generator_forward.19} parent=0 // pred_check_branch
    %19 = sbr.rel (0) target = $region21
  $region20: #{generator_forward.19} parent=0 // pred_region
    _
  $region21: #{generator_forward.19} parent=0 // pred_fallthru
    _
  %p21 = scmp.eq.s32.totalorder 0, 0
  // Predicated region
  $region22: #{generator_forward.19} parent=0 // pred_check
    %p22 = pneg %p21
  $region23: #{generator_forward.19} parent=0 // pred_check_branch
    %24 = sbr.rel (%p22) target = $region25
  $region24: #{generator_forward.19} parent=0 // pred_region
    %25 = vst [vmem:[#allocation2] sm:$0xff] 0.0
    %26 = vst [vmem:[#allocation2 + $0x8] sm:$0xff] 0.0
    %27 = vst [vmem:[#allocation2 + $0x10] sm:$0xff] 0.0
    %28 = vst [vmem:[#allocation2 + $0x18] sm:$0xff] 0.0
    %29 = vst [vmem:[#allocation2 + $0x20] sm:$0xff] 0.0
    %30 = vst [vmem:[#allocation2 + $0x28] sm:$0xff] 0.0
    %31 = vst [vmem:[#allocation2 + $0x30] sm:$0xff] 0.0
    %32 = vst [vmem:[#allocation2 + $0x38] sm:$0xff] 0.0
    %33 = vst [vmem:[#allocation2 + $0x40] sm:$0xff] 0.0
    %34 = vst [vmem:[#allocation2 + $0x48] sm:$0xff] 0.0
    %35 = vst [vmem:[#allocation2 + $0x50] sm:$0xff] 0.0
    %36 = vst [vmem:[#allocation2 + $0x58] sm:$0xff] 0.0
    %37 = vst [vmem:[#allocation2 + $0x60] sm:$0xff] 0.0
    %38 = vst [vmem:[#allocation2 + $0x68] sm:$0xff] 0.0
    %39 = vst [vmem:[#allocation2 + $0x70] sm:$0xff] 0.0
    %40 = vst [vmem:[#allocation2 + $0x78] sm:$0xff] 0.0
    %41 = vst [vmem:[#allocation2 + $0x80] sm:$0xff] 0.0
    %42 = vst [vmem:[#allocation2 + $0x88] sm:$0xff] 0.0
    %43 = vst [vmem:[#allocation2 + $0x90] sm:$0xff] 0.0
    %44 = vst [vmem:[#allocation2 + $0x98] sm:$0xff] 0.0
    %45 = vst [vmem:[#allocation2 + $0xa0] sm:$0xff] 0.0
    %46 = vst [vmem:[#allocation2 + $0xa8] sm:$0xff] 0.0
    %47 = vst [vmem:[#allocation2 + $0xb0] sm:$0xff] 0.0
    %48 = vst [vmem:[#allocation2 + $0xb8] sm:$0xff] 0.0
    %49 = vst [vmem:[#allocation2 + $0xc0] sm:$0xff] 0.0
    %50 = vst [vmem:[#allocation2 + $0xc8] sm:$0xff] 0.0
    %51 = vst [vmem:[#allocation2 + $0xd0] sm:$0xff] 0.0
    %52 = vst [vmem:[#allocation2 + $0xd8] sm:$0xff] 0.0
    %53 = vst [vmem:[#allocation2 + $0xe0] sm:$0xff] 0.0
    %54 = vst [vmem:[#allocation2 + $0xe8] sm:$0xff] 0.0
    %55 = vst [vmem:[#allocation2 + $0xf0] sm:$0xff] 0.0
    %56 = vst [vmem:[#allocation2 + $0xf8] sm:$0xff] 0.0
    %57 = vst [vmem:[#allocation2 + $0x100] sm:$0xff] 0.0
    %58 = vst [vmem:[#allocation2 + $0x108] sm:$0xff] 0.0
    %59 = vst [vmem:[#allocation2 + $0x110] sm:$0xff] 0.0
    %60 = vst [vmem:[#allocation2 + $0x118] sm:$0xff] 0.0
    %61 = vst [vmem:[#allocation2 + $0x120] sm:$0xff] 0.0
    %62 = vst [vmem:[#allocation2 + $0x128] sm:$0xff] 0.0
    %63 = vst [vmem:[#allocation2 + $0x130] sm:$0xff] 0.0
    %64 = vst [vmem:[#allocation2 + $0x138] sm:$0xff] 0.0
    %65 = vst [vmem:[#allocation2 + $0x140] sm:$0xff] 0.0
    %66 = vst [vmem:[#allocation2 + $0x148] sm:$0xff] 0.0
    %67 = vst [vmem:[#allocation2 + $0x150] sm:$0xff] 0.0
    %68 = vst [vmem:[#allocation2 + $0x158] sm:$0xff] 0.0
    %69 = vst [vmem:[#allocation2 + $0x160] sm:$0xff] 0.0
    %70 = vst [vmem:[#allocation2 + $0x168] sm:$0xff] 0.0
    %71 = vst [vmem:[#allocation2 + $0x170] sm:$0xff] 0.0
    %72 = vst [vmem:[#allocation2 + $0x178] sm:$0xff] 0.0
    %73 = vst [vmem:[#allocation2 + $0x180] sm:$0xff] 0.0
    %74 = vst [vmem:[#allocation2 + $0x188] sm:$0xff] 0.0
    %75 = vst [vmem:[#allocation2 + $0x190] sm:$0xff] 0.0
    %76 = vst [vmem:[#allocation2 + $0x198] sm:$0xff] 0.0
    %77 = vst [vmem:[#allocation2 + $0x1a0] sm:$0xff] 0.0
    %78 = vst [vmem:[#allocation2 + $0x1a8] sm:$0xff] 0.0
    %79 = vst [vmem:[#allocation2 + $0x1b0] sm:$0xff] 0.0
    %80 = vst [vmem:[#allocation2 + $0x1b8] sm:$0xff] 0.0
    %81 = vst [vmem:[#allocation2 + $0x1c0] sm:$0xff] 0.0
    %82 = vst [vmem:[#allocation2 + $0x1c8] sm:$0xff] 0.0
    %83 = vst [vmem:[#allocation2 + $0x1d0] sm:$0xff] 0.0
    %84 = vst [vmem:[#allocation2 + $0x1d8] sm:$0xff] 0.0
    %85 = vst [vmem:[#allocation2 + $0x1e0] sm:$0xff] 0.0
    %86 = vst [vmem:[#allocation2 + $0x1e8] sm:$0xff] 0.0
    %87 = vst [vmem:[#allocation2 + $0x1f0] sm:$0xff] 0.0
    %88 = vst [vmem:[#allocation2 + $0x1f8] sm:$0xff] 0.0
  $region25: #{generator_forward.19} parent=0 // pred_fallthru
    _
  %v89 = vld [vmem:[#allocation2] sm:$0xff]
  %v90 = vld [vmem:[#allocation2 + $0x8] sm:$0xff]
  %v91 = vld [vmem:[#allocation2 + $0x10] sm:$0xff]
  %v92 = vld [vmem:[#allocation2 + $0x18] sm:$0xff]
  %v93 = vld [vmem:[#allocation2 + $0x20] sm:$0xff]
  %v94 = vld [vmem:[#allocation2 + $0x28] sm:$0xff]
  %v95 = vld [vmem:[#allocation2 + $0x30] sm:$0xff]
  %v96 = vld [vmem:[#allocation2 + $0x38] sm:$0xff]
  %v97 = vld [vmem:[#allocation2 + $0x40] sm:$0xff]
  %v98 = vld [vmem:[#allocation2 + $0x48] sm:$0xff]
  %v99 = vld [vmem:[#allocation2 + $0x50] sm:$0xff]
  %v100 = vld [vmem:[#allocation2 + $0x58] sm:$0xff]
  %v101 = vld [vmem:[#allocation2 + $0x60] sm:$0xff]
  %v102 = vld [vmem:[#allocation2 + $0x68] sm:$0xff]
  %v103 = vld [vmem:[#allocation2 + $0x70] sm:$0xff]
  %v104 = vld [vmem:[#allocation2 + $0x78] sm:$0xff]
  %v105 = vld [vmem:[#allocation2 + $0x80] sm:$0xff]
  %v106 = vld [vmem:[#allocation2 + $0x88] sm:$0xff]
  %v107 = vld [vmem:[#allocation2 + $0x90] sm:$0xff]
  %v108 = vld [vmem:[#allocation2 + $0x98] sm:$0xff]
  %v109 = vld [vmem:[#allocation2 + $0xa0] sm:$0xff]
  %v110 = vld [vmem:[#allocation2 + $0xa8] sm:$0xff]
  %v111 = vld [vmem:[#allocation2 + $0xb0] sm:$0xff]
  %v112 = vld [vmem:[#allocation2 + $0xb8] sm:$0xff]
  %v113 = vld [vmem:[#allocation2 + $0xc0] sm:$0xff]
  %v114 = vld [vmem:[#allocation2 + $0xc8] sm:$0xff]
  %v115 = vld [vmem:[#allocation2 + $0xd0] sm:$0xff]
  %v116 = vld [vmem:[#allocation2 + $0xd8] sm:$0xff]
  %v117 = vld [vmem:[#allocation2 + $0xe0] sm:$0xff]
  %v118 = vld [vmem:[#allocation2 + $0xe8] sm:$0xff]
  %v119 = vld [vmem:[#allocation2 + $0xf0] sm:$0xff]
  %v120 = vld [vmem:[#allocation2 + $0xf8] sm:$0xff]
  %v121 = vld [vmem:[#allocation2 + $0x100] sm:$0xff]
  %v122 = vld [vmem:[#allocation2 + $0x108] sm:$0xff]
  %v123 = vld [vmem:[#allocation2 + $0x110] sm:$0xff]
  %v124 = vld [vmem:[#allocation2 + $0x118] sm:$0xff]
  %v125 = vld [vmem:[#allocation2 + $0x120] sm:$0xff]
  %v126 = vld [vmem:[#allocation2 + $0x128] sm:$0xff]
  %v127 = vld [vmem:[#allocation2 + $0x130] sm:$0xff]
  %v128 = vld [vmem:[#allocation2 + $0x138] sm:$0xff]
  %v129 = vld [vmem:[#allocation2 + $0x140] sm:$0xff]
  %v130 = vld [vmem:[#allocation2 + $0x148] sm:$0xff]
  %v131 = vld [vmem:[#allocation2 + $0x150] sm:$0xff]
  %v132 = vld [vmem:[#allocation2 + $0x158] sm:$0xff]
  %v133 = vld [vmem:[#allocation2 + $0x160] sm:$0xff]
  %v134 = vld [vmem:[#allocation2 + $0x168] sm:$0xff]
  %v135 = vld [vmem:[#allocation2 + $0x170] sm:$0xff]
  %v136 = vld [vmem:[#allocation2 + $0x178] sm:$0xff]
  %v137 = vld [vmem:[#allocation2 + $0x180] sm:$0xff]
  %v138 = vld [vmem:[#allocation2 + $0x188] sm:$0xff]
  %v139 = vld [vmem:[#allocation2 + $0x190] sm:$0xff]
  %v140 = vld [vmem:[#allocation2 + $0x198] sm:$0xff]
  %v141 = vld [vmem:[#allocation2 + $0x1a0] sm:$0xff]
  %v142 = vld [vmem:[#allocation2 + $0x1a8] sm:$0xff]
  %v143 = vld [vmem:[#allocation2 + $0x1b0] sm:$0xff]
  %v144 = vld [vmem:[#allocation2 + $0x1b8] sm:$0xff]
  %v145 = vld [vmem:[#allocation2 + $0x1c0] sm:$0xff]
  %v146 = vld [vmem:[#allocation2 + $0x1c8] sm:$0xff]
  %v147 = vld [vmem:[#allocation2 + $0x1d0] sm:$0xff]
  %v148 = vld [vmem:[#allocation2 + $0x1d8] sm:$0xff]
  %v149 = vld [vmem:[#allocation2 + $0x1e0] sm:$0xff]
  %v150 = vld [vmem:[#allocation2 + $0x1e8] sm:$0xff]
  %v151 = vld [vmem:[#allocation2 + $0x1f0] sm:$0xff]
  %v152 = vld [vmem:[#allocation2 + $0x1f8] sm:$0xff]
  %v153 = vld [vmem:[%s0] sm:$0xf]
  %v154 = vld [vmem:[%s0 + $0x4] sm:$0xf]
  %v155 = vld [vmem:[%s0 + $0x8] sm:$0xf]
  %v156 = vld [vmem:[%s0 + $0xc] sm:$0xf]
  %v157 = vld [vmem:[%s0 + $0x10] sm:$0xf]
  %v158 = vld [vmem:[%s0 + $0x14] sm:$0xf]
  %v159 = vld [vmem:[%s0 + $0x18] sm:$0xf]
  %v160 = vld [vmem:[%s0 + $0x1c] sm:$0xf]
  %v161 = vld [vmem:[%s0 + $0x20] sm:$0xf]
  %v162 = vld [vmem:[%s0 + $0x24] sm:$0xf]
  %v163 = vld [vmem:[%s0 + $0x28] sm:$0xf]
  %v164 = vld [vmem:[%s0 + $0x2c] sm:$0xf]
  %v165 = vld [vmem:[%s0 + $0x30] sm:$0xf]
  %v166 = vld [vmem:[%s0 + $0x34] sm:$0xf]
  %v167 = vld [vmem:[%s0 + $0x38] sm:$0xf]
  %v168 = vld [vmem:[%s0 + $0x3c] sm:$0xf]
  %v169 = vld [vmem:[%s0 + $0x40] sm:$0xf]
  %v170 = vld [vmem:[%s0 + $0x44] sm:$0xf]
  %v171 = vld [vmem:[%s0 + $0x48] sm:$0xf]
  %v172 = vld [vmem:[%s0 + $0x4c] sm:$0xf]
  %v173 = vld [vmem:[%s0 + $0x50] sm:$0xf]
  %v174 = vld [vmem:[%s0 + $0x54] sm:$0xf]
  %v175 = vld [vmem:[%s0 + $0x58] sm:$0xf]
  %v176 = vld [vmem:[%s0 + $0x5c] sm:$0xf]
  %v177 = vld [vmem:[%s0 + $0x60] sm:$0xf]
  %v178 = vld [vmem:[%s0 + $0x64] sm:$0xf]
  %v179 = vld [vmem:[%s0 + $0x68] sm:$0xf]
  %v180 = vld [vmem:[%s0 + $0x6c] sm:$0xf]
  %v181 = vld [vmem:[%s0 + $0x70] sm:$0xf]
  %v182 = vld [vmem:[%s0 + $0x74] sm:$0xf]
  %v183 = vld [vmem:[%s0 + $0x78] sm:$0xf]
  %v184 = vld [vmem:[%s0 + $0x7c] sm:$0xf]
  %v185 = vld [vmem:[%s0 + $0x80] sm:$0xf]
  %v186 = vld [vmem:[%s0 + $0x84] sm:$0xf]
  %v187 = vld [vmem:[%s0 + $0x88] sm:$0xf]
  %v188 = vld [vmem:[%s0 + $0x8c] sm:$0xf]
  %v189 = vld [vmem:[%s0 + $0x90] sm:$0xf]
  %v190 = vld [vmem:[%s0 + $0x94] sm:$0xf]
  %v191 = vld [vmem:[%s0 + $0x98] sm:$0xf]
  %v192 = vld [vmem:[%s0 + $0x9c] sm:$0xf]
  %v193 = vld [vmem:[%s0 + $0xa0] sm:$0xf]
  %v194 = vld [vmem:[%s0 + $0xa4] sm:$0xf]
  %v195 = vld [vmem:[%s0 + $0xa8] sm:$0xf]
  %v196 = vld [vmem:[%s0 + $0xac] sm:$0xf]
  %v197 = vld [vmem:[%s0 + $0xb0] sm:$0xf]
  %v198 = vld [vmem:[%s0 + $0xb4] sm:$0xf]
  %v199 = vld [vmem:[%s0 + $0xb8] sm:$0xf]
  %v200 = vld [vmem:[%s0 + $0xbc] sm:$0xf]
  %v201 = vld [vmem:[%s0 + $0xc0] sm:$0xf]
  %v202 = vld [vmem:[%s0 + $0xc4] sm:$0xf]
  %v203 = vld [vmem:[%s0 + $0xc8] sm:$0xf]
  %v204 = vld [vmem:[%s0 + $0xcc] sm:$0xf]
  %v205 = vld [vmem:[%s0 + $0xd0] sm:$0xf]
  %v206 = vld [vmem:[%s0 + $0xd4] sm:$0xf]
  %v207 = vld [vmem:[%s0 + $0xd8] sm:$0xf]
  %v208 = vld [vmem:[%s0 + $0xdc] sm:$0xf]
  %v209 = vld [vmem:[%s0 + $0xe0] sm:$0xf]
  %v210 = vld [vmem:[%s0 + $0xe4] sm:$0xf]
  %v211 = vld [vmem:[%s0 + $0xe8] sm:$0xf]
  %v212 = vld [vmem:[%s0 + $0xec] sm:$0xf]
  %v213 = vld [vmem:[%s0 + $0xf0] sm:$0xf]
  %v214 = vld [vmem:[%s0 + $0xf4] sm:$0xf]
  %v215 = vld [vmem:[%s0 + $0xf8] sm:$0xf]
  %v216 = vld [vmem:[%s0 + $0xfc] sm:$0xf]
  %v217 = vld [vmem:[%s1] sm:$0xf]
  %v218 = vld [vmem:[%s1 + $0x4] sm:$0xf]
  %v219 = vld [vmem:[%s1 + $0x8] sm:$0xf]
  %v220 = vld [vmem:[%s1 + $0xc] sm:$0xf]
  %v221 = vld [vmem:[%s1 + $0x10] sm:$0xf]
  %v222 = vld [vmem:[%s1 + $0x14] sm:$0xf]
  %v223 = vld [vmem:[%s1 + $0x18] sm:$0xf]
  %v224 = vld [vmem:[%s1 + $0x1c] sm:$0xf]
  %v225 = vld [vmem:[%s1 + $0x20] sm:$0xf]
  %v226 = vld [vmem:[%s1 + $0x24] sm:$0xf]
  %v227 = vld [vmem:[%s1 + $0x28] sm:$0xf]
  %v228 = vld [vmem:[%s1 + $0x2c] sm:$0xf]
  %v229 = vld [vmem:[%s1 + $0x30] sm:$0xf]
  %v230 = vld [vmem:[%s1 + $0x34] sm:$0xf]
  %v231 = vld [vmem:[%s1 + $0x38] sm:$0xf]
  %v232 = vld [vmem:[%s1 + $0x3c] sm:$0xf]
  %v297 = vunpack.c.l.b16 %v153
  %v298 = vunpack.c.l.b16 %v154
  %v299 = vunpack.c.l.b16 %v155
  %v300 = vunpack.c.l.b16 %v156
  %v301 = vunpack.c.l.b16 %v157
  %v302 = vunpack.c.l.b16 %v158
  %v303 = vunpack.c.l.b16 %v159
  %v304 = vunpack.c.l.b16 %v160
  %v305 = vunpack.c.l.b16 %v161
  %v306 = vunpack.c.l.b16 %v162
  %v307 = vunpack.c.l.b16 %v163
  %v308 = vunpack.c.l.b16 %v164
  %v309 = vunpack.c.l.b16 %v165
  %v310 = vunpack.c.l.b16 %v166
  %v311 = vunpack.c.l.b16 %v167
  %v312 = vunpack.c.l.b16 %v168
  %v313 = vunpack.c.l.b16 %v169
  %v314 = vunpack.c.l.b16 %v170
  %v315 = vunpack.c.l.b16 %v171
  %v316 = vunpack.c.l.b16 %v172
  %v317 = vunpack.c.l.b16 %v173
  %v318 = vunpack.c.l.b16 %v174
  %v319 = vunpack.c.l.b16 %v175
  %v320 = vunpack.c.l.b16 %v176
  %v321 = vunpack.c.l.b16 %v177
  %v322 = vunpack.c.l.b16 %v178
  %v323 = vunpack.c.l.b16 %v179
  %v324 = vunpack.c.l.b16 %v180
  %v325 = vunpack.c.l.b16 %v181
  %v326 = vunpack.c.l.b16 %v182
  %v327 = vunpack.c.l.b16 %v183
  %v328 = vunpack.c.l.b16 %v184
  %v329 = vunpack.c.l.b16 %v185
  %v330 = vunpack.c.l.b16 %v186
  %v331 = vunpack.c.l.b16 %v187
  %v332 = vunpack.c.l.b16 %v188
  %v333 = vunpack.c.l.b16 %v189
  %v334 = vunpack.c.l.b16 %v190
  %v335 = vunpack.c.l.b16 %v191
  %v336 = vunpack.c.l.b16 %v192
  %v337 = vunpack.c.l.b16 %v193
  %v338 = vunpack.c.l.b16 %v194
  %v339 = vunpack.c.l.b16 %v195
  %v340 = vunpack.c.l.b16 %v196
  %v341 = vunpack.c.l.b16 %v197
  %v342 = vunpack.c.l.b16 %v198
  %v343 = vunpack.c.l.b16 %v199
  %v344 = vunpack.c.l.b16 %v200
  %v345 = vunpack.c.l.b16 %v201
  %v346 = vunpack.c.l.b16 %v202
  %v347 = vunpack.c.l.b16 %v203
  %v348 = vunpack.c.l.b16 %v204
  %v349 = vunpack.c.l.b16 %v205
  %v350 = vunpack.c.l.b16 %v206
  %v351 = vunpack.c.l.b16 %v207
  %v352 = vunpack.c.l.b16 %v208
  %v353 = vunpack.c.l.b16 %v209
  %v354 = vunpack.c.l.b16 %v210
  %v355 = vunpack.c.l.b16 %v211
  %v356 = vunpack.c.l.b16 %v212
  %v357 = vunpack.c.l.b16 %v213
  %v358 = vunpack.c.l.b16 %v214
  %v359 = vunpack.c.l.b16 %v215
  %v360 = vunpack.c.l.b16 %v216
  %v361 = vpack.c.b16 %v298, %v297
  %v362 = vpack.c.b16 %v300, %v299
  %v363 = vpack.c.b16 %v302, %v301
  %v364 = vpack.c.b16 %v304, %v303
  %v365 = vpack.c.b16 %v306, %v305
  %v366 = vpack.c.b16 %v308, %v307
  %v367 = vpack.c.b16 %v310, %v309
  %v368 = vpack.c.b16 %v312, %v311
  %v369 = vpack.c.b16 %v314, %v313
  %v370 = vpack.c.b16 %v316, %v315
  %v371 = vpack.c.b16 %v318, %v317
  %v372 = vpack.c.b16 %v320, %v319
  %v373 = vpack.c.b16 %v322, %v321
  %v374 = vpack.c.b16 %v324, %v323
  %v375 = vpack.c.b16 %v326, %v325
  %v376 = vpack.c.b16 %v328, %v327
  %v377 = vpack.c.b16 %v330, %v329
  %v378 = vpack.c.b16 %v332, %v331
  %v379 = vpack.c.b16 %v334, %v333
  %v380 = vpack.c.b16 %v336, %v335
  %v381 = vpack.c.b16 %v338, %v337
  %v382 = vpack.c.b16 %v340, %v339
  %v383 = vpack.c.b16 %v342, %v341
  %v384 = vpack.c.b16 %v344, %v343
  %v385 = vpack.c.b16 %v346, %v345
  %v386 = vpack.c.b16 %v348, %v347
  %v387 = vpack.c.b16 %v350, %v349
  %v388 = vpack.c.b16 %v352, %v351
  %v389 = vpack.c.b16 %v354, %v353
  %v390 = vpack.c.b16 %v356, %v355
  %v391 = vpack.c.b16 %v358, %v357
  %v392 = vpack.c.b16 %v360, %v359
  %v441 = vunpack.c.l.b16 %v217
  %v442 = vunpack.c.l.b16 %v218
  %v443 = vunpack.c.l.b16 %v219
  %v444 = vunpack.c.l.b16 %v220
  %v445 = vunpack.c.l.b16 %v221
  %v446 = vunpack.c.l.b16 %v222
  %v447 = vunpack.c.l.b16 %v223
  %v448 = vunpack.c.l.b16 %v224
  %v449 = vunpack.c.l.b16 %v225
  %v450 = vunpack.c.l.b16 %v226
  %v451 = vunpack.c.l.b16 %v227
  %v452 = vunpack.c.l.b16 %v228
  %v453 = vunpack.c.l.b16 %v229
  %v454 = vunpack.c.l.b16 %v230
  %v455 = vunpack.c.l.b16 %v231
  %v456 = vunpack.c.l.b16 %v232
  %v457 = vpack.c.b16 %v442, %v441
  %v458 = vpack.c.b16 %v444, %v443
  %v459 = vpack.c.b16 %v446, %v445
  %v460 = vpack.c.b16 %v448, %v447
  %v461 = vpack.c.b16 %v450, %v449
  %v462 = vpack.c.b16 %v452, %v451
  %v463 = vpack.c.b16 %v454, %v453
  %v464 = vpack.c.b16 %v456, %v455
  %473 = vmatprep.subr.bf16.mxu0 0
  %474 = vmatpush1.bf16.msra.mxu0 %v457
  %475 = vmatprep.subr.bf16.mxu0 0
  %476 = vmatpush1.bf16.msra.mxu0 %v458
  %477 = vmatprep.subr.bf16.mxu0 0
  %478 = vmatpush1.bf16.msra.mxu0 %v459
  %479 = vmatprep.subr.bf16.mxu0 0
  %480 = vmatpush1.bf16.msra.mxu0 %v460
  %481 = vmatprep.subr.bf16.mxu0 0
  %482 = vmatpush1.bf16.msra.mxu0 %v461
  %483 = vmatprep.subr.bf16.mxu0 0
  %484 = vmatpush1.bf16.msra.mxu0 %v462
  %485 = vmatprep.subr.bf16.mxu0 0
  %486 = vmatpush1.bf16.msra.mxu0 %v463
  %487 = vmatprep.subr.bf16.mxu0 0
  %488 = vmatpush1.bf16.msra.mxu0 %v464
  %489 = vmatprep.subr.bf16.mxu0 0
  %490 = vmatpush1.bf16.msra.mxu0 0
  %491 = vmatprep.subr.bf16.mxu0 0
  %492 = vmatpush1.bf16.msra.mxu0 0
  %493 = vmatprep.subr.bf16.mxu0 0
  %494 = vmatpush1.bf16.msra.mxu0 0
  %495 = vmatprep.subr.bf16.mxu0 0
  %496 = vmatpush1.bf16.msra.mxu0 0
  %497 = vmatprep.subr.bf16.mxu0 0
  %498 = vmatpush1.bf16.msra.mxu0 0
  %499 = vmatprep.subr.bf16.mxu0 0
  %500 = vmatpush1.bf16.msra.mxu0 0
  %501 = vmatprep.subr.bf16.mxu0 0
  %502 = vmatpush1.bf16.msra.mxu0 0
  %503 = vmatprep.subr.bf16.mxu0 0
  %504 = vmatpush1.bf16.msra.mxu0 0
  %505 = vmatprep.mubr.bf16.mxu0 0
  %506 = vmatmul.mubr.bf16.gmra.mrb[0].mxu0 %v361
  %v507 = vpop.f32.mrb[0].mxu0
  %v508 = vadd.f32 0.0, %v507
  %v509 = vpop.f32.mrb[0].mxu0
  %v510 = vpop.f32.mrb[0].mxu0
  %v511 = vadd.f32 0.0, %v510
  %v512 = vpop.f32.mrb[0].mxu0
  %513 = vmatprep.mubr.bf16.mxu0 0
  %514 = vmatmul.mubr.bf16.gmra.mrb[0].mxu0 %v362
  %v515 = vpop.f32.mrb[0].mxu0
  %v516 = vadd.f32 0.0, %v515
  %v517 = vpop.f32.mrb[0].mxu0
  %v518 = vpop.f32.mrb[0].mxu0
  %v519 = vadd.f32 0.0, %v518
  %v520 = vpop.f32.mrb[0].mxu0
  %521 = vmatprep.mubr.bf16.mxu0 0
  %522 = vmatmul.mubr.bf16.gmra.mrb[0].mxu0 %v363
  %v523 = vpop.f32.mrb[0].mxu0
  %v524 = vadd.f32 0.0, %v523
  %v525 = vpop.f32.mrb[0].mxu0
  %v526 = vpop.f32.mrb[0].mxu0
  %v527 = vadd.f32 0.0, %v526
  %v528 = vpop.f32.mrb[0].mxu0
  %529 = vmatprep.mubr.bf16.mxu0 0
  %530 = vmatmul.mubr.bf16.gmra.mrb[0].mxu0 %v364
  %v531 = vpop.f32.mrb[0].mxu0
  %v532 = vadd.f32 0.0, %v531
  %v533 = vpop.f32.mrb[0].mxu0
  %v534 = vpop.f32.mrb[0].mxu0
  %v535 = vadd.f32 0.0, %v534
  %v536 = vpop.f32.mrb[0].mxu0
  %537 = vmatprep.mubr.bf16.mxu0 0
  %538 = vmatmul.mubr.bf16.gmra.mrb[0].mxu0 %v365
  %v539 = vpop.f32.mrb[0].mxu0
  %v540 = vadd.f32 0.0, %v539
  %v541 = vpop.f32.mrb[0].mxu0
  %v542 = vpop.f32.mrb[0].mxu0
  %v543 = vadd.f32 0.0, %v542
  %v544 = vpop.f32.mrb[0].mxu0
  %545 = vmatprep.mubr.bf16.mxu0 0
  %546 = vmatmul.mubr.bf16.gmra.mrb[0].mxu0 %v366
  %v547 = vpop.f32.mrb[0].mxu0
  %v548 = vadd.f32 0.0, %v547
  %v549 = vpop.f32.mrb[0].mxu0
  %v550 = vpop.f32.mrb[0].mxu0
  %v551 = vadd.f32 0.0, %v550
  %v552 = vpop.f32.mrb[0].mxu0
  %553 = vmatprep.mubr.bf16.mxu0 0
  %554 = vmatmul.mubr.bf16.gmra.mrb[0].mxu0 %v367
  %v555 = vpop.f32.mrb[0].mxu0
  %v556 = vadd.f32 0.0, %v555
  %v557 = vpop.f32.mrb[0].mxu0
  %v558 = vpop.f32.mrb[0].mxu0
  %v559 = vadd.f32 0.0, %v558
  %v560 = vpop.f32.mrb[0].mxu0
  %561 = vmatprep.mubr.bf16.mxu0 0
  %562 = vmatmul.mubr.bf16.gmra.mrb[0].mxu0 %v368
  %v563 = vpop.f32.mrb[0].mxu0
  %v564 = vadd.f32 0.0, %v563
  %v565 = vpop.f32.mrb[0].mxu0
  %v566 = vpop.f32.mrb[0].mxu0
  %v567 = vadd.f32 0.0, %v566
  %v568 = vpop.f32.mrb[0].mxu0
  %569 = vmatprep.mubr.bf16.mxu0 0
  %570 = vmatmul.mubr.bf16.gmra.mrb[0].mxu0 %v369
  %v571 = vpop.f32.mrb[0].mxu0
  %v572 = vadd.f32 0.0, %v571
  %v573 = vpop.f32.mrb[0].mxu0
  %v574 = vpop.f32.mrb[0].mxu0
  %v575 = vadd.f32 0.0, %v574
  %v576 = vpop.f32.mrb[0].mxu0
  %577 = vmatprep.mubr.bf16.mxu0 0
  %578 = vmatmul.mubr.bf16.gmra.mrb[0].mxu0 %v370
  %v579 = vpop.f32.mrb[0].mxu0
  %v580 = vadd.f32 0.0, %v579
  %v581 = vpop.f32.mrb[0].mxu0
  %v582 = vpop.f32.mrb[0].mxu0
  %v583 = vadd.f32 0.0, %v582
  %v584 = vpop.f32.mrb[0].mxu0
  %585 = vmatprep.mubr.bf16.mxu0 0
  %586 = vmatmul.mubr.bf16.gmra.mrb[0].mxu0 %v371
  %v587 = vpop.f32.mrb[0].mxu0
  %v588 = vadd.f32 0.0, %v587
  %v589 = vpop.f32.mrb[0].mxu0
  %v590 = vpop.f32.mrb[0].mxu0
  %v591 = vadd.f32 0.0, %v590
  %v592 = vpop.f32.mrb[0].mxu0
  %593 = vmatprep.mubr.bf16.mxu0 0
  %594 = vmatmul.mubr.bf16.gmra.mrb[0].mxu0 %v372
  %v595 = vpop.f32.mrb[0].mxu0
  %v596 = vadd.f32 0.0, %v595
  %v597 = vpop.f32.mrb[0].mxu0
  %v598 = vpop.f32.mrb[0].mxu0
  %v599 = vadd.f32 0.0, %v598
  %v600 = vpop.f32.mrb[0].mxu0
  %601 = vmatprep.mubr.bf16.mxu0 0
  %602 = vmatmul.mubr.bf16.gmra.mrb[0].mxu0 %v373
  %v603 = vpop.f32.mrb[0].mxu0
  %v604 = vadd.f32 0.0, %v603
  %v605 = vpop.f32.mrb[0].mxu0
  %v606 = vpop.f32.mrb[0].mxu0
  %v607 = vadd.f32 0.0, %v606
  %v608 = vpop.f32.mrb[0].mxu0
  %609 = vmatprep.mubr.bf16.mxu0 0
  %610 = vmatmul.mubr.bf16.gmra.mrb[0].mxu0 %v374
  %v611 = vpop.f32.mrb[0].mxu0
  %v612 = vadd.f32 0.0, %v611
  %v613 = vpop.f32.mrb[0].mxu0
  %v614 = vpop.f32.mrb[0].mxu0
  %v615 = vadd.f32 0.0, %v614
  %v616 = vpop.f32.mrb[0].mxu0
  %617 = vmatprep.mubr.bf16.mxu0 0
  %618 = vmatmul.mubr.bf16.gmra.mrb[0].mxu0 %v375
  %v619 = vpop.f32.mrb[0].mxu0
  %v620 = vadd.f32 0.0, %v619
  %v621 = vpop.f32.mrb[0].mxu0
  %v622 = vpop.f32.mrb[0].mxu0
  %v623 = vadd.f32 0.0, %v622
  %v624 = vpop.f32.mrb[0].mxu0
  %625 = vmatprep.mubr.bf16.mxu0 0
  %626 = vmatmul.mubr.bf16.gmra.mrb[0].mxu0 %v376
  %v627 = vpop.f32.mrb[0].mxu0
  %v628 = vadd.f32 0.0, %v627
  %v629 = vpop.f32.mrb[0].mxu0
  %v630 = vpop.f32.mrb[0].mxu0
  %v631 = vadd.f32 0.0, %v630
  %v632 = vpop.f32.mrb[0].mxu0
  %633 = vmatprep.mubr.bf16.mxu0 0
  %634 = vmatmul.mubr.bf16.gmra.mrb[0].mxu0 %v377
  %v635 = vpop.f32.mrb[0].mxu0
  %v636 = vadd.f32 0.0, %v635
  %v637 = vpop.f32.mrb[0].mxu0
  %v638 = vpop.f32.mrb[0].mxu0
  %v639 = vadd.f32 0.0, %v638
  %v640 = vpop.f32.mrb[0].mxu0
  %641 = vmatprep.mubr.bf16.mxu0 0
  %642 = vmatmul.mubr.bf16.gmra.mrb[0].mxu0 %v378
  %v643 = vpop.f32.mrb[0].mxu0
  %v644 = vadd.f32 0.0, %v643
  %v645 = vpop.f32.mrb[0].mxu0
  %v646 = vpop.f32.mrb[0].mxu0
  %v647 = vadd.f32 0.0, %v646
  %v648 = vpop.f32.mrb[0].mxu0
  %649 = vmatprep.mubr.bf16.mxu0 0
  %650 = vmatmul.mubr.bf16.gmra.mrb[0].mxu0 %v379
  %v651 = vpop.f32.mrb[0].mxu0
  %v652 = vadd.f32 0.0, %v651
  %v653 = vpop.f32.mrb[0].mxu0
  %v654 = vpop.f32.mrb[0].mxu0
  %v655 = vadd.f32 0.0, %v654
  %v656 = vpop.f32.mrb[0].mxu0
  %657 = vmatprep.mubr.bf16.mxu0 0
  %658 = vmatmul.mubr.bf16.gmra.mrb[0].mxu0 %v380
  %v659 = vpop.f32.mrb[0].mxu0
  %v660 = vadd.f32 0.0, %v659
  %v661 = vpop.f32.mrb[0].mxu0
  %v662 = vpop.f32.mrb[0].mxu0
  %v663 = vadd.f32 0.0, %v662
  %v664 = vpop.f32.mrb[0].mxu0
  %665 = vmatprep.mubr.bf16.mxu0 0
  %666 = vmatmul.mubr.bf16.gmra.mrb[0].mxu0 %v381
  %v667 = vpop.f32.mrb[0].mxu0
  %v668 = vadd.f32 0.0, %v667
  %v669 = vpop.f32.mrb[0].mxu0
  %v670 = vpop.f32.mrb[0].mxu0
  %v671 = vadd.f32 0.0, %v670
  %v672 = vpop.f32.mrb[0].mxu0
  %673 = vmatprep.mubr.bf16.mxu0 0
  %674 = vmatmul.mubr.bf16.gmra.mrb[0].mxu0 %v382
  %v675 = vpop.f32.mrb[0].mxu0
  %v676 = vadd.f32 0.0, %v675
  %v677 = vpop.f32.mrb[0].mxu0
  %v678 = vpop.f32.mrb[0].mxu0
  %v679 = vadd.f32 0.0, %v678
  %v680 = vpop.f32.mrb[0].mxu0
  %681 = vmatprep.mubr.bf16.mxu0 0
  %682 = vmatmul.mubr.bf16.gmra.mrb[0].mxu0 %v383
  %v683 = vpop.f32.mrb[0].mxu0
  %v684 = vadd.f32 0.0, %v683
  %v685 = vpop.f32.mrb[0].mxu0
  %v686 = vpop.f32.mrb[0].mxu0
  %v687 = vadd.f32 0.0, %v686
  %v688 = vpop.f32.mrb[0].mxu0
  %689 = vmatprep.mubr.bf16.mxu0 0
  %690 = vmatmul.mubr.bf16.gmra.mrb[0].mxu0 %v384
  %v691 = vpop.f32.mrb[0].mxu0
  %v692 = vadd.f32 0.0, %v691
  %v693 = vpop.f32.mrb[0].mxu0
  %v694 = vpop.f32.mrb[0].mxu0
  %v695 = vadd.f32 0.0, %v694
  %v696 = vpop.f32.mrb[0].mxu0
  %697 = vmatprep.mubr.bf16.mxu0 0
  %698 = vmatmul.mubr.bf16.gmra.mrb[0].mxu0 %v385
  %v699 = vpop.f32.mrb[0].mxu0
  %v700 = vadd.f32 0.0, %v699
  %v701 = vpop.f32.mrb[0].mxu0
  %v702 = vpop.f32.mrb[0].mxu0
  %v703 = vadd.f32 0.0, %v702
  %v704 = vpop.f32.mrb[0].mxu0
  %705 = vmatprep.mubr.bf16.mxu0 0
  %706 = vmatmul.mubr.bf16.gmra.mrb[0].mxu0 %v386
  %v707 = vpop.f32.mrb[0].mxu0
  %v708 = vadd.f32 0.0, %v707
  %v709 = vpop.f32.mrb[0].mxu0
  %v710 = vpop.f32.mrb[0].mxu0
  %v711 = vadd.f32 0.0, %v710
  %v712 = vpop.f32.mrb[0].mxu0
  %713 = vmatprep.mubr.bf16.mxu0 0
  %714 = vmatmul.mubr.bf16.gmra.mrb[0].mxu0 %v387
  %v715 = vpop.f32.mrb[0].mxu0
  %v716 = vadd.f32 0.0, %v715
  %v717 = vpop.f32.mrb[0].mxu0
  %v718 = vpop.f32.mrb[0].mxu0
  %v719 = vadd.f32 0.0, %v718
  %v720 = vpop.f32.mrb[0].mxu0
  %721 = vmatprep.mubr.bf16.mxu0 0
  %722 = vmatmul.mubr.bf16.gmra.mrb[0].mxu0 %v388
  %v723 = vpop.f32.mrb[0].mxu0
  %v724 = vadd.f32 0.0, %v723
  %v725 = vpop.f32.mrb[0].mxu0
  %v726 = vpop.f32.mrb[0].mxu0
  %v727 = vadd.f32 0.0, %v726
  %v728 = vpop.f32.mrb[0].mxu0
  %729 = vmatprep.mubr.bf16.mxu0 0
  %730 = vmatmul.mubr.bf16.gmra.mrb[0].mxu0 %v389
  %v731 = vpop.f32.mrb[0].mxu0
  %v732 = vadd.f32 0.0, %v731
  %v733 = vpop.f32.mrb[0].mxu0
  %v734 = vpop.f32.mrb[0].mxu0
  %v735 = vadd.f32 0.0, %v734
  %v736 = vpop.f32.mrb[0].mxu0
  %737 = vmatprep.mubr.bf16.mxu0 0
  %738 = vmatmul.mubr.bf16.gmra.mrb[0].mxu0 %v390
  %v739 = vpop.f32.mrb[0].mxu0
  %v740 = vadd.f32 0.0, %v739
  %v741 = vpop.f32.mrb[0].mxu0
  %v742 = vpop.f32.mrb[0].mxu0
  %v743 = vadd.f32 0.0, %v742
  %v744 = vpop.f32.mrb[0].mxu0
  %745 = vmatprep.mubr.bf16.mxu0 0
  %746 = vmatmul.mubr.bf16.gmra.mrb[0].mxu0 %v391
  %v747 = vpop.f32.mrb[0].mxu0
  %v748 = vadd.f32 0.0, %v747
  %v749 = vpop.f32.mrb[0].mxu0
  %v750 = vpop.f32.mrb[0].mxu0
  %v751 = vadd.f32 0.0, %v750
  %v752 = vpop.f32.mrb[0].mxu0
  %753 = vmatprep.mubr.bf16.mxu0 0
  %754 = vmatmul.mubr.bf16.gmra.mrb[0].mxu0 %v392
  %v755 = vpop.f32.mrb[0].mxu0
  %v756 = vadd.f32 0.0, %v755
  %v757 = vpop.f32.mrb[0].mxu0
  %v758 = vpop.f32.mrb[0].mxu0
  %v759 = vadd.f32 0.0, %v758
  %v760 = vpop.f32.mrb[0].mxu0
  %761 = vdwg.mxu0
  %v762 = vadd.f32 %v89, %v508
  %v763 = vadd.f32 %v90, %v511
  %v764 = vadd.f32 %v91, %v516
  %v765 = vadd.f32 %v92, %v519
  %v766 = vadd.f32 %v93, %v524
  %v767 = vadd.f32 %v94, %v527
  %v768 = vadd.f32 %v95, %v532
  %v769 = vadd.f32 %v96, %v535
  %v770 = vadd.f32 %v97, %v540
  %v771 = vadd.f32 %v98, %v543
  %v772 = vadd.f32 %v99, %v548
  %v773 = vadd.f32 %v100, %v551
  %v774 = vadd.f32 %v101, %v556
  %v775 = vadd.f32 %v102, %v559
  %v776 = vadd.f32 %v103, %v564
  %v777 = vadd.f32 %v104, %v567
  %v778 = vadd.f32 %v105, %v572
  %v779 = vadd.f32 %v106, %v575
  %v780 = vadd.f32 %v107, %v580
  %v781 = vadd.f32 %v108, %v583
  %v782 = vadd.f32 %v109, %v588
  %v783 = vadd.f32 %v110, %v591
  %v784 = vadd.f32 %v111, %v596
  %v785 = vadd.f32 %v112, %v599
  %v786 = vadd.f32 %v113, %v604
  %v787 = vadd.f32 %v114, %v607
  %v788 = vadd.f32 %v115, %v612
  %v789 = vadd.f32 %v116, %v615
  %v790 = vadd.f32 %v117, %v620
  %v791 = vadd.f32 %v118, %v623
  %v792 = vadd.f32 %v119, %v628
  %v793 = vadd.f32 %v120, %v631
  %v794 = vadd.f32 %v121, %v636
  %v795 = vadd.f32 %v122, %v639
  %v796 = vadd.f32 %v123, %v644
  %v797 = vadd.f32 %v124, %v647
  %v798 = vadd.f32 %v125, %v652
  %v799 = vadd.f32 %v126, %v655
  %v800 = vadd.f32 %v127, %v660
  %v801 = vadd.f32 %v128, %v663
  %v802 = vadd.f32 %v129, %v668
  %v803 = vadd.f32 %v130, %v671
  %v804 = vadd.f32 %v131, %v676
  %v805 = vadd.f32 %v132, %v679
  %v806 = vadd.f32 %v133, %v684
  %v807 = vadd.f32 %v134, %v687
  %v808 = vadd.f32 %v135, %v692
  %v809 = vadd.f32 %v136, %v695
  %v810 = vadd.f32 %v137, %v700
  %v811 = vadd.f32 %v138, %v703
  %v812 = vadd.f32 %v139, %v708
  %v813 = vadd.f32 %v140, %v711
  %v814 = vadd.f32 %v141, %v716
  %v815 = vadd.f32 %v142, %v719
  %v816 = vadd.f32 %v143, %v724
  %v817 = vadd.f32 %v144, %v727
  %v818 = vadd.f32 %v145, %v732
  %v819 = vadd.f32 %v146, %v735
  %v820 = vadd.f32 %v147, %v740
  %v821 = vadd.f32 %v148, %v743
  %v822 = vadd.f32 %v149, %v748
  %v823 = vadd.f32 %v150, %v751
  %v824 = vadd.f32 %v151, %v756
  %v825 = vadd.f32 %v152, %v759
  %826 = vst [vmem:[#allocation2] sm:$0xff] %v762
  %827 = vst [vmem:[#allocation2 + $0x8] sm:$0xff] %v763
  %828 = vst [vmem:[#allocation2 + $0x10] sm:$0xff] %v764
  %829 = vst [vmem:[#allocation2 + $0x18] sm:$0xff] %v765
  %830 = vst [vmem:[#allocation2 + $0x20] sm:$0xff] %v766
  %831 = vst [vmem:[#allocation2 + $0x28] sm:$0xff] %v767
  %832 = vst [vmem:[#allocation2 + $0x30] sm:$0xff] %v768
  %833 = vst [vmem:[#allocation2 + $0x38] sm:$0xff] %v769
  %834 = vst [vmem:[#allocation2 + $0x40] sm:$0xff] %v770
  %835 = vst [vmem:[#allocation2 + $0x48] sm:$0xff] %v771
  %836 = vst [vmem:[#allocation2 + $0x50] sm:$0xff] %v772
  %837 = vst [vmem:[#allocation2 + $0x58] sm:$0xff] %v773
  %838 = vst [vmem:[#allocation2 + $0x60] sm:$0xff] %v774
  %839 = vst [vmem:[#allocation2 + $0x68] sm:$0xff] %v775
  %840 = vst [vmem:[#allocation2 + $0x70] sm:$0xff] %v776
  %841 = vst [vmem:[#allocation2 + $0x78] sm:$0xff] %v777
  %842 = vst [vmem:[#allocation2 + $0x80] sm:$0xff] %v778
  %843 = vst [vmem:[#allocation2 + $0x88] sm:$0xff] %v779
  %844 = vst [vmem:[#allocation2 + $0x90] sm:$0xff] %v780
  %845 = vst [vmem:[#allocation2 + $0x98] sm:$0xff] %v781
  %846 = vst [vmem:[#allocation2 + $0xa0] sm:$0xff] %v782
  %847 = vst [vmem:[#allocation2 + $0xa8] sm:$0xff] %v783
  %848 = vst [vmem:[#allocation2 + $0xb0] sm:$0xff] %v784
  %849 = vst [vmem:[#allocation2 + $0xb8] sm:$0xff] %v785
  %850 = vst [vmem:[#allocation2 + $0xc0] sm:$0xff] %v786
  %851 = vst [vmem:[#allocation2 + $0xc8] sm:$0xff] %v787
  %852 = vst [vmem:[#allocation2 + $0xd0] sm:$0xff] %v788
  %853 = vst [vmem:[#allocation2 + $0xd8] sm:$0xff] %v789
  %854 = vst [vmem:[#allocation2 + $0xe0] sm:$0xff] %v790
  %855 = vst [vmem:[#allocation2 + $0xe8] sm:$0xff] %v791
  %856 = vst [vmem:[#allocation2 + $0xf0] sm:$0xff] %v792
  %857 = vst [vmem:[#allocation2 + $0xf8] sm:$0xff] %v793
  %858 = vst [vmem:[#allocation2 + $0x100] sm:$0xff] %v794
  %859 = vst [vmem:[#allocation2 + $0x108] sm:$0xff] %v795
  %860 = vst [vmem:[#allocation2 + $0x110] sm:$0xff] %v796
  %861 = vst [vmem:[#allocation2 + $0x118] sm:$0xff] %v797
  %862 = vst [vmem:[#allocation2 + $0x120] sm:$0xff] %v798
  %863 = vst [vmem:[#allocation2 + $0x128] sm:$0xff] %v799
  %864 = vst [vmem:[#allocation2 + $0x130] sm:$0xff] %v800
  %865 = vst [vmem:[#allocation2 + $0x138] sm:$0xff] %v801
  %866 = vst [vmem:[#allocation2 + $0x140] sm:$0xff] %v802
  %867 = vst [vmem:[#allocation2 + $0x148] sm:$0xff] %v803
  %868 = vst [vmem:[#allocation2 + $0x150] sm:$0xff] %v804
  %869 = vst [vmem:[#allocation2 + $0x158] sm:$0xff] %v805
  %870 = vst [vmem:[#allocation2 + $0x160] sm:$0xff] %v806
  %871 = vst [vmem:[#allocation2 + $0x168] sm:$0xff] %v807
  %872 = vst [vmem:[#allocation2 + $0x170] sm:$0xff] %v808
  %873 = vst [vmem:[#allocation2 + $0x178] sm:$0xff] %v809
  %874 = vst [vmem:[#allocation2 + $0x180] sm:$0xff] %v810
  %875 = vst [vmem:[#allocation2 + $0x188] sm:$0xff] %v811
  %876 = vst [vmem:[#allocation2 + $0x190] sm:$0xff] %v812
  %877 = vst [vmem:[#allocation2 + $0x198] sm:$0xff] %v813
  %878 = vst [vmem:[#allocation2 + $0x1a0] sm:$0xff] %v814
  %879 = vst [vmem:[#allocation2 + $0x1a8] sm:$0xff] %v815
  %880 = vst [vmem:[#allocation2 + $0x1b0] sm:$0xff] %v816
  %881 = vst [vmem:[#allocation2 + $0x1b8] sm:$0xff] %v817
  %882 = vst [vmem:[#allocation2 + $0x1c0] sm:$0xff] %v818
  %883 = vst [vmem:[#allocation2 + $0x1c8] sm:$0xff] %v819
  %884 = vst [vmem:[#allocation2 + $0x1d0] sm:$0xff] %v820
  %885 = vst [vmem:[#allocation2 + $0x1d8] sm:$0xff] %v821
  %886 = vst [vmem:[#allocation2 + $0x1e0] sm:$0xff] %v822
  %887 = vst [vmem:[#allocation2 + $0x1e8] sm:$0xff] %v823
  %888 = vst [vmem:[#allocation2 + $0x1f0] sm:$0xff] %v824
  %889 = vst [vmem:[#allocation2 + $0x1f8] sm:$0xff] %v825
  // Predicated region
  $region26: #{generator_forward.19} parent=0 // pred_check
    %p890 = pneg %p21
  $region27: #{generator_forward.19} parent=0 // pred_check_branch
    %892 = sbr.rel (%p890) target = $region29
  $region28: #{generator_forward.19} parent=0 // pred_region
    %v893 = vld [vmem:[#allocation2] sm:$0xff]
    %v894 = vld [vmem:[#allocation2 + $0x8] sm:$0xff]
    %v895 = vld [vmem:[#allocation2 + $0x10] sm:$0xff]
    %v896 = vld [vmem:[#allocation2 + $0x18] sm:$0xff]
    %v897 = vld [vmem:[#allocation2 + $0x20] sm:$0xff]
    %v898 = vld [vmem:[#allocation2 + $0x28] sm:$0xff]
    %v899 = vld [vmem:[#allocation2 + $0x30] sm:$0xff]
    %v900 = vld [vmem:[#allocation2 + $0x38] sm:$0xff]
    %v901 = vld [vmem:[#allocation2 + $0x40] sm:$0xff]
    %v902 = vld [vmem:[#allocation2 + $0x48] sm:$0xff]
    %v903 = vld [vmem:[#allocation2 + $0x50] sm:$0xff]
    %v904 = vld [vmem:[#allocation2 + $0x58] sm:$0xff]
    %v905 = vld [vmem:[#allocation2 + $0x60] sm:$0xff]
    %v906 = vld [vmem:[#allocation2 + $0x68] sm:$0xff]
    %v907 = vld [vmem:[#allocation2 + $0x70] sm:$0xff]
    %v908 = vld [vmem:[#allocation2 + $0x78] sm:$0xff]
    %v909 = vld [vmem:[#allocation2 + $0x80] sm:$0xff]
    %v910 = vld [vmem:[#allocation2 + $0x88] sm:$0xff]
    %v911 = vld [vmem:[#allocation2 + $0x90] sm:$0xff]
    %v912 = vld [vmem:[#allocation2 + $0x98] sm:$0xff]
    %v913 = vld [vmem:[#allocation2 + $0xa0] sm:$0xff]
    %v914 = vld [vmem:[#allocation2 + $0xa8] sm:$0xff]
    %v915 = vld [vmem:[#allocation2 + $0xb0] sm:$0xff]
    %v916 = vld [vmem:[#allocation2 + $0xb8] sm:$0xff]
    %v917 = vld [vmem:[#allocation2 + $0xc0] sm:$0xff]
    %v918 = vld [vmem:[#allocation2 + $0xc8] sm:$0xff]
    %v919 = vld [vmem:[#allocation2 + $0xd0] sm:$0xff]
    %v920 = vld [vmem:[#allocation2 + $0xd8] sm:$0xff]
    %v921 = vld [vmem:[#allocation2 + $0xe0] sm:$0xff]
    %v922 = vld [vmem:[#allocation2 + $0xe8] sm:$0xff]
    %v923 = vld [vmem:[#allocation2 + $0xf0] sm:$0xff]
    %v924 = vld [vmem:[#allocation2 + $0xf8] sm:$0xff]
    %v925 = vld [vmem:[#allocation2 + $0x100] sm:$0xff]
    %v926 = vld [vmem:[#allocation2 + $0x108] sm:$0xff]
    %v927 = vld [vmem:[#allocation2 + $0x110] sm:$0xff]
    %v928 = vld [vmem:[#allocation2 + $0x118] sm:$0xff]
    %v929 = vld [vmem:[#allocation2 + $0x120] sm:$0xff]
    %v930 = vld [vmem:[#allocation2 + $0x128] sm:$0xff]
    %v931 = vld [vmem:[#allocation2 + $0x130] sm:$0xff]
    %v932 = vld [vmem:[#allocation2 + $0x138] sm:$0xff]
    %v933 = vld [vmem:[#allocation2 + $0x140] sm:$0xff]
    %v934 = vld [vmem:[#allocation2 + $0x148] sm:$0xff]
    %v935 = vld [vmem:[#allocation2 + $0x150] sm:$0xff]
    %v936 = vld [vmem:[#allocation2 + $0x158] sm:$0xff]
    %v937 = vld [vmem:[#allocation2 + $0x160] sm:$0xff]
    %v938 = vld [vmem:[#allocation2 + $0x168] sm:$0xff]
    %v939 = vld [vmem:[#allocation2 + $0x170] sm:$0xff]
    %v940 = vld [vmem:[#allocation2 + $0x178] sm:$0xff]
    %v941 = vld [vmem:[#allocation2 + $0x180] sm:$0xff]
    %v942 = vld [vmem:[#allocation2 + $0x188] sm:$0xff]
    %v943 = vld [vmem:[#allocation2 + $0x190] sm:$0xff]
    %v944 = vld [vmem:[#allocation2 + $0x198] sm:$0xff]
    %v945 = vld [vmem:[#allocation2 + $0x1a0] sm:$0xff]
    %v946 = vld [vmem:[#allocation2 + $0x1a8] sm:$0xff]
    %v947 = vld [vmem:[#allocation2 + $0x1b0] sm:$0xff]
    %v948 = vld [vmem:[#allocation2 + $0x1b8] sm:$0xff]
    %v949 = vld [vmem:[#allocation2 + $0x1c0] sm:$0xff]
    %v950 = vld [vmem:[#allocation2 + $0x1c8] sm:$0xff]
    %v951 = vld [vmem:[#allocation2 + $0x1d0] sm:$0xff]
    %v952 = vld [vmem:[#allocation2 + $0x1d8] sm:$0xff]
    %v953 = vld [vmem:[#allocation2 + $0x1e0] sm:$0xff]
    %v954 = vld [vmem:[#allocation2 + $0x1e8] sm:$0xff]
    %v955 = vld [vmem:[#allocation2 + $0x1f0] sm:$0xff]
    %v956 = vld [vmem:[#allocation2 + $0x1f8] sm:$0xff]
    %v957 = vadd.f32 %v893, %v894
    %v958 = vadd.f32 %v957, %v895
    %v959 = vadd.f32 %v958, %v896
    %v960 = vadd.f32 %v959, %v897
    %v961 = vadd.f32 %v960, %v898
    %v962 = vadd.f32 %v961, %v899
    %v963 = vadd.f32 %v962, %v900
    %v964 = vadd.f32 %v963, %v901
    %v965 = vadd.f32 %v964, %v902
    %v966 = vadd.f32 %v965, %v903
    %v967 = vadd.f32 %v966, %v904
    %v968 = vadd.f32 %v967, %v905
    %v969 = vadd.f32 %v968, %v906
    %v970 = vadd.f32 %v969, %v907
    %v971 = vadd.f32 %v970, %v908
    %v972 = vadd.f32 %v971, %v909
    %v973 = vadd.f32 %v972, %v910
    %v974 = vadd.f32 %v973, %v911
    %v975 = vadd.f32 %v974, %v912
    %v976 = vadd.f32 %v975, %v913
    %v977 = vadd.f32 %v976, %v914
    %v978 = vadd.f32 %v977, %v915
    %v979 = vadd.f32 %v978, %v916
    %v980 = vadd.f32 %v979, %v917
    %v981 = vadd.f32 %v980, %v918
    %v982 = vadd.f32 %v981, %v919
    %v983 = vadd.f32 %v982, %v920
    %v984 = vadd.f32 %v983, %v921
    %v985 = vadd.f32 %v984, %v922
    %v986 = vadd.f32 %v985, %v923
    %v987 = vadd.f32 %v986, %v924
    %v988 = vadd.f32 %v987, %v925
    %v989 = vadd.f32 %v988, %v926
    %v990 = vadd.f32 %v989, %v927
    %v991 = vadd.f32 %v990, %v928
    %v992 = vadd.f32 %v991, %v929
    %v993 = vadd.f32 %v992, %v930
    %v994 = vadd.f32 %v993, %v931
    %v995 = vadd.f32 %v994, %v932
    %v996 = vadd.f32 %v995, %v933
    %v997 = vadd.f32 %v996, %v934
    %v998 = vadd.f32 %v997, %v935
    %v999 = vadd.f32 %v998, %v936
    %v1000 = vadd.f32 %v999, %v937
    %v1001 = vadd.f32 %v1000, %v938
    %v1002 = vadd.f32 %v1001, %v939
    %v1003 = vadd.f32 %v1002, %v940
    %v1004 = vadd.f32 %v1003, %v941
    %v1005 = vadd.f32 %v1004, %v942
    %v1006 = vadd.f32 %v1005, %v943
    %v1007 = vadd.f32 %v1006, %v944
    %v1008 = vadd.f32 %v1007, %v945
    %v1009 = vadd.f32 %v1008, %v946
    %v1010 = vadd.f32 %v1009, %v947
    %v1011 = vadd.f32 %v1010, %v948
    %v1012 = vadd.f32 %v1011, %v949
    %v1013 = vadd.f32 %v1012, %v950
    %v1014 = vadd.f32 %v1013, %v951
    %v1015 = vadd.f32 %v1014, %v952
    %v1016 = vadd.f32 %v1015, %v953
    %v1017 = vadd.f32 %v1016, %v954
    %v1018 = vadd.f32 %v1017, %v955
    %v1019 = vadd.f32 %v1018, %v956
    %v1020 = vrot.slane %v1019, 4
    %v1021 = vadd.f32 %v1019, %v1020
    %v1022 = vrot.slane %v1021, 2
    %v1023 = vadd.f32 %v1021, %v1022
    %v1024 = vrot.slane %v1023, 1
    %v1025 = vadd.f32 %v1023, %v1024
    %v1026 = vld [vmem:[%s4] sm:$0xff]
    %v1027 = vld [vmem:[%s4 + $0x8] sm:$0xff]
    %v1028 = vld [vmem:[%s4 + $0x10] sm:$0xff]
    %v1029 = vld [vmem:[%s4 + $0x18] sm:$0xff]
    %v1030 = vld [vmem:[%s4 + $0x20] sm:$0xff]
    %v1031 = vld [vmem:[%s4 + $0x28] sm:$0xff]
    %v1032 = vld [vmem:[%s4 + $0x30] sm:$0xff]
    %v1033 = vld [vmem:[%s4 + $0x38] sm:$0xff]
    %v1034 = vld [vmem:[%s4 + $0x40] sm:$0xff]
    %v1035 = vld [vmem:[%s4 + $0x48] sm:$0xff]
    %v1036 = vld [vmem:[%s4 + $0x50] sm:$0xff]
    %v1037 = vld [vmem:[%s4 + $0x58] sm:$0xff]
    %v1038 = vld [vmem:[%s4 + $0x60] sm:$0xff]
    %v1039 = vld [vmem:[%s4 + $0x68] sm:$0xff]
    %v1040 = vld [vmem:[%s4 + $0x70] sm:$0xff]
    %v1041 = vld [vmem:[%s4 + $0x78] sm:$0xff]
    %1042 = vmatprep.subr.mxu0 0.0
    %1043 = vmatpush1.msra.mxu0 %v1026
    %1044 = vmatprep.subr.mxu0 0.0
    %1045 = vmatpush1.msra.mxu0 %v1027
    %1046 = vmatprep.subr.mxu0 0.0
    %1047 = vmatpush1.msra.mxu0 %v1028
    %1048 = vmatprep.subr.mxu0 0.0
    %1049 = vmatpush1.msra.mxu0 %v1029
    %1050 = vmatprep.subr.mxu0 0.0
    %1051 = vmatpush1.msra.mxu0 %v1030
    %1052 = vmatprep.subr.mxu0 0.0
    %1053 = vmatpush1.msra.mxu0 %v1031
    %1054 = vmatprep.subr.mxu0 0.0
    %1055 = vmatpush1.msra.mxu0 %v1032
    %1056 = vmatprep.subr.mxu0 0.0
    %1057 = vmatpush1.msra.mxu0 %v1033
    %1058 = vmatprep.subr.mxu0 0.0
    %1059 = vmatpush1.msra.mxu0 %v1034
    %1060 = vmatprep.subr.mxu0 0.0
    %1061 = vmatpush1.msra.mxu0 %v1035
    %1062 = vmatprep.subr.mxu0 0.0
    %1063 = vmatpush1.msra.mxu0 %v1036
    %1064 = vmatprep.subr.mxu0 0.0
    %1065 = vmatpush1.msra.mxu0 %v1037
    %1066 = vmatprep.subr.mxu0 0.0
    %1067 = vmatpush1.msra.mxu0 %v1038
    %1068 = vmatprep.subr.mxu0 0.0
    %1069 = vmatpush1.msra.mxu0 %v1039
    %1070 = vmatprep.subr.mxu0 0.0
    %1071 = vmatpush1.msra.mxu0 %v1040
    %1072 = vmatprep.subr.mxu0 0.0
    %1073 = vmatpush1.msra.mxu0 %v1041
    %1074 = vmatprep.subr.mxu0 0.0
    %1075 = vmatpush1.msra.mxu0 0.0
    %1076 = vmatprep.subr.mxu0 0.0
    %1077 = vmatpush1.msra.mxu0 0.0
    %1078 = vmatprep.subr.mxu0 0.0
    %1079 = vmatpush1.msra.mxu0 0.0
    %1080 = vmatprep.subr.mxu0 0.0
    %1081 = vmatpush1.msra.mxu0 0.0
    %1082 = vmatprep.subr.mxu0 0.0
    %1083 = vmatpush1.msra.mxu0 0.0
    %1084 = vmatprep.subr.mxu0 0.0
    %1085 = vmatpush1.msra.mxu0 0.0
    %1086 = vmatprep.subr.mxu0 0.0
    %1087 = vmatpush1.msra.mxu0 0.0
    %1088 = vmatprep.subr.mxu0 0.0
    %1089 = vmatpush1.msra.mxu0 0.0
    %1090 = vmatprep.subr.mxu0 0.0
    %1091 = vmatpush1.msra.mxu0 0.0
    %1092 = vmatprep.subr.mxu0 0.0
    %1093 = vmatpush1.msra.mxu0 0.0
    %1094 = vmatprep.subr.mxu0 0.0
    %1095 = vmatpush1.msra.mxu0 0.0
    %1096 = vmatprep.subr.mxu0 0.0
    %1097 = vmatpush1.msra.mxu0 0.0
    %1098 = vmatprep.subr.mxu0 0.0
    %1099 = vmatpush1.msra.mxu0 0.0
    %1100 = vmatprep.subr.mxu0 0.0
    %1101 = vmatpush1.msra.mxu0 0.0
    %1102 = vmatprep.subr.mxu0 0.0
    %1103 = vmatpush1.msra.mxu0 0.0
    %1104 = vmatprep.subr.mxu0 0.0
    %1105 = vmatpush1.msra.mxu0 0.0
    %1106 = vmatprep.mubr.f32.mxu0 0.0
    %1107 = vmatmul.mubr.f32.gmra.mrb[0].mxu0 %v1025
    %v1108 = vpop.f32.mrb[0].mxu0
    %v1109 = vadd.f32 0.0, %v1108
    %v1110 = vpop.f32.mrb[0].mxu0
    %1111 = vdwg.mxu0
    %v1112 = vlaneseq
    %v1113 = vshrl.u32 %v1112, 7
    %v1114 = vsub.s32 0, %v1113
    %v1115 = vrot.slane %v1109, %v1114
    %v1116 = vsub.f32 %v893, %v1115
    %v1117 = vsub.f32 %v894, %v1115
    %v1118 = vsub.f32 %v895, %v1115
    %v1119 = vsub.f32 %v896, %v1115
    %v1120 = vsub.f32 %v897, %v1115
    %v1121 = vsub.f32 %v898, %v1115
    %v1122 = vsub.f32 %v899, %v1115
    %v1123 = vsub.f32 %v900, %v1115
    %v1124 = vsub.f32 %v901, %v1115
    %v1125 = vsub.f32 %v902, %v1115
    %v1126 = vsub.f32 %v903, %v1115
    %v1127 = vsub.f32 %v904, %v1115
    %v1128 = vsub.f32 %v905, %v1115
    %v1129 = vsub.f32 %v906, %v1115
    %v1130 = vsub.f32 %v907, %v1115
    %v1131 = vsub.f32 %v908, %v1115
    %v1132 = vsub.f32 %v909, %v1115
    %v1133 = vsub.f32 %v910, %v1115
    %v1134 = vsub.f32 %v911, %v1115
    %v1135 = vsub.f32 %v912, %v1115
    %v1136 = vsub.f32 %v913, %v1115
    %v1137 = vsub.f32 %v914, %v1115
    %v1138 = vsub.f32 %v915, %v1115
    %v1139 = vsub.f32 %v916, %v1115
    %v1140 = vsub.f32 %v917, %v1115
    %v1141 = vsub.f32 %v918, %v1115
    %v1142 = vsub.f32 %v919, %v1115
    %v1143 = vsub.f32 %v920, %v1115
    %v1144 = vsub.f32 %v921, %v1115
    %v1145 = vsub.f32 %v922, %v1115
    %v1146 = vsub.f32 %v923, %v1115
    %v1147 = vsub.f32 %v924, %v1115
    %v1148 = vsub.f32 %v925, %v1115
    %v1149 = vsub.f32 %v926, %v1115
    %v1150 = vsub.f32 %v927, %v1115
    %v1151 = vsub.f32 %v928, %v1115
    %v1152 = vsub.f32 %v929, %v1115
    %v1153 = vsub.f32 %v930, %v1115
    %v1154 = vsub.f32 %v931, %v1115
    %v1155 = vsub.f32 %v932, %v1115
    %v1156 = vsub.f32 %v933, %v1115
    %v1157 = vsub.f32 %v934, %v1115
    %v1158 = vsub.f32 %v935, %v1115
    %v1159 = vsub.f32 %v936, %v1115
    %v1160 = vsub.f32 %v937, %v1115
    %v1161 = vsub.f32 %v938, %v1115
    %v1162 = vsub.f32 %v939, %v1115
    %v1163 = vsub.f32 %v940, %v1115
    %v1164 = vsub.f32 %v941, %v1115
    %v1165 = vsub.f32 %v942, %v1115
    %v1166 = vsub.f32 %v943, %v1115
    %v1167 = vsub.f32 %v944, %v1115
    %v1168 = vsub.f32 %v945, %v1115
    %v1169 = vsub.f32 %v946, %v1115
    %v1170 = vsub.f32 %v947, %v1115
    %v1171 = vsub.f32 %v948, %v1115
    %v1172 = vsub.f32 %v949, %v1115
    %v1173 = vsub.f32 %v950, %v1115
    %v1174 = vsub.f32 %v951, %v1115
    %v1175 = vsub.f32 %v952, %v1115
    %v1176 = vsub.f32 %v953, %v1115
    %v1177 = vsub.f32 %v954, %v1115
    %v1178 = vsub.f32 %v955, %v1115
    %v1179 = vsub.f32 %v956, %v1115
    %v1180 = vmul.f32 %v1116, %v1116
    %v1181 = vmul.f32 %v1117, %v1117
    %v1182 = vmul.f32 %v1118, %v1118
    %v1183 = vmul.f32 %v1119, %v1119
    %v1184 = vmul.f32 %v1120, %v1120
    %v1185 = vmul.f32 %v1121, %v1121
    %v1186 = vmul.f32 %v1122, %v1122
    %v1187 = vmul.f32 %v1123, %v1123
    %v1188 = vmul.f32 %v1124, %v1124
    %v1189 = vmul.f32 %v1125, %v1125
    %v1190 = vmul.f32 %v1126, %v1126
    %v1191 = vmul.f32 %v1127, %v1127
    %v1192 = vmul.f32 %v1128, %v1128
    %v1193 = vmul.f32 %v1129, %v1129
    %v1194 = vmul.f32 %v1130, %v1130
    %v1195 = vmul.f32 %v1131, %v1131
    %v1196 = vmul.f32 %v1132, %v1132
    %v1197 = vmul.f32 %v1133, %v1133
    %v1198 = vmul.f32 %v1134, %v1134
    %v1199 = vmul.f32 %v1135, %v1135
    %v1200 = vmul.f32 %v1136, %v1136
    %v1201 = vmul.f32 %v1137, %v1137
    %v1202 = vmul.f32 %v1138, %v1138
    %v1203 = vmul.f32 %v1139, %v1139
    %v1204 = vmul.f32 %v1140, %v1140
    %v1205 = vmul.f32 %v1141, %v1141
    %v1206 = vmul.f32 %v1142, %v1142
    %v1207 = vmul.f32 %v1143, %v1143
    %v1208 = vmul.f32 %v1144, %v1144
    %v1209 = vmul.f32 %v1145, %v1145
    %v1210 = vmul.f32 %v1146, %v1146
    %v1211 = vmul.f32 %v1147, %v1147
    %v1212 = vmul.f32 %v1148, %v1148
    %v1213 = vmul.f32 %v1149, %v1149
    %v1214 = vmul.f32 %v1150, %v1150
    %v1215 = vmul.f32 %v1151, %v1151
    %v1216 = vmul.f32 %v1152, %v1152
    %v1217 = vmul.f32 %v1153, %v1153
    %v1218 = vmul.f32 %v1154, %v1154
    %v1219 = vmul.f32 %v1155, %v1155
    %v1220 = vmul.f32 %v1156, %v1156
    %v1221 = vmul.f32 %v1157, %v1157
    %v1222 = vmul.f32 %v1158, %v1158
    %v1223 = vmul.f32 %v1159, %v1159
    %v1224 = vmul.f32 %v1160, %v1160
    %v1225 = vmul.f32 %v1161, %v1161
    %v1226 = vmul.f32 %v1162, %v1162
    %v1227 = vmul.f32 %v1163, %v1163
    %v1228 = vmul.f32 %v1164, %v1164
    %v1229 = vmul.f32 %v1165, %v1165
    %v1230 = vmul.f32 %v1166, %v1166
    %v1231 = vmul.f32 %v1167, %v1167
    %v1232 = vmul.f32 %v1168, %v1168
    %v1233 = vmul.f32 %v1169, %v1169
    %v1234 = vmul.f32 %v1170, %v1170
    %v1235 = vmul.f32 %v1171, %v1171
    %v1236 = vmul.f32 %v1172, %v1172
    %v1237 = vmul.f32 %v1173, %v1173
    %v1238 = vmul.f32 %v1174, %v1174
    %v1239 = vmul.f32 %v1175, %v1175
    %v1240 = vmul.f32 %v1176, %v1176
    %v1241 = vmul.f32 %v1177, %v1177
    %v1242 = vmul.f32 %v1178, %v1178
    %v1243 = vmul.f32 %v1179, %v1179
    %v1244 = vadd.f32 %v1180, %v1181
    %v1245 = vadd.f32 %v1244, %v1182
    %v1246 = vadd.f32 %v1245, %v1183
    %v1247 = vadd.f32 %v1246, %v1184
    %v1248 = vadd.f32 %v1247, %v1185
    %v1249 = vadd.f32 %v1248, %v1186
    %v1250 = vadd.f32 %v1249, %v1187
    %v1251 = vadd.f32 %v1250, %v1188
    %v1252 = vadd.f32 %v1251, %v1189
    %v1253 = vadd.f32 %v1252, %v1190
    %v1254 = vadd.f32 %v1253, %v1191
    %v1255 = vadd.f32 %v1254, %v1192
    %v1256 = vadd.f32 %v1255, %v1193
    %v1257 = vadd.f32 %v1256, %v1194
    %v1258 = vadd.f32 %v1257, %v1195
    %v1259 = vadd.f32 %v1258, %v1196
    %v1260 = vadd.f32 %v1259, %v1197
    %v1261 = vadd.f32 %v1260, %v1198
    %v1262 = vadd.f32 %v1261, %v1199
    %v1263 = vadd.f32 %v1262, %v1200
    %v1264 = vadd.f32 %v1263, %v1201
    %v1265 = vadd.f32 %v1264, %v1202
    %v1266 = vadd.f32 %v1265, %v1203
    %v1267 = vadd.f32 %v1266, %v1204
    %v1268 = vadd.f32 %v1267, %v1205
    %v1269 = vadd.f32 %v1268, %v1206
    %v1270 = vadd.f32 %v1269, %v1207
    %v1271 = vadd.f32 %v1270, %v1208
    %v1272 = vadd.f32 %v1271, %v1209
    %v1273 = vadd.f32 %v1272, %v1210
    %v1274 = vadd.f32 %v1273, %v1211
    %v1275 = vadd.f32 %v1274, %v1212
    %v1276 = vadd.f32 %v1275, %v1213
    %v1277 = vadd.f32 %v1276, %v1214
    %v1278 = vadd.f32 %v1277, %v1215
    %v1279 = vadd.f32 %v1278, %v1216
    %v1280 = vadd.f32 %v1279, %v1217
    %v1281 = vadd.f32 %v1280, %v1218
    %v1282 = vadd.f32 %v1281, %v1219
    %v1283 = vadd.f32 %v1282, %v1220
    %v1284 = vadd.f32 %v1283, %v1221
    %v1285 = vadd.f32 %v1284, %v1222
    %v1286 = vadd.f32 %v1285, %v1223
    %v1287 = vadd.f32 %v1286, %v1224
    %v1288 = vadd.f32 %v1287, %v1225
    %v1289 = vadd.f32 %v1288, %v1226
    %v1290 = vadd.f32 %v1289, %v1227
    %v1291 = vadd.f32 %v1290, %v1228
    %v1292 = vadd.f32 %v1291, %v1229
    %v1293 = vadd.f32 %v1292, %v1230
    %v1294 = vadd.f32 %v1293, %v1231
    %v1295 = vadd.f32 %v1294, %v1232
    %v1296 = vadd.f32 %v1295, %v1233
    %v1297 = vadd.f32 %v1296, %v1234
    %v1298 = vadd.f32 %v1297, %v1235
    %v1299 = vadd.f32 %v1298, %v1236
    %v1300 = vadd.f32 %v1299, %v1237
    %v1301 = vadd.f32 %v1300, %v1238
    %v1302 = vadd.f32 %v1301, %v1239
    %v1303 = vadd.f32 %v1302, %v1240
    %v1304 = vadd.f32 %v1303, %v1241
    %v1305 = vadd.f32 %v1304, %v1242
    %v1306 = vadd.f32 %v1305, %v1243
    %v1307 = vrot.slane %v1306, 4
    %v1308 = vadd.f32 %v1306, %v1307
    %v1309 = vrot.slane %v1308, 2
    %v1310 = vadd.f32 %v1308, %v1309
    %v1311 = vrot.slane %v1310, 1
    %v1312 = vadd.f32 %v1310, %v1311
    %1313 = vmatprep.subr.mxu0 0.0
    %1314 = vmatpush1.msra.mxu0 %v1026
    %1315 = vmatprep.subr.mxu0 0.0
    %1316 = vmatpush1.msra.mxu0 %v1027
    %1317 = vmatprep.subr.mxu0 0.0
    %1318 = vmatpush1.msra.mxu0 %v1028
    %1319 = vmatprep.subr.mxu0 0.0
    %1320 = vmatpush1.msra.mxu0 %v1029
    %1321 = vmatprep.subr.mxu0 0.0
    %1322 = vmatpush1.msra.mxu0 %v1030
    %1323 = vmatprep.subr.mxu0 0.0
    %1324 = vmatpush1.msra.mxu0 %v1031
    %1325 = vmatprep.subr.mxu0 0.0
    %1326 = vmatpush1.msra.mxu0 %v1032
    %1327 = vmatprep.subr.mxu0 0.0
    %1328 = vmatpush1.msra.mxu0 %v1033
    %1329 = vmatprep.subr.mxu0 0.0
    %1330 = vmatpush1.msra.mxu0 %v1034
    %1331 = vmatprep.subr.mxu0 0.0
    %1332 = vmatpush1.msra.mxu0 %v1035
    %1333 = vmatprep.subr.mxu0 0.0
    %1334 = vmatpush1.msra.mxu0 %v1036
    %1335 = vmatprep.subr.mxu0 0.0
    %1336 = vmatpush1.msra.mxu0 %v1037
    %1337 = vmatprep.subr.mxu0 0.0
    %1338 = vmatpush1.msra.mxu0 %v1038
    %1339 = vmatprep.subr.mxu0 0.0
    %1340 = vmatpush1.msra.mxu0 %v1039
    %1341 = vmatprep.subr.mxu0 0.0
    %1342 = vmatpush1.msra.mxu0 %v1040
    %1343 = vmatprep.subr.mxu0 0.0
    %1344 = vmatpush1.msra.mxu0 %v1041
    %1345 = vmatprep.subr.mxu0 0.0
    %1346 = vmatpush1.msra.mxu0 0.0
    %1347 = vmatprep.subr.mxu0 0.0
    %1348 = vmatpush1.msra.mxu0 0.0
    %1349 = vmatprep.subr.mxu0 0.0
    %1350 = vmatpush1.msra.mxu0 0.0
    %1351 = vmatprep.subr.mxu0 0.0
    %1352 = vmatpush1.msra.mxu0 0.0
    %1353 = vmatprep.subr.mxu0 0.0
    %1354 = vmatpush1.msra.mxu0 0.0
    %1355 = vmatprep.subr.mxu0 0.0
    %1356 = vmatpush1.msra.mxu0 0.0
    %1357 = vmatprep.subr.mxu0 0.0
    %1358 = vmatpush1.msra.mxu0 0.0
    %1359 = vmatprep.subr.mxu0 0.0
    %1360 = vmatpush1.msra.mxu0 0.0
    %1361 = vmatprep.subr.mxu0 0.0
    %1362 = vmatpush1.msra.mxu0 0.0
    %1363 = vmatprep.subr.mxu0 0.0
    %1364 = vmatpush1.msra.mxu0 0.0
    %1365 = vmatprep.subr.mxu0 0.0
    %1366 = vmatpush1.msra.mxu0 0.0
    %1367 = vmatprep.subr.mxu0 0.0
    %1368 = vmatpush1.msra.mxu0 0.0
    %1369 = vmatprep.subr.mxu0 0.0
    %1370 = vmatpush1.msra.mxu0 0.0
    %1371 = vmatprep.subr.mxu0 0.0
    %1372 = vmatpush1.msra.mxu0 0.0
    %1373 = vmatprep.subr.mxu0 0.0
    %1374 = vmatpush1.msra.mxu0 0.0
    %1375 = vmatprep.subr.mxu0 0.0
    %1376 = vmatpush1.msra.mxu0 0.0
    %1377 = vmatprep.mubr.f32.mxu0 0.0
    %1378 = vmatmul.mubr.f32.gmra.mrb[0].mxu0 %v1312
    %v1379 = vpop.f32.mrb[0].mxu0
    %v1380 = vadd.f32 1e-05, %v1379
    %v1381 = vpop.f32.mrb[0].mxu0
    %1382 = vdwg.mxu0
    %v1383 = vrsqrt.pop %v1380
    %v1384 = vlaneseq
    %v1385 = vshrl.u32 %v1384, 7
    %v1386 = vsub.s32 0, %v1385
    %v1387 = vrot.slane %v1383, %v1386
    %v1388 = vmul.f32 %v1116, %v1387
    %v1389 = vmul.f32 %v1117, %v1387
    %v1390 = vmul.f32 %v1118, %v1387
    %v1391 = vmul.f32 %v1119, %v1387
    %v1392 = vmul.f32 %v1120, %v1387
    %v1393 = vmul.f32 %v1121, %v1387
    %v1394 = vmul.f32 %v1122, %v1387
    %v1395 = vmul.f32 %v1123, %v1387
    %v1396 = vmul.f32 %v1124, %v1387
    %v1397 = vmul.f32 %v1125, %v1387
    %v1398 = vmul.f32 %v1126, %v1387
    %v1399 = vmul.f32 %v1127, %v1387
    %v1400 = vmul.f32 %v1128, %v1387
    %v1401 = vmul.f32 %v1129, %v1387
    %v1402 = vmul.f32 %v1130, %v1387
    %v1403 = vmul.f32 %v1131, %v1387
    %v1404 = vmul.f32 %v1132, %v1387
    %v1405 = vmul.f32 %v1133, %v1387
    %v1406 = vmul.f32 %v1134, %v1387
    %v1407 = vmul.f32 %v1135, %v1387
    %v1408 = vmul.f32 %v1136, %v1387
    %v1409 = vmul.f32 %v1137, %v1387
    %v1410 = vmul.f32 %v1138, %v1387
    %v1411 = vmul.f32 %v1139, %v1387
    %v1412 = vmul.f32 %v1140, %v1387
    %v1413 = vmul.f32 %v1141, %v1387
    %v1414 = vmul.f32 %v1142, %v1387
    %v1415 = vmul.f32 %v1143, %v1387
    %v1416 = vmul.f32 %v1144, %v1387
    %v1417 = vmul.f32 %v1145, %v1387
    %v1418 = vmul.f32 %v1146, %v1387
    %v1419 = vmul.f32 %v1147, %v1387
    %v1420 = vmul.f32 %v1148, %v1387
    %v1421 = vmul.f32 %v1149, %v1387
    %v1422 = vmul.f32 %v1150, %v1387
    %v1423 = vmul.f32 %v1151, %v1387
    %v1424 = vmul.f32 %v1152, %v1387
    %v1425 = vmul.f32 %v1153, %v1387
    %v1426 = vmul.f32 %v1154, %v1387
    %v1427 = vmul.f32 %v1155, %v1387
    %v1428 = vmul.f32 %v1156, %v1387
    %v1429 = vmul.f32 %v1157, %v1387
    %v1430 = vmul.f32 %v1158, %v1387
    %v1431 = vmul.f32 %v1159, %v1387
    %v1432 = vmul.f32 %v1160, %v1387
    %v1433 = vmul.f32 %v1161, %v1387
    %v1434 = vmul.f32 %v1162, %v1387
    %v1435 = vmul.f32 %v1163, %v1387
    %v1436 = vmul.f32 %v1164, %v1387
    %v1437 = vmul.f32 %v1165, %v1387
    %v1438 = vmul.f32 %v1166, %v1387
    %v1439 = vmul.f32 %v1167, %v1387
    %v1440 = vmul.f32 %v1168, %v1387
    %v1441 = vmul.f32 %v1169, %v1387
    %v1442 = vmul.f32 %v1170, %v1387
    %v1443 = vmul.f32 %v1171, %v1387
    %v1444 = vmul.f32 %v1172, %v1387
    %v1445 = vmul.f32 %v1173, %v1387
    %v1446 = vmul.f32 %v1174, %v1387
    %v1447 = vmul.f32 %v1175, %v1387
    %v1448 = vmul.f32 %v1176, %v1387
    %v1449 = vmul.f32 %v1177, %v1387
    %v1450 = vmul.f32 %v1178, %v1387
    %v1451 = vmul.f32 %v1179, %v1387
    %v1452 = vld [vmem:[%s2] sm:$0x1]
    %v1454 = vlaneseq
    %v1455 = vshrl.u32 %v1454, 7
    %v1456 = vsub.s32 0, %v1455
    %v1457 = vrot.slane %v1452, %v1456
    %v1459 = vmul.f32 %v1388, %v1457
    %v1460 = vmul.f32 %v1389, %v1457
    %v1461 = vmul.f32 %v1390, %v1457
    %v1462 = vmul.f32 %v1391, %v1457
    %v1463 = vmul.f32 %v1392, %v1457
    %v1464 = vmul.f32 %v1393, %v1457
    %v1465 = vmul.f32 %v1394, %v1457
    %v1466 = vmul.f32 %v1395, %v1457
    %v1467 = vmul.f32 %v1396, %v1457
    %v1468 = vmul.f32 %v1397, %v1457
    %v1469 = vmul.f32 %v1398, %v1457
    %v1470 = vmul.f32 %v1399, %v1457
    %v1471 = vmul.f32 %v1400, %v1457
    %v1472 = vmul.f32 %v1401, %v1457
    %v1473 = vmul.f32 %v1402, %v1457
    %v1474 = vmul.f32 %v1403, %v1457
    %v1475 = vmul.f32 %v1404, %v1457
    %v1476 = vmul.f32 %v1405, %v1457
    %v1477 = vmul.f32 %v1406, %v1457
    %v1478 = vmul.f32 %v1407, %v1457
    %v1479 = vmul.f32 %v1408, %v1457
    %v1480 = vmul.f32 %v1409, %v1457
    %v1481 = vmul.f32 %v1410, %v1457
    %v1482 = vmul.f32 %v1411, %v1457
    %v1483 = vmul.f32 %v1412, %v1457
    %v1484 = vmul.f32 %v1413, %v1457
    %v1485 = vmul.f32 %v1414, %v1457
    %v1486 = vmul.f32 %v1415, %v1457
    %v1487 = vmul.f32 %v1416, %v1457
    %v1488 = vmul.f32 %v1417, %v1457
    %v1489 = vmul.f32 %v1418, %v1457
    %v1490 = vmul.f32 %v1419, %v1457
    %v1491 = vmul.f32 %v1420, %v1457
    %v1492 = vmul.f32 %v1421, %v1457
    %v1493 = vmul.f32 %v1422, %v1457
    %v1494 = vmul.f32 %v1423, %v1457
    %v1495 = vmul.f32 %v1424, %v1457
    %v1496 = vmul.f32 %v1425, %v1457
    %v1497 = vmul.f32 %v1426, %v1457
    %v1498 = vmul.f32 %v1427, %v1457
    %v1499 = vmul.f32 %v1428, %v1457
    %v1500 = vmul.f32 %v1429, %v1457
    %v1501 = vmul.f32 %v1430, %v1457
    %v1502 = vmul.f32 %v1431, %v1457
    %v1503 = vmul.f32 %v1432, %v1457
    %v1504 = vmul.f32 %v1433, %v1457
    %v1505 = vmul.f32 %v1434, %v1457
    %v1506 = vmul.f32 %v1435, %v1457
    %v1507 = vmul.f32 %v1436, %v1457
    %v1508 = vmul.f32 %v1437, %v1457
    %v1509 = vmul.f32 %v1438, %v1457
    %v1510 = vmul.f32 %v1439, %v1457
    %v1511 = vmul.f32 %v1440, %v1457
    %v1512 = vmul.f32 %v1441, %v1457
    %v1513 = vmul.f32 %v1442, %v1457
    %v1514 = vmul.f32 %v1443, %v1457
    %v1515 = vmul.f32 %v1444, %v1457
    %v1516 = vmul.f32 %v1445, %v1457
    %v1517 = vmul.f32 %v1446, %v1457
    %v1518 = vmul.f32 %v1447, %v1457
    %v1519 = vmul.f32 %v1448, %v1457
    %v1520 = vmul.f32 %v1449, %v1457
    %v1521 = vmul.f32 %v1450, %v1457
    %v1522 = vmul.f32 %v1451, %v1457
    %v1523 = vld [vmem:[%s3] sm:$0x1]
    %v1525 = vlaneseq
    %v1526 = vshrl.u32 %v1525, 7
    %v1527 = vsub.s32 0, %v1526
    %v1528 = vrot.slane %v1523, %v1527
    %v1530 = vadd.f32 %v1459, %v1528
    %v1531 = vadd.f32 %v1460, %v1528
    %v1532 = vadd.f32 %v1461, %v1528
    %v1533 = vadd.f32 %v1462, %v1528
    %v1534 = vadd.f32 %v1463, %v1528
    %v1535 = vadd.f32 %v1464, %v1528
    %v1536 = vadd.f32 %v1465, %v1528
    %v1537 = vadd.f32 %v1466, %v1528
    %v1538 = vadd.f32 %v1467, %v1528
    %v1539 = vadd.f32 %v1468, %v1528
    %v1540 = vadd.f32 %v1469, %v1528
    %v1541 = vadd.f32 %v1470, %v1528
    %v1542 = vadd.f32 %v1471, %v1528
    %v1543 = vadd.f32 %v1472, %v1528
    %v1544 = vadd.f32 %v1473, %v1528
    %v1545 = vadd.f32 %v1474, %v1528
    %v1546 = vadd.f32 %v1475, %v1528
    %v1547 = vadd.f32 %v1476, %v1528
    %v1548 = vadd.f32 %v1477, %v1528
    %v1549 = vadd.f32 %v1478, %v1528
    %v1550 = vadd.f32 %v1479, %v1528
    %v1551 = vadd.f32 %v1480, %v1528
    %v1552 = vadd.f32 %v1481, %v1528
    %v1553 = vadd.f32 %v1482, %v1528
    %v1554 = vadd.f32 %v1483, %v1528
    %v1555 = vadd.f32 %v1484, %v1528
    %v1556 = vadd.f32 %v1485, %v1528
    %v1557 = vadd.f32 %v1486, %v1528
    %v1558 = vadd.f32 %v1487, %v1528
    %v1559 = vadd.f32 %v1488, %v1528
    %v1560 = vadd.f32 %v1489, %v1528
    %v1561 = vadd.f32 %v1490, %v1528
    %v1562 = vadd.f32 %v1491, %v1528
    %v1563 = vadd.f32 %v1492, %v1528
    %v1564 = vadd.f32 %v1493, %v1528
    %v1565 = vadd.f32 %v1494, %v1528
    %v1566 = vadd.f32 %v1495, %v1528
    %v1567 = vadd.f32 %v1496, %v1528
    %v1568 = vadd.f32 %v1497, %v1528
    %v1569 = vadd.f32 %v1498, %v1528
    %v1570 = vadd.f32 %v1499, %v1528
    %v1571 = vadd.f32 %v1500, %v1528
    %v1572 = vadd.f32 %v1501, %v1528
    %v1573 = vadd.f32 %v1502, %v1528
    %v1574 = vadd.f32 %v1503, %v1528
    %v1575 = vadd.f32 %v1504, %v1528
    %v1576 = vadd.f32 %v1505, %v1528
    %v1577 = vadd.f32 %v1506, %v1528
    %v1578 = vadd.f32 %v1507, %v1528
    %v1579 = vadd.f32 %v1508, %v1528
    %v1580 = vadd.f32 %v1509, %v1528
    %v1581 = vadd.f32 %v1510, %v1528
    %v1582 = vadd.f32 %v1511, %v1528
    %v1583 = vadd.f32 %v1512, %v1528
    %v1584 = vadd.f32 %v1513, %v1528
    %v1585 = vadd.f32 %v1514, %v1528
    %v1586 = vadd.f32 %v1515, %v1528
    %v1587 = vadd.f32 %v1516, %v1528
    %v1588 = vadd.f32 %v1517, %v1528
    %v1589 = vadd.f32 %v1518, %v1528
    %v1590 = vadd.f32 %v1519, %v1528
    %v1591 = vadd.f32 %v1520, %v1528
    %v1592 = vadd.f32 %v1521, %v1528
    %v1593 = vadd.f32 %v1522, %v1528
    %v1594 = vmax.f32 %v1530, 0.0
    %v1595 = vmax.f32 %v1531, 0.0
    %v1596 = vmax.f32 %v1532, 0.0
    %v1597 = vmax.f32 %v1533, 0.0
    %v1598 = vmax.f32 %v1534, 0.0
    %v1599 = vmax.f32 %v1535, 0.0
    %v1600 = vmax.f32 %v1536, 0.0
    %v1601 = vmax.f32 %v1537, 0.0
    %v1602 = vmax.f32 %v1538, 0.0
    %v1603 = vmax.f32 %v1539, 0.0
    %v1604 = vmax.f32 %v1540, 0.0
    %v1605 = vmax.f32 %v1541, 0.0
    %v1606 = vmax.f32 %v1542, 0.0
    %v1607 = vmax.f32 %v1543, 0.0
    %v1608 = vmax.f32 %v1544, 0.0
    %v1609 = vmax.f32 %v1545, 0.0
    %v1610 = vmax.f32 %v1546, 0.0
    %v1611 = vmax.f32 %v1547, 0.0
    %v1612 = vmax.f32 %v1548, 0.0
    %v1613 = vmax.f32 %v1549, 0.0
    %v1614 = vmax.f32 %v1550, 0.0
    %v1615 = vmax.f32 %v1551, 0.0
    %v1616 = vmax.f32 %v1552, 0.0
    %v1617 = vmax.f32 %v1553, 0.0
    %v1618 = vmax.f32 %v1554, 0.0
    %v1619 = vmax.f32 %v1555, 0.0
    %v1620 = vmax.f32 %v1556, 0.0
    %v1621 = vmax.f32 %v1557, 0.0
    %v1622 = vmax.f32 %v1558, 0.0
    %v1623 = vmax.f32 %v1559, 0.0
    %v1624 = vmax.f32 %v1560, 0.0
    %v1625 = vmax.f32 %v1561, 0.0
    %v1626 = vmax.f32 %v1562, 0.0
    %v1627 = vmax.f32 %v1563, 0.0
    %v1628 = vmax.f32 %v1564, 0.0
    %v1629 = vmax.f32 %v1565, 0.0
    %v1630 = vmax.f32 %v1566, 0.0
    %v1631 = vmax.f32 %v1567, 0.0
    %v1632 = vmax.f32 %v1568, 0.0
    %v1633 = vmax.f32 %v1569, 0.0
    %v1634 = vmax.f32 %v1570, 0.0
    %v1635 = vmax.f32 %v1571, 0.0
    %v1636 = vmax.f32 %v1572, 0.0
    %v1637 = vmax.f32 %v1573, 0.0
    %v1638 = vmax.f32 %v1574, 0.0
    %v1639 = vmax.f32 %v1575, 0.0
    %v1640 = vmax.f32 %v1576, 0.0
    %v1641 = vmax.f32 %v1577, 0.0
    %v1642 = vmax.f32 %v1578, 0.0
    %v1643 = vmax.f32 %v1579, 0.0
    %v1644 = vmax.f32 %v1580, 0.0
    %v1645 = vmax.f32 %v1581, 0.0
    %v1646 = vmax.f32 %v1582, 0.0
    %v1647 = vmax.f32 %v1583, 0.0
    %v1648 = vmax.f32 %v1584, 0.0
    %v1649 = vmax.f32 %v1585, 0.0
    %v1650 = vmax.f32 %v1586, 0.0
    %v1651 = vmax.f32 %v1587, 0.0
    %v1652 = vmax.f32 %v1588, 0.0
    %v1653 = vmax.f32 %v1589, 0.0
    %v1654 = vmax.f32 %v1590, 0.0
    %v1655 = vmax.f32 %v1591, 0.0
    %v1656 = vmax.f32 %v1592, 0.0
    %v1657 = vmax.f32 %v1593, 0.0
    %1658 = vst [vmem:[%s5] sm:$0xff] %v1594
    %1659 = vst [vmem:[%s5 + $0x8] sm:$0xff] %v1595
    %1660 = vst [vmem:[%s5 + $0x10] sm:$0xff] %v1596
    %1661 = vst [vmem:[%s5 + $0x18] sm:$0xff] %v1597
    %1662 = vst [vmem:[%s5 + $0x20] sm:$0xff] %v1598
    %1663 = vst [vmem:[%s5 + $0x28] sm:$0xff] %v1599
    %1664 = vst [vmem:[%s5 + $0x30] sm:$0xff] %v1600
    %1665 = vst [vmem:[%s5 + $0x38] sm:$0xff] %v1601
    %1666 = vst [vmem:[%s5 + $0x40] sm:$0xff] %v1602
    %1667 = vst [vmem:[%s5 + $0x48] sm:$0xff] %v1603
    %1668 = vst [vmem:[%s5 + $0x50] sm:$0xff] %v1604
    %1669 = vst [vmem:[%s5 + $0x58] sm:$0xff] %v1605
    %1670 = vst [vmem:[%s5 + $0x60] sm:$0xff] %v1606
    %1671 = vst [vmem:[%s5 + $0x68] sm:$0xff] %v1607
    %1672 = vst [vmem:[%s5 + $0x70] sm:$0xff] %v1608
    %1673 = vst [vmem:[%s5 + $0x78] sm:$0xff] %v1609
    %1674 = vst [vmem:[%s5 + $0x80] sm:$0xff] %v1610
    %1675 = vst [vmem:[%s5 + $0x88] sm:$0xff] %v1611
    %1676 = vst [vmem:[%s5 + $0x90] sm:$0xff] %v1612
    %1677 = vst [vmem:[%s5 + $0x98] sm:$0xff] %v1613
    %1678 = vst [vmem:[%s5 + $0xa0] sm:$0xff] %v1614
    %1679 = vst [vmem:[%s5 + $0xa8] sm:$0xff] %v1615
    %1680 = vst [vmem:[%s5 + $0xb0] sm:$0xff] %v1616
    %1681 = vst [vmem:[%s5 + $0xb8] sm:$0xff] %v1617
    %1682 = vst [vmem:[%s5 + $0xc0] sm:$0xff] %v1618
    %1683 = vst [vmem:[%s5 + $0xc8] sm:$0xff] %v1619
    %1684 = vst [vmem:[%s5 + $0xd0] sm:$0xff] %v1620
    %1685 = vst [vmem:[%s5 + $0xd8] sm:$0xff] %v1621
    %1686 = vst [vmem:[%s5 + $0xe0] sm:$0xff] %v1622
    %1687 = vst [vmem:[%s5 + $0xe8] sm:$0xff] %v1623
    %1688 = vst [vmem:[%s5 + $0xf0] sm:$0xff] %v1624
    %1689 = vst [vmem:[%s5 + $0xf8] sm:$0xff] %v1625
    %1690 = vst [vmem:[%s5 + $0x100] sm:$0xff] %v1626
    %1691 = vst [vmem:[%s5 + $0x108] sm:$0xff] %v1627
    %1692 = vst [vmem:[%s5 + $0x110] sm:$0xff] %v1628
    %1693 = vst [vmem:[%s5 + $0x118] sm:$0xff] %v1629
    %1694 = vst [vmem:[%s5 + $0x120] sm:$0xff] %v1630
    %1695 = vst [vmem:[%s5 + $0x128] sm:$0xff] %v1631
    %1696 = vst [vmem:[%s5 + $0x130] sm:$0xff] %v1632
    %1697 = vst [vmem:[%s5 + $0x138] sm:$0xff] %v1633
    %1698 = vst [vmem:[%s5 + $0x140] sm:$0xff] %v1634
    %1699 = vst [vmem:[%s5 + $0x148] sm:$0xff] %v1635
    %1700 = vst [vmem:[%s5 + $0x150] sm:$0xff] %v1636
    %1701 = vst [vmem:[%s5 + $0x158] sm:$0xff] %v1637
    %1702 = vst [vmem:[%s5 + $0x160] sm:$0xff] %v1638
    %1703 = vst [vmem:[%s5 + $0x168] sm:$0xff] %v1639
    %1704 = vst [vmem:[%s5 + $0x170] sm:$0xff] %v1640
    %1705 = vst [vmem:[%s5 + $0x178] sm:$0xff] %v1641
    %1706 = vst [vmem:[%s5 + $0x180] sm:$0xff] %v1642
    %1707 = vst [vmem:[%s5 + $0x188] sm:$0xff] %v1643
    %1708 = vst [vmem:[%s5 + $0x190] sm:$0xff] %v1644
    %1709 = vst [vmem:[%s5 + $0x198] sm:$0xff] %v1645
    %1710 = vst [vmem:[%s5 + $0x1a0] sm:$0xff] %v1646
    %1711 = vst [vmem:[%s5 + $0x1a8] sm:$0xff] %v1647
    %1712 = vst [vmem:[%s5 + $0x1b0] sm:$0xff] %v1648
    %1713 = vst [vmem:[%s5 + $0x1b8] sm:$0xff] %v1649
    %1714 = vst [vmem:[%s5 + $0x1c0] sm:$0xff] %v1650
    %1715 = vst [vmem:[%s5 + $0x1c8] sm:$0xff] %v1651
    %1716 = vst [vmem:[%s5 + $0x1d0] sm:$0xff] %v1652
    %1717 = vst [vmem:[%s5 + $0x1d8] sm:$0xff] %v1653
    %1718 = vst [vmem:[%s5 + $0x1e0] sm:$0xff] %v1654
    %1719 = vst [vmem:[%s5 + $0x1e8] sm:$0xff] %v1655
    %1720 = vst [vmem:[%s5 + $0x1f0] sm:$0xff] %v1656
    %1721 = vst [vmem:[%s5 + $0x1f8] sm:$0xff] %v1657
  $region29: #{generator_forward.19} parent=0 // pred_fallthru
    _
  // Predicated region
  $region30: #{generator_forward.19} parent=0 // pred_check
    _
  $region31: #{generator_forward.19} parent=0 // pred_check_branch
    %1723 = sbr.rel (0) target = $region33
  $region32: #{generator_forward.19} parent=0 // pred_region
    _
  $region33: #{generator_forward.19} parent=0 // pred_fallthru
    _
  // Predicated region
  $region34: #{generator_forward.19} parent=0 // pred_check
    _
  $region35: #{generator_forward.19} parent=0 // pred_check_branch
    %1725 = sbr.rel (0) target = $region37
  $region36: #{generator_forward.19} parent=0 // pred_region
    _
  $region37: #{generator_forward.19} parent=0 // pred_fallthru
    _

// kernel: generator_forward.20
$region0: #{generator_forward.20}
  #allocation0 [shape = 'u32[]', space=smem, size = 0x4, offset = 0x4, fixed_abs, tag = 'smem constant byte address 0x4 - core index']
  #allocation1 [shape = 'u32[144,128]{1,0:T(1,128)}', space=vmem, size = 0x12000, scoped, tag = 'internal scratch']
  #allocation2 [shape = 'f32[128,128]{1,0:T(8,128)}', space=vmem, size = 0x10000, scoped, tag = 'scratch operand']
  %s0 = inlined_call_operand.vmem [shape: bf16[128,128], index: 0, kind: input, shape index: {}]
  %s1 = inlined_call_operand.vmem [shape: bf16[128,128], index: 1, kind: input, shape index: {}]
  %s2 = inlined_call_operand.vmem [shape: f32[1,128], index: 2, kind: input, shape index: {}]
  %s3 = inlined_call_operand.vmem [shape: f32[1,128], index: 3, kind: input, shape index: {}]
  %s4 = inlined_call_operand.vmem [shape: f32[128,128], index: 4, kind: input, shape index: {}]
  %s5 = inlined_call_operand.vmem [shape: f32[128,128], index: 5, kind: output, shape index: {}]
  %s6 = sld [smem:[#allocation0]]
  $region38: #{generator_forward.20} parent=0
    _
  %s8 = ssub.s32 1, %s6
  %s9 = scalar_select 0, %s8, %s6
  // Predicated region
  $region2: #{generator_forward.20} parent=0 // pred_check
    _
  $region3: #{generator_forward.20} parent=0 // pred_check_branch
    %11 = sbr.rel (0) target = $region5
  $region4: #{generator_forward.20} parent=0 // pred_region
    _
  $region5: #{generator_forward.20} parent=0 // pred_fallthru
    _
  // Predicated region
  $region6: #{generator_forward.20} parent=0 // pred_check
    _
  $region7: #{generator_forward.20} parent=0 // pred_check_branch
    %13 = sbr.rel (0) target = $region9
  $region8: #{generator_forward.20} parent=0 // pred_region
    _
  $region9: #{generator_forward.20} parent=0 // pred_fallthru
    _
  // Predicated region
  $region10: #{generator_forward.20} parent=0 // pred_check
    _
  $region11: #{generator_forward.20} parent=0 // pred_check_branch
    %15 = sbr.rel (0) target = $region13
  $region12: #{generator_forward.20} parent=0 // pred_region
    _
  $region13: #{generator_forward.20} parent=0 // pred_fallthru
    _
  // Predicated region
  $region14: #{generator_forward.20} parent=0 // pred_check
    _
  $region15: #{generator_forward.20} parent=0 // pred_check_branch
    %17 = sbr.rel (0) target = $region17
  $region16: #{generator_forward.20} parent=0 // pred_region
    _
  $region17: #{generator_forward.20} parent=0 // pred_fallthru
    _
  // Predicated region
  $region18: #{generator_forward.20} parent=0 // pred_check
    _
  $region19: #{generator_forward.20} parent=0 // pred_check_branch
    %19 = sbr.rel (0) target = $region21
  $region20: #{generator_forward.20} parent=0 // pred_region
    _
  $region21: #{generator_forward.20} parent=0 // pred_fallthru
    _
  %p21 = scmp.eq.s32.totalorder 0, 0
  // Predicated region
  $region22: #{generator_forward.20} parent=0 // pred_check
    %p22 = pneg %p21
  $region23: #{generator_forward.20} parent=0 // pred_check_branch
    %24 = sbr.rel (%p22) target = $region25
  $region24: #{generator_forward.20} parent=0 // pred_region
    %25 = vst [vmem:[#allocation2] sm:$0xff] 0.0
    %26 = vst [vmem:[#allocation2 + $0x8] sm:$0xff] 0.0
    %27 = vst [vmem:[#allocation2 + $0x10] sm:$0xff] 0.0
    %28 = vst [vmem:[#allocation2 + $0x18] sm:$0xff] 0.0
    %29 = vst [vmem:[#allocation2 + $0x20] sm:$0xff] 0.0
    %30 = vst [vmem:[#allocation2 + $0x28] sm:$0xff] 0.0
    %31 = vst [vmem:[#allocation2 + $0x30] sm:$0xff] 0.0
    %32 = vst [vmem:[#allocation2 + $0x38] sm:$0xff] 0.0
    %33 = vst [vmem:[#allocation2 + $0x40] sm:$0xff] 0.0
    %34 = vst [vmem:[#allocation2 + $0x48] sm:$0xff] 0.0
    %35 = vst [vmem:[#allocation2 + $0x50] sm:$0xff] 0.0
    %36 = vst [vmem:[#allocation2 + $0x58] sm:$0xff] 0.0
    %37 = vst [vmem:[#allocation2 + $0x60] sm:$0xff] 0.0
    %38 = vst [vmem:[#allocation2 + $0x68] sm:$0xff] 0.0
    %39 = vst [vmem:[#allocation2 + $0x70] sm:$0xff] 0.0
    %40 = vst [vmem:[#allocation2 + $0x78] sm:$0xff] 0.0
  $region25: #{generator_forward.20} parent=0 // pred_fallthru
    _
  %v41 = vld [vmem:[#allocation2] sm:$0xff]
  %v42 = vld [vmem:[#allocation2 + $0x8] sm:$0xff]
  %v43 = vld [vmem:[#allocation2 + $0x10] sm:$0xff]
  %v44 = vld [vmem:[#allocation2 + $0x18] sm:$0xff]
  %v45 = vld [vmem:[#allocation2 + $0x20] sm:$0xff]
  %v46 = vld [vmem:[#allocation2 + $0x28] sm:$0xff]
  %v47 = vld [vmem:[#allocation2 + $0x30] sm:$0xff]
  %v48 = vld [vmem:[#allocation2 + $0x38] sm:$0xff]
  %v49 = vld [vmem:[#allocation2 + $0x40] sm:$0xff]
  %v50 = vld [vmem:[#allocation2 + $0x48] sm:$0xff]
  %v51 = vld [vmem:[#allocation2 + $0x50] sm:$0xff]
  %v52 = vld [vmem:[#allocation2 + $0x58] sm:$0xff]
  %v53 = vld [vmem:[#allocation2 + $0x60] sm:$0xff]
  %v54 = vld [vmem:[#allocation2 + $0x68] sm:$0xff]
  %v55 = vld [vmem:[#allocation2 + $0x70] sm:$0xff]
  %v56 = vld [vmem:[#allocation2 + $0x78] sm:$0xff]
  %v57 = vld [vmem:[%s0] sm:$0xf]
  %v58 = vld [vmem:[%s0 + $0x4] sm:$0xf]
  %v59 = vld [vmem:[%s0 + $0x8] sm:$0xf]
  %v60 = vld [vmem:[%s0 + $0xc] sm:$0xf]
  %v61 = vld [vmem:[%s0 + $0x10] sm:$0xf]
  %v62 = vld [vmem:[%s0 + $0x14] sm:$0xf]
  %v63 = vld [vmem:[%s0 + $0x18] sm:$0xf]
  %v64 = vld [vmem:[%s0 + $0x1c] sm:$0xf]
  %v65 = vld [vmem:[%s0 + $0x20] sm:$0xf]
  %v66 = vld [vmem:[%s0 + $0x24] sm:$0xf]
  %v67 = vld [vmem:[%s0 + $0x28] sm:$0xf]
  %v68 = vld [vmem:[%s0 + $0x2c] sm:$0xf]
  %v69 = vld [vmem:[%s0 + $0x30] sm:$0xf]
  %v70 = vld [vmem:[%s0 + $0x34] sm:$0xf]
  %v71 = vld [vmem:[%s0 + $0x38] sm:$0xf]
  %v72 = vld [vmem:[%s0 + $0x3c] sm:$0xf]
  %v73 = vld [vmem:[%s1] sm:$0xf]
  %v74 = vld [vmem:[%s1 + $0x4] sm:$0xf]
  %v75 = vld [vmem:[%s1 + $0x8] sm:$0xf]
  %v76 = vld [vmem:[%s1 + $0xc] sm:$0xf]
  %v77 = vld [vmem:[%s1 + $0x10] sm:$0xf]
  %v78 = vld [vmem:[%s1 + $0x14] sm:$0xf]
  %v79 = vld [vmem:[%s1 + $0x18] sm:$0xf]
  %v80 = vld [vmem:[%s1 + $0x1c] sm:$0xf]
  %v81 = vld [vmem:[%s1 + $0x20] sm:$0xf]
  %v82 = vld [vmem:[%s1 + $0x24] sm:$0xf]
  %v83 = vld [vmem:[%s1 + $0x28] sm:$0xf]
  %v84 = vld [vmem:[%s1 + $0x2c] sm:$0xf]
  %v85 = vld [vmem:[%s1 + $0x30] sm:$0xf]
  %v86 = vld [vmem:[%s1 + $0x34] sm:$0xf]
  %v87 = vld [vmem:[%s1 + $0x38] sm:$0xf]
  %v88 = vld [vmem:[%s1 + $0x3c] sm:$0xf]
  %v105 = vunpack.c.l.b16 %v57
  %v106 = vunpack.c.l.b16 %v58
  %v107 = vunpack.c.l.b16 %v59
  %v108 = vunpack.c.l.b16 %v60
  %v109 = vunpack.c.l.b16 %v61
  %v110 = vunpack.c.l.b16 %v62
  %v111 = vunpack.c.l.b16 %v63
  %v112 = vunpack.c.l.b16 %v64
  %v113 = vunpack.c.l.b16 %v65
  %v114 = vunpack.c.l.b16 %v66
  %v115 = vunpack.c.l.b16 %v67
  %v116 = vunpack.c.l.b16 %v68
  %v117 = vunpack.c.l.b16 %v69
  %v118 = vunpack.c.l.b16 %v70
  %v119 = vunpack.c.l.b16 %v71
  %v120 = vunpack.c.l.b16 %v72
  %v121 = vpack.c.b16 %v106, %v105
  %v122 = vpack.c.b16 %v108, %v107
  %v123 = vpack.c.b16 %v110, %v109
  %v124 = vpack.c.b16 %v112, %v111
  %v125 = vpack.c.b16 %v114, %v113
  %v126 = vpack.c.b16 %v116, %v115
  %v127 = vpack.c.b16 %v118, %v117
  %v128 = vpack.c.b16 %v120, %v119
  %v153 = vunpack.c.l.b16 %v73
  %v154 = vunpack.c.l.b16 %v74
  %v155 = vunpack.c.l.b16 %v75
  %v156 = vunpack.c.l.b16 %v76
  %v157 = vunpack.c.l.b16 %v77
  %v158 = vunpack.c.l.b16 %v78
  %v159 = vunpack.c.l.b16 %v79
  %v160 = vunpack.c.l.b16 %v80
  %v161 = vunpack.c.l.b16 %v81
  %v162 = vunpack.c.l.b16 %v82
  %v163 = vunpack.c.l.b16 %v83
  %v164 = vunpack.c.l.b16 %v84
  %v165 = vunpack.c.l.b16 %v85
  %v166 = vunpack.c.l.b16 %v86
  %v167 = vunpack.c.l.b16 %v87
  %v168 = vunpack.c.l.b16 %v88
  %v169 = vpack.c.b16 %v154, %v153
  %v170 = vpack.c.b16 %v156, %v155
  %v171 = vpack.c.b16 %v158, %v157
  %v172 = vpack.c.b16 %v160, %v159
  %v173 = vpack.c.b16 %v162, %v161
  %v174 = vpack.c.b16 %v164, %v163
  %v175 = vpack.c.b16 %v166, %v165
  %v176 = vpack.c.b16 %v168, %v167
  %185 = vmatprep.subr.bf16.mxu0 0
  %186 = vmatpush1.bf16.msra.mxu0 %v169
  %187 = vmatprep.subr.bf16.mxu0 0
  %188 = vmatpush1.bf16.msra.mxu0 %v170
  %189 = vmatprep.subr.bf16.mxu0 0
  %190 = vmatpush1.bf16.msra.mxu0 %v171
  %191 = vmatprep.subr.bf16.mxu0 0
  %192 = vmatpush1.bf16.msra.mxu0 %v172
  %193 = vmatprep.subr.bf16.mxu0 0
  %194 = vmatpush1.bf16.msra.mxu0 %v173
  %195 = vmatprep.subr.bf16.mxu0 0
  %196 = vmatpush1.bf16.msra.mxu0 %v174
  %197 = vmatprep.subr.bf16.mxu0 0
  %198 = vmatpush1.bf16.msra.mxu0 %v175
  %199 = vmatprep.subr.bf16.mxu0 0
  %200 = vmatpush1.bf16.msra.mxu0 %v176
  %201 = vmatprep.subr.bf16.mxu0 0
  %202 = vmatpush1.bf16.msra.mxu0 0
  %203 = vmatprep.subr.bf16.mxu0 0
  %204 = vmatpush1.bf16.msra.mxu0 0
  %205 = vmatprep.subr.bf16.mxu0 0
  %206 = vmatpush1.bf16.msra.mxu0 0
  %207 = vmatprep.subr.bf16.mxu0 0
  %208 = vmatpush1.bf16.msra.mxu0 0
  %209 = vmatprep.subr.bf16.mxu0 0
  %210 = vmatpush1.bf16.msra.mxu0 0
  %211 = vmatprep.subr.bf16.mxu0 0
  %212 = vmatpush1.bf16.msra.mxu0 0
  %213 = vmatprep.subr.bf16.mxu0 0
  %214 = vmatpush1.bf16.msra.mxu0 0
  %215 = vmatprep.subr.bf16.mxu0 0
  %216 = vmatpush1.bf16.msra.mxu0 0
  %217 = vmatprep.mubr.bf16.mxu0 0
  %218 = vmatmul.mubr.bf16.gmra.mrb[0].mxu0 %v121
  %v219 = vpop.f32.mrb[0].mxu0
  %v220 = vadd.f32 0.0, %v219
  %v221 = vpop.f32.mrb[0].mxu0
  %v222 = vpop.f32.mrb[0].mxu0
  %v223 = vadd.f32 0.0, %v222
  %v224 = vpop.f32.mrb[0].mxu0
  %225 = vmatprep.mubr.bf16.mxu0 0
  %226 = vmatmul.mubr.bf16.gmra.mrb[0].mxu0 %v122
  %v227 = vpop.f32.mrb[0].mxu0
  %v228 = vadd.f32 0.0, %v227
  %v229 = vpop.f32.mrb[0].mxu0
  %v230 = vpop.f32.mrb[0].mxu0
  %v231 = vadd.f32 0.0, %v230
  %v232 = vpop.f32.mrb[0].mxu0
  %233 = vmatprep.mubr.bf16.mxu0 0
  %234 = vmatmul.mubr.bf16.gmra.mrb[0].mxu0 %v123
  %v235 = vpop.f32.mrb[0].mxu0
  %v236 = vadd.f32 0.0, %v235
  %v237 = vpop.f32.mrb[0].mxu0
  %v238 = vpop.f32.mrb[0].mxu0
  %v239 = vadd.f32 0.0, %v238
  %v240 = vpop.f32.mrb[0].mxu0
  %241 = vmatprep.mubr.bf16.mxu0 0
  %242 = vmatmul.mubr.bf16.gmra.mrb[0].mxu0 %v124
  %v243 = vpop.f32.mrb[0].mxu0
  %v244 = vadd.f32 0.0, %v243
  %v245 = vpop.f32.mrb[0].mxu0
  %v246 = vpop.f32.mrb[0].mxu0
  %v247 = vadd.f32 0.0, %v246
  %v248 = vpop.f32.mrb[0].mxu0
  %249 = vmatprep.mubr.bf16.mxu0 0
  %250 = vmatmul.mubr.bf16.gmra.mrb[0].mxu0 %v125
  %v251 = vpop.f32.mrb[0].mxu0
  %v252 = vadd.f32 0.0, %v251
  %v253 = vpop.f32.mrb[0].mxu0
  %v254 = vpop.f32.mrb[0].mxu0
  %v255 = vadd.f32 0.0, %v254
  %v256 = vpop.f32.mrb[0].mxu0
  %257 = vmatprep.mubr.bf16.mxu0 0
  %258 = vmatmul.mubr.bf16.gmra.mrb[0].mxu0 %v126
  %v259 = vpop.f32.mrb[0].mxu0
  %v260 = vadd.f32 0.0, %v259
  %v261 = vpop.f32.mrb[0].mxu0
  %v262 = vpop.f32.mrb[0].mxu0
  %v263 = vadd.f32 0.0, %v262
  %v264 = vpop.f32.mrb[0].mxu0
  %265 = vmatprep.mubr.bf16.mxu0 0
  %266 = vmatmul.mubr.bf16.gmra.mrb[0].mxu0 %v127
  %v267 = vpop.f32.mrb[0].mxu0
  %v268 = vadd.f32 0.0, %v267
  %v269 = vpop.f32.mrb[0].mxu0
  %v270 = vpop.f32.mrb[0].mxu0
  %v271 = vadd.f32 0.0, %v270
  %v272 = vpop.f32.mrb[0].mxu0
  %273 = vmatprep.mubr.bf16.mxu0 0
  %274 = vmatmul.mubr.bf16.gmra.mrb[0].mxu0 %v128
  %v275 = vpop.f32.mrb[0].mxu0
  %v276 = vadd.f32 0.0, %v275
  %v277 = vpop.f32.mrb[0].mxu0
  %v278 = vpop.f32.mrb[0].mxu0
  %v279 = vadd.f32 0.0, %v278
  %v280 = vpop.f32.mrb[0].mxu0
  %281 = vdwg.mxu0
  %v282 = vadd.f32 %v41, %v220
  %v283 = vadd.f32 %v42, %v223
  %v284 = vadd.f32 %v43, %v228
  %v285 = vadd.f32 %v44, %v231
  %v286 = vadd.f32 %v45, %v236
  %v287 = vadd.f32 %v46, %v239
  %v288 = vadd.f32 %v47, %v244
  %v289 = vadd.f32 %v48, %v247
  %v290 = vadd.f32 %v49, %v252
  %v291 = vadd.f32 %v50, %v255
  %v292 = vadd.f32 %v51, %v260
  %v293 = vadd.f32 %v52, %v263
  %v294 = vadd.f32 %v53, %v268
  %v295 = vadd.f32 %v54, %v271
  %v296 = vadd.f32 %v55, %v276
  %v297 = vadd.f32 %v56, %v279
  %298 = vst [vmem:[#allocation2] sm:$0xff] %v282
  %299 = vst [vmem:[#allocation2 + $0x8] sm:$0xff] %v283
  %300 = vst [vmem:[#allocation2 + $0x10] sm:$0xff] %v284
  %301 = vst [vmem:[#allocation2 + $0x18] sm:$0xff] %v285
  %302 = vst [vmem:[#allocation2 + $0x20] sm:$0xff] %v286
  %303 = vst [vmem:[#allocation2 + $0x28] sm:$0xff] %v287
  %304 = vst [vmem:[#allocation2 + $0x30] sm:$0xff] %v288
  %305 = vst [vmem:[#allocation2 + $0x38] sm:$0xff] %v289
  %306 = vst [vmem:[#allocation2 + $0x40] sm:$0xff] %v290
  %307 = vst [vmem:[#allocation2 + $0x48] sm:$0xff] %v291
  %308 = vst [vmem:[#allocation2 + $0x50] sm:$0xff] %v292
  %309 = vst [vmem:[#allocation2 + $0x58] sm:$0xff] %v293
  %310 = vst [vmem:[#allocation2 + $0x60] sm:$0xff] %v294
  %311 = vst [vmem:[#allocation2 + $0x68] sm:$0xff] %v295
  %312 = vst [vmem:[#allocation2 + $0x70] sm:$0xff] %v296
  %313 = vst [vmem:[#allocation2 + $0x78] sm:$0xff] %v297
  // Predicated region
  $region26: #{generator_forward.20} parent=0 // pred_check
    %p314 = pneg %p21
  $region27: #{generator_forward.20} parent=0 // pred_check_branch
    %316 = sbr.rel (%p314) target = $region29
  $region28: #{generator_forward.20} parent=0 // pred_region
    %v317 = vld [vmem:[#allocation2] sm:$0xff]
    %v318 = vld [vmem:[#allocation2 + $0x8] sm:$0xff]
    %v319 = vld [vmem:[#allocation2 + $0x10] sm:$0xff]
    %v320 = vld [vmem:[#allocation2 + $0x18] sm:$0xff]
    %v321 = vld [vmem:[#allocation2 + $0x20] sm:$0xff]
    %v322 = vld [vmem:[#allocation2 + $0x28] sm:$0xff]
    %v323 = vld [vmem:[#allocation2 + $0x30] sm:$0xff]
    %v324 = vld [vmem:[#allocation2 + $0x38] sm:$0xff]
    %v325 = vld [vmem:[#allocation2 + $0x40] sm:$0xff]
    %v326 = vld [vmem:[#allocation2 + $0x48] sm:$0xff]
    %v327 = vld [vmem:[#allocation2 + $0x50] sm:$0xff]
    %v328 = vld [vmem:[#allocation2 + $0x58] sm:$0xff]
    %v329 = vld [vmem:[#allocation2 + $0x60] sm:$0xff]
    %v330 = vld [vmem:[#allocation2 + $0x68] sm:$0xff]
    %v331 = vld [vmem:[#allocation2 + $0x70] sm:$0xff]
    %v332 = vld [vmem:[#allocation2 + $0x78] sm:$0xff]
    %v333 = vadd.f32 %v317, %v318
    %v334 = vadd.f32 %v333, %v319
    %v335 = vadd.f32 %v334, %v320
    %v336 = vadd.f32 %v335, %v321
    %v337 = vadd.f32 %v336, %v322
    %v338 = vadd.f32 %v337, %v323
    %v339 = vadd.f32 %v338, %v324
    %v340 = vadd.f32 %v339, %v325
    %v341 = vadd.f32 %v340, %v326
    %v342 = vadd.f32 %v341, %v327
    %v343 = vadd.f32 %v342, %v328
    %v344 = vadd.f32 %v343, %v329
    %v345 = vadd.f32 %v344, %v330
    %v346 = vadd.f32 %v345, %v331
    %v347 = vadd.f32 %v346, %v332
    %v348 = vrot.slane %v347, 4
    %v349 = vadd.f32 %v347, %v348
    %v350 = vrot.slane %v349, 2
    %v351 = vadd.f32 %v349, %v350
    %v352 = vrot.slane %v351, 1
    %v353 = vadd.f32 %v351, %v352
    %v354 = vld [vmem:[%s4] sm:$0xff]
    %v355 = vld [vmem:[%s4 + $0x8] sm:$0xff]
    %v356 = vld [vmem:[%s4 + $0x10] sm:$0xff]
    %v357 = vld [vmem:[%s4 + $0x18] sm:$0xff]
    %v358 = vld [vmem:[%s4 + $0x20] sm:$0xff]
    %v359 = vld [vmem:[%s4 + $0x28] sm:$0xff]
    %v360 = vld [vmem:[%s4 + $0x30] sm:$0xff]
    %v361 = vld [vmem:[%s4 + $0x38] sm:$0xff]
    %v362 = vld [vmem:[%s4 + $0x40] sm:$0xff]
    %v363 = vld [vmem:[%s4 + $0x48] sm:$0xff]
    %v364 = vld [vmem:[%s4 + $0x50] sm:$0xff]
    %v365 = vld [vmem:[%s4 + $0x58] sm:$0xff]
    %v366 = vld [vmem:[%s4 + $0x60] sm:$0xff]
    %v367 = vld [vmem:[%s4 + $0x68] sm:$0xff]
    %v368 = vld [vmem:[%s4 + $0x70] sm:$0xff]
    %v369 = vld [vmem:[%s4 + $0x78] sm:$0xff]
    %370 = vmatprep.subr.mxu0 0.0
    %371 = vmatpush1.msra.mxu0 %v354
    %372 = vmatprep.subr.mxu0 0.0
    %373 = vmatpush1.msra.mxu0 %v355
    %374 = vmatprep.subr.mxu0 0.0
    %375 = vmatpush1.msra.mxu0 %v356
    %376 = vmatprep.subr.mxu0 0.0
    %377 = vmatpush1.msra.mxu0 %v357
    %378 = vmatprep.subr.mxu0 0.0
    %379 = vmatpush1.msra.mxu0 %v358
    %380 = vmatprep.subr.mxu0 0.0
    %381 = vmatpush1.msra.mxu0 %v359
    %382 = vmatprep.subr.mxu0 0.0
    %383 = vmatpush1.msra.mxu0 %v360
    %384 = vmatprep.subr.mxu0 0.0
    %385 = vmatpush1.msra.mxu0 %v361
    %386 = vmatprep.subr.mxu0 0.0
    %387 = vmatpush1.msra.mxu0 %v362
    %388 = vmatprep.subr.mxu0 0.0
    %389 = vmatpush1.msra.mxu0 %v363
    %390 = vmatprep.subr.mxu0 0.0
    %391 = vmatpush1.msra.mxu0 %v364
    %392 = vmatprep.subr.mxu0 0.0
    %393 = vmatpush1.msra.mxu0 %v365
    %394 = vmatprep.subr.mxu0 0.0
    %395 = vmatpush1.msra.mxu0 %v366
    %396 = vmatprep.subr.mxu0 0.0
    %397 = vmatpush1.msra.mxu0 %v367
    %398 = vmatprep.subr.mxu0 0.0
    %399 = vmatpush1.msra.mxu0 %v368
    %400 = vmatprep.subr.mxu0 0.0
    %401 = vmatpush1.msra.mxu0 %v369
    %402 = vmatprep.subr.mxu0 0.0
    %403 = vmatpush1.msra.mxu0 0.0
    %404 = vmatprep.subr.mxu0 0.0
    %405 = vmatpush1.msra.mxu0 0.0
    %406 = vmatprep.subr.mxu0 0.0
    %407 = vmatpush1.msra.mxu0 0.0
    %408 = vmatprep.subr.mxu0 0.0
    %409 = vmatpush1.msra.mxu0 0.0
    %410 = vmatprep.subr.mxu0 0.0
    %411 = vmatpush1.msra.mxu0 0.0
    %412 = vmatprep.subr.mxu0 0.0
    %413 = vmatpush1.msra.mxu0 0.0
    %414 = vmatprep.subr.mxu0 0.0
    %415 = vmatpush1.msra.mxu0 0.0
    %416 = vmatprep.subr.mxu0 0.0
    %417 = vmatpush1.msra.mxu0 0.0
    %418 = vmatprep.subr.mxu0 0.0
    %419 = vmatpush1.msra.mxu0 0.0
    %420 = vmatprep.subr.mxu0 0.0
    %421 = vmatpush1.msra.mxu0 0.0
    %422 = vmatprep.subr.mxu0 0.0
    %423 = vmatpush1.msra.mxu0 0.0
    %424 = vmatprep.subr.mxu0 0.0
    %425 = vmatpush1.msra.mxu0 0.0
    %426 = vmatprep.subr.mxu0 0.0
    %427 = vmatpush1.msra.mxu0 0.0
    %428 = vmatprep.subr.mxu0 0.0
    %429 = vmatpush1.msra.mxu0 0.0
    %430 = vmatprep.subr.mxu0 0.0
    %431 = vmatpush1.msra.mxu0 0.0
    %432 = vmatprep.subr.mxu0 0.0
    %433 = vmatpush1.msra.mxu0 0.0
    %434 = vmatprep.mubr.f32.mxu0 0.0
    %435 = vmatmul.mubr.f32.gmra.mrb[0].mxu0 %v353
    %v436 = vpop.f32.mrb[0].mxu0
    %v437 = vadd.f32 0.0, %v436
    %v438 = vpop.f32.mrb[0].mxu0
    %439 = vdwg.mxu0
    %v440 = vlaneseq
    %v441 = vshrl.u32 %v440, 7
    %v442 = vsub.s32 0, %v441
    %v443 = vrot.slane %v437, %v442
    %v444 = vsub.f32 %v317, %v443
    %v445 = vsub.f32 %v318, %v443
    %v446 = vsub.f32 %v319, %v443
    %v447 = vsub.f32 %v320, %v443
    %v448 = vsub.f32 %v321, %v443
    %v449 = vsub.f32 %v322, %v443
    %v450 = vsub.f32 %v323, %v443
    %v451 = vsub.f32 %v324, %v443
    %v452 = vsub.f32 %v325, %v443
    %v453 = vsub.f32 %v326, %v443
    %v454 = vsub.f32 %v327, %v443
    %v455 = vsub.f32 %v328, %v443
    %v456 = vsub.f32 %v329, %v443
    %v457 = vsub.f32 %v330, %v443
    %v458 = vsub.f32 %v331, %v443
    %v459 = vsub.f32 %v332, %v443
    %v460 = vmul.f32 %v444, %v444
    %v461 = vmul.f32 %v445, %v445
    %v462 = vmul.f32 %v446, %v446
    %v463 = vmul.f32 %v447, %v447
    %v464 = vmul.f32 %v448, %v448
    %v465 = vmul.f32 %v449, %v449
    %v466 = vmul.f32 %v450, %v450
    %v467 = vmul.f32 %v451, %v451
    %v468 = vmul.f32 %v452, %v452
    %v469 = vmul.f32 %v453, %v453
    %v470 = vmul.f32 %v454, %v454
    %v471 = vmul.f32 %v455, %v455
    %v472 = vmul.f32 %v456, %v456
    %v473 = vmul.f32 %v457, %v457
    %v474 = vmul.f32 %v458, %v458
    %v475 = vmul.f32 %v459, %v459
    %v476 = vadd.f32 %v460, %v461
    %v477 = vadd.f32 %v476, %v462
    %v478 = vadd.f32 %v477, %v463
    %v479 = vadd.f32 %v478, %v464
    %v480 = vadd.f32 %v479, %v465
    %v481 = vadd.f32 %v480, %v466
    %v482 = vadd.f32 %v481, %v467
    %v483 = vadd.f32 %v482, %v468
    %v484 = vadd.f32 %v483, %v469
    %v485 = vadd.f32 %v484, %v470
    %v486 = vadd.f32 %v485, %v471
    %v487 = vadd.f32 %v486, %v472
    %v488 = vadd.f32 %v487, %v473
    %v489 = vadd.f32 %v488, %v474
    %v490 = vadd.f32 %v489, %v475
    %v491 = vrot.slane %v490, 4
    %v492 = vadd.f32 %v490, %v491
    %v493 = vrot.slane %v492, 2
    %v494 = vadd.f32 %v492, %v493
    %v495 = vrot.slane %v494, 1
    %v496 = vadd.f32 %v494, %v495
    %497 = vmatprep.subr.mxu0 0.0
    %498 = vmatpush1.msra.mxu0 %v354
    %499 = vmatprep.subr.mxu0 0.0
    %500 = vmatpush1.msra.mxu0 %v355
    %501 = vmatprep.subr.mxu0 0.0
    %502 = vmatpush1.msra.mxu0 %v356
    %503 = vmatprep.subr.mxu0 0.0
    %504 = vmatpush1.msra.mxu0 %v357
    %505 = vmatprep.subr.mxu0 0.0
    %506 = vmatpush1.msra.mxu0 %v358
    %507 = vmatprep.subr.mxu0 0.0
    %508 = vmatpush1.msra.mxu0 %v359
    %509 = vmatprep.subr.mxu0 0.0
    %510 = vmatpush1.msra.mxu0 %v360
    %511 = vmatprep.subr.mxu0 0.0
    %512 = vmatpush1.msra.mxu0 %v361
    %513 = vmatprep.subr.mxu0 0.0
    %514 = vmatpush1.msra.mxu0 %v362
    %515 = vmatprep.subr.mxu0 0.0
    %516 = vmatpush1.msra.mxu0 %v363
    %517 = vmatprep.subr.mxu0 0.0
    %518 = vmatpush1.msra.mxu0 %v364
    %519 = vmatprep.subr.mxu0 0.0
    %520 = vmatpush1.msra.mxu0 %v365
    %521 = vmatprep.subr.mxu0 0.0
    %522 = vmatpush1.msra.mxu0 %v366
    %523 = vmatprep.subr.mxu0 0.0
    %524 = vmatpush1.msra.mxu0 %v367
    %525 = vmatprep.subr.mxu0 0.0
    %526 = vmatpush1.msra.mxu0 %v368
    %527 = vmatprep.subr.mxu0 0.0
    %528 = vmatpush1.msra.mxu0 %v369
    %529 = vmatprep.subr.mxu0 0.0
    %530 = vmatpush1.msra.mxu0 0.0
    %531 = vmatprep.subr.mxu0 0.0
    %532 = vmatpush1.msra.mxu0 0.0
    %533 = vmatprep.subr.mxu0 0.0
    %534 = vmatpush1.msra.mxu0 0.0
    %535 = vmatprep.subr.mxu0 0.0
    %536 = vmatpush1.msra.mxu0 0.0
    %537 = vmatprep.subr.mxu0 0.0
    %538 = vmatpush1.msra.mxu0 0.0
    %539 = vmatprep.subr.mxu0 0.0
    %540 = vmatpush1.msra.mxu0 0.0
    %541 = vmatprep.subr.mxu0 0.0
    %542 = vmatpush1.msra.mxu0 0.0
    %543 = vmatprep.subr.mxu0 0.0
    %544 = vmatpush1.msra.mxu0 0.0
    %545 = vmatprep.subr.mxu0 0.0
    %546 = vmatpush1.msra.mxu0 0.0
    %547 = vmatprep.subr.mxu0 0.0
    %548 = vmatpush1.msra.mxu0 0.0
    %549 = vmatprep.subr.mxu0 0.0
    %550 = vmatpush1.msra.mxu0 0.0
    %551 = vmatprep.subr.mxu0 0.0
    %552 = vmatpush1.msra.mxu0 0.0
    %553 = vmatprep.subr.mxu0 0.0
    %554 = vmatpush1.msra.mxu0 0.0
    %555 = vmatprep.subr.mxu0 0.0
    %556 = vmatpush1.msra.mxu0 0.0
    %557 = vmatprep.subr.mxu0 0.0
    %558 = vmatpush1.msra.mxu0 0.0
    %559 = vmatprep.subr.mxu0 0.0
    %560 = vmatpush1.msra.mxu0 0.0
    %561 = vmatprep.mubr.f32.mxu0 0.0
    %562 = vmatmul.mubr.f32.gmra.mrb[0].mxu0 %v496
    %v563 = vpop.f32.mrb[0].mxu0
    %v564 = vadd.f32 1e-05, %v563
    %v565 = vpop.f32.mrb[0].mxu0
    %566 = vdwg.mxu0
    %v567 = vrsqrt.pop %v564
    %v568 = vlaneseq
    %v569 = vshrl.u32 %v568, 7
    %v570 = vsub.s32 0, %v569
    %v571 = vrot.slane %v567, %v570
    %v572 = vmul.f32 %v444, %v571
    %v573 = vmul.f32 %v445, %v571
    %v574 = vmul.f32 %v446, %v571
    %v575 = vmul.f32 %v447, %v571
    %v576 = vmul.f32 %v448, %v571
    %v577 = vmul.f32 %v449, %v571
    %v578 = vmul.f32 %v450, %v571
    %v579 = vmul.f32 %v451, %v571
    %v580 = vmul.f32 %v452, %v571
    %v581 = vmul.f32 %v453, %v571
    %v582 = vmul.f32 %v454, %v571
    %v583 = vmul.f32 %v455, %v571
    %v584 = vmul.f32 %v456, %v571
    %v585 = vmul.f32 %v457, %v571
    %v586 = vmul.f32 %v458, %v571
    %v587 = vmul.f32 %v459, %v571
    %v588 = vld [vmem:[%s2] sm:$0x1]
    %v590 = vlaneseq
    %v591 = vshrl.u32 %v590, 7
    %v592 = vsub.s32 0, %v591
    %v593 = vrot.slane %v588, %v592
    %v595 = vmul.f32 %v572, %v593
    %v596 = vmul.f32 %v573, %v593
    %v597 = vmul.f32 %v574, %v593
    %v598 = vmul.f32 %v575, %v593
    %v599 = vmul.f32 %v576, %v593
    %v600 = vmul.f32 %v577, %v593
    %v601 = vmul.f32 %v578, %v593
    %v602 = vmul.f32 %v579, %v593
    %v603 = vmul.f32 %v580, %v593
    %v604 = vmul.f32 %v581, %v593
    %v605 = vmul.f32 %v582, %v593
    %v606 = vmul.f32 %v583, %v593
    %v607 = vmul.f32 %v584, %v593
    %v608 = vmul.f32 %v585, %v593
    %v609 = vmul.f32 %v586, %v593
    %v610 = vmul.f32 %v587, %v593
    %v611 = vld [vmem:[%s3] sm:$0x1]
    %v613 = vlaneseq
    %v614 = vshrl.u32 %v613, 7
    %v615 = vsub.s32 0, %v614
    %v616 = vrot.slane %v611, %v615
    %v618 = vadd.f32 %v595, %v616
    %v619 = vadd.f32 %v596, %v616
    %v620 = vadd.f32 %v597, %v616
    %v621 = vadd.f32 %v598, %v616
    %v622 = vadd.f32 %v599, %v616
    %v623 = vadd.f32 %v600, %v616
    %v624 = vadd.f32 %v601, %v616
    %v625 = vadd.f32 %v602, %v616
    %v626 = vadd.f32 %v603, %v616
    %v627 = vadd.f32 %v604, %v616
    %v628 = vadd.f32 %v605, %v616
    %v629 = vadd.f32 %v606, %v616
    %v630 = vadd.f32 %v607, %v616
    %v631 = vadd.f32 %v608, %v616
    %v632 = vadd.f32 %v609, %v616
    %v633 = vadd.f32 %v610, %v616
    %v634 = vmax.f32 %v618, 0.0
    %v635 = vmax.f32 %v619, 0.0
    %v636 = vmax.f32 %v620, 0.0
    %v637 = vmax.f32 %v621, 0.0
    %v638 = vmax.f32 %v622, 0.0
    %v639 = vmax.f32 %v623, 0.0
    %v640 = vmax.f32 %v624, 0.0
    %v641 = vmax.f32 %v625, 0.0
    %v642 = vmax.f32 %v626, 0.0
    %v643 = vmax.f32 %v627, 0.0
    %v644 = vmax.f32 %v628, 0.0
    %v645 = vmax.f32 %v629, 0.0
    %v646 = vmax.f32 %v630, 0.0
    %v647 = vmax.f32 %v631, 0.0
    %v648 = vmax.f32 %v632, 0.0
    %v649 = vmax.f32 %v633, 0.0
    %650 = vst [vmem:[%s5] sm:$0xff] %v634
    %651 = vst [vmem:[%s5 + $0x8] sm:$0xff] %v635
    %652 = vst [vmem:[%s5 + $0x10] sm:$0xff] %v636
    %653 = vst [vmem:[%s5 + $0x18] sm:$0xff] %v637
    %654 = vst [vmem:[%s5 + $0x20] sm:$0xff] %v638
    %655 = vst [vmem:[%s5 + $0x28] sm:$0xff] %v639
    %656 = vst [vmem:[%s5 + $0x30] sm:$0xff] %v640
    %657 = vst [vmem:[%s5 + $0x38] sm:$0xff] %v641
    %658 = vst [vmem:[%s5 + $0x40] sm:$0xff] %v642
    %659 = vst [vmem:[%s5 + $0x48] sm:$0xff] %v643
    %660 = vst [vmem:[%s5 + $0x50] sm:$0xff] %v644
    %661 = vst [vmem:[%s5 + $0x58] sm:$0xff] %v645
    %662 = vst [vmem:[%s5 + $0x60] sm:$0xff] %v646
    %663 = vst [vmem:[%s5 + $0x68] sm:$0xff] %v647
    %664 = vst [vmem:[%s5 + $0x70] sm:$0xff] %v648
    %665 = vst [vmem:[%s5 + $0x78] sm:$0xff] %v649
  $region29: #{generator_forward.20} parent=0 // pred_fallthru
    _
  // Predicated region
  $region30: #{generator_forward.20} parent=0 // pred_check
    _
  $region31: #{generator_forward.20} parent=0 // pred_check_branch
    %667 = sbr.rel (0) target = $region33
  $region32: #{generator_forward.20} parent=0 // pred_region
    _
  $region33: #{generator_forward.20} parent=0 // pred_fallthru
    _
  // Predicated region
  $region34: #{generator_forward.20} parent=0 // pred_check
    _
  $region35: #{generator_forward.20} parent=0 // pred_check_branch
    %669 = sbr.rel (0) target = $region37
  $region36: #{generator_forward.20} parent=0 // pred_region
    _
  $region37: #{generator_forward.20} parent=0 // pred_fallthru
    _

// kernel: generator_forward.21
$region0: #{generator_forward.21}
  #allocation0 [shape = 'u32[]', space=smem, size = 0x4, offset = 0x4, fixed_abs, tag = 'smem constant byte address 0x4 - core index']
  #allocation1 [shape = 'u32[144,128]{1,0:T(1,128)}', space=vmem, size = 0x12000, scoped, tag = 'internal scratch']
  #allocation2 [shape = 'f32[32,128]{1,0:T(8,128)}', space=vmem, size = 0x4000, scoped, tag = 'scratch operand']
  %s0 = inlined_call_operand.vmem [shape: bf16[32,256], index: 0, kind: input, shape index: {}]
  %s1 = inlined_call_operand.vmem [shape: bf16[256,128], index: 1, kind: input, shape index: {}]
  %s2 = inlined_call_operand.vmem [shape: f32[1,128], index: 2, kind: input, shape index: {}]
  %s3 = inlined_call_operand.vmem [shape: f32[1,128], index: 3, kind: input, shape index: {}]
  %s4 = inlined_call_operand.vmem [shape: f32[128,128], index: 4, kind: input, shape index: {}]
  %s5 = inlined_call_operand.vmem [shape: f32[32,128], index: 5, kind: output, shape index: {}]
  %s6 = sld [smem:[#allocation0]]
  $region38: #{generator_forward.21} parent=0
    _
  %s8 = ssub.s32 1, %s6
  %s9 = scalar_select 0, %s8, %s6
  // Predicated region
  $region2: #{generator_forward.21} parent=0 // pred_check
    _
  $region3: #{generator_forward.21} parent=0 // pred_check_branch
    %11 = sbr.rel (0) target = $region5
  $region4: #{generator_forward.21} parent=0 // pred_region
    _
  $region5: #{generator_forward.21} parent=0 // pred_fallthru
    _
  // Predicated region
  $region6: #{generator_forward.21} parent=0 // pred_check
    _
  $region7: #{generator_forward.21} parent=0 // pred_check_branch
    %13 = sbr.rel (0) target = $region9
  $region8: #{generator_forward.21} parent=0 // pred_region
    _
  $region9: #{generator_forward.21} parent=0 // pred_fallthru
    _
  // Predicated region
  $region10: #{generator_forward.21} parent=0 // pred_check
    _
  $region11: #{generator_forward.21} parent=0 // pred_check_branch
    %15 = sbr.rel (0) target = $region13
  $region12: #{generator_forward.21} parent=0 // pred_region
    _
  $region13: #{generator_forward.21} parent=0 // pred_fallthru
    _
  // Predicated region
  $region14: #{generator_forward.21} parent=0 // pred_check
    _
  $region15: #{generator_forward.21} parent=0 // pred_check_branch
    %17 = sbr.rel (0) target = $region17
  $region16: #{generator_forward.21} parent=0 // pred_region
    _
  $region17: #{generator_forward.21} parent=0 // pred_fallthru
    _
  // Predicated region
  $region18: #{generator_forward.21} parent=0 // pred_check
    _
  $region19: #{generator_forward.21} parent=0 // pred_check_branch
    %19 = sbr.rel (0) target = $region21
  $region20: #{generator_forward.21} parent=0 // pred_region
    _
  $region21: #{generator_forward.21} parent=0 // pred_fallthru
    _
  %p21 = scmp.eq.s32.totalorder 0, 0
  // Predicated region
  $region22: #{generator_forward.21} parent=0 // pred_check
    %p22 = pneg %p21
  $region23: #{generator_forward.21} parent=0 // pred_check_branch
    %24 = sbr.rel (%p22) target = $region25
  $region24: #{generator_forward.21} parent=0 // pred_region
    %25 = vst [vmem:[#allocation2] sm:$0xff] 0.0
    %26 = vst [vmem:[#allocation2 + $0x8] sm:$0xff] 0.0
    %27 = vst [vmem:[#allocation2 + $0x10] sm:$0xff] 0.0
    %28 = vst [vmem:[#allocation2 + $0x18] sm:$0xff] 0.0
  $region25: #{generator_forward.21} parent=0 // pred_fallthru
    _
  %v29 = vld [vmem:[#allocation2] sm:$0xff]
  %v30 = vld [vmem:[#allocation2 + $0x8] sm:$0xff]
  %v31 = vld [vmem:[#allocation2 + $0x10] sm:$0xff]
  %v32 = vld [vmem:[#allocation2 + $0x18] sm:$0xff]
  %v33 = vld [vmem:[%s0] sm:$0xff]
  %v34 = vld [vmem:[%s0 + $0x8] sm:$0xff]
  %v35 = vld [vmem:[%s0 + $0x10] sm:$0xff]
  %v36 = vld [vmem:[%s0 + $0x18] sm:$0xff]
  %v37 = vld [vmem:[%s1] sm:$0xf]
  %v38 = vld [vmem:[%s1 + $0x4] sm:$0xf]
  %v39 = vld [vmem:[%s1 + $0x8] sm:$0xf]
  %v40 = vld [vmem:[%s1 + $0xc] sm:$0xf]
  %v41 = vld [vmem:[%s1 + $0x10] sm:$0xf]
  %v42 = vld [vmem:[%s1 + $0x14] sm:$0xf]
  %v43 = vld [vmem:[%s1 + $0x18] sm:$0xf]
  %v44 = vld [vmem:[%s1 + $0x1c] sm:$0xf]
  %v45 = vld [vmem:[%s1 + $0x20] sm:$0xf]
  %v46 = vld [vmem:[%s1 + $0x24] sm:$0xf]
  %v47 = vld [vmem:[%s1 + $0x28] sm:$0xf]
  %v48 = vld [vmem:[%s1 + $0x2c] sm:$0xf]
  %v49 = vld [vmem:[%s1 + $0x30] sm:$0xf]
  %v50 = vld [vmem:[%s1 + $0x34] sm:$0xf]
  %v51 = vld [vmem:[%s1 + $0x38] sm:$0xf]
  %v52 = vld [vmem:[%s1 + $0x3c] sm:$0xf]
  %v53 = vld [vmem:[%s1 + $0x40] sm:$0xf]
  %v54 = vld [vmem:[%s1 + $0x44] sm:$0xf]
  %v55 = vld [vmem:[%s1 + $0x48] sm:$0xf]
  %v56 = vld [vmem:[%s1 + $0x4c] sm:$0xf]
  %v57 = vld [vmem:[%s1 + $0x50] sm:$0xf]
  %v58 = vld [vmem:[%s1 + $0x54] sm:$0xf]
  %v59 = vld [vmem:[%s1 + $0x58] sm:$0xf]
  %v60 = vld [vmem:[%s1 + $0x5c] sm:$0xf]
  %v61 = vld [vmem:[%s1 + $0x60] sm:$0xf]
  %v62 = vld [vmem:[%s1 + $0x64] sm:$0xf]
  %v63 = vld [vmem:[%s1 + $0x68] sm:$0xf]
  %v64 = vld [vmem:[%s1 + $0x6c] sm:$0xf]
  %v65 = vld [vmem:[%s1 + $0x70] sm:$0xf]
  %v66 = vld [vmem:[%s1 + $0x74] sm:$0xf]
  %v67 = vld [vmem:[%s1 + $0x78] sm:$0xf]
  %v68 = vld [vmem:[%s1 + $0x7c] sm:$0xf]
  %v73 = vunpack.c.l.b16 %v33
  %v74 = vunpack.c.h.b16 %v33
  %v75 = vunpack.c.l.b16 %v34
  %v76 = vunpack.c.h.b16 %v34
  %v77 = vunpack.c.l.b16 %v35
  %v78 = vunpack.c.h.b16 %v35
  %v79 = vunpack.c.l.b16 %v36
  %v80 = vunpack.c.h.b16 %v36
  %v81 = vpack.c.b16 %v75, %v73
  %v82 = vpack.c.b16 %v76, %v74
  %v83 = vpack.c.b16 %v79, %v77
  %v84 = vpack.c.b16 %v80, %v78
  %v121 = vunpack.c.l.b16 %v37
  %v122 = vunpack.c.l.b16 %v38
  %v123 = vunpack.c.l.b16 %v39
  %v124 = vunpack.c.l.b16 %v40
  %v125 = vunpack.c.l.b16 %v41
  %v126 = vunpack.c.l.b16 %v42
  %v127 = vunpack.c.l.b16 %v43
  %v128 = vunpack.c.l.b16 %v44
  %v129 = vunpack.c.l.b16 %v45
  %v130 = vunpack.c.l.b16 %v46
  %v131 = vunpack.c.l.b16 %v47
  %v132 = vunpack.c.l.b16 %v48
  %v133 = vunpack.c.l.b16 %v49
  %v134 = vunpack.c.l.b16 %v50
  %v135 = vunpack.c.l.b16 %v51
  %v136 = vunpack.c.l.b16 %v52
  %v137 = vunpack.c.l.b16 %v53
  %v138 = vunpack.c.l.b16 %v54
  %v139 = vunpack.c.l.b16 %v55
  %v140 = vunpack.c.l.b16 %v56
  %v141 = vunpack.c.l.b16 %v57
  %v142 = vunpack.c.l.b16 %v58
  %v143 = vunpack.c.l.b16 %v59
  %v144 = vunpack.c.l.b16 %v60
  %v145 = vunpack.c.l.b16 %v61
  %v146 = vunpack.c.l.b16 %v62
  %v147 = vunpack.c.l.b16 %v63
  %v148 = vunpack.c.l.b16 %v64
  %v149 = vunpack.c.l.b16 %v65
  %v150 = vunpack.c.l.b16 %v66
  %v151 = vunpack.c.l.b16 %v67
  %v152 = vunpack.c.l.b16 %v68
  %v153 = vpack.c.b16 %v122, %v121
  %v154 = vpack.c.b16 %v124, %v123
  %v155 = vpack.c.b16 %v126, %v125
  %v156 = vpack.c.b16 %v128, %v127
  %v157 = vpack.c.b16 %v130, %v129
  %v158 = vpack.c.b16 %v132, %v131
  %v159 = vpack.c.b16 %v134, %v133
  %v160 = vpack.c.b16 %v136, %v135
  %v161 = vpack.c.b16 %v138, %v137
  %v162 = vpack.c.b16 %v140, %v139
  %v163 = vpack.c.b16 %v142, %v141
  %v164 = vpack.c.b16 %v144, %v143
  %v165 = vpack.c.b16 %v146, %v145
  %v166 = vpack.c.b16 %v148, %v147
  %v167 = vpack.c.b16 %v150, %v149
  %v168 = vpack.c.b16 %v152, %v151
  %185 = vmatprep.subr.bf16.mxu0 0
  %186 = vmatpush1.bf16.msra.mxu0 %v153
  %187 = vmatprep.subr.bf16.mxu0 0
  %188 = vmatpush1.bf16.msra.mxu0 %v154
  %189 = vmatprep.subr.bf16.mxu0 0
  %190 = vmatpush1.bf16.msra.mxu0 %v155
  %191 = vmatprep.subr.bf16.mxu0 0
  %192 = vmatpush1.bf16.msra.mxu0 %v156
  %193 = vmatprep.subr.bf16.mxu0 0
  %194 = vmatpush1.bf16.msra.mxu0 %v157
  %195 = vmatprep.subr.bf16.mxu0 0
  %196 = vmatpush1.bf16.msra.mxu0 %v158
  %197 = vmatprep.subr.bf16.mxu0 0
  %198 = vmatpush1.bf16.msra.mxu0 %v159
  %199 = vmatprep.subr.bf16.mxu0 0
  %200 = vmatpush1.bf16.msra.mxu0 %v160
  %201 = vmatprep.subr.bf16.mxu0 0
  %202 = vmatpush1.bf16.msra.mxu0 %v161
  %203 = vmatprep.subr.bf16.mxu0 0
  %204 = vmatpush1.bf16.msra.mxu0 %v162
  %205 = vmatprep.subr.bf16.mxu0 0
  %206 = vmatpush1.bf16.msra.mxu0 %v163
  %207 = vmatprep.subr.bf16.mxu0 0
  %208 = vmatpush1.bf16.msra.mxu0 %v164
  %209 = vmatprep.subr.bf16.mxu0 0
  %210 = vmatpush1.bf16.msra.mxu0 %v165
  %211 = vmatprep.subr.bf16.mxu0 0
  %212 = vmatpush1.bf16.msra.mxu0 %v166
  %213 = vmatprep.subr.bf16.mxu0 0
  %214 = vmatpush1.bf16.msra.mxu0 %v167
  %215 = vmatprep.subr.bf16.mxu0 0
  %216 = vmatpush1.bf16.msra.mxu0 %v168
  %217 = vmatprep.mubr.bf16.mxu0 %v82
  %218 = vmatmul.mubr.bf16.gmra.mrb[0].mxu0 %v81
  %v219 = vpop.f32.mrb[0].mxu0
  %v220 = vadd.f32 0.0, %v219
  %v221 = vpop.f32.mrb[0].mxu0
  %v222 = vpop.f32.mrb[0].mxu0
  %v223 = vadd.f32 0.0, %v222
  %v224 = vpop.f32.mrb[0].mxu0
  %225 = vmatprep.mubr.bf16.mxu0 %v84
  %226 = vmatmul.mubr.bf16.gmra.mrb[0].mxu0 %v83
  %v227 = vpop.f32.mrb[0].mxu0
  %v228 = vadd.f32 0.0, %v227
  %v229 = vpop.f32.mrb[0].mxu0
  %v230 = vpop.f32.mrb[0].mxu0
  %v231 = vadd.f32 0.0, %v230
  %v232 = vpop.f32.mrb[0].mxu0
  %233 = vdwg.mxu0
  %v234 = vadd.f32 %v29, %v220
  %v235 = vadd.f32 %v30, %v223
  %v236 = vadd.f32 %v31, %v228
  %v237 = vadd.f32 %v32, %v231
  %238 = vst [vmem:[#allocation2] sm:$0xff] %v234
  %239 = vst [vmem:[#allocation2 + $0x8] sm:$0xff] %v235
  %240 = vst [vmem:[#allocation2 + $0x10] sm:$0xff] %v236
  %241 = vst [vmem:[#allocation2 + $0x18] sm:$0xff] %v237
  // Predicated region
  $region26: #{generator_forward.21} parent=0 // pred_check
    %p242 = pneg %p21
  $region27: #{generator_forward.21} parent=0 // pred_check_branch
    %244 = sbr.rel (%p242) target = $region29
  $region28: #{generator_forward.21} parent=0 // pred_region
    %v245 = vld [vmem:[#allocation2] sm:$0xff]
    %v246 = vld [vmem:[#allocation2 + $0x8] sm:$0xff]
    %v247 = vld [vmem:[#allocation2 + $0x10] sm:$0xff]
    %v248 = vld [vmem:[#allocation2 + $0x18] sm:$0xff]
    %v249 = vadd.f32 %v245, %v246
    %v250 = vadd.f32 %v249, %v247
    %v251 = vadd.f32 %v250, %v248
    %v252 = vrot.slane %v251, 4
    %v253 = vadd.f32 %v251, %v252
    %v254 = vrot.slane %v253, 2
    %v255 = vadd.f32 %v253, %v254
    %v256 = vrot.slane %v255, 1
    %v257 = vadd.f32 %v255, %v256
    %v258 = vld [vmem:[%s4] sm:$0xff]
    %v259 = vld [vmem:[%s4 + $0x8] sm:$0xff]
    %v260 = vld [vmem:[%s4 + $0x10] sm:$0xff]
    %v261 = vld [vmem:[%s4 + $0x18] sm:$0xff]
    %v262 = vld [vmem:[%s4 + $0x20] sm:$0xff]
    %v263 = vld [vmem:[%s4 + $0x28] sm:$0xff]
    %v264 = vld [vmem:[%s4 + $0x30] sm:$0xff]
    %v265 = vld [vmem:[%s4 + $0x38] sm:$0xff]
    %v266 = vld [vmem:[%s4 + $0x40] sm:$0xff]
    %v267 = vld [vmem:[%s4 + $0x48] sm:$0xff]
    %v268 = vld [vmem:[%s4 + $0x50] sm:$0xff]
    %v269 = vld [vmem:[%s4 + $0x58] sm:$0xff]
    %v270 = vld [vmem:[%s4 + $0x60] sm:$0xff]
    %v271 = vld [vmem:[%s4 + $0x68] sm:$0xff]
    %v272 = vld [vmem:[%s4 + $0x70] sm:$0xff]
    %v273 = vld [vmem:[%s4 + $0x78] sm:$0xff]
    %274 = vmatprep.subr.mxu0 0.0
    %275 = vmatpush1.msra.mxu0 %v258
    %276 = vmatprep.subr.mxu0 0.0
    %277 = vmatpush1.msra.mxu0 %v259
    %278 = vmatprep.subr.mxu0 0.0
    %279 = vmatpush1.msra.mxu0 %v260
    %280 = vmatprep.subr.mxu0 0.0
    %281 = vmatpush1.msra.mxu0 %v261
    %282 = vmatprep.subr.mxu0 0.0
    %283 = vmatpush1.msra.mxu0 %v262
    %284 = vmatprep.subr.mxu0 0.0
    %285 = vmatpush1.msra.mxu0 %v263
    %286 = vmatprep.subr.mxu0 0.0
    %287 = vmatpush1.msra.mxu0 %v264
    %288 = vmatprep.subr.mxu0 0.0
    %289 = vmatpush1.msra.mxu0 %v265
    %290 = vmatprep.subr.mxu0 0.0
    %291 = vmatpush1.msra.mxu0 %v266
    %292 = vmatprep.subr.mxu0 0.0
    %293 = vmatpush1.msra.mxu0 %v267
    %294 = vmatprep.subr.mxu0 0.0
    %295 = vmatpush1.msra.mxu0 %v268
    %296 = vmatprep.subr.mxu0 0.0
    %297 = vmatpush1.msra.mxu0 %v269
    %298 = vmatprep.subr.mxu0 0.0
    %299 = vmatpush1.msra.mxu0 %v270
    %300 = vmatprep.subr.mxu0 0.0
    %301 = vmatpush1.msra.mxu0 %v271
    %302 = vmatprep.subr.mxu0 0.0
    %303 = vmatpush1.msra.mxu0 %v272
    %304 = vmatprep.subr.mxu0 0.0
    %305 = vmatpush1.msra.mxu0 %v273
    %306 = vmatprep.subr.mxu0 0.0
    %307 = vmatpush1.msra.mxu0 0.0
    %308 = vmatprep.subr.mxu0 0.0
    %309 = vmatpush1.msra.mxu0 0.0
    %310 = vmatprep.subr.mxu0 0.0
    %311 = vmatpush1.msra.mxu0 0.0
    %312 = vmatprep.subr.mxu0 0.0
    %313 = vmatpush1.msra.mxu0 0.0
    %314 = vmatprep.subr.mxu0 0.0
    %315 = vmatpush1.msra.mxu0 0.0
    %316 = vmatprep.subr.mxu0 0.0
    %317 = vmatpush1.msra.mxu0 0.0
    %318 = vmatprep.subr.mxu0 0.0
    %319 = vmatpush1.msra.mxu0 0.0
    %320 = vmatprep.subr.mxu0 0.0
    %321 = vmatpush1.msra.mxu0 0.0
    %322 = vmatprep.subr.mxu0 0.0
    %323 = vmatpush1.msra.mxu0 0.0
    %324 = vmatprep.subr.mxu0 0.0
    %325 = vmatpush1.msra.mxu0 0.0
    %326 = vmatprep.subr.mxu0 0.0
    %327 = vmatpush1.msra.mxu0 0.0
    %328 = vmatprep.subr.mxu0 0.0
    %329 = vmatpush1.msra.mxu0 0.0
    %330 = vmatprep.subr.mxu0 0.0
    %331 = vmatpush1.msra.mxu0 0.0
    %332 = vmatprep.subr.mxu0 0.0
    %333 = vmatpush1.msra.mxu0 0.0
    %334 = vmatprep.subr.mxu0 0.0
    %335 = vmatpush1.msra.mxu0 0.0
    %336 = vmatprep.subr.mxu0 0.0
    %337 = vmatpush1.msra.mxu0 0.0
    %338 = vmatprep.mubr.f32.mxu0 0.0
    %339 = vmatmul.mubr.f32.gmra.mrb[0].mxu0 %v257
    %v340 = vpop.f32.mrb[0].mxu0
    %v341 = vadd.f32 0.0, %v340
    %v342 = vpop.f32.mrb[0].mxu0
    %343 = vdwg.mxu0
    %v344 = vlaneseq
    %v345 = vshrl.u32 %v344, 7
    %v346 = vsub.s32 0, %v345
    %v347 = vrot.slane %v341, %v346
    %v348 = vsub.f32 %v245, %v347
    %v349 = vsub.f32 %v246, %v347
    %v350 = vsub.f32 %v247, %v347
    %v351 = vsub.f32 %v248, %v347
    %v352 = vmul.f32 %v348, %v348
    %v353 = vmul.f32 %v349, %v349
    %v354 = vmul.f32 %v350, %v350
    %v355 = vmul.f32 %v351, %v351
    %v356 = vadd.f32 %v352, %v353
    %v357 = vadd.f32 %v356, %v354
    %v358 = vadd.f32 %v357, %v355
    %v359 = vrot.slane %v358, 4
    %v360 = vadd.f32 %v358, %v359
    %v361 = vrot.slane %v360, 2
    %v362 = vadd.f32 %v360, %v361
    %v363 = vrot.slane %v362, 1
    %v364 = vadd.f32 %v362, %v363
    %365 = vmatprep.subr.mxu0 0.0
    %366 = vmatpush1.msra.mxu0 %v258
    %367 = vmatprep.subr.mxu0 0.0
    %368 = vmatpush1.msra.mxu0 %v259
    %369 = vmatprep.subr.mxu0 0.0
    %370 = vmatpush1.msra.mxu0 %v260
    %371 = vmatprep.subr.mxu0 0.0
    %372 = vmatpush1.msra.mxu0 %v261
    %373 = vmatprep.subr.mxu0 0.0
    %374 = vmatpush1.msra.mxu0 %v262
    %375 = vmatprep.subr.mxu0 0.0
    %376 = vmatpush1.msra.mxu0 %v263
    %377 = vmatprep.subr.mxu0 0.0
    %378 = vmatpush1.msra.mxu0 %v264
    %379 = vmatprep.subr.mxu0 0.0
    %380 = vmatpush1.msra.mxu0 %v265
    %381 = vmatprep.subr.mxu0 0.0
    %382 = vmatpush1.msra.mxu0 %v266
    %383 = vmatprep.subr.mxu0 0.0
    %384 = vmatpush1.msra.mxu0 %v267
    %385 = vmatprep.subr.mxu0 0.0
    %386 = vmatpush1.msra.mxu0 %v268
    %387 = vmatprep.subr.mxu0 0.0
    %388 = vmatpush1.msra.mxu0 %v269
    %389 = vmatprep.subr.mxu0 0.0
    %390 = vmatpush1.msra.mxu0 %v270
    %391 = vmatprep.subr.mxu0 0.0
    %392 = vmatpush1.msra.mxu0 %v271
    %393 = vmatprep.subr.mxu0 0.0
    %394 = vmatpush1.msra.mxu0 %v272
    %395 = vmatprep.subr.mxu0 0.0
    %396 = vmatpush1.msra.mxu0 %v273
    %397 = vmatprep.subr.mxu0 0.0
    %398 = vmatpush1.msra.mxu0 0.0
    %399 = vmatprep.subr.mxu0 0.0
    %400 = vmatpush1.msra.mxu0 0.0
    %401 = vmatprep.subr.mxu0 0.0
    %402 = vmatpush1.msra.mxu0 0.0
    %403 = vmatprep.subr.mxu0 0.0
    %404 = vmatpush1.msra.mxu0 0.0
    %405 = vmatprep.subr.mxu0 0.0
    %406 = vmatpush1.msra.mxu0 0.0
    %407 = vmatprep.subr.mxu0 0.0
    %408 = vmatpush1.msra.mxu0 0.0
    %409 = vmatprep.subr.mxu0 0.0
    %410 = vmatpush1.msra.mxu0 0.0
    %411 = vmatprep.subr.mxu0 0.0
    %412 = vmatpush1.msra.mxu0 0.0
    %413 = vmatprep.subr.mxu0 0.0
    %414 = vmatpush1.msra.mxu0 0.0
    %415 = vmatprep.subr.mxu0 0.0
    %416 = vmatpush1.msra.mxu0 0.0
    %417 = vmatprep.subr.mxu0 0.0
    %418 = vmatpush1.msra.mxu0 0.0
    %419 = vmatprep.subr.mxu0 0.0
    %420 = vmatpush1.msra.mxu0 0.0
    %421 = vmatprep.subr.mxu0 0.0
    %422 = vmatpush1.msra.mxu0 0.0
    %423 = vmatprep.subr.mxu0 0.0
    %424 = vmatpush1.msra.mxu0 0.0
    %425 = vmatprep.subr.mxu0 0.0
    %426 = vmatpush1.msra.mxu0 0.0
    %427 = vmatprep.subr.mxu0 0.0
    %428 = vmatpush1.msra.mxu0 0.0
    %429 = vmatprep.mubr.f32.mxu0 0.0
    %430 = vmatmul.mubr.f32.gmra.mrb[0].mxu0 %v364
    %v431 = vpop.f32.mrb[0].mxu0
    %v432 = vadd.f32 1e-05, %v431
    %v433 = vpop.f32.mrb[0].mxu0
    %434 = vdwg.mxu0
    %v435 = vrsqrt.pop %v432
    %v436 = vlaneseq
    %v437 = vshrl.u32 %v436, 7
    %v438 = vsub.s32 0, %v437
    %v439 = vrot.slane %v435, %v438
    %v440 = vmul.f32 %v348, %v439
    %v441 = vmul.f32 %v349, %v439
    %v442 = vmul.f32 %v350, %v439
    %v443 = vmul.f32 %v351, %v439
    %v444 = vld [vmem:[%s2] sm:$0x1]
    %v446 = vlaneseq
    %v447 = vshrl.u32 %v446, 7
    %v448 = vsub.s32 0, %v447
    %v449 = vrot.slane %v444, %v448
    %v451 = vmul.f32 %v440, %v449
    %v452 = vmul.f32 %v441, %v449
    %v453 = vmul.f32 %v442, %v449
    %v454 = vmul.f32 %v443, %v449
    %v455 = vld [vmem:[%s3] sm:$0x1]
    %v457 = vlaneseq
    %v458 = vshrl.u32 %v457, 7
    %v459 = vsub.s32 0, %v458
    %v460 = vrot.slane %v455, %v459
    %v462 = vadd.f32 %v451, %v460
    %v463 = vadd.f32 %v452, %v460
    %v464 = vadd.f32 %v453, %v460
    %v465 = vadd.f32 %v454, %v460
    %v466 = vmax.f32 %v462, 0.0
    %v467 = vmax.f32 %v463, 0.0
    %v468 = vmax.f32 %v464, 0.0
    %v469 = vmax.f32 %v465, 0.0
    %470 = vst [vmem:[%s5] sm:$0xff] %v466
    %471 = vst [vmem:[%s5 + $0x8] sm:$0xff] %v467
    %472 = vst [vmem:[%s5 + $0x10] sm:$0xff] %v468
    %473 = vst [vmem:[%s5 + $0x18] sm:$0xff] %v469
  $region29: #{generator_forward.21} parent=0 // pred_fallthru
    _
  // Predicated region
  $region30: #{generator_forward.21} parent=0 // pred_check
    _
  $region31: #{generator_forward.21} parent=0 // pred_check_branch
    %475 = sbr.rel (0) target = $region33
  $region32: #{generator_forward.21} parent=0 // pred_region
    _
  $region33: #{generator_forward.21} parent=0 // pred_fallthru
    _
  // Predicated region
  $region34: #{generator_forward.21} parent=0 // pred_check
    _
  $region35: #{generator_forward.21} parent=0 // pred_check_branch
    %477 = sbr.rel (0) target = $region37
  $region36: #{generator_forward.21} parent=0 // pred_region
    _
  $region37: #{generator_forward.21} parent=0 // pred_fallthru
    _

// kernel: generator_forward.23
$region0: #{generator_forward.23}
  #allocation0 [shape = 'u32[]', space=smem, size = 0x4, offset = 0x4, fixed_abs, tag = 'smem constant byte address 0x4 - core index']
  #allocation1 [shape = 'u32[144,128]{1,0:T(1,128)}', space=vmem, size = 0x12000, scoped, tag = 'internal scratch']
  #allocation2 [shape = 'f32[32,128]{1,0:T(8,128)}', space=vmem, size = 0x4000, scoped, tag = 'scratch operand']
  %s0 = inlined_call_operand.vmem [shape: bf16[32,384], index: 0, kind: input, shape index: {}]
  %s1 = inlined_call_operand.vmem [shape: bf16[384,128], index: 1, kind: input, shape index: {}]
  %s2 = inlined_call_operand.vmem [shape: f32[1,128], index: 2, kind: input, shape index: {}]
  %s3 = inlined_call_operand.vmem [shape: f32[1,128], index: 3, kind: input, shape index: {}]
  %s4 = inlined_call_operand.vmem [shape: f32[128,128], index: 4, kind: input, shape index: {}]
  %s5 = inlined_call_operand.vmem [shape: f32[32,128], index: 5, kind: input, shape index: {}]
  %s6 = inlined_call_operand.vmem [shape: f32[32,128], index: 6, kind: output, shape index: {}]
  %s7 = sld [smem:[#allocation0]]
  $region42: #{generator_forward.23} parent=0
    _
  %s9 = ssub.s32 1, %s7
  %s10 = scalar_select 0, %s9, %s7
  // Predicated region
  $region2: #{generator_forward.23} parent=0 // pred_check
    _
  $region3: #{generator_forward.23} parent=0 // pred_check_branch
    %12 = sbr.rel (0) target = $region5
  $region4: #{generator_forward.23} parent=0 // pred_region
    _
  $region5: #{generator_forward.23} parent=0 // pred_fallthru
    _
  // Predicated region
  $region6: #{generator_forward.23} parent=0 // pred_check
    _
  $region7: #{generator_forward.23} parent=0 // pred_check_branch
    %14 = sbr.rel (0) target = $region9
  $region8: #{generator_forward.23} parent=0 // pred_region
    _
  $region9: #{generator_forward.23} parent=0 // pred_fallthru
    _
  // Predicated region
  $region10: #{generator_forward.23} parent=0 // pred_check
    _
  $region11: #{generator_forward.23} parent=0 // pred_check_branch
    %16 = sbr.rel (0) target = $region13
  $region12: #{generator_forward.23} parent=0 // pred_region
    _
  $region13: #{generator_forward.23} parent=0 // pred_fallthru
    _
  // Predicated region
  $region14: #{generator_forward.23} parent=0 // pred_check
    _
  $region15: #{generator_forward.23} parent=0 // pred_check_branch
    %18 = sbr.rel (0) target = $region17
  $region16: #{generator_forward.23} parent=0 // pred_region
    _
  $region17: #{generator_forward.23} parent=0 // pred_fallthru
    _
  // Predicated region
  $region18: #{generator_forward.23} parent=0 // pred_check
    _
  $region19: #{generator_forward.23} parent=0 // pred_check_branch
    %20 = sbr.rel (0) target = $region21
  $region20: #{generator_forward.23} parent=0 // pred_region
    _
  $region21: #{generator_forward.23} parent=0 // pred_fallthru
    _
  // Predicated region
  $region22: #{generator_forward.23} parent=0 // pred_check
    _
  $region23: #{generator_forward.23} parent=0 // pred_check_branch
    %22 = sbr.rel (0) target = $region25
  $region24: #{generator_forward.23} parent=0 // pred_region
    _
  $region25: #{generator_forward.23} parent=0 // pred_fallthru
    _
  %p24 = scmp.eq.s32.totalorder 0, 0
  // Predicated region
  $region26: #{generator_forward.23} parent=0 // pred_check
    %p25 = pneg %p24
  $region27: #{generator_forward.23} parent=0 // pred_check_branch
    %27 = sbr.rel (%p25) target = $region29
  $region28: #{generator_forward.23} parent=0 // pred_region
    %28 = vst [vmem:[#allocation2] sm:$0xff] 0.0
    %29 = vst [vmem:[#allocation2 + $0x8] sm:$0xff] 0.0
    %30 = vst [vmem:[#allocation2 + $0x10] sm:$0xff] 0.0
    %31 = vst [vmem:[#allocation2 + $0x18] sm:$0xff] 0.0
  $region29: #{generator_forward.23} parent=0 // pred_fallthru
    _
  %v32 = vld [vmem:[#allocation2] sm:$0xff]
  %v33 = vld [vmem:[#allocation2 + $0x8] sm:$0xff]
  %v34 = vld [vmem:[#allocation2 + $0x10] sm:$0xff]
  %v35 = vld [vmem:[#allocation2 + $0x18] sm:$0xff]
  %v36 = vld [vmem:[%s0] sm:$0xff]
  %v37 = vld [vmem:[%s0 + $0x8] sm:$0xf]
  %v38 = vld [vmem:[%s0 + $0xc] sm:$0xff]
  %v39 = vld [vmem:[%s0 + $0x14] sm:$0xf]
  %v40 = vld [vmem:[%s0 + $0x18] sm:$0xff]
  %v41 = vld [vmem:[%s0 + $0x20] sm:$0xf]
  %v42 = vld [vmem:[%s0 + $0x24] sm:$0xff]
  %v43 = vld [vmem:[%s0 + $0x2c] sm:$0xf]
  %v44 = vld [vmem:[%s1] sm:$0xf]
  %v45 = vld [vmem:[%s1 + $0x4] sm:$0xf]
  %v46 = vld [vmem:[%s1 + $0x8] sm:$0xf]
  %v47 = vld [vmem:[%s1 + $0xc] sm:$0xf]
  %v48 = vld [vmem:[%s1 + $0x10] sm:$0xf]
  %v49 = vld [vmem:[%s1 + $0x14] sm:$0xf]
  %v50 = vld [vmem:[%s1 + $0x18] sm:$0xf]
  %v51 = vld [vmem:[%s1 + $0x1c] sm:$0xf]
  %v52 = vld [vmem:[%s1 + $0x20] sm:$0xf]
  %v53 = vld [vmem:[%s1 + $0x24] sm:$0xf]
  %v54 = vld [vmem:[%s1 + $0x28] sm:$0xf]
  %v55 = vld [vmem:[%s1 + $0x2c] sm:$0xf]
  %v56 = vld [vmem:[%s1 + $0x30] sm:$0xf]
  %v57 = vld [vmem:[%s1 + $0x34] sm:$0xf]
  %v58 = vld [vmem:[%s1 + $0x38] sm:$0xf]
  %v59 = vld [vmem:[%s1 + $0x3c] sm:$0xf]
  %v60 = vld [vmem:[%s1 + $0x40] sm:$0xf]
  %v61 = vld [vmem:[%s1 + $0x44] sm:$0xf]
  %v62 = vld [vmem:[%s1 + $0x48] sm:$0xf]
  %v63 = vld [vmem:[%s1 + $0x4c] sm:$0xf]
  %v64 = vld [vmem:[%s1 + $0x50] sm:$0xf]
  %v65 = vld [vmem:[%s1 + $0x54] sm:$0xf]
  %v66 = vld [vmem:[%s1 + $0x58] sm:$0xf]
  %v67 = vld [vmem:[%s1 + $0x5c] sm:$0xf]
  %v68 = vld [vmem:[%s1 + $0x60] sm:$0xf]
  %v69 = vld [vmem:[%s1 + $0x64] sm:$0xf]
  %v70 = vld [vmem:[%s1 + $0x68] sm:$0xf]
  %v71 = vld [vmem:[%s1 + $0x6c] sm:$0xf]
  %v72 = vld [vmem:[%s1 + $0x70] sm:$0xf]
  %v73 = vld [vmem:[%s1 + $0x74] sm:$0xf]
  %v74 = vld [vmem:[%s1 + $0x78] sm:$0xf]
  %v75 = vld [vmem:[%s1 + $0x7c] sm:$0xf]
  %v76 = vld [vmem:[%s1 + $0x80] sm:$0xf]
  %v77 = vld [vmem:[%s1 + $0x84] sm:$0xf]
  %v78 = vld [vmem:[%s1 + $0x88] sm:$0xf]
  %v79 = vld [vmem:[%s1 + $0x8c] sm:$0xf]
  %v80 = vld [vmem:[%s1 + $0x90] sm:$0xf]
  %v81 = vld [vmem:[%s1 + $0x94] sm:$0xf]
  %v82 = vld [vmem:[%s1 + $0x98] sm:$0xf]
  %v83 = vld [vmem:[%s1 + $0x9c] sm:$0xf]
  %v84 = vld [vmem:[%s1 + $0xa0] sm:$0xf]
  %v85 = vld [vmem:[%s1 + $0xa4] sm:$0xf]
  %v86 = vld [vmem:[%s1 + $0xa8] sm:$0xf]
  %v87 = vld [vmem:[%s1 + $0xac] sm:$0xf]
  %v88 = vld [vmem:[%s1 + $0xb0] sm:$0xf]
  %v89 = vld [vmem:[%s1 + $0xb4] sm:$0xf]
  %v90 = vld [vmem:[%s1 + $0xb8] sm:$0xf]
  %v91 = vld [vmem:[%s1 + $0xbc] sm:$0xf]
  %v100 = vunpack.c.l.b16 %v36
  %v101 = vunpack.c.h.b16 %v36
  %v102 = vunpack.c.l.b16 %v37
  %v103 = vunpack.c.l.b16 %v38
  %v104 = vunpack.c.h.b16 %v38
  %v105 = vunpack.c.l.b16 %v39
  %v106 = vunpack.c.l.b16 %v40
  %v107 = vunpack.c.h.b16 %v40
  %v108 = vunpack.c.l.b16 %v41
  %v109 = vunpack.c.l.b16 %v42
  %v110 = vunpack.c.h.b16 %v42
  %v111 = vunpack.c.l.b16 %v43
  %v112 = vpack.c.b16 %v103, %v100
  %v113 = vpack.c.b16 %v104, %v101
  %v114 = vpack.c.b16 %v105, %v102
  %v115 = vpack.c.b16 %v109, %v106
  %v116 = vpack.c.b16 %v110, %v107
  %v117 = vpack.c.b16 %v111, %v108
  %v172 = vunpack.c.l.b16 %v44
  %v173 = vunpack.c.l.b16 %v45
  %v174 = vunpack.c.l.b16 %v46
  %v175 = vunpack.c.l.b16 %v47
  %v176 = vunpack.c.l.b16 %v48
  %v177 = vunpack.c.l.b16 %v49
  %v178 = vunpack.c.l.b16 %v50
  %v179 = vunpack.c.l.b16 %v51
  %v180 = vunpack.c.l.b16 %v52
  %v181 = vunpack.c.l.b16 %v53
  %v182 = vunpack.c.l.b16 %v54
  %v183 = vunpack.c.l.b16 %v55
  %v184 = vunpack.c.l.b16 %v56
  %v185 = vunpack.c.l.b16 %v57
  %v186 = vunpack.c.l.b16 %v58
  %v187 = vunpack.c.l.b16 %v59
  %v188 = vunpack.c.l.b16 %v60
  %v189 = vunpack.c.l.b16 %v61
  %v190 = vunpack.c.l.b16 %v62
  %v191 = vunpack.c.l.b16 %v63
  %v192 = vunpack.c.l.b16 %v64
  %v193 = vunpack.c.l.b16 %v65
  %v194 = vunpack.c.l.b16 %v66
  %v195 = vunpack.c.l.b16 %v67
  %v196 = vunpack.c.l.b16 %v68
  %v197 = vunpack.c.l.b16 %v69
  %v198 = vunpack.c.l.b16 %v70
  %v199 = vunpack.c.l.b16 %v71
  %v200 = vunpack.c.l.b16 %v72
  %v201 = vunpack.c.l.b16 %v73
  %v202 = vunpack.c.l.b16 %v74
  %v203 = vunpack.c.l.b16 %v75
  %v204 = vunpack.c.l.b16 %v76
  %v205 = vunpack.c.l.b16 %v77
  %v206 = vunpack.c.l.b16 %v78
  %v207 = vunpack.c.l.b16 %v79
  %v208 = vunpack.c.l.b16 %v80
  %v209 = vunpack.c.l.b16 %v81
  %v210 = vunpack.c.l.b16 %v82
  %v211 = vunpack.c.l.b16 %v83
  %v212 = vunpack.c.l.b16 %v84
  %v213 = vunpack.c.l.b16 %v85
  %v214 = vunpack.c.l.b16 %v86
  %v215 = vunpack.c.l.b16 %v87
  %v216 = vunpack.c.l.b16 %v88
  %v217 = vunpack.c.l.b16 %v89
  %v218 = vunpack.c.l.b16 %v90
  %v219 = vunpack.c.l.b16 %v91
  %v220 = vpack.c.b16 %v173, %v172
  %v221 = vpack.c.b16 %v175, %v174
  %v222 = vpack.c.b16 %v177, %v176
  %v223 = vpack.c.b16 %v179, %v178
  %v224 = vpack.c.b16 %v181, %v180
  %v225 = vpack.c.b16 %v183, %v182
  %v226 = vpack.c.b16 %v185, %v184
  %v227 = vpack.c.b16 %v187, %v186
  %v228 = vpack.c.b16 %v189, %v188
  %v229 = vpack.c.b16 %v191, %v190
  %v230 = vpack.c.b16 %v193, %v192
  %v231 = vpack.c.b16 %v195, %v194
  %v232 = vpack.c.b16 %v197, %v196
  %v233 = vpack.c.b16 %v199, %v198
  %v234 = vpack.c.b16 %v201, %v200
  %v235 = vpack.c.b16 %v203, %v202
  %v236 = vpack.c.b16 %v205, %v204
  %v237 = vpack.c.b16 %v207, %v206
  %v238 = vpack.c.b16 %v209, %v208
  %v239 = vpack.c.b16 %v211, %v210
  %v240 = vpack.c.b16 %v213, %v212
  %v241 = vpack.c.b16 %v215, %v214
  %v242 = vpack.c.b16 %v217, %v216
  %v243 = vpack.c.b16 %v219, %v218
  %268 = vmatprep.subr.bf16.mxu0 0
  %269 = vmatpush1.bf16.msra.mxu0 %v220
  %270 = vmatprep.subr.bf16.mxu0 0
  %271 = vmatpush1.bf16.msra.mxu0 %v221
  %272 = vmatprep.subr.bf16.mxu0 0
  %273 = vmatpush1.bf16.msra.mxu0 %v222
  %274 = vmatprep.subr.bf16.mxu0 0
  %275 = vmatpush1.bf16.msra.mxu0 %v223
  %276 = vmatprep.subr.bf16.mxu0 0
  %277 = vmatpush1.bf16.msra.mxu0 %v224
  %278 = vmatprep.subr.bf16.mxu0 0
  %279 = vmatpush1.bf16.msra.mxu0 %v225
  %280 = vmatprep.subr.bf16.mxu0 0
  %281 = vmatpush1.bf16.msra.mxu0 %v226
  %282 = vmatprep.subr.bf16.mxu0 0
  %283 = vmatpush1.bf16.msra.mxu0 %v227
  %284 = vmatprep.subr.bf16.mxu0 0
  %285 = vmatpush1.bf16.msra.mxu0 %v228
  %286 = vmatprep.subr.bf16.mxu0 0
  %287 = vmatpush1.bf16.msra.mxu0 %v229
  %288 = vmatprep.subr.bf16.mxu0 0
  %289 = vmatpush1.bf16.msra.mxu0 %v230
  %290 = vmatprep.subr.bf16.mxu0 0
  %291 = vmatpush1.bf16.msra.mxu0 %v231
  %292 = vmatprep.subr.bf16.mxu0 0
  %293 = vmatpush1.bf16.msra.mxu0 %v232
  %294 = vmatprep.subr.bf16.mxu0 0
  %295 = vmatpush1.bf16.msra.mxu0 %v233
  %296 = vmatprep.subr.bf16.mxu0 0
  %297 = vmatpush1.bf16.msra.mxu0 %v234
  %298 = vmatprep.subr.bf16.mxu0 0
  %299 = vmatpush1.bf16.msra.mxu0 %v235
  %300 = vmatprep.mubr.bf16.mxu0 %v113
  %301 = vmatmul.mubr.bf16.gmra.mrb[0].mxu0 %v112
  %v302 = vpop.f32.mrb[0].mxu0
  %v303 = vadd.f32 0.0, %v302
  %v304 = vpop.f32.mrb[0].mxu0
  %v305 = vpop.f32.mrb[0].mxu0
  %v306 = vadd.f32 0.0, %v305
  %v307 = vpop.f32.mrb[0].mxu0
  %308 = vmatprep.mubr.bf16.mxu0 %v116
  %309 = vmatmul.mubr.bf16.gmra.mrb[0].mxu0 %v115
  %v310 = vpop.f32.mrb[0].mxu0
  %v311 = vadd.f32 0.0, %v310
  %v312 = vpop.f32.mrb[0].mxu0
  %v313 = vpop.f32.mrb[0].mxu0
  %v314 = vadd.f32 0.0, %v313
  %v315 = vpop.f32.mrb[0].mxu0
  %316 = vdwg.mxu0
  %317 = vmatprep.subr.bf16.mxu0 0
  %318 = vmatpush1.bf16.msra.mxu0 %v236
  %319 = vmatprep.subr.bf16.mxu0 0
  %320 = vmatpush1.bf16.msra.mxu0 %v237
  %321 = vmatprep.subr.bf16.mxu0 0
  %322 = vmatpush1.bf16.msra.mxu0 %v238
  %323 = vmatprep.subr.bf16.mxu0 0
  %324 = vmatpush1.bf16.msra.mxu0 %v239
  %325 = vmatprep.subr.bf16.mxu0 0
  %326 = vmatpush1.bf16.msra.mxu0 %v240
  %327 = vmatprep.subr.bf16.mxu0 0
  %328 = vmatpush1.bf16.msra.mxu0 %v241
  %329 = vmatprep.subr.bf16.mxu0 0
  %330 = vmatpush1.bf16.msra.mxu0 %v242
  %331 = vmatprep.subr.bf16.mxu0 0
  %332 = vmatpush1.bf16.msra.mxu0 %v243
  %333 = vmatprep.subr.bf16.mxu0 0
  %334 = vmatpush1.bf16.msra.mxu0 0
  %335 = vmatprep.subr.bf16.mxu0 0
  %336 = vmatpush1.bf16.msra.mxu0 0
  %337 = vmatprep.subr.bf16.mxu0 0
  %338 = vmatpush1.bf16.msra.mxu0 0
  %339 = vmatprep.subr.bf16.mxu0 0
  %340 = vmatpush1.bf16.msra.mxu0 0
  %341 = vmatprep.subr.bf16.mxu0 0
  %342 = vmatpush1.bf16.msra.mxu0 0
  %343 = vmatprep.subr.bf16.mxu0 0
  %344 = vmatpush1.bf16.msra.mxu0 0
  %345 = vmatprep.subr.bf16.mxu0 0
  %346 = vmatpush1.bf16.msra.mxu0 0
  %347 = vmatprep.subr.bf16.mxu0 0
  %348 = vmatpush1.bf16.msra.mxu0 0
  %349 = vmatprep.mubr.bf16.mxu0 0
  %350 = vmatmul.mubr.bf16.gmra.mrb[0].mxu0 %v114
  %v351 = vpop.f32.mrb[0].mxu0
  %v352 = vadd.f32 %v303, %v351
  %v353 = vpop.f32.mrb[0].mxu0
  %v354 = vpop.f32.mrb[0].mxu0
  %v355 = vadd.f32 %v306, %v354
  %v356 = vpop.f32.mrb[0].mxu0
  %357 = vmatprep.mubr.bf16.mxu0 0
  %358 = vmatmul.mubr.bf16.gmra.mrb[0].mxu0 %v117
  %v359 = vpop.f32.mrb[0].mxu0
  %v360 = vadd.f32 %v311, %v359
  %v361 = vpop.f32.mrb[0].mxu0
  %v362 = vpop.f32.mrb[0].mxu0
  %v363 = vadd.f32 %v314, %v362
  %v364 = vpop.f32.mrb[0].mxu0
  %365 = vdwg.mxu0
  %v366 = vadd.f32 %v32, %v352
  %v367 = vadd.f32 %v33, %v355
  %v368 = vadd.f32 %v34, %v360
  %v369 = vadd.f32 %v35, %v363
  %370 = vst [vmem:[#allocation2] sm:$0xff] %v366
  %371 = vst [vmem:[#allocation2 + $0x8] sm:$0xff] %v367
  %372 = vst [vmem:[#allocation2 + $0x10] sm:$0xff] %v368
  %373 = vst [vmem:[#allocation2 + $0x18] sm:$0xff] %v369
  // Predicated region
  $region30: #{generator_forward.23} parent=0 // pred_check
    %p374 = pneg %p24
  $region31: #{generator_forward.23} parent=0 // pred_check_branch
    %376 = sbr.rel (%p374) target = $region33
  $region32: #{generator_forward.23} parent=0 // pred_region
    %v377 = vld [vmem:[#allocation2] sm:$0xff]
    %v378 = vld [vmem:[#allocation2 + $0x8] sm:$0xff]
    %v379 = vld [vmem:[#allocation2 + $0x10] sm:$0xff]
    %v380 = vld [vmem:[#allocation2 + $0x18] sm:$0xff]
    %v381 = vadd.f32 %v377, %v378
    %v382 = vadd.f32 %v381, %v379
    %v383 = vadd.f32 %v382, %v380
    %v384 = vrot.slane %v383, 4
    %v385 = vadd.f32 %v383, %v384
    %v386 = vrot.slane %v385, 2
    %v387 = vadd.f32 %v385, %v386
    %v388 = vrot.slane %v387, 1
    %v389 = vadd.f32 %v387, %v388
    %v390 = vld [vmem:[%s4] sm:$0xff]
    %v391 = vld [vmem:[%s4 + $0x8] sm:$0xff]
    %v392 = vld [vmem:[%s4 + $0x10] sm:$0xff]
    %v393 = vld [vmem:[%s4 + $0x18] sm:$0xff]
    %v394 = vld [vmem:[%s4 + $0x20] sm:$0xff]
    %v395 = vld [vmem:[%s4 + $0x28] sm:$0xff]
    %v396 = vld [vmem:[%s4 + $0x30] sm:$0xff]
    %v397 = vld [vmem:[%s4 + $0x38] sm:$0xff]
    %v398 = vld [vmem:[%s4 + $0x40] sm:$0xff]
    %v399 = vld [vmem:[%s4 + $0x48] sm:$0xff]
    %v400 = vld [vmem:[%s4 + $0x50] sm:$0xff]
    %v401 = vld [vmem:[%s4 + $0x58] sm:$0xff]
    %v402 = vld [vmem:[%s4 + $0x60] sm:$0xff]
    %v403 = vld [vmem:[%s4 + $0x68] sm:$0xff]
    %v404 = vld [vmem:[%s4 + $0x70] sm:$0xff]
    %v405 = vld [vmem:[%s4 + $0x78] sm:$0xff]
    %406 = vmatprep.subr.mxu0 0.0
    %407 = vmatpush1.msra.mxu0 %v390
    %408 = vmatprep.subr.mxu0 0.0
    %409 = vmatpush1.msra.mxu0 %v391
    %410 = vmatprep.subr.mxu0 0.0
    %411 = vmatpush1.msra.mxu0 %v392
    %412 = vmatprep.subr.mxu0 0.0
    %413 = vmatpush1.msra.mxu0 %v393
    %414 = vmatprep.subr.mxu0 0.0
    %415 = vmatpush1.msra.mxu0 %v394
    %416 = vmatprep.subr.mxu0 0.0
    %417 = vmatpush1.msra.mxu0 %v395
    %418 = vmatprep.subr.mxu0 0.0
    %419 = vmatpush1.msra.mxu0 %v396
    %420 = vmatprep.subr.mxu0 0.0
    %421 = vmatpush1.msra.mxu0 %v397
    %422 = vmatprep.subr.mxu0 0.0
    %423 = vmatpush1.msra.mxu0 %v398
    %424 = vmatprep.subr.mxu0 0.0
    %425 = vmatpush1.msra.mxu0 %v399
    %426 = vmatprep.subr.mxu0 0.0
    %427 = vmatpush1.msra.mxu0 %v400
    %428 = vmatprep.subr.mxu0 0.0
    %429 = vmatpush1.msra.mxu0 %v401
    %430 = vmatprep.subr.mxu0 0.0
    %431 = vmatpush1.msra.mxu0 %v402
    %432 = vmatprep.subr.mxu0 0.0
    %433 = vmatpush1.msra.mxu0 %v403
    %434 = vmatprep.subr.mxu0 0.0
    %435 = vmatpush1.msra.mxu0 %v404
    %436 = vmatprep.subr.mxu0 0.0
    %437 = vmatpush1.msra.mxu0 %v405
    %438 = vmatprep.subr.mxu0 0.0
    %439 = vmatpush1.msra.mxu0 0.0
    %440 = vmatprep.subr.mxu0 0.0
    %441 = vmatpush1.msra.mxu0 0.0
    %442 = vmatprep.subr.mxu0 0.0
    %443 = vmatpush1.msra.mxu0 0.0
    %444 = vmatprep.subr.mxu0 0.0
    %445 = vmatpush1.msra.mxu0 0.0
    %446 = vmatprep.subr.mxu0 0.0
    %447 = vmatpush1.msra.mxu0 0.0
    %448 = vmatprep.subr.mxu0 0.0
    %449 = vmatpush1.msra.mxu0 0.0
    %450 = vmatprep.subr.mxu0 0.0
    %451 = vmatpush1.msra.mxu0 0.0
    %452 = vmatprep.subr.mxu0 0.0
    %453 = vmatpush1.msra.mxu0 0.0
    %454 = vmatprep.subr.mxu0 0.0
    %455 = vmatpush1.msra.mxu0 0.0
    %456 = vmatprep.subr.mxu0 0.0
    %457 = vmatpush1.msra.mxu0 0.0
    %458 = vmatprep.subr.mxu0 0.0
    %459 = vmatpush1.msra.mxu0 0.0
    %460 = vmatprep.subr.mxu0 0.0
    %461 = vmatpush1.msra.mxu0 0.0
    %462 = vmatprep.subr.mxu0 0.0
    %463 = vmatpush1.msra.mxu0 0.0
    %464 = vmatprep.subr.mxu0 0.0
    %465 = vmatpush1.msra.mxu0 0.0
    %466 = vmatprep.subr.mxu0 0.0
    %467 = vmatpush1.msra.mxu0 0.0
    %468 = vmatprep.subr.mxu0 0.0
    %469 = vmatpush1.msra.mxu0 0.0
    %470 = vmatprep.mubr.f32.mxu0 0.0
    %471 = vmatmul.mubr.f32.gmra.mrb[0].mxu0 %v389
    %v472 = vpop.f32.mrb[0].mxu0
    %v473 = vadd.f32 0.0, %v472
    %v474 = vpop.f32.mrb[0].mxu0
    %475 = vdwg.mxu0
    %v476 = vlaneseq
    %v477 = vshrl.u32 %v476, 7
    %v478 = vsub.s32 0, %v477
    %v479 = vrot.slane %v473, %v478
    %v480 = vsub.f32 %v377, %v479
    %v481 = vsub.f32 %v378, %v479
    %v482 = vsub.f32 %v379, %v479
    %v483 = vsub.f32 %v380, %v479
    %v484 = vmul.f32 %v480, %v480
    %v485 = vmul.f32 %v481, %v481
    %v486 = vmul.f32 %v482, %v482
    %v487 = vmul.f32 %v483, %v483
    %v488 = vadd.f32 %v484, %v485
    %v489 = vadd.f32 %v488, %v486
    %v490 = vadd.f32 %v489, %v487
    %v491 = vrot.slane %v490, 4
    %v492 = vadd.f32 %v490, %v491
    %v493 = vrot.slane %v492, 2
    %v494 = vadd.f32 %v492, %v493
    %v495 = vrot.slane %v494, 1
    %v496 = vadd.f32 %v494, %v495
    %497 = vmatprep.subr.mxu0 0.0
    %498 = vmatpush1.msra.mxu0 %v390
    %499 = vmatprep.subr.mxu0 0.0
    %500 = vmatpush1.msra.mxu0 %v391
    %501 = vmatprep.subr.mxu0 0.0
    %502 = vmatpush1.msra.mxu0 %v392
    %503 = vmatprep.subr.mxu0 0.0
    %504 = vmatpush1.msra.mxu0 %v393
    %505 = vmatprep.subr.mxu0 0.0
    %506 = vmatpush1.msra.mxu0 %v394
    %507 = vmatprep.subr.mxu0 0.0
    %508 = vmatpush1.msra.mxu0 %v395
    %509 = vmatprep.subr.mxu0 0.0
    %510 = vmatpush1.msra.mxu0 %v396
    %511 = vmatprep.subr.mxu0 0.0
    %512 = vmatpush1.msra.mxu0 %v397
    %513 = vmatprep.subr.mxu0 0.0
    %514 = vmatpush1.msra.mxu0 %v398
    %515 = vmatprep.subr.mxu0 0.0
    %516 = vmatpush1.msra.mxu0 %v399
    %517 = vmatprep.subr.mxu0 0.0
    %518 = vmatpush1.msra.mxu0 %v400
    %519 = vmatprep.subr.mxu0 0.0
    %520 = vmatpush1.msra.mxu0 %v401
    %521 = vmatprep.subr.mxu0 0.0
    %522 = vmatpush1.msra.mxu0 %v402
    %523 = vmatprep.subr.mxu0 0.0
    %524 = vmatpush1.msra.mxu0 %v403
    %525 = vmatprep.subr.mxu0 0.0
    %526 = vmatpush1.msra.mxu0 %v404
    %527 = vmatprep.subr.mxu0 0.0
    %528 = vmatpush1.msra.mxu0 %v405
    %529 = vmatprep.subr.mxu0 0.0
    %530 = vmatpush1.msra.mxu0 0.0
    %531 = vmatprep.subr.mxu0 0.0
    %532 = vmatpush1.msra.mxu0 0.0
    %533 = vmatprep.subr.mxu0 0.0
    %534 = vmatpush1.msra.mxu0 0.0
    %535 = vmatprep.subr.mxu0 0.0
    %536 = vmatpush1.msra.mxu0 0.0
    %537 = vmatprep.subr.mxu0 0.0
    %538 = vmatpush1.msra.mxu0 0.0
    %539 = vmatprep.subr.mxu0 0.0
    %540 = vmatpush1.msra.mxu0 0.0
    %541 = vmatprep.subr.mxu0 0.0
    %542 = vmatpush1.msra.mxu0 0.0
    %543 = vmatprep.subr.mxu0 0.0
    %544 = vmatpush1.msra.mxu0 0.0
    %545 = vmatprep.subr.mxu0 0.0
    %546 = vmatpush1.msra.mxu0 0.0
    %547 = vmatprep.subr.mxu0 0.0
    %548 = vmatpush1.msra.mxu0 0.0
    %549 = vmatprep.subr.mxu0 0.0
    %550 = vmatpush1.msra.mxu0 0.0
    %551 = vmatprep.subr.mxu0 0.0
    %552 = vmatpush1.msra.mxu0 0.0
    %553 = vmatprep.subr.mxu0 0.0
    %554 = vmatpush1.msra.mxu0 0.0
    %555 = vmatprep.subr.mxu0 0.0
    %556 = vmatpush1.msra.mxu0 0.0
    %557 = vmatprep.subr.mxu0 0.0
    %558 = vmatpush1.msra.mxu0 0.0
    %559 = vmatprep.subr.mxu0 0.0
    %560 = vmatpush1.msra.mxu0 0.0
    %561 = vmatprep.mubr.f32.mxu0 0.0
    %562 = vmatmul.mubr.f32.gmra.mrb[0].mxu0 %v496
    %v563 = vpop.f32.mrb[0].mxu0
    %v564 = vadd.f32 1e-05, %v563
    %v565 = vpop.f32.mrb[0].mxu0
    %566 = vdwg.mxu0
    %v567 = vrsqrt.pop %v564
    %v568 = vlaneseq
    %v569 = vshrl.u32 %v568, 7
    %v570 = vsub.s32 0, %v569
    %v571 = vrot.slane %v567, %v570
    %v572 = vmul.f32 %v480, %v571
    %v573 = vmul.f32 %v481, %v571
    %v574 = vmul.f32 %v482, %v571
    %v575 = vmul.f32 %v483, %v571
    %v576 = vld [vmem:[%s2] sm:$0x1]
    %v578 = vlaneseq
    %v579 = vshrl.u32 %v578, 7
    %v580 = vsub.s32 0, %v579
    %v581 = vrot.slane %v576, %v580
    %v583 = vmul.f32 %v572, %v581
    %v584 = vmul.f32 %v573, %v581
    %v585 = vmul.f32 %v574, %v581
    %v586 = vmul.f32 %v575, %v581
    %v587 = vld [vmem:[%s3] sm:$0x1]
    %v589 = vlaneseq
    %v590 = vshrl.u32 %v589, 7
    %v591 = vsub.s32 0, %v590
    %v592 = vrot.slane %v587, %v591
    %v594 = vadd.f32 %v583, %v592
    %v595 = vadd.f32 %v584, %v592
    %v596 = vadd.f32 %v585, %v592
    %v597 = vadd.f32 %v586, %v592
    %v598 = vld [vmem:[%s5] sm:$0xff]
    %v599 = vld [vmem:[%s5 + $0x8] sm:$0xff]
    %v600 = vld [vmem:[%s5 + $0x10] sm:$0xff]
    %v601 = vld [vmem:[%s5 + $0x18] sm:$0xff]
    %v602 = vadd.f32 %v594, %v598
    %v603 = vadd.f32 %v595, %v599
    %v604 = vadd.f32 %v596, %v600
    %v605 = vadd.f32 %v597, %v601
    %606 = vst [vmem:[%s6] sm:$0xff] %v602
    %607 = vst [vmem:[%s6 + $0x8] sm:$0xff] %v603
    %608 = vst [vmem:[%s6 + $0x10] sm:$0xff] %v604
    %609 = vst [vmem:[%s6 + $0x18] sm:$0xff] %v605
  $region33: #{generator_forward.23} parent=0 // pred_fallthru
    _
  // Predicated region
  $region34: #{generator_forward.23} parent=0 // pred_check
    _
  $region35: #{generator_forward.23} parent=0 // pred_check_branch
    %611 = sbr.rel (0) target = $region37
  $region36: #{generator_forward.23} parent=0 // pred_region
    _
  $region37: #{generator_forward.23} parent=0 // pred_fallthru
    _
  // Predicated region
  $region38: #{generator_forward.23} parent=0 // pred_check
    _
  $region39: #{generator_forward.23} parent=0 // pred_check_branch
    %613 = sbr.rel (0) target = $region41
  $region40: #{generator_forward.23} parent=0 // pred_region
    _
  $region41: #{generator_forward.23} parent=0 // pred_fallthru
    _

// kernel: generator_forward.22
$region0: #{generator_forward.22}
  #allocation0 [shape = 'u32[]', space=smem, size = 0x4, offset = 0x4, fixed_abs, tag = 'smem constant byte address 0x4 - core index']
  #allocation1 [shape = 'u32[144,128]{1,0:T(1,128)}', space=vmem, size = 0x12000, scoped, tag = 'internal scratch']
  #allocation2 [shape = 'f32[32,128]{1,0:T(8,128)}', space=vmem, size = 0x4000, scoped, tag = 'scratch operand']
  %s0 = inlined_call_operand.vmem [shape: bf16[32,384], index: 0, kind: input, shape index: {}]
  %s1 = inlined_call_operand.vmem [shape: bf16[384,128], index: 1, kind: input, shape index: {}]
  %s2 = inlined_call_operand.vmem [shape: f32[1,128], index: 2, kind: input, shape index: {}]
  %s3 = inlined_call_operand.vmem [shape: f32[1,128], index: 3, kind: input, shape index: {}]
  %s4 = inlined_call_operand.vmem [shape: f32[128,128], index: 4, kind: input, shape index: {}]
  %s5 = inlined_call_operand.vmem [shape: f32[32,128], index: 5, kind: output, shape index: {}]
  %s6 = sld [smem:[#allocation0]]
  $region38: #{generator_forward.22} parent=0
    _
  %s8 = ssub.s32 1, %s6
  %s9 = scalar_select 0, %s8, %s6
  // Predicated region
  $region2: #{generator_forward.22} parent=0 // pred_check
    _
  $region3: #{generator_forward.22} parent=0 // pred_check_branch
    %11 = sbr.rel (0) target = $region5
  $region4: #{generator_forward.22} parent=0 // pred_region
    _
  $region5: #{generator_forward.22} parent=0 // pred_fallthru
    _
  // Predicated region
  $region6: #{generator_forward.22} parent=0 // pred_check
    _
  $region7: #{generator_forward.22} parent=0 // pred_check_branch
    %13 = sbr.rel (0) target = $region9
  $region8: #{generator_forward.22} parent=0 // pred_region
    _
  $region9: #{generator_forward.22} parent=0 // pred_fallthru
    _
  // Predicated region
  $region10: #{generator_forward.22} parent=0 // pred_check
    _
  $region11: #{generator_forward.22} parent=0 // pred_check_branch
    %15 = sbr.rel (0) target = $region13
  $region12: #{generator_forward.22} parent=0 // pred_region
    _
  $region13: #{generator_forward.22} parent=0 // pred_fallthru
    _
  // Predicated region
  $region14: #{generator_forward.22} parent=0 // pred_check
    _
  $region15: #{generator_forward.22} parent=0 // pred_check_branch
    %17 = sbr.rel (0) target = $region17
  $region16: #{generator_forward.22} parent=0 // pred_region
    _
  $region17: #{generator_forward.22} parent=0 // pred_fallthru
    _
  // Predicated region
  $region18: #{generator_forward.22} parent=0 // pred_check
    _
  $region19: #{generator_forward.22} parent=0 // pred_check_branch
    %19 = sbr.rel (0) target = $region21
  $region20: #{generator_forward.22} parent=0 // pred_region
    _
  $region21: #{generator_forward.22} parent=0 // pred_fallthru
    _
  %p21 = scmp.eq.s32.totalorder 0, 0
  // Predicated region
  $region22: #{generator_forward.22} parent=0 // pred_check
    %p22 = pneg %p21
  $region23: #{generator_forward.22} parent=0 // pred_check_branch
    %24 = sbr.rel (%p22) target = $region25
  $region24: #{generator_forward.22} parent=0 // pred_region
    %25 = vst [vmem:[#allocation2] sm:$0xff] 0.0
    %26 = vst [vmem:[#allocation2 + $0x8] sm:$0xff] 0.0
    %27 = vst [vmem:[#allocation2 + $0x10] sm:$0xff] 0.0
    %28 = vst [vmem:[#allocation2 + $0x18] sm:$0xff] 0.0
  $region25: #{generator_forward.22} parent=0 // pred_fallthru
    _
  %v29 = vld [vmem:[#allocation2] sm:$0xff]
  %v30 = vld [vmem:[#allocation2 + $0x8] sm:$0xff]
  %v31 = vld [vmem:[#allocation2 + $0x10] sm:$0xff]
  %v32 = vld [vmem:[#allocation2 + $0x18] sm:$0xff]
  %v33 = vld [vmem:[%s0] sm:$0xff]
  %v34 = vld [vmem:[%s0 + $0x8] sm:$0xf]
  %v35 = vld [vmem:[%s0 + $0xc] sm:$0xff]
  %v36 = vld [vmem:[%s0 + $0x14] sm:$0xf]
  %v37 = vld [vmem:[%s0 + $0x18] sm:$0xff]
  %v38 = vld [vmem:[%s0 + $0x20] sm:$0xf]
  %v39 = vld [vmem:[%s0 + $0x24] sm:$0xff]
  %v40 = vld [vmem:[%s0 + $0x2c] sm:$0xf]
  %v41 = vld [vmem:[%s1] sm:$0xf]
  %v42 = vld [vmem:[%s1 + $0x4] sm:$0xf]
  %v43 = vld [vmem:[%s1 + $0x8] sm:$0xf]
  %v44 = vld [vmem:[%s1 + $0xc] sm:$0xf]
  %v45 = vld [vmem:[%s1 + $0x10] sm:$0xf]
  %v46 = vld [vmem:[%s1 + $0x14] sm:$0xf]
  %v47 = vld [vmem:[%s1 + $0x18] sm:$0xf]
  %v48 = vld [vmem:[%s1 + $0x1c] sm:$0xf]
  %v49 = vld [vmem:[%s1 + $0x20] sm:$0xf]
  %v50 = vld [vmem:[%s1 + $0x24] sm:$0xf]
  %v51 = vld [vmem:[%s1 + $0x28] sm:$0xf]
  %v52 = vld [vmem:[%s1 + $0x2c] sm:$0xf]
  %v53 = vld [vmem:[%s1 + $0x30] sm:$0xf]
  %v54 = vld [vmem:[%s1 + $0x34] sm:$0xf]
  %v55 = vld [vmem:[%s1 + $0x38] sm:$0xf]
  %v56 = vld [vmem:[%s1 + $0x3c] sm:$0xf]
  %v57 = vld [vmem:[%s1 + $0x40] sm:$0xf]
  %v58 = vld [vmem:[%s1 + $0x44] sm:$0xf]
  %v59 = vld [vmem:[%s1 + $0x48] sm:$0xf]
  %v60 = vld [vmem:[%s1 + $0x4c] sm:$0xf]
  %v61 = vld [vmem:[%s1 + $0x50] sm:$0xf]
  %v62 = vld [vmem:[%s1 + $0x54] sm:$0xf]
  %v63 = vld [vmem:[%s1 + $0x58] sm:$0xf]
  %v64 = vld [vmem:[%s1 + $0x5c] sm:$0xf]
  %v65 = vld [vmem:[%s1 + $0x60] sm:$0xf]
  %v66 = vld [vmem:[%s1 + $0x64] sm:$0xf]
  %v67 = vld [vmem:[%s1 + $0x68] sm:$0xf]
  %v68 = vld [vmem:[%s1 + $0x6c] sm:$0xf]
  %v69 = vld [vmem:[%s1 + $0x70] sm:$0xf]
  %v70 = vld [vmem:[%s1 + $0x74] sm:$0xf]
  %v71 = vld [vmem:[%s1 + $0x78] sm:$0xf]
  %v72 = vld [vmem:[%s1 + $0x7c] sm:$0xf]
  %v73 = vld [vmem:[%s1 + $0x80] sm:$0xf]
  %v74 = vld [vmem:[%s1 + $0x84] sm:$0xf]
  %v75 = vld [vmem:[%s1 + $0x88] sm:$0xf]
  %v76 = vld [vmem:[%s1 + $0x8c] sm:$0xf]
  %v77 = vld [vmem:[%s1 + $0x90] sm:$0xf]
  %v78 = vld [vmem:[%s1 + $0x94] sm:$0xf]
  %v79 = vld [vmem:[%s1 + $0x98] sm:$0xf]
  %v80 = vld [vmem:[%s1 + $0x9c] sm:$0xf]
  %v81 = vld [vmem:[%s1 + $0xa0] sm:$0xf]
  %v82 = vld [vmem:[%s1 + $0xa4] sm:$0xf]
  %v83 = vld [vmem:[%s1 + $0xa8] sm:$0xf]
  %v84 = vld [vmem:[%s1 + $0xac] sm:$0xf]
  %v85 = vld [vmem:[%s1 + $0xb0] sm:$0xf]
  %v86 = vld [vmem:[%s1 + $0xb4] sm:$0xf]
  %v87 = vld [vmem:[%s1 + $0xb8] sm:$0xf]
  %v88 = vld [vmem:[%s1 + $0xbc] sm:$0xf]
  %v97 = vunpack.c.l.b16 %v33
  %v98 = vunpack.c.h.b16 %v33
  %v99 = vunpack.c.l.b16 %v34
  %v100 = vunpack.c.l.b16 %v35
  %v101 = vunpack.c.h.b16 %v35
  %v102 = vunpack.c.l.b16 %v36
  %v103 = vunpack.c.l.b16 %v37
  %v104 = vunpack.c.h.b16 %v37
  %v105 = vunpack.c.l.b16 %v38
  %v106 = vunpack.c.l.b16 %v39
  %v107 = vunpack.c.h.b16 %v39
  %v108 = vunpack.c.l.b16 %v40
  %v109 = vpack.c.b16 %v100, %v97
  %v110 = vpack.c.b16 %v101, %v98
  %v111 = vpack.c.b16 %v102, %v99
  %v112 = vpack.c.b16 %v106, %v103
  %v113 = vpack.c.b16 %v107, %v104
  %v114 = vpack.c.b16 %v108, %v105
  %v169 = vunpack.c.l.b16 %v41
  %v170 = vunpack.c.l.b16 %v42
  %v171 = vunpack.c.l.b16 %v43
  %v172 = vunpack.c.l.b16 %v44
  %v173 = vunpack.c.l.b16 %v45
  %v174 = vunpack.c.l.b16 %v46
  %v175 = vunpack.c.l.b16 %v47
  %v176 = vunpack.c.l.b16 %v48
  %v177 = vunpack.c.l.b16 %v49
  %v178 = vunpack.c.l.b16 %v50
  %v179 = vunpack.c.l.b16 %v51
  %v180 = vunpack.c.l.b16 %v52
  %v181 = vunpack.c.l.b16 %v53
  %v182 = vunpack.c.l.b16 %v54
  %v183 = vunpack.c.l.b16 %v55
  %v184 = vunpack.c.l.b16 %v56
  %v185 = vunpack.c.l.b16 %v57
  %v186 = vunpack.c.l.b16 %v58
  %v187 = vunpack.c.l.b16 %v59
  %v188 = vunpack.c.l.b16 %v60
  %v189 = vunpack.c.l.b16 %v61
  %v190 = vunpack.c.l.b16 %v62
  %v191 = vunpack.c.l.b16 %v63
  %v192 = vunpack.c.l.b16 %v64
  %v193 = vunpack.c.l.b16 %v65
  %v194 = vunpack.c.l.b16 %v66
  %v195 = vunpack.c.l.b16 %v67
  %v196 = vunpack.c.l.b16 %v68
  %v197 = vunpack.c.l.b16 %v69
  %v198 = vunpack.c.l.b16 %v70
  %v199 = vunpack.c.l.b16 %v71
  %v200 = vunpack.c.l.b16 %v72
  %v201 = vunpack.c.l.b16 %v73
  %v202 = vunpack.c.l.b16 %v74
  %v203 = vunpack.c.l.b16 %v75
  %v204 = vunpack.c.l.b16 %v76
  %v205 = vunpack.c.l.b16 %v77
  %v206 = vunpack.c.l.b16 %v78
  %v207 = vunpack.c.l.b16 %v79
  %v208 = vunpack.c.l.b16 %v80
  %v209 = vunpack.c.l.b16 %v81
  %v210 = vunpack.c.l.b16 %v82
  %v211 = vunpack.c.l.b16 %v83
  %v212 = vunpack.c.l.b16 %v84
  %v213 = vunpack.c.l.b16 %v85
  %v214 = vunpack.c.l.b16 %v86
  %v215 = vunpack.c.l.b16 %v87
  %v216 = vunpack.c.l.b16 %v88
  %v217 = vpack.c.b16 %v170, %v169
  %v218 = vpack.c.b16 %v172, %v171
  %v219 = vpack.c.b16 %v174, %v173
  %v220 = vpack.c.b16 %v176, %v175
  %v221 = vpack.c.b16 %v178, %v177
  %v222 = vpack.c.b16 %v180, %v179
  %v223 = vpack.c.b16 %v182, %v181
  %v224 = vpack.c.b16 %v184, %v183
  %v225 = vpack.c.b16 %v186, %v185
  %v226 = vpack.c.b16 %v188, %v187
  %v227 = vpack.c.b16 %v190, %v189
  %v228 = vpack.c.b16 %v192, %v191
  %v229 = vpack.c.b16 %v194, %v193
  %v230 = vpack.c.b16 %v196, %v195
  %v231 = vpack.c.b16 %v198, %v197
  %v232 = vpack.c.b16 %v200, %v199
  %v233 = vpack.c.b16 %v202, %v201
  %v234 = vpack.c.b16 %v204, %v203
  %v235 = vpack.c.b16 %v206, %v205
  %v236 = vpack.c.b16 %v208, %v207
  %v237 = vpack.c.b16 %v210, %v209
  %v238 = vpack.c.b16 %v212, %v211
  %v239 = vpack.c.b16 %v214, %v213
  %v240 = vpack.c.b16 %v216, %v215
  %265 = vmatprep.subr.bf16.mxu0 0
  %266 = vmatpush1.bf16.msra.mxu0 %v217
  %267 = vmatprep.subr.bf16.mxu0 0
  %268 = vmatpush1.bf16.msra.mxu0 %v218
  %269 = vmatprep.subr.bf16.mxu0 0
  %270 = vmatpush1.bf16.msra.mxu0 %v219
  %271 = vmatprep.subr.bf16.mxu0 0
  %272 = vmatpush1.bf16.msra.mxu0 %v220
  %273 = vmatprep.subr.bf16.mxu0 0
  %274 = vmatpush1.bf16.msra.mxu0 %v221
  %275 = vmatprep.subr.bf16.mxu0 0
  %276 = vmatpush1.bf16.msra.mxu0 %v222
  %277 = vmatprep.subr.bf16.mxu0 0
  %278 = vmatpush1.bf16.msra.mxu0 %v223
  %279 = vmatprep.subr.bf16.mxu0 0
  %280 = vmatpush1.bf16.msra.mxu0 %v224
  %281 = vmatprep.subr.bf16.mxu0 0
  %282 = vmatpush1.bf16.msra.mxu0 %v225
  %283 = vmatprep.subr.bf16.mxu0 0
  %284 = vmatpush1.bf16.msra.mxu0 %v226
  %285 = vmatprep.subr.bf16.mxu0 0
  %286 = vmatpush1.bf16.msra.mxu0 %v227
  %287 = vmatprep.subr.bf16.mxu0 0
  %288 = vmatpush1.bf16.msra.mxu0 %v228
  %289 = vmatprep.subr.bf16.mxu0 0
  %290 = vmatpush1.bf16.msra.mxu0 %v229
  %291 = vmatprep.subr.bf16.mxu0 0
  %292 = vmatpush1.bf16.msra.mxu0 %v230
  %293 = vmatprep.subr.bf16.mxu0 0
  %294 = vmatpush1.bf16.msra.mxu0 %v231
  %295 = vmatprep.subr.bf16.mxu0 0
  %296 = vmatpush1.bf16.msra.mxu0 %v232
  %297 = vmatprep.mubr.bf16.mxu0 %v110
  %298 = vmatmul.mubr.bf16.gmra.mrb[0].mxu0 %v109
  %v299 = vpop.f32.mrb[0].mxu0
  %v300 = vadd.f32 0.0, %v299
  %v301 = vpop.f32.mrb[0].mxu0
  %v302 = vpop.f32.mrb[0].mxu0
  %v303 = vadd.f32 0.0, %v302
  %v304 = vpop.f32.mrb[0].mxu0
  %305 = vmatprep.mubr.bf16.mxu0 %v113
  %306 = vmatmul.mubr.bf16.gmra.mrb[0].mxu0 %v112
  %v307 = vpop.f32.mrb[0].mxu0
  %v308 = vadd.f32 0.0, %v307
  %v309 = vpop.f32.mrb[0].mxu0
  %v310 = vpop.f32.mrb[0].mxu0
  %v311 = vadd.f32 0.0, %v310
  %v312 = vpop.f32.mrb[0].mxu0
  %313 = vdwg.mxu0
  %314 = vmatprep.subr.bf16.mxu0 0
  %315 = vmatpush1.bf16.msra.mxu0 %v233
  %316 = vmatprep.subr.bf16.mxu0 0
  %317 = vmatpush1.bf16.msra.mxu0 %v234
  %318 = vmatprep.subr.bf16.mxu0 0
  %319 = vmatpush1.bf16.msra.mxu0 %v235
  %320 = vmatprep.subr.bf16.mxu0 0
  %321 = vmatpush1.bf16.msra.mxu0 %v236
  %322 = vmatprep.subr.bf16.mxu0 0
  %323 = vmatpush1.bf16.msra.mxu0 %v237
  %324 = vmatprep.subr.bf16.mxu0 0
  %325 = vmatpush1.bf16.msra.mxu0 %v238
  %326 = vmatprep.subr.bf16.mxu0 0
  %327 = vmatpush1.bf16.msra.mxu0 %v239
  %328 = vmatprep.subr.bf16.mxu0 0
  %329 = vmatpush1.bf16.msra.mxu0 %v240
  %330 = vmatprep.subr.bf16.mxu0 0
  %331 = vmatpush1.bf16.msra.mxu0 0
  %332 = vmatprep.subr.bf16.mxu0 0
  %333 = vmatpush1.bf16.msra.mxu0 0
  %334 = vmatprep.subr.bf16.mxu0 0
  %335 = vmatpush1.bf16.msra.mxu0 0
  %336 = vmatprep.subr.bf16.mxu0 0
  %337 = vmatpush1.bf16.msra.mxu0 0
  %338 = vmatprep.subr.bf16.mxu0 0
  %339 = vmatpush1.bf16.msra.mxu0 0
  %340 = vmatprep.subr.bf16.mxu0 0
  %341 = vmatpush1.bf16.msra.mxu0 0
  %342 = vmatprep.subr.bf16.mxu0 0
  %343 = vmatpush1.bf16.msra.mxu0 0
  %344 = vmatprep.subr.bf16.mxu0 0
  %345 = vmatpush1.bf16.msra.mxu0 0
  %346 = vmatprep.mubr.bf16.mxu0 0
  %347 = vmatmul.mubr.bf16.gmra.mrb[0].mxu0 %v111
  %v348 = vpop.f32.mrb[0].mxu0
  %v349 = vadd.f32 %v300, %v348
  %v350 = vpop.f32.mrb[0].mxu0
  %v351 = vpop.f32.mrb[0].mxu0
  %v352 = vadd.f32 %v303, %v351
  %v353 = vpop.f32.mrb[0].mxu0
  %354 = vmatprep.mubr.bf16.mxu0 0
  %355 = vmatmul.mubr.bf16.gmra.mrb[0].mxu0 %v114
  %v356 = vpop.f32.mrb[0].mxu0
  %v357 = vadd.f32 %v308, %v356
  %v358 = vpop.f32.mrb[0].mxu0
  %v359 = vpop.f32.mrb[0].mxu0
  %v360 = vadd.f32 %v311, %v359
  %v361 = vpop.f32.mrb[0].mxu0
  %362 = vdwg.mxu0
  %v363 = vadd.f32 %v29, %v349
  %v364 = vadd.f32 %v30, %v352
  %v365 = vadd.f32 %v31, %v357
  %v366 = vadd.f32 %v32, %v360
  %367 = vst [vmem:[#allocation2] sm:$0xff] %v363
  %368 = vst [vmem:[#allocation2 + $0x8] sm:$0xff] %v364
  %369 = vst [vmem:[#allocation2 + $0x10] sm:$0xff] %v365
  %370 = vst [vmem:[#allocation2 + $0x18] sm:$0xff] %v366
  // Predicated region
  $region26: #{generator_forward.22} parent=0 // pred_check
    %p371 = pneg %p21
  $region27: #{generator_forward.22} parent=0 // pred_check_branch
    %373 = sbr.rel (%p371) target = $region29
  $region28: #{generator_forward.22} parent=0 // pred_region
    %v374 = vld [vmem:[#allocation2] sm:$0xff]
    %v375 = vld [vmem:[#allocation2 + $0x8] sm:$0xff]
    %v376 = vld [vmem:[#allocation2 + $0x10] sm:$0xff]
    %v377 = vld [vmem:[#allocation2 + $0x18] sm:$0xff]
    %v378 = vadd.f32 %v374, %v375
    %v379 = vadd.f32 %v378, %v376
    %v380 = vadd.f32 %v379, %v377
    %v381 = vrot.slane %v380, 4
    %v382 = vadd.f32 %v380, %v381
    %v383 = vrot.slane %v382, 2
    %v384 = vadd.f32 %v382, %v383
    %v385 = vrot.slane %v384, 1
    %v386 = vadd.f32 %v384, %v385
    %v387 = vld [vmem:[%s4] sm:$0xff]
    %v388 = vld [vmem:[%s4 + $0x8] sm:$0xff]
    %v389 = vld [vmem:[%s4 + $0x10] sm:$0xff]
    %v390 = vld [vmem:[%s4 + $0x18] sm:$0xff]
    %v391 = vld [vmem:[%s4 + $0x20] sm:$0xff]
    %v392 = vld [vmem:[%s4 + $0x28] sm:$0xff]
    %v393 = vld [vmem:[%s4 + $0x30] sm:$0xff]
    %v394 = vld [vmem:[%s4 + $0x38] sm:$0xff]
    %v395 = vld [vmem:[%s4 + $0x40] sm:$0xff]
    %v396 = vld [vmem:[%s4 + $0x48] sm:$0xff]
    %v397 = vld [vmem:[%s4 + $0x50] sm:$0xff]
    %v398 = vld [vmem:[%s4 + $0x58] sm:$0xff]
    %v399 = vld [vmem:[%s4 + $0x60] sm:$0xff]
    %v400 = vld [vmem:[%s4 + $0x68] sm:$0xff]
    %v401 = vld [vmem:[%s4 + $0x70] sm:$0xff]
    %v402 = vld [vmem:[%s4 + $0x78] sm:$0xff]
    %403 = vmatprep.subr.mxu0 0.0
    %404 = vmatpush1.msra.mxu0 %v387
    %405 = vmatprep.subr.mxu0 0.0
    %406 = vmatpush1.msra.mxu0 %v388
    %407 = vmatprep.subr.mxu0 0.0
    %408 = vmatpush1.msra.mxu0 %v389
    %409 = vmatprep.subr.mxu0 0.0
    %410 = vmatpush1.msra.mxu0 %v390
    %411 = vmatprep.subr.mxu0 0.0
    %412 = vmatpush1.msra.mxu0 %v391
    %413 = vmatprep.subr.mxu0 0.0
    %414 = vmatpush1.msra.mxu0 %v392
    %415 = vmatprep.subr.mxu0 0.0
    %416 = vmatpush1.msra.mxu0 %v393
    %417 = vmatprep.subr.mxu0 0.0
    %418 = vmatpush1.msra.mxu0 %v394
    %419 = vmatprep.subr.mxu0 0.0
    %420 = vmatpush1.msra.mxu0 %v395
    %421 = vmatprep.subr.mxu0 0.0
    %422 = vmatpush1.msra.mxu0 %v396
    %423 = vmatprep.subr.mxu0 0.0
    %424 = vmatpush1.msra.mxu0 %v397
    %425 = vmatprep.subr.mxu0 0.0
    %426 = vmatpush1.msra.mxu0 %v398
    %427 = vmatprep.subr.mxu0 0.0
    %428 = vmatpush1.msra.mxu0 %v399
    %429 = vmatprep.subr.mxu0 0.0
    %430 = vmatpush1.msra.mxu0 %v400
    %431 = vmatprep.subr.mxu0 0.0
    %432 = vmatpush1.msra.mxu0 %v401
    %433 = vmatprep.subr.mxu0 0.0
    %434 = vmatpush1.msra.mxu0 %v402
    %435 = vmatprep.subr.mxu0 0.0
    %436 = vmatpush1.msra.mxu0 0.0
    %437 = vmatprep.subr.mxu0 0.0
    %438 = vmatpush1.msra.mxu0 0.0
    %439 = vmatprep.subr.mxu0 0.0
    %440 = vmatpush1.msra.mxu0 0.0
    %441 = vmatprep.subr.mxu0 0.0
    %442 = vmatpush1.msra.mxu0 0.0
    %443 = vmatprep.subr.mxu0 0.0
    %444 = vmatpush1.msra.mxu0 0.0
    %445 = vmatprep.subr.mxu0 0.0
    %446 = vmatpush1.msra.mxu0 0.0
    %447 = vmatprep.subr.mxu0 0.0
    %448 = vmatpush1.msra.mxu0 0.0
    %449 = vmatprep.subr.mxu0 0.0
    %450 = vmatpush1.msra.mxu0 0.0
    %451 = vmatprep.subr.mxu0 0.0
    %452 = vmatpush1.msra.mxu0 0.0
    %453 = vmatprep.subr.mxu0 0.0
    %454 = vmatpush1.msra.mxu0 0.0
    %455 = vmatprep.subr.mxu0 0.0
    %456 = vmatpush1.msra.mxu0 0.0
    %457 = vmatprep.subr.mxu0 0.0
    %458 = vmatpush1.msra.mxu0 0.0
    %459 = vmatprep.subr.mxu0 0.0
    %460 = vmatpush1.msra.mxu0 0.0
    %461 = vmatprep.subr.mxu0 0.0
    %462 = vmatpush1.msra.mxu0 0.0
    %463 = vmatprep.subr.mxu0 0.0
    %464 = vmatpush1.msra.mxu0 0.0
    %465 = vmatprep.subr.mxu0 0.0
    %466 = vmatpush1.msra.mxu0 0.0
    %467 = vmatprep.mubr.f32.mxu0 0.0
    %468 = vmatmul.mubr.f32.gmra.mrb[0].mxu0 %v386
    %v469 = vpop.f32.mrb[0].mxu0
    %v470 = vadd.f32 0.0, %v469
    %v471 = vpop.f32.mrb[0].mxu0
    %472 = vdwg.mxu0
    %v473 = vlaneseq
    %v474 = vshrl.u32 %v473, 7
    %v475 = vsub.s32 0, %v474
    %v476 = vrot.slane %v470, %v475
    %v477 = vsub.f32 %v374, %v476
    %v478 = vsub.f32 %v375, %v476
    %v479 = vsub.f32 %v376, %v476
    %v480 = vsub.f32 %v377, %v476
    %v481 = vmul.f32 %v477, %v477
    %v482 = vmul.f32 %v478, %v478
    %v483 = vmul.f32 %v479, %v479
    %v484 = vmul.f32 %v480, %v480
    %v485 = vadd.f32 %v481, %v482
    %v486 = vadd.f32 %v485, %v483
    %v487 = vadd.f32 %v486, %v484
    %v488 = vrot.slane %v487, 4
    %v489 = vadd.f32 %v487, %v488
    %v490 = vrot.slane %v489, 2
    %v491 = vadd.f32 %v489, %v490
    %v492 = vrot.slane %v491, 1
    %v493 = vadd.f32 %v491, %v492
    %494 = vmatprep.subr.mxu0 0.0
    %495 = vmatpush1.msra.mxu0 %v387
    %496 = vmatprep.subr.mxu0 0.0
    %497 = vmatpush1.msra.mxu0 %v388
    %498 = vmatprep.subr.mxu0 0.0
    %499 = vmatpush1.msra.mxu0 %v389
    %500 = vmatprep.subr.mxu0 0.0
    %501 = vmatpush1.msra.mxu0 %v390
    %502 = vmatprep.subr.mxu0 0.0
    %503 = vmatpush1.msra.mxu0 %v391
    %504 = vmatprep.subr.mxu0 0.0
    %505 = vmatpush1.msra.mxu0 %v392
    %506 = vmatprep.subr.mxu0 0.0
    %507 = vmatpush1.msra.mxu0 %v393
    %508 = vmatprep.subr.mxu0 0.0
    %509 = vmatpush1.msra.mxu0 %v394
    %510 = vmatprep.subr.mxu0 0.0
    %511 = vmatpush1.msra.mxu0 %v395
    %512 = vmatprep.subr.mxu0 0.0
    %513 = vmatpush1.msra.mxu0 %v396
    %514 = vmatprep.subr.mxu0 0.0
    %515 = vmatpush1.msra.mxu0 %v397
    %516 = vmatprep.subr.mxu0 0.0
    %517 = vmatpush1.msra.mxu0 %v398
    %518 = vmatprep.subr.mxu0 0.0
    %519 = vmatpush1.msra.mxu0 %v399
    %520 = vmatprep.subr.mxu0 0.0
    %521 = vmatpush1.msra.mxu0 %v400
    %522 = vmatprep.subr.mxu0 0.0
    %523 = vmatpush1.msra.mxu0 %v401
    %524 = vmatprep.subr.mxu0 0.0
    %525 = vmatpush1.msra.mxu0 %v402
    %526 = vmatprep.subr.mxu0 0.0
    %527 = vmatpush1.msra.mxu0 0.0
    %528 = vmatprep.subr.mxu0 0.0
    %529 = vmatpush1.msra.mxu0 0.0
    %530 = vmatprep.subr.mxu0 0.0
    %531 = vmatpush1.msra.mxu0 0.0
    %532 = vmatprep.subr.mxu0 0.0
    %533 = vmatpush1.msra.mxu0 0.0
    %534 = vmatprep.subr.mxu0 0.0
    %535 = vmatpush1.msra.mxu0 0.0
    %536 = vmatprep.subr.mxu0 0.0
    %537 = vmatpush1.msra.mxu0 0.0
    %538 = vmatprep.subr.mxu0 0.0
    %539 = vmatpush1.msra.mxu0 0.0
    %540 = vmatprep.subr.mxu0 0.0
    %541 = vmatpush1.msra.mxu0 0.0
    %542 = vmatprep.subr.mxu0 0.0
    %543 = vmatpush1.msra.mxu0 0.0
    %544 = vmatprep.subr.mxu0 0.0
    %545 = vmatpush1.msra.mxu0 0.0
    %546 = vmatprep.subr.mxu0 0.0
    %547 = vmatpush1.msra.mxu0 0.0
    %548 = vmatprep.subr.mxu0 0.0
    %549 = vmatpush1.msra.mxu0 0.0
    %550 = vmatprep.subr.mxu0 0.0
    %551 = vmatpush1.msra.mxu0 0.0
    %552 = vmatprep.subr.mxu0 0.0
    %553 = vmatpush1.msra.mxu0 0.0
    %554 = vmatprep.subr.mxu0 0.0
    %555 = vmatpush1.msra.mxu0 0.0
    %556 = vmatprep.subr.mxu0 0.0
    %557 = vmatpush1.msra.mxu0 0.0
    %558 = vmatprep.mubr.f32.mxu0 0.0
    %559 = vmatmul.mubr.f32.gmra.mrb[0].mxu0 %v493
    %v560 = vpop.f32.mrb[0].mxu0
    %v561 = vadd.f32 1e-05, %v560
    %v562 = vpop.f32.mrb[0].mxu0
    %563 = vdwg.mxu0
    %v564 = vrsqrt.pop %v561
    %v565 = vlaneseq
    %v566 = vshrl.u32 %v565, 7
    %v567 = vsub.s32 0, %v566
    %v568 = vrot.slane %v564, %v567
    %v569 = vmul.f32 %v477, %v568
    %v570 = vmul.f32 %v478, %v568
    %v571 = vmul.f32 %v479, %v568
    %v572 = vmul.f32 %v480, %v568
    %v573 = vld [vmem:[%s2] sm:$0x1]
    %v575 = vlaneseq
    %v576 = vshrl.u32 %v575, 7
    %v577 = vsub.s32 0, %v576
    %v578 = vrot.slane %v573, %v577
    %v580 = vmul.f32 %v569, %v578
    %v581 = vmul.f32 %v570, %v578
    %v582 = vmul.f32 %v571, %v578
    %v583 = vmul.f32 %v572, %v578
    %v584 = vld [vmem:[%s3] sm:$0x1]
    %v586 = vlaneseq
    %v587 = vshrl.u32 %v586, 7
    %v588 = vsub.s32 0, %v587
    %v589 = vrot.slane %v584, %v588
    %v591 = vadd.f32 %v580, %v589
    %v592 = vadd.f32 %v581, %v589
    %v593 = vadd.f32 %v582, %v589
    %v594 = vadd.f32 %v583, %v589
    %v595 = vmax.f32 %v591, 0.0
    %v596 = vmax.f32 %v592, 0.0
    %v597 = vmax.f32 %v593, 0.0
    %v598 = vmax.f32 %v594, 0.0
    %599 = vst [vmem:[%s5] sm:$0xff] %v595
    %600 = vst [vmem:[%s5 + $0x8] sm:$0xff] %v596
    %601 = vst [vmem:[%s5 + $0x10] sm:$0xff] %v597
    %602 = vst [vmem:[%s5 + $0x18] sm:$0xff] %v598
  $region29: #{generator_forward.22} parent=0 // pred_fallthru
    _
  // Predicated region
  $region30: #{generator_forward.22} parent=0 // pred_check
    _
  $region31: #{generator_forward.22} parent=0 // pred_check_branch
    %604 = sbr.rel (0) target = $region33
  $region32: #{generator_forward.22} parent=0 // pred_region
    _
  $region33: #{generator_forward.22} parent=0 // pred_fallthru
    _
  // Predicated region
  $region34: #{generator_forward.22} parent=0 // pred_check
    _
  $region35: #{generator_forward.22} parent=0 // pred_check_branch
    %606 = sbr.rel (0) target = $region37
  $region36: #{generator_forward.22} parent=0 // pred_region
    _
  $region37: #{generator_forward.22} parent=0 // pred_fallthru
    _

// kernel: generator_forward.28
$region0: #{generator_forward.28}
  #allocation0 [shape = 'u32[]', space=smem, size = 0x4, offset = 0x4, fixed_abs, tag = 'smem constant byte address 0x4 - core index']
  #allocation1 [shape = 'u32[144,128]{1,0:T(1,128)}', space=vmem, size = 0x12000, scoped, tag = 'internal scratch']
  %s0 = inlined_call_operand.vmem [shape: f32[2,16,32], index: 0, kind: input, shape index: {}]
  %s1 = inlined_call_operand.vmem [shape: f32[2,128,32], index: 1, kind: input, shape index: {}]
  %s2 = inlined_call_operand.hbm [shape: f32[2,16,128], index: 2, kind: output, shape index: {0}]
  %s3 = inlined_call_operand.hbm [shape: f32[2,16,128], index: 3, kind: output, shape index: {1}]
  %s4 = inlined_call_operand.vmem [shape: f32[2,16,32], index: 4, kind: output, shape index: {2}]
  %5 = xla_tuple %s2, %s3, %s4
  %s6 = sld [smem:[#allocation0]]
  $region34: #{generator_forward.28} parent=0
    _
  %s8 = ssub.s32 1, %s6
  %s9 = scalar_select 0, %s8, %s6
  $region1: #{generator_forward.28} parent=0
    #allocation2 [shape = 'u8[16384]{0}', space=vmem, size = 0x4000, scoped, tag = 'output window, operand 0, single buffered']
    #allocation3 [shape = 's32[1]{0}', space=sflag, size = 0x4, scoped, tag = 'scoped memory for generator_forward.28']
    #allocation4 [shape = 'u8[16384]{0}', space=vmem, size = 0x4000, scoped, tag = 'output window, operand 1, single buffered']
    #allocation5 [shape = 's32[1]{0}', space=sflag, size = 0x4, scoped, tag = 'scoped memory for generator_forward.28']
    %10 = vsyncpa [#allocation3], 0
    %11 = vsyncpa [#allocation5], 0
    // Predicated region
    $region2: #{generator_forward.28} parent=1 // pred_check
      _
    $region3: #{generator_forward.28} parent=1 // pred_check_branch
      %13 = sbr.rel (0) target = $region5
    $region4: #{generator_forward.28} parent=1 // pred_region
      _
    $region5: #{generator_forward.28} parent=1 // pred_fallthru
      _
    // Predicated region
    $region6: #{generator_forward.28} parent=1 // pred_check
      _
    $region7: #{generator_forward.28} parent=1 // pred_check_branch
      %15 = sbr.rel (0) target = $region9
    $region8: #{generator_forward.28} parent=1 // pred_region
      _
    $region9: #{generator_forward.28} parent=1 // pred_fallthru
      _
    %v17 = vld [vmem:[%s0] sm:$0xff]
    %v18 = vld [vmem:[%s0 + $0x8] sm:$0xff]
    %v19 = vld [vmem:[%s0 + $0x10] sm:$0xff]
    %v20 = vld [vmem:[%s0 + $0x18] sm:$0xff]
    %v21 = vld [vmem:[%s1] sm:$0xff]
    %v22 = vld [vmem:[%s1 + $0x8] sm:$0xff]
    %v23 = vld [vmem:[%s1 + $0x10] sm:$0xff]
    %v24 = vld [vmem:[%s1 + $0x18] sm:$0xff]
    %v25 = vld [vmem:[%s1 + $0x20] sm:$0xff]
    %v26 = vld [vmem:[%s1 + $0x28] sm:$0xff]
    %v27 = vld [vmem:[%s1 + $0x30] sm:$0xff]
    %v28 = vld [vmem:[%s1 + $0x38] sm:$0xff]
    %v29 = vld [vmem:[%s1 + $0x40] sm:$0xff]
    %v30 = vld [vmem:[%s1 + $0x48] sm:$0xff]
    %v31 = vld [vmem:[%s1 + $0x50] sm:$0xff]
    %v32 = vld [vmem:[%s1 + $0x58] sm:$0xff]
    %v33 = vld [vmem:[%s1 + $0x60] sm:$0xff]
    %v34 = vld [vmem:[%s1 + $0x68] sm:$0xff]
    %v35 = vld [vmem:[%s1 + $0x70] sm:$0xff]
    %v36 = vld [vmem:[%s1 + $0x78] sm:$0xff]
    %v37 = vld [vmem:[%s1 + $0x80] sm:$0xff]
    %v38 = vld [vmem:[%s1 + $0x88] sm:$0xff]
    %v39 = vld [vmem:[%s1 + $0x90] sm:$0xff]
    %v40 = vld [vmem:[%s1 + $0x98] sm:$0xff]
    %v41 = vld [vmem:[%s1 + $0xa0] sm:$0xff]
    %v42 = vld [vmem:[%s1 + $0xa8] sm:$0xff]
    %v43 = vld [vmem:[%s1 + $0xb0] sm:$0xff]
    %v44 = vld [vmem:[%s1 + $0xb8] sm:$0xff]
    %v45 = vld [vmem:[%s1 + $0xc0] sm:$0xff]
    %v46 = vld [vmem:[%s1 + $0xc8] sm:$0xff]
    %v47 = vld [vmem:[%s1 + $0xd0] sm:$0xff]
    %v48 = vld [vmem:[%s1 + $0xd8] sm:$0xff]
    %v49 = vld [vmem:[%s1 + $0xe0] sm:$0xff]
    %v50 = vld [vmem:[%s1 + $0xe8] sm:$0xff]
    %v51 = vld [vmem:[%s1 + $0xf0] sm:$0xff]
    %v52 = vld [vmem:[%s1 + $0xf8] sm:$0xff]
    %v53 = vpack.c.bf16 %v18, %v17
    %v54 = vpack.c.bf16 %v20, %v19
    %v55 = vpack.c.bf16 %v22, %v21
    %v56 = vpack.c.bf16 %v24, %v23
    %v57 = vpack.c.bf16 %v26, %v25
    %v58 = vpack.c.bf16 %v28, %v27
    %v59 = vpack.c.bf16 %v30, %v29
    %v60 = vpack.c.bf16 %v32, %v31
    %v61 = vpack.c.bf16 %v34, %v33
    %v62 = vpack.c.bf16 %v36, %v35
    %v63 = vpack.c.bf16 %v38, %v37
    %v64 = vpack.c.bf16 %v40, %v39
    %v65 = vpack.c.bf16 %v42, %v41
    %v66 = vpack.c.bf16 %v44, %v43
    %v67 = vpack.c.bf16 %v46, %v45
    %v68 = vpack.c.bf16 %v48, %v47
    %v69 = vpack.c.bf16 %v50, %v49
    %v70 = vpack.c.bf16 %v52, %v51
    %vm71 = vcmask 261120
    %v73 = vsel %vm71, %v53, 0
    %v76 = vsel %vm71, %v55, 0
    %v79 = vsel %vm71, %v56, 0
    %v82 = vsel %vm71, %v57, 0
    %v85 = vsel %vm71, %v58, 0
    %v88 = vsel %vm71, %v59, 0
    %v91 = vsel %vm71, %v60, 0
    %v94 = vsel %vm71, %v61, 0
    %v97 = vsel %vm71, %v62, 0
    %99 = vmatprep.subr.bf16.mxu0 0
    %100 = vmatpush1.bf16.xpose.msra.mxu0 %v76
    %101 = vmatprep.subr.bf16.mxu0 0
    %102 = vmatpush1.bf16.xpose.msra.mxu0 %v79
    %103 = vmatprep.subr.bf16.mxu0 0
    %104 = vmatpush1.bf16.xpose.msra.mxu0 %v82
    %105 = vmatprep.subr.bf16.mxu0 0
    %106 = vmatpush1.bf16.xpose.msra.mxu0 %v85
    %107 = vmatprep.subr.bf16.mxu0 0
    %108 = vmatpush1.bf16.xpose.msra.mxu0 %v88
    %109 = vmatprep.subr.bf16.mxu0 0
    %110 = vmatpush1.bf16.xpose.msra.mxu0 %v91
    %111 = vmatprep.subr.bf16.mxu0 0
    %112 = vmatpush1.bf16.xpose.msra.mxu0 %v94
    %113 = vmatprep.subr.bf16.mxu0 0
    %114 = vmatpush1.bf16.xpose.msra.mxu0 %v97
    %115 = vmatprep.subr.bf16.mxu0 0
    %116 = vmatpush1.bf16.xpose.msra.mxu0 0
    %117 = vmatprep.subr.bf16.mxu0 0
    %118 = vmatpush1.bf16.xpose.msra.mxu0 0
    %119 = vmatprep.subr.bf16.mxu0 0
    %120 = vmatpush1.bf16.xpose.msra.mxu0 0
    %121 = vmatprep.subr.bf16.mxu0 0
    %122 = vmatpush1.bf16.xpose.msra.mxu0 0
    %123 = vmatprep.subr.bf16.mxu0 0
    %124 = vmatpush1.bf16.xpose.msra.mxu0 0
    %125 = vmatprep.subr.bf16.mxu0 0
    %126 = vmatpush1.bf16.xpose.msra.mxu0 0
    %127 = vmatprep.subr.bf16.mxu0 0
    %128 = vmatpush1.bf16.xpose.msra.mxu0 0
    %129 = vmatprep.subr.bf16.mxu0 0
    %130 = vmatpush1.bf16.xpose.msra.mxu0 0
    %131 = vmatprep.mubr.bf16.mxu0 0
    %132 = vmatmul.mubr.bf16.gmra.mrb[0].mxu0 %v73
    %v133 = vpop.f32.mrb[0].mxu0
    %v134 = vadd.f32 0.0, %v133
    %v135 = vpop.f32.mrb[0].mxu0
    %v136 = vpop.f32.mrb[0].mxu0
    %v137 = vadd.f32 0.0, %v136
    %v138 = vpop.f32.mrb[0].mxu0
    %139 = vdwg.mxu0
    %v141 = vsel %vm71, %v54, 0
    %v144 = vsel %vm71, %v63, 0
    %v147 = vsel %vm71, %v64, 0
    %v150 = vsel %vm71, %v65, 0
    %v153 = vsel %vm71, %v66, 0
    %v156 = vsel %vm71, %v67, 0
    %v159 = vsel %vm71, %v68, 0
    %v162 = vsel %vm71, %v69, 0
    %v165 = vsel %vm71, %v70, 0
    %167 = vmatprep.subr.bf16.mxu0 0
    %168 = vmatpush1.bf16.xpose.msra.mxu0 %v144
    %169 = vmatprep.subr.bf16.mxu0 0
    %170 = vmatpush1.bf16.xpose.msra.mxu0 %v147
    %171 = vmatprep.subr.bf16.mxu0 0
    %172 = vmatpush1.bf16.xpose.msra.mxu0 %v150
    %173 = vmatprep.subr.bf16.mxu0 0
    %174 = vmatpush1.bf16.xpose.msra.mxu0 %v153
    %175 = vmatprep.subr.bf16.mxu0 0
    %176 = vmatpush1.bf16.xpose.msra.mxu0 %v156
    %177 = vmatprep.subr.bf16.mxu0 0
    %178 = vmatpush1.bf16.xpose.msra.mxu0 %v159
    %179 = vmatprep.subr.bf16.mxu0 0
    %180 = vmatpush1.bf16.xpose.msra.mxu0 %v162
    %181 = vmatprep.subr.bf16.mxu0 0
    %182 = vmatpush1.bf16.xpose.msra.mxu0 %v165
    %183 = vmatprep.subr.bf16.mxu0 0
    %184 = vmatpush1.bf16.xpose.msra.mxu0 0
    %185 = vmatprep.subr.bf16.mxu0 0
    %186 = vmatpush1.bf16.xpose.msra.mxu0 0
    %187 = vmatprep.subr.bf16.mxu0 0
    %188 = vmatpush1.bf16.xpose.msra.mxu0 0
    %189 = vmatprep.subr.bf16.mxu0 0
    %190 = vmatpush1.bf16.xpose.msra.mxu0 0
    %191 = vmatprep.subr.bf16.mxu0 0
    %192 = vmatpush1.bf16.xpose.msra.mxu0 0
    %193 = vmatprep.subr.bf16.mxu0 0
    %194 = vmatpush1.bf16.xpose.msra.mxu0 0
    %195 = vmatprep.subr.bf16.mxu0 0
    %196 = vmatpush1.bf16.xpose.msra.mxu0 0
    %197 = vmatprep.subr.bf16.mxu0 0
    %198 = vmatpush1.bf16.xpose.msra.mxu0 0
    %199 = vmatprep.mubr.bf16.mxu0 0
    %200 = vmatmul.mubr.bf16.gmra.mrb[0].mxu0 %v141
    %v201 = vpop.f32.mrb[0].mxu0
    %v202 = vadd.f32 0.0, %v201
    %v203 = vpop.f32.mrb[0].mxu0
    %v204 = vpop.f32.mrb[0].mxu0
    %v205 = vadd.f32 0.0, %v204
    %v206 = vpop.f32.mrb[0].mxu0
    %207 = vdwg.mxu0
    %v208 = vmul.f32 %v17, %v17
    %v209 = vmul.f32 %v18, %v18
    %v210 = vmul.f32 %v19, %v19
    %v211 = vmul.f32 %v20, %v20
    %v212 = vsel %vm71, %v208, 0.0
    %213 = vadd.xlane.f32.xlu0 %v212
    %v214 = vpop.xlane.xlu0 %213
    %v215 = vsel %vm71, %v209, 0.0
    %216 = vadd.xlane.f32.xlu0 %v215
    %v217 = vpop.xlane.xlu0 %216
    %v218 = vsel %vm71, %v210, 0.0
    %219 = vadd.xlane.f32.xlu0 %v218
    %v220 = vpop.xlane.xlu0 %219
    %v221 = vsel %vm71, %v211, 0.0
    %222 = vadd.xlane.f32.xlu0 %v221
    %v223 = vpop.xlane.xlu0 %222
    %v224 = vmul.f32 %v21, %v21
    %v225 = vmul.f32 %v22, %v22
    %v226 = vmul.f32 %v23, %v23
    %v227 = vmul.f32 %v24, %v24
    %v228 = vmul.f32 %v25, %v25
    %v229 = vmul.f32 %v26, %v26
    %v230 = vmul.f32 %v27, %v27
    %v231 = vmul.f32 %v28, %v28
    %v232 = vmul.f32 %v29, %v29
    %v233 = vmul.f32 %v30, %v30
    %v234 = vmul.f32 %v31, %v31
    %v235 = vmul.f32 %v32, %v32
    %v236 = vmul.f32 %v33, %v33
    %v237 = vmul.f32 %v34, %v34
    %v238 = vmul.f32 %v35, %v35
    %v239 = vmul.f32 %v36, %v36
    %v240 = vmul.f32 %v37, %v37
    %v241 = vmul.f32 %v38, %v38
    %v242 = vmul.f32 %v39, %v39
    %v243 = vmul.f32 %v40, %v40
    %v244 = vmul.f32 %v41, %v41
    %v245 = vmul.f32 %v42, %v42
    %v246 = vmul.f32 %v43, %v43
    %v247 = vmul.f32 %v44, %v44
    %v248 = vmul.f32 %v45, %v45
    %v249 = vmul.f32 %v46, %v46
    %v250 = vmul.f32 %v47, %v47
    %v251 = vmul.f32 %v48, %v48
    %v252 = vmul.f32 %v49, %v49
    %v253 = vmul.f32 %v50, %v50
    %v254 = vmul.f32 %v51, %v51
    %v255 = vmul.f32 %v52, %v52
    %v256 = vsel %vm71, %v224, 0.0
    %257 = vadd.xlane.f32.xlu0 %v256
    %v258 = vpop.xlane.xlu0 %257
    %v259 = vsel %vm71, %v225, 0.0
    %260 = vadd.xlane.f32.xlu0 %v259
    %v261 = vpop.xlane.xlu0 %260
    %v262 = vsel %vm71, %v226, 0.0
    %263 = vadd.xlane.f32.xlu0 %v262
    %v264 = vpop.xlane.xlu0 %263
    %v265 = vsel %vm71, %v227, 0.0
    %266 = vadd.xlane.f32.xlu0 %v265
    %v267 = vpop.xlane.xlu0 %266
    %v268 = vsel %vm71, %v228, 0.0
    %269 = vadd.xlane.f32.xlu0 %v268
    %v270 = vpop.xlane.xlu0 %269
    %v271 = vsel %vm71, %v229, 0.0
    %272 = vadd.xlane.f32.xlu0 %v271
    %v273 = vpop.xlane.xlu0 %272
    %v274 = vsel %vm71, %v230, 0.0
    %275 = vadd.xlane.f32.xlu0 %v274
    %v276 = vpop.xlane.xlu0 %275
    %v277 = vsel %vm71, %v231, 0.0
    %278 = vadd.xlane.f32.xlu0 %v277
    %v279 = vpop.xlane.xlu0 %278
    %v280 = vsel %vm71, %v232, 0.0
    %281 = vadd.xlane.f32.xlu0 %v280
    %v282 = vpop.xlane.xlu0 %281
    %v283 = vsel %vm71, %v233, 0.0
    %284 = vadd.xlane.f32.xlu0 %v283
    %v285 = vpop.xlane.xlu0 %284
    %v286 = vsel %vm71, %v234, 0.0
    %287 = vadd.xlane.f32.xlu0 %v286
    %v288 = vpop.xlane.xlu0 %287
    %v289 = vsel %vm71, %v235, 0.0
    %290 = vadd.xlane.f32.xlu0 %v289
    %v291 = vpop.xlane.xlu0 %290
    %v292 = vsel %vm71, %v236, 0.0
    %293 = vadd.xlane.f32.xlu0 %v292
    %v294 = vpop.xlane.xlu0 %293
    %v295 = vsel %vm71, %v237, 0.0
    %296 = vadd.xlane.f32.xlu0 %v295
    %v297 = vpop.xlane.xlu0 %296
    %v298 = vsel %vm71, %v238, 0.0
    %299 = vadd.xlane.f32.xlu0 %v298
    %v300 = vpop.xlane.xlu0 %299
    %v301 = vsel %vm71, %v239, 0.0
    %302 = vadd.xlane.f32.xlu0 %v301
    %v303 = vpop.xlane.xlu0 %302
    %v304 = vsel %vm71, %v240, 0.0
    %305 = vadd.xlane.f32.xlu0 %v304
    %v306 = vpop.xlane.xlu0 %305
    %v307 = vsel %vm71, %v241, 0.0
    %308 = vadd.xlane.f32.xlu0 %v307
    %v309 = vpop.xlane.xlu0 %308
    %v310 = vsel %vm71, %v242, 0.0
    %311 = vadd.xlane.f32.xlu0 %v310
    %v312 = vpop.xlane.xlu0 %311
    %v313 = vsel %vm71, %v243, 0.0
    %314 = vadd.xlane.f32.xlu0 %v313
    %v315 = vpop.xlane.xlu0 %314
    %v316 = vsel %vm71, %v244, 0.0
    %317 = vadd.xlane.f32.xlu0 %v316
    %v318 = vpop.xlane.xlu0 %317
    %v319 = vsel %vm71, %v245, 0.0
    %320 = vadd.xlane.f32.xlu0 %v319
    %v321 = vpop.xlane.xlu0 %320
    %v322 = vsel %vm71, %v246, 0.0
    %323 = vadd.xlane.f32.xlu0 %v322
    %v324 = vpop.xlane.xlu0 %323
    %v325 = vsel %vm71, %v247, 0.0
    %326 = vadd.xlane.f32.xlu0 %v325
    %v327 = vpop.xlane.xlu0 %326
    %v328 = vsel %vm71, %v248, 0.0
    %329 = vadd.xlane.f32.xlu0 %v328
    %v330 = vpop.xlane.xlu0 %329
    %v331 = vsel %vm71, %v249, 0.0
    %332 = vadd.xlane.f32.xlu0 %v331
    %v333 = vpop.xlane.xlu0 %332
    %v334 = vsel %vm71, %v250, 0.0
    %335 = vadd.xlane.f32.xlu0 %v334
    %v336 = vpop.xlane.xlu0 %335
    %v337 = vsel %vm71, %v251, 0.0
    %338 = vadd.xlane.f32.xlu0 %v337
    %v339 = vpop.xlane.xlu0 %338
    %v340 = vsel %vm71, %v252, 0.0
    %341 = vadd.xlane.f32.xlu0 %v340
    %v342 = vpop.xlane.xlu0 %341
    %v343 = vsel %vm71, %v253, 0.0
    %344 = vadd.xlane.f32.xlu0 %v343
    %v345 = vpop.xlane.xlu0 %344
    %v346 = vsel %vm71, %v254, 0.0
    %347 = vadd.xlane.f32.xlu0 %v346
    %v348 = vpop.xlane.xlu0 %347
    %v349 = vsel %vm71, %v255, 0.0
    %350 = vadd.xlane.f32.xlu0 %v349
    %v351 = vpop.xlane.xlu0 %350
    %v352 = vmul.f32 %v134, 2.0
    %v353 = vmul.f32 %v137, 2.0
    %v354 = vmul.f32 %v202, 2.0
    %v355 = vmul.f32 %v205, 2.0
    %v356 = vsub.f32 %v352, %v214
    %v357 = vsub.f32 %v353, %v217
    %v358 = vsub.f32 %v354, %v220
    %v359 = vsub.f32 %v355, %v223
    %v392 = vlaneseq
    %v393 = vand.u32 %v392, 127
    %v394 = vlaneseq
    %v395 = vshrl.u32 %v394, 7
    %v396 = vsub.s32 %v393, %v395
    %v397 = vrot.slane %v258, %v396
    %v398 = vadd.s32 %v393, 4294967288
    %v399 = vlaneseq
    %v400 = vshrl.u32 %v399, 7
    %v401 = vsub.s32 %v398, %v400
    %v402 = vrot.slane %v261, %v401
    %vm403 = vcmask 130112
    %v404 = vsel %vm403, %v402, %v397
    %v405 = vadd.s32 %v393, 4294967280
    %v406 = vlaneseq
    %v407 = vshrl.u32 %v406, 7
    %v408 = vsub.s32 %v405, %v407
    %v409 = vrot.slane %v264, %v408
    %vm410 = vcmask 195712
    %v411 = vsel %vm410, %v409, %v404
    %v412 = vadd.s32 %v393, 4294967272
    %v413 = vlaneseq
    %v414 = vshrl.u32 %v413, 7
    %v415 = vsub.s32 %v412, %v414
    %v416 = vrot.slane %v267, %v415
    %vm417 = vcmask 261312
    %v418 = vsel %vm417, %v416, %v411
    %v419 = vadd.s32 %v393, 4294967264
    %v420 = vlaneseq
    %v421 = vshrl.u32 %v420, 7
    %v422 = vsub.s32 %v419, %v421
    %v423 = vrot.slane %v270, %v422
    %vm424 = vcmask 326912
    %v425 = vsel %vm424, %v423, %v418
    %v426 = vadd.s32 %v393, 4294967256
    %v427 = vlaneseq
    %v428 = vshrl.u32 %v427, 7
    %v429 = vsub.s32 %v426, %v428
    %v430 = vrot.slane %v273, %v429
    %vm431 = vcmask 392512
    %v432 = vsel %vm431, %v430, %v425
    %v433 = vadd.s32 %v393, 4294967248
    %v434 = vlaneseq
    %v435 = vshrl.u32 %v434, 7
    %v436 = vsub.s32 %v433, %v435
    %v437 = vrot.slane %v276, %v436
    %vm438 = vcmask 458112
    %v439 = vsel %vm438, %v437, %v432
    %v440 = vadd.s32 %v393, 4294967240
    %v441 = vlaneseq
    %v442 = vshrl.u32 %v441, 7
    %v443 = vsub.s32 %v440, %v442
    %v444 = vrot.slane %v279, %v443
    %vm445 = vcmask 523712
    %v446 = vsel %vm445, %v444, %v439
    %v447 = vadd.s32 %v393, 4294967232
    %v448 = vlaneseq
    %v449 = vshrl.u32 %v448, 7
    %v450 = vsub.s32 %v447, %v449
    %v451 = vrot.slane %v282, %v450
    %vm452 = vcmask 589312
    %v453 = vsel %vm452, %v451, %v446
    %v454 = vadd.s32 %v393, 4294967224
    %v455 = vlaneseq
    %v456 = vshrl.u32 %v455, 7
    %v457 = vsub.s32 %v454, %v456
    %v458 = vrot.slane %v285, %v457
    %vm459 = vcmask 654912
    %v460 = vsel %vm459, %v458, %v453
    %v461 = vadd.s32 %v393, 4294967216
    %v462 = vlaneseq
    %v463 = vshrl.u32 %v462, 7
    %v464 = vsub.s32 %v461, %v463
    %v465 = vrot.slane %v288, %v464
    %vm466 = vcmask 720512
    %v467 = vsel %vm466, %v465, %v460
    %v468 = vadd.s32 %v393, 4294967208
    %v469 = vlaneseq
    %v470 = vshrl.u32 %v469, 7
    %v471 = vsub.s32 %v468, %v470
    %v472 = vrot.slane %v291, %v471
    %vm473 = vcmask 786112
    %v474 = vsel %vm473, %v472, %v467
    %v475 = vadd.s32 %v393, 4294967200
    %v476 = vlaneseq
    %v477 = vshrl.u32 %v476, 7
    %v478 = vsub.s32 %v475, %v477
    %v479 = vrot.slane %v294, %v478
    %vm480 = vcmask 851712
    %v481 = vsel %vm480, %v479, %v474
    %v482 = vadd.s32 %v393, 4294967192
    %v483 = vlaneseq
    %v484 = vshrl.u32 %v483, 7
    %v485 = vsub.s32 %v482, %v484
    %v486 = vrot.slane %v297, %v485
    %vm487 = vcmask 917312
    %v488 = vsel %vm487, %v486, %v481
    %v489 = vadd.s32 %v393, 4294967184
    %v490 = vlaneseq
    %v491 = vshrl.u32 %v490, 7
    %v492 = vsub.s32 %v489, %v491
    %v493 = vrot.slane %v300, %v492
    %vm494 = vcmask 982912
    %v495 = vsel %vm494, %v493, %v488
    %v496 = vadd.s32 %v393, 4294967176
    %v497 = vlaneseq
    %v498 = vshrl.u32 %v497, 7
    %v499 = vsub.s32 %v496, %v498
    %v500 = vrot.slane %v303, %v499
    %vm501 = vcmask 1048512
    %v502 = vsel %vm501, %v500, %v495
    %v503 = vlaneseq
    %v504 = vshrl.u32 %v503, 7
    %v505 = vsub.s32 %v393, %v504
    %v506 = vrot.slane %v306, %v505
    %v507 = vlaneseq
    %v508 = vshrl.u32 %v507, 7
    %v509 = vsub.s32 %v398, %v508
    %v510 = vrot.slane %v309, %v509
    %v511 = vsel %vm403, %v510, %v506
    %v512 = vlaneseq
    %v513 = vshrl.u32 %v512, 7
    %v514 = vsub.s32 %v405, %v513
    %v515 = vrot.slane %v312, %v514
    %v516 = vsel %vm410, %v515, %v511
    %v517 = vlaneseq
    %v518 = vshrl.u32 %v517, 7
    %v519 = vsub.s32 %v412, %v518
    %v520 = vrot.slane %v315, %v519
    %v521 = vsel %vm417, %v520, %v516
    %v522 = vlaneseq
    %v523 = vshrl.u32 %v522, 7
    %v524 = vsub.s32 %v419, %v523
    %v525 = vrot.slane %v318, %v524
    %v526 = vsel %vm424, %v525, %v521
    %v527 = vlaneseq
    %v528 = vshrl.u32 %v527, 7
    %v529 = vsub.s32 %v426, %v528
    %v530 = vrot.slane %v321, %v529
    %v531 = vsel %vm431, %v530, %v526
    %v532 = vlaneseq
    %v533 = vshrl.u32 %v532, 7
    %v534 = vsub.s32 %v433, %v533
    %v535 = vrot.slane %v324, %v534
    %v536 = vsel %vm438, %v535, %v531
    %v537 = vlaneseq
    %v538 = vshrl.u32 %v537, 7
    %v539 = vsub.s32 %v440, %v538
    %v540 = vrot.slane %v327, %v539
    %v541 = vsel %vm445, %v540, %v536
    %v542 = vlaneseq
    %v543 = vshrl.u32 %v542, 7
    %v544 = vsub.s32 %v447, %v543
    %v545 = vrot.slane %v330, %v544
    %v546 = vsel %vm452, %v545, %v541
    %v547 = vlaneseq
    %v548 = vshrl.u32 %v547, 7
    %v549 = vsub.s32 %v454, %v548
    %v550 = vrot.slane %v333, %v549
    %v551 = vsel %vm459, %v550, %v546
    %v552 = vlaneseq
    %v553 = vshrl.u32 %v552, 7
    %v554 = vsub.s32 %v461, %v553
    %v555 = vrot.slane %v336, %v554
    %v556 = vsel %vm466, %v555, %v551
    %v557 = vlaneseq
    %v558 = vshrl.u32 %v557, 7
    %v559 = vsub.s32 %v468, %v558
    %v560 = vrot.slane %v339, %v559
    %v561 = vsel %vm473, %v560, %v556
    %v562 = vlaneseq
    %v563 = vshrl.u32 %v562, 7
    %v564 = vsub.s32 %v475, %v563
    %v565 = vrot.slane %v342, %v564
    %v566 = vsel %vm480, %v565, %v561
    %v567 = vlaneseq
    %v568 = vshrl.u32 %v567, 7
    %v569 = vsub.s32 %v482, %v568
    %v570 = vrot.slane %v345, %v569
    %v571 = vsel %vm487, %v570, %v566
    %v572 = vlaneseq
    %v573 = vshrl.u32 %v572, 7
    %v574 = vsub.s32 %v489, %v573
    %v575 = vrot.slane %v348, %v574
    %v576 = vsel %vm494, %v575, %v571
    %v577 = vlaneseq
    %v578 = vshrl.u32 %v577, 7
    %v579 = vsub.s32 %v496, %v578
    %v580 = vrot.slane %v351, %v579
    %v581 = vsel %vm501, %v580, %v576
    %vm582 = vcmask 1042434
    %v583 = vsel %vm582, %v502, %v502
    %vm584 = vcmask 1043459
    %v585 = vsel %vm584, %v502, %v583
    %vm586 = vcmask 1044484
    %v587 = vsel %vm586, %v502, %v585
    %vm588 = vcmask 1045509
    %v589 = vsel %vm588, %v502, %v587
    %vm590 = vcmask 1046534
    %v591 = vsel %vm590, %v502, %v589
    %vm592 = vcmask 1047559
    %v593 = vsel %vm592, %v502, %v591
    %v594 = vsel %vm582, %v581, %v581
    %v595 = vsel %vm584, %v581, %v594
    %v596 = vsel %vm586, %v581, %v595
    %v597 = vsel %vm588, %v581, %v596
    %v598 = vsel %vm590, %v581, %v597
    %v599 = vsel %vm592, %v581, %v598
    %v602 = vsub.f32 %v356, %v593
    %v603 = vsub.f32 %v357, %v593
    %v604 = vsub.f32 %v358, %v599
    %v605 = vsub.f32 %v359, %v599
    %606 = vmax.xlane.f32.xlu0 %v602
    %v607 = vpop.xlane.xlu0 %606
    %608 = vmax.xlane.f32.xlu0 %v603
    %v609 = vpop.xlane.xlu0 %608
    %610 = vmax.xlane.f32.xlu0 %v604
    %v611 = vpop.xlane.xlu0 %610
    %612 = vmax.xlane.f32.xlu0 %v605
    %v613 = vpop.xlane.xlu0 %612
    %v614 = vsub.f32 %v602, %v607
    %v615 = vsub.f32 %v603, %v609
    %v616 = vsub.f32 %v604, %v611
    %v617 = vsub.f32 %v605, %v613
    %v618 = vmul.f32 %v614, 1.442695
    %v619 = vpow.pop %v618
    %v620 = vmul.f32 %v615, 1.442695
    %v621 = vpow.pop %v620
    %v622 = vmul.f32 %v616, 1.442695
    %v623 = vpow.pop %v622
    %v624 = vmul.f32 %v617, 1.442695
    %v625 = vpow.pop %v624
    %626 = vadd.xlane.f32.xlu0 %v619
    %v627 = vpop.xlane.xlu0 %626
    %628 = vadd.xlane.f32.xlu0 %v621
    %v629 = vpop.xlane.xlu0 %628
    %630 = vadd.xlane.f32.xlu0 %v623
    %v631 = vpop.xlane.xlu0 %630
    %632 = vadd.xlane.f32.xlu0 %v625
    %v633 = vpop.xlane.xlu0 %632
    %v634 = vrcp.pop %v627
    %v635 = vmul.f32 %v619, %v634
    %v636 = vrcp.pop %v629
    %v637 = vmul.f32 %v621, %v636
    %v638 = vrcp.pop %v631
    %v639 = vmul.f32 %v623, %v638
    %v640 = vrcp.pop %v633
    %v641 = vmul.f32 %v625, %v640
    %642 = vst [vmem:[#allocation2] sm:$0xff] %v635
    %643 = vst [vmem:[#allocation2 + $0x8] sm:$0xff] %v637
    %644 = vst [vmem:[#allocation2 + $0x10] sm:$0xff] %v639
    %645 = vst [vmem:[#allocation2 + $0x18] sm:$0xff] %v641
    %v646 = vlog2.pop %v627
    %v647 = vmul.f32 %v646, 0.6931472
    %v648 = vlog2.pop %v629
    %v649 = vmul.f32 %v648, 0.6931472
    %v650 = vlog2.pop %v631
    %v651 = vmul.f32 %v650, 0.6931472
    %v652 = vlog2.pop %v633
    %v653 = vmul.f32 %v652, 0.6931472
    %v654 = vsub.f32 %v614, %v647
    %v655 = vsub.f32 %v615, %v649
    %v656 = vsub.f32 %v616, %v651
    %v657 = vsub.f32 %v617, %v653
    %658 = vst [vmem:[#allocation4] sm:$0xff] %v654
    %659 = vst [vmem:[#allocation4 + $0x8] sm:$0xff] %v655
    %660 = vst [vmem:[#allocation4 + $0x10] sm:$0xff] %v656
    %661 = vst [vmem:[#allocation4 + $0x18] sm:$0xff] %v657
    %v662 = vpack.c.bf16 %v637, %v635
    %v663 = vpack.c.bf16 %v641, %v639
    %664 = vmatprep.subr.bf16.mxu0 0
    %665 = vmatpush1.bf16.msra.mxu0 %v55
    %666 = vmatprep.subr.bf16.mxu0 0
    %667 = vmatpush1.bf16.msra.mxu0 %v56
    %668 = vmatprep.subr.bf16.mxu0 0
    %669 = vmatpush1.bf16.msra.mxu0 %v57
    %670 = vmatprep.subr.bf16.mxu0 0
    %671 = vmatpush1.bf16.msra.mxu0 %v58
    %672 = vmatprep.subr.bf16.mxu0 0
    %673 = vmatpush1.bf16.msra.mxu0 %v59
    %674 = vmatprep.subr.bf16.mxu0 0
    %675 = vmatpush1.bf16.msra.mxu0 %v60
    %676 = vmatprep.subr.bf16.mxu0 0
    %677 = vmatpush1.bf16.msra.mxu0 %v61
    %678 = vmatprep.subr.bf16.mxu0 0
    %679 = vmatpush1.bf16.msra.mxu0 %v62
    %680 = vmatprep.subr.bf16.mxu0 0
    %681 = vmatpush1.bf16.msra.mxu0 0
    %682 = vmatprep.subr.bf16.mxu0 0
    %683 = vmatpush1.bf16.msra.mxu0 0
    %684 = vmatprep.subr.bf16.mxu0 0
    %685 = vmatpush1.bf16.msra.mxu0 0
    %686 = vmatprep.subr.bf16.mxu0 0
    %687 = vmatpush1.bf16.msra.mxu0 0
    %688 = vmatprep.subr.bf16.mxu0 0
    %689 = vmatpush1.bf16.msra.mxu0 0
    %690 = vmatprep.subr.bf16.mxu0 0
    %691 = vmatpush1.bf16.msra.mxu0 0
    %692 = vmatprep.subr.bf16.mxu0 0
    %693 = vmatpush1.bf16.msra.mxu0 0
    %694 = vmatprep.subr.bf16.mxu0 0
    %695 = vmatpush1.bf16.msra.mxu0 0
    %696 = vmatprep.mubr.bf16.mxu0 0
    %697 = vmatmul.mubr.bf16.gmra.mrb[0].mxu0 %v662
    %v698 = vpop.f32.mrb[0].mxu0
    %v699 = vadd.f32 0.0, %v698
    %v700 = vpop.f32.mrb[0].mxu0
    %v701 = vpop.f32.mrb[0].mxu0
    %v702 = vadd.f32 0.0, %v701
    %v703 = vpop.f32.mrb[0].mxu0
    %704 = vdwg.mxu0
    %705 = vmatprep.subr.bf16.mxu0 0
    %706 = vmatpush1.bf16.msra.mxu0 %v63
    %707 = vmatprep.subr.bf16.mxu0 0
    %708 = vmatpush1.bf16.msra.mxu0 %v64
    %709 = vmatprep.subr.bf16.mxu0 0
    %710 = vmatpush1.bf16.msra.mxu0 %v65
    %711 = vmatprep.subr.bf16.mxu0 0
    %712 = vmatpush1.bf16.msra.mxu0 %v66
    %713 = vmatprep.subr.bf16.mxu0 0
    %714 = vmatpush1.bf16.msra.mxu0 %v67
    %715 = vmatprep.subr.bf16.mxu0 0
    %716 = vmatpush1.bf16.msra.mxu0 %v68
    %717 = vmatprep.subr.bf16.mxu0 0
    %718 = vmatpush1.bf16.msra.mxu0 %v69
    %719 = vmatprep.subr.bf16.mxu0 0
    %720 = vmatpush1.bf16.msra.mxu0 %v70
    %721 = vmatprep.subr.bf16.mxu0 0
    %722 = vmatpush1.bf16.msra.mxu0 0
    %723 = vmatprep.subr.bf16.mxu0 0
    %724 = vmatpush1.bf16.msra.mxu0 0
    %725 = vmatprep.subr.bf16.mxu0 0
    %726 = vmatpush1.bf16.msra.mxu0 0
    %727 = vmatprep.subr.bf16.mxu0 0
    %728 = vmatpush1.bf16.msra.mxu0 0
    %729 = vmatprep.subr.bf16.mxu0 0
    %730 = vmatpush1.bf16.msra.mxu0 0
    %731 = vmatprep.subr.bf16.mxu0 0
    %732 = vmatpush1.bf16.msra.mxu0 0
    %733 = vmatprep.subr.bf16.mxu0 0
    %734 = vmatpush1.bf16.msra.mxu0 0
    %735 = vmatprep.subr.bf16.mxu0 0
    %736 = vmatpush1.bf16.msra.mxu0 0
    %737 = vmatprep.mubr.bf16.mxu0 0
    %738 = vmatmul.mubr.bf16.gmra.mrb[0].mxu0 %v663
    %v739 = vpop.f32.mrb[0].mxu0
    %v740 = vadd.f32 0.0, %v739
    %v741 = vpop.f32.mrb[0].mxu0
    %v742 = vpop.f32.mrb[0].mxu0
    %v743 = vadd.f32 0.0, %v742
    %v744 = vpop.f32.mrb[0].mxu0
    %745 = vdwg.mxu0
    %746 = vst.msk [vmem:[%s4] sm:$0xff] %vm71, %v699
    %747 = vst.msk [vmem:[%s4 + $0x8] sm:$0xff] %vm71, %v702
    %748 = vst.msk [vmem:[%s4 + $0x10] sm:$0xff] %vm71, %v740
    %749 = vst.msk [vmem:[%s4 + $0x18] sm:$0xff] %vm71, %v743
    // Predicated region
    $region10: #{generator_forward.28} parent=1 // pred_check
      _
    $region11: #{generator_forward.28} parent=1 // pred_check_branch
      %751 = sbr.rel (0) target = $region13
    $region12: #{generator_forward.28} parent=1 // pred_region
      %s753 = ssub.s32 512, 512
      %754 = vsyncadd [#allocation3], %s753
      %s755 = sshll.u32 [#allocation2], 4
      %s756 = int_to_ptr.vmem [resolvable:$true] %s755
      %761 = dma.vmem_to_hbm [thread:$0]  %s756, 512, %s2, [#allocation3], 128, 128, 8
    $region13: #{generator_forward.28} parent=1 // pred_fallthru
      _
    // Predicated region
    $region14: #{generator_forward.28} parent=1 // pred_check
      _
    $region15: #{generator_forward.28} parent=1 // pred_check_branch
      %763 = sbr.rel (0) target = $region17
    $region16: #{generator_forward.28} parent=1 // pred_region
      %s765 = ssub.s32 512, 512
      %766 = vsyncadd [#allocation5], %s765
      %s767 = sshll.u32 [#allocation4], 4
      %s768 = int_to_ptr.vmem [resolvable:$true] %s767
      %773 = dma.vmem_to_hbm [thread:$0]  %s768, 512, %s3, [#allocation5], 128, 128, 8
    $region17: #{generator_forward.28} parent=1 // pred_fallthru
      _
    // Predicated region
    $region18: #{generator_forward.28} parent=1 // pred_check
      _
    $region19: #{generator_forward.28} parent=1 // pred_check_branch
      %775 = sbr.rel (0) target = $region21
    $region20: #{generator_forward.28} parent=1 // pred_region
      _
    $region21: #{generator_forward.28} parent=1 // pred_fallthru
      _
    // Predicated region
    $region22: #{generator_forward.28} parent=1 // pred_check
      _
    $region23: #{generator_forward.28} parent=1 // pred_check_branch
      %777 = sbr.rel (0) target = $region25
    $region24: #{generator_forward.28} parent=1 // pred_region
      %778 = dma.done [#allocation3], 512
    $region25: #{generator_forward.28} parent=1 // pred_fallthru
      _
    // Predicated region
    $region26: #{generator_forward.28} parent=1 // pred_check
      _
    $region27: #{generator_forward.28} parent=1 // pred_check_branch
      %780 = sbr.rel (0) target = $region29
    $region28: #{generator_forward.28} parent=1 // pred_region
      %781 = dma.done [#allocation5], 512
    $region29: #{generator_forward.28} parent=1 // pred_fallthru
      _
    // Predicated region
    $region30: #{generator_forward.28} parent=1 // pred_check
      _
    $region31: #{generator_forward.28} parent=1 // pred_check_branch
      %783 = sbr.rel (0) target = $region33
    $region32: #{generator_forward.28} parent=1 // pred_region
      _
    $region33: #{generator_forward.28} parent=1 // pred_fallthru
      _
    %784 = vsyncpa [#allocation3], 1
    %785 = vsyncpa [#allocation5], 1

// kernel: generator_forward.36
$region0: #{generator_forward.36}
  #allocation0 [shape = 'u32[]', space=smem, size = 0x4, offset = 0x4, fixed_abs, tag = 'smem constant byte address 0x4 - core index']
  #allocation1 [shape = 'u32[144,128]{1,0:T(1,128)}', space=vmem, size = 0x12000, scoped, tag = 'internal scratch']
  #allocation2 [shape = 'f32[128,128]{1,0:T(8,128)}', space=vmem, size = 0x10000, scoped, tag = 'scratch operand']
  %s0 = inlined_call_operand.vmem [shape: bf16[128,256], index: 0, kind: input, shape index: {}]
  %s1 = inlined_call_operand.vmem [shape: bf16[256,128], index: 1, kind: input, shape index: {}]
  %s2 = inlined_call_operand.vmem [shape: f32[1,128], index: 2, kind: input, shape index: {}]
  %s3 = inlined_call_operand.vmem [shape: f32[1,128], index: 3, kind: input, shape index: {}]
  %s4 = inlined_call_operand.vmem [shape: f32[128,128], index: 4, kind: input, shape index: {}]
  %s5 = inlined_call_operand.vmem [shape: f32[128,128], index: 5, kind: output, shape index: {}]
  %s6 = sld [smem:[#allocation0]]
  $region38: #{generator_forward.36} parent=0
    _
  %s8 = ssub.s32 1, %s6
  %s9 = scalar_select 0, %s8, %s6
  // Predicated region
  $region2: #{generator_forward.36} parent=0 // pred_check
    _
  $region3: #{generator_forward.36} parent=0 // pred_check_branch
    %11 = sbr.rel (0) target = $region5
  $region4: #{generator_forward.36} parent=0 // pred_region
    _
  $region5: #{generator_forward.36} parent=0 // pred_fallthru
    _
  // Predicated region
  $region6: #{generator_forward.36} parent=0 // pred_check
    _
  $region7: #{generator_forward.36} parent=0 // pred_check_branch
    %13 = sbr.rel (0) target = $region9
  $region8: #{generator_forward.36} parent=0 // pred_region
    _
  $region9: #{generator_forward.36} parent=0 // pred_fallthru
    _
  // Predicated region
  $region10: #{generator_forward.36} parent=0 // pred_check
    _
  $region11: #{generator_forward.36} parent=0 // pred_check_branch
    %15 = sbr.rel (0) target = $region13
  $region12: #{generator_forward.36} parent=0 // pred_region
    _
  $region13: #{generator_forward.36} parent=0 // pred_fallthru
    _
  // Predicated region
  $region14: #{generator_forward.36} parent=0 // pred_check
    _
  $region15: #{generator_forward.36} parent=0 // pred_check_branch
    %17 = sbr.rel (0) target = $region17
  $region16: #{generator_forward.36} parent=0 // pred_region
    _
  $region17: #{generator_forward.36} parent=0 // pred_fallthru
    _
  // Predicated region
  $region18: #{generator_forward.36} parent=0 // pred_check
    _
  $region19: #{generator_forward.36} parent=0 // pred_check_branch
    %19 = sbr.rel (0) target = $region21
  $region20: #{generator_forward.36} parent=0 // pred_region
    _
  $region21: #{generator_forward.36} parent=0 // pred_fallthru
    _
  %p21 = scmp.eq.s32.totalorder 0, 0
  // Predicated region
  $region22: #{generator_forward.36} parent=0 // pred_check
    %p22 = pneg %p21
  $region23: #{generator_forward.36} parent=0 // pred_check_branch
    %24 = sbr.rel (%p22) target = $region25
  $region24: #{generator_forward.36} parent=0 // pred_region
    %25 = vst [vmem:[#allocation2] sm:$0xff] 0.0
    %26 = vst [vmem:[#allocation2 + $0x8] sm:$0xff] 0.0
    %27 = vst [vmem:[#allocation2 + $0x10] sm:$0xff] 0.0
    %28 = vst [vmem:[#allocation2 + $0x18] sm:$0xff] 0.0
    %29 = vst [vmem:[#allocation2 + $0x20] sm:$0xff] 0.0
    %30 = vst [vmem:[#allocation2 + $0x28] sm:$0xff] 0.0
    %31 = vst [vmem:[#allocation2 + $0x30] sm:$0xff] 0.0
    %32 = vst [vmem:[#allocation2 + $0x38] sm:$0xff] 0.0
    %33 = vst [vmem:[#allocation2 + $0x40] sm:$0xff] 0.0
    %34 = vst [vmem:[#allocation2 + $0x48] sm:$0xff] 0.0
    %35 = vst [vmem:[#allocation2 + $0x50] sm:$0xff] 0.0
    %36 = vst [vmem:[#allocation2 + $0x58] sm:$0xff] 0.0
    %37 = vst [vmem:[#allocation2 + $0x60] sm:$0xff] 0.0
    %38 = vst [vmem:[#allocation2 + $0x68] sm:$0xff] 0.0
    %39 = vst [vmem:[#allocation2 + $0x70] sm:$0xff] 0.0
    %40 = vst [vmem:[#allocation2 + $0x78] sm:$0xff] 0.0
  $region25: #{generator_forward.36} parent=0 // pred_fallthru
    _
  %v41 = vld [vmem:[#allocation2] sm:$0xff]
  %v42 = vld [vmem:[#allocation2 + $0x8] sm:$0xff]
  %v43 = vld [vmem:[#allocation2 + $0x10] sm:$0xff]
  %v44 = vld [vmem:[#allocation2 + $0x18] sm:$0xff]
  %v45 = vld [vmem:[#allocation2 + $0x20] sm:$0xff]
  %v46 = vld [vmem:[#allocation2 + $0x28] sm:$0xff]
  %v47 = vld [vmem:[#allocation2 + $0x30] sm:$0xff]
  %v48 = vld [vmem:[#allocation2 + $0x38] sm:$0xff]
  %v49 = vld [vmem:[#allocation2 + $0x40] sm:$0xff]
  %v50 = vld [vmem:[#allocation2 + $0x48] sm:$0xff]
  %v51 = vld [vmem:[#allocation2 + $0x50] sm:$0xff]
  %v52 = vld [vmem:[#allocation2 + $0x58] sm:$0xff]
  %v53 = vld [vmem:[#allocation2 + $0x60] sm:$0xff]
  %v54 = vld [vmem:[#allocation2 + $0x68] sm:$0xff]
  %v55 = vld [vmem:[#allocation2 + $0x70] sm:$0xff]
  %v56 = vld [vmem:[#allocation2 + $0x78] sm:$0xff]
  %v57 = vld [vmem:[%s0] sm:$0xff]
  %v58 = vld [vmem:[%s0 + $0x8] sm:$0xff]
  %v59 = vld [vmem:[%s0 + $0x10] sm:$0xff]
  %v60 = vld [vmem:[%s0 + $0x18] sm:$0xff]
  %v61 = vld [vmem:[%s0 + $0x20] sm:$0xff]
  %v62 = vld [vmem:[%s0 + $0x28] sm:$0xff]
  %v63 = vld [vmem:[%s0 + $0x30] sm:$0xff]
  %v64 = vld [vmem:[%s0 + $0x38] sm:$0xff]
  %v65 = vld [vmem:[%s0 + $0x40] sm:$0xff]
  %v66 = vld [vmem:[%s0 + $0x48] sm:$0xff]
  %v67 = vld [vmem:[%s0 + $0x50] sm:$0xff]
  %v68 = vld [vmem:[%s0 + $0x58] sm:$0xff]
  %v69 = vld [vmem:[%s0 + $0x60] sm:$0xff]
  %v70 = vld [vmem:[%s0 + $0x68] sm:$0xff]
  %v71 = vld [vmem:[%s0 + $0x70] sm:$0xff]
  %v72 = vld [vmem:[%s0 + $0x78] sm:$0xff]
  %v73 = vld [vmem:[%s1] sm:$0xf]
  %v74 = vld [vmem:[%s1 + $0x4] sm:$0xf]
  %v75 = vld [vmem:[%s1 + $0x8] sm:$0xf]
  %v76 = vld [vmem:[%s1 + $0xc] sm:$0xf]
  %v77 = vld [vmem:[%s1 + $0x10] sm:$0xf]
  %v78 = vld [vmem:[%s1 + $0x14] sm:$0xf]
  %v79 = vld [vmem:[%s1 + $0x18] sm:$0xf]
  %v80 = vld [vmem:[%s1 + $0x1c] sm:$0xf]
  %v81 = vld [vmem:[%s1 + $0x20] sm:$0xf]
  %v82 = vld [vmem:[%s1 + $0x24] sm:$0xf]
  %v83 = vld [vmem:[%s1 + $0x28] sm:$0xf]
  %v84 = vld [vmem:[%s1 + $0x2c] sm:$0xf]
  %v85 = vld [vmem:[%s1 + $0x30] sm:$0xf]
  %v86 = vld [vmem:[%s1 + $0x34] sm:$0xf]
  %v87 = vld [vmem:[%s1 + $0x38] sm:$0xf]
  %v88 = vld [vmem:[%s1 + $0x3c] sm:$0xf]
  %v89 = vld [vmem:[%s1 + $0x40] sm:$0xf]
  %v90 = vld [vmem:[%s1 + $0x44] sm:$0xf]
  %v91 = vld [vmem:[%s1 + $0x48] sm:$0xf]
  %v92 = vld [vmem:[%s1 + $0x4c] sm:$0xf]
  %v93 = vld [vmem:[%s1 + $0x50] sm:$0xf]
  %v94 = vld [vmem:[%s1 + $0x54] sm:$0xf]
  %v95 = vld [vmem:[%s1 + $0x58] sm:$0xf]
  %v96 = vld [vmem:[%s1 + $0x5c] sm:$0xf]
  %v97 = vld [vmem:[%s1 + $0x60] sm:$0xf]
  %v98 = vld [vmem:[%s1 + $0x64] sm:$0xf]
  %v99 = vld [vmem:[%s1 + $0x68] sm:$0xf]
  %v100 = vld [vmem:[%s1 + $0x6c] sm:$0xf]
  %v101 = vld [vmem:[%s1 + $0x70] sm:$0xf]
  %v102 = vld [vmem:[%s1 + $0x74] sm:$0xf]
  %v103 = vld [vmem:[%s1 + $0x78] sm:$0xf]
  %v104 = vld [vmem:[%s1 + $0x7c] sm:$0xf]
  %v121 = vunpack.c.l.b16 %v57
  %v122 = vunpack.c.h.b16 %v57
  %v123 = vunpack.c.l.b16 %v58
  %v124 = vunpack.c.h.b16 %v58
  %v125 = vunpack.c.l.b16 %v59
  %v126 = vunpack.c.h.b16 %v59
  %v127 = vunpack.c.l.b16 %v60
  %v128 = vunpack.c.h.b16 %v60
  %v129 = vunpack.c.l.b16 %v61
  %v130 = vunpack.c.h.b16 %v61
  %v131 = vunpack.c.l.b16 %v62
  %v132 = vunpack.c.h.b16 %v62
  %v133 = vunpack.c.l.b16 %v63
  %v134 = vunpack.c.h.b16 %v63
  %v135 = vunpack.c.l.b16 %v64
  %v136 = vunpack.c.h.b16 %v64
  %v137 = vunpack.c.l.b16 %v65
  %v138 = vunpack.c.h.b16 %v65
  %v139 = vunpack.c.l.b16 %v66
  %v140 = vunpack.c.h.b16 %v66
  %v141 = vunpack.c.l.b16 %v67
  %v142 = vunpack.c.h.b16 %v67
  %v143 = vunpack.c.l.b16 %v68
  %v144 = vunpack.c.h.b16 %v68
  %v145 = vunpack.c.l.b16 %v69
  %v146 = vunpack.c.h.b16 %v69
  %v147 = vunpack.c.l.b16 %v70
  %v148 = vunpack.c.h.b16 %v70
  %v149 = vunpack.c.l.b16 %v71
  %v150 = vunpack.c.h.b16 %v71
  %v151 = vunpack.c.l.b16 %v72
  %v152 = vunpack.c.h.b16 %v72
  %v153 = vpack.c.b16 %v123, %v121
  %v154 = vpack.c.b16 %v124, %v122
  %v155 = vpack.c.b16 %v127, %v125
  %v156 = vpack.c.b16 %v128, %v126
  %v157 = vpack.c.b16 %v131, %v129
  %v158 = vpack.c.b16 %v132, %v130
  %v159 = vpack.c.b16 %v135, %v133
  %v160 = vpack.c.b16 %v136, %v134
  %v161 = vpack.c.b16 %v139, %v137
  %v162 = vpack.c.b16 %v140, %v138
  %v163 = vpack.c.b16 %v143, %v141
  %v164 = vpack.c.b16 %v144, %v142
  %v165 = vpack.c.b16 %v147, %v145
  %v166 = vpack.c.b16 %v148, %v146
  %v167 = vpack.c.b16 %v151, %v149
  %v168 = vpack.c.b16 %v152, %v150
  %v217 = vunpack.c.l.b16 %v73
  %v218 = vunpack.c.l.b16 %v74
  %v219 = vunpack.c.l.b16 %v75
  %v220 = vunpack.c.l.b16 %v76
  %v221 = vunpack.c.l.b16 %v77
  %v222 = vunpack.c.l.b16 %v78
  %v223 = vunpack.c.l.b16 %v79
  %v224 = vunpack.c.l.b16 %v80
  %v225 = vunpack.c.l.b16 %v81
  %v226 = vunpack.c.l.b16 %v82
  %v227 = vunpack.c.l.b16 %v83
  %v228 = vunpack.c.l.b16 %v84
  %v229 = vunpack.c.l.b16 %v85
  %v230 = vunpack.c.l.b16 %v86
  %v231 = vunpack.c.l.b16 %v87
  %v232 = vunpack.c.l.b16 %v88
  %v233 = vunpack.c.l.b16 %v89
  %v234 = vunpack.c.l.b16 %v90
  %v235 = vunpack.c.l.b16 %v91
  %v236 = vunpack.c.l.b16 %v92
  %v237 = vunpack.c.l.b16 %v93
  %v238 = vunpack.c.l.b16 %v94
  %v239 = vunpack.c.l.b16 %v95
  %v240 = vunpack.c.l.b16 %v96
  %v241 = vunpack.c.l.b16 %v97
  %v242 = vunpack.c.l.b16 %v98
  %v243 = vunpack.c.l.b16 %v99
  %v244 = vunpack.c.l.b16 %v100
  %v245 = vunpack.c.l.b16 %v101
  %v246 = vunpack.c.l.b16 %v102
  %v247 = vunpack.c.l.b16 %v103
  %v248 = vunpack.c.l.b16 %v104
  %v249 = vpack.c.b16 %v218, %v217
  %v250 = vpack.c.b16 %v220, %v219
  %v251 = vpack.c.b16 %v222, %v221
  %v252 = vpack.c.b16 %v224, %v223
  %v253 = vpack.c.b16 %v226, %v225
  %v254 = vpack.c.b16 %v228, %v227
  %v255 = vpack.c.b16 %v230, %v229
  %v256 = vpack.c.b16 %v232, %v231
  %v257 = vpack.c.b16 %v234, %v233
  %v258 = vpack.c.b16 %v236, %v235
  %v259 = vpack.c.b16 %v238, %v237
  %v260 = vpack.c.b16 %v240, %v239
  %v261 = vpack.c.b16 %v242, %v241
  %v262 = vpack.c.b16 %v244, %v243
  %v263 = vpack.c.b16 %v246, %v245
  %v264 = vpack.c.b16 %v248, %v247
  %281 = vmatprep.subr.bf16.mxu0 0
  %282 = vmatpush1.bf16.msra.mxu0 %v249
  %283 = vmatprep.subr.bf16.mxu0 0
  %284 = vmatpush1.bf16.msra.mxu0 %v250
  %285 = vmatprep.subr.bf16.mxu0 0
  %286 = vmatpush1.bf16.msra.mxu0 %v251
  %287 = vmatprep.subr.bf16.mxu0 0
  %288 = vmatpush1.bf16.msra.mxu0 %v252
  %289 = vmatprep.subr.bf16.mxu0 0
  %290 = vmatpush1.bf16.msra.mxu0 %v253
  %291 = vmatprep.subr.bf16.mxu0 0
  %292 = vmatpush1.bf16.msra.mxu0 %v254
  %293 = vmatprep.subr.bf16.mxu0 0
  %294 = vmatpush1.bf16.msra.mxu0 %v255
  %295 = vmatprep.subr.bf16.mxu0 0
  %296 = vmatpush1.bf16.msra.mxu0 %v256
  %297 = vmatprep.subr.bf16.mxu0 0
  %298 = vmatpush1.bf16.msra.mxu0 %v257
  %299 = vmatprep.subr.bf16.mxu0 0
  %300 = vmatpush1.bf16.msra.mxu0 %v258
  %301 = vmatprep.subr.bf16.mxu0 0
  %302 = vmatpush1.bf16.msra.mxu0 %v259
  %303 = vmatprep.subr.bf16.mxu0 0
  %304 = vmatpush1.bf16.msra.mxu0 %v260
  %305 = vmatprep.subr.bf16.mxu0 0
  %306 = vmatpush1.bf16.msra.mxu0 %v261
  %307 = vmatprep.subr.bf16.mxu0 0
  %308 = vmatpush1.bf16.msra.mxu0 %v262
  %309 = vmatprep.subr.bf16.mxu0 0
  %310 = vmatpush1.bf16.msra.mxu0 %v263
  %311 = vmatprep.subr.bf16.mxu0 0
  %312 = vmatpush1.bf16.msra.mxu0 %v264
  %313 = vmatprep.mubr.bf16.mxu0 %v154
  %314 = vmatmul.mubr.bf16.gmra.mrb[0].mxu0 %v153
  %v315 = vpop.f32.mrb[0].mxu0
  %v316 = vadd.f32 0.0, %v315
  %v317 = vpop.f32.mrb[0].mxu0
  %v318 = vpop.f32.mrb[0].mxu0
  %v319 = vadd.f32 0.0, %v318
  %v320 = vpop.f32.mrb[0].mxu0
  %321 = vmatprep.mubr.bf16.mxu0 %v156
  %322 = vmatmul.mubr.bf16.gmra.mrb[0].mxu0 %v155
  %v323 = vpop.f32.mrb[0].mxu0
  %v324 = vadd.f32 0.0, %v323
  %v325 = vpop.f32.mrb[0].mxu0
  %v326 = vpop.f32.mrb[0].mxu0
  %v327 = vadd.f32 0.0, %v326
  %v328 = vpop.f32.mrb[0].mxu0
  %329 = vmatprep.mubr.bf16.mxu0 %v158
  %330 = vmatmul.mubr.bf16.gmra.mrb[0].mxu0 %v157
  %v331 = vpop.f32.mrb[0].mxu0
  %v332 = vadd.f32 0.0, %v331
  %v333 = vpop.f32.mrb[0].mxu0
  %v334 = vpop.f32.mrb[0].mxu0
  %v335 = vadd.f32 0.0, %v334
  %v336 = vpop.f32.mrb[0].mxu0
  %337 = vmatprep.mubr.bf16.mxu0 %v160
  %338 = vmatmul.mubr.bf16.gmra.mrb[0].mxu0 %v159
  %v339 = vpop.f32.mrb[0].mxu0
  %v340 = vadd.f32 0.0, %v339
  %v341 = vpop.f32.mrb[0].mxu0
  %v342 = vpop.f32.mrb[0].mxu0
  %v343 = vadd.f32 0.0, %v342
  %v344 = vpop.f32.mrb[0].mxu0
  %345 = vmatprep.mubr.bf16.mxu0 %v162
  %346 = vmatmul.mubr.bf16.gmra.mrb[0].mxu0 %v161
  %v347 = vpop.f32.mrb[0].mxu0
  %v348 = vadd.f32 0.0, %v347
  %v349 = vpop.f32.mrb[0].mxu0
  %v350 = vpop.f32.mrb[0].mxu0
  %v351 = vadd.f32 0.0, %v350
  %v352 = vpop.f32.mrb[0].mxu0
  %353 = vmatprep.mubr.bf16.mxu0 %v164
  %354 = vmatmul.mubr.bf16.gmra.mrb[0].mxu0 %v163
  %v355 = vpop.f32.mrb[0].mxu0
  %v356 = vadd.f32 0.0, %v355
  %v357 = vpop.f32.mrb[0].mxu0
  %v358 = vpop.f32.mrb[0].mxu0
  %v359 = vadd.f32 0.0, %v358
  %v360 = vpop.f32.mrb[0].mxu0
  %361 = vmatprep.mubr.bf16.mxu0 %v166
  %362 = vmatmul.mubr.bf16.gmra.mrb[0].mxu0 %v165
  %v363 = vpop.f32.mrb[0].mxu0
  %v364 = vadd.f32 0.0, %v363
  %v365 = vpop.f32.mrb[0].mxu0
  %v366 = vpop.f32.mrb[0].mxu0
  %v367 = vadd.f32 0.0, %v366
  %v368 = vpop.f32.mrb[0].mxu0
  %369 = vmatprep.mubr.bf16.mxu0 %v168
  %370 = vmatmul.mubr.bf16.gmra.mrb[0].mxu0 %v167
  %v371 = vpop.f32.mrb[0].mxu0
  %v372 = vadd.f32 0.0, %v371
  %v373 = vpop.f32.mrb[0].mxu0
  %v374 = vpop.f32.mrb[0].mxu0
  %v375 = vadd.f32 0.0, %v374
  %v376 = vpop.f32.mrb[0].mxu0
  %377 = vdwg.mxu0
  %v378 = vadd.f32 %v41, %v316
  %v379 = vadd.f32 %v42, %v319
  %v380 = vadd.f32 %v43, %v324
  %v381 = vadd.f32 %v44, %v327
  %v382 = vadd.f32 %v45, %v332
  %v383 = vadd.f32 %v46, %v335
  %v384 = vadd.f32 %v47, %v340
  %v385 = vadd.f32 %v48, %v343
  %v386 = vadd.f32 %v49, %v348
  %v387 = vadd.f32 %v50, %v351
  %v388 = vadd.f32 %v51, %v356
  %v389 = vadd.f32 %v52, %v359
  %v390 = vadd.f32 %v53, %v364
  %v391 = vadd.f32 %v54, %v367
  %v392 = vadd.f32 %v55, %v372
  %v393 = vadd.f32 %v56, %v375
  %394 = vst [vmem:[#allocation2] sm:$0xff] %v378
  %395 = vst [vmem:[#allocation2 + $0x8] sm:$0xff] %v379
  %396 = vst [vmem:[#allocation2 + $0x10] sm:$0xff] %v380
  %397 = vst [vmem:[#allocation2 + $0x18] sm:$0xff] %v381
  %398 = vst [vmem:[#allocation2 + $0x20] sm:$0xff] %v382
  %399 = vst [vmem:[#allocation2 + $0x28] sm:$0xff] %v383
  %400 = vst [vmem:[#allocation2 + $0x30] sm:$0xff] %v384
  %401 = vst [vmem:[#allocation2 + $0x38] sm:$0xff] %v385
  %402 = vst [vmem:[#allocation2 + $0x40] sm:$0xff] %v386
  %403 = vst [vmem:[#allocation2 + $0x48] sm:$0xff] %v387
  %404 = vst [vmem:[#allocation2 + $0x50] sm:$0xff] %v388
  %405 = vst [vmem:[#allocation2 + $0x58] sm:$0xff] %v389
  %406 = vst [vmem:[#allocation2 + $0x60] sm:$0xff] %v390
  %407 = vst [vmem:[#allocation2 + $0x68] sm:$0xff] %v391
  %408 = vst [vmem:[#allocation2 + $0x70] sm:$0xff] %v392
  %409 = vst [vmem:[#allocation2 + $0x78] sm:$0xff] %v393
  // Predicated region
  $region26: #{generator_forward.36} parent=0 // pred_check
    %p410 = pneg %p21
  $region27: #{generator_forward.36} parent=0 // pred_check_branch
    %412 = sbr.rel (%p410) target = $region29
  $region28: #{generator_forward.36} parent=0 // pred_region
    %v413 = vld [vmem:[#allocation2] sm:$0xff]
    %v414 = vld [vmem:[#allocation2 + $0x8] sm:$0xff]
    %v415 = vld [vmem:[#allocation2 + $0x10] sm:$0xff]
    %v416 = vld [vmem:[#allocation2 + $0x18] sm:$0xff]
    %v417 = vld [vmem:[#allocation2 + $0x20] sm:$0xff]
    %v418 = vld [vmem:[#allocation2 + $0x28] sm:$0xff]
    %v419 = vld [vmem:[#allocation2 + $0x30] sm:$0xff]
    %v420 = vld [vmem:[#allocation2 + $0x38] sm:$0xff]
    %v421 = vld [vmem:[#allocation2 + $0x40] sm:$0xff]
    %v422 = vld [vmem:[#allocation2 + $0x48] sm:$0xff]
    %v423 = vld [vmem:[#allocation2 + $0x50] sm:$0xff]
    %v424 = vld [vmem:[#allocation2 + $0x58] sm:$0xff]
    %v425 = vld [vmem:[#allocation2 + $0x60] sm:$0xff]
    %v426 = vld [vmem:[#allocation2 + $0x68] sm:$0xff]
    %v427 = vld [vmem:[#allocation2 + $0x70] sm:$0xff]
    %v428 = vld [vmem:[#allocation2 + $0x78] sm:$0xff]
    %v429 = vadd.f32 %v413, %v414
    %v430 = vadd.f32 %v429, %v415
    %v431 = vadd.f32 %v430, %v416
    %v432 = vadd.f32 %v431, %v417
    %v433 = vadd.f32 %v432, %v418
    %v434 = vadd.f32 %v433, %v419
    %v435 = vadd.f32 %v434, %v420
    %v436 = vadd.f32 %v435, %v421
    %v437 = vadd.f32 %v436, %v422
    %v438 = vadd.f32 %v437, %v423
    %v439 = vadd.f32 %v438, %v424
    %v440 = vadd.f32 %v439, %v425
    %v441 = vadd.f32 %v440, %v426
    %v442 = vadd.f32 %v441, %v427
    %v443 = vadd.f32 %v442, %v428
    %v444 = vrot.slane %v443, 4
    %v445 = vadd.f32 %v443, %v444
    %v446 = vrot.slane %v445, 2
    %v447 = vadd.f32 %v445, %v446
    %v448 = vrot.slane %v447, 1
    %v449 = vadd.f32 %v447, %v448
    %v450 = vld [vmem:[%s4] sm:$0xff]
    %v451 = vld [vmem:[%s4 + $0x8] sm:$0xff]
    %v452 = vld [vmem:[%s4 + $0x10] sm:$0xff]
    %v453 = vld [vmem:[%s4 + $0x18] sm:$0xff]
    %v454 = vld [vmem:[%s4 + $0x20] sm:$0xff]
    %v455 = vld [vmem:[%s4 + $0x28] sm:$0xff]
    %v456 = vld [vmem:[%s4 + $0x30] sm:$0xff]
    %v457 = vld [vmem:[%s4 + $0x38] sm:$0xff]
    %v458 = vld [vmem:[%s4 + $0x40] sm:$0xff]
    %v459 = vld [vmem:[%s4 + $0x48] sm:$0xff]
    %v460 = vld [vmem:[%s4 + $0x50] sm:$0xff]
    %v461 = vld [vmem:[%s4 + $0x58] sm:$0xff]
    %v462 = vld [vmem:[%s4 + $0x60] sm:$0xff]
    %v463 = vld [vmem:[%s4 + $0x68] sm:$0xff]
    %v464 = vld [vmem:[%s4 + $0x70] sm:$0xff]
    %v465 = vld [vmem:[%s4 + $0x78] sm:$0xff]
    %466 = vmatprep.subr.mxu0 0.0
    %467 = vmatpush1.msra.mxu0 %v450
    %468 = vmatprep.subr.mxu0 0.0
    %469 = vmatpush1.msra.mxu0 %v451
    %470 = vmatprep.subr.mxu0 0.0
    %471 = vmatpush1.msra.mxu0 %v452
    %472 = vmatprep.subr.mxu0 0.0
    %473 = vmatpush1.msra.mxu0 %v453
    %474 = vmatprep.subr.mxu0 0.0
    %475 = vmatpush1.msra.mxu0 %v454
    %476 = vmatprep.subr.mxu0 0.0
    %477 = vmatpush1.msra.mxu0 %v455
    %478 = vmatprep.subr.mxu0 0.0
    %479 = vmatpush1.msra.mxu0 %v456
    %480 = vmatprep.subr.mxu0 0.0
    %481 = vmatpush1.msra.mxu0 %v457
    %482 = vmatprep.subr.mxu0 0.0
    %483 = vmatpush1.msra.mxu0 %v458
    %484 = vmatprep.subr.mxu0 0.0
    %485 = vmatpush1.msra.mxu0 %v459
    %486 = vmatprep.subr.mxu0 0.0
    %487 = vmatpush1.msra.mxu0 %v460
    %488 = vmatprep.subr.mxu0 0.0
    %489 = vmatpush1.msra.mxu0 %v461
    %490 = vmatprep.subr.mxu0 0.0
    %491 = vmatpush1.msra.mxu0 %v462
    %492 = vmatprep.subr.mxu0 0.0
    %493 = vmatpush1.msra.mxu0 %v463
    %494 = vmatprep.subr.mxu0 0.0
    %495 = vmatpush1.msra.mxu0 %v464
    %496 = vmatprep.subr.mxu0 0.0
    %497 = vmatpush1.msra.mxu0 %v465
    %498 = vmatprep.subr.mxu0 0.0
    %499 = vmatpush1.msra.mxu0 0.0
    %500 = vmatprep.subr.mxu0 0.0
    %501 = vmatpush1.msra.mxu0 0.0
    %502 = vmatprep.subr.mxu0 0.0
    %503 = vmatpush1.msra.mxu0 0.0
    %504 = vmatprep.subr.mxu0 0.0
    %505 = vmatpush1.msra.mxu0 0.0
    %506 = vmatprep.subr.mxu0 0.0
    %507 = vmatpush1.msra.mxu0 0.0
    %508 = vmatprep.subr.mxu0 0.0
    %509 = vmatpush1.msra.mxu0 0.0
    %510 = vmatprep.subr.mxu0 0.0
    %511 = vmatpush1.msra.mxu0 0.0
    %512 = vmatprep.subr.mxu0 0.0
    %513 = vmatpush1.msra.mxu0 0.0
    %514 = vmatprep.subr.mxu0 0.0
    %515 = vmatpush1.msra.mxu0 0.0
    %516 = vmatprep.subr.mxu0 0.0
    %517 = vmatpush1.msra.mxu0 0.0
    %518 = vmatprep.subr.mxu0 0.0
    %519 = vmatpush1.msra.mxu0 0.0
    %520 = vmatprep.subr.mxu0 0.0
    %521 = vmatpush1.msra.mxu0 0.0
    %522 = vmatprep.subr.mxu0 0.0
    %523 = vmatpush1.msra.mxu0 0.0
    %524 = vmatprep.subr.mxu0 0.0
    %525 = vmatpush1.msra.mxu0 0.0
    %526 = vmatprep.subr.mxu0 0.0
    %527 = vmatpush1.msra.mxu0 0.0
    %528 = vmatprep.subr.mxu0 0.0
    %529 = vmatpush1.msra.mxu0 0.0
    %530 = vmatprep.mubr.f32.mxu0 0.0
    %531 = vmatmul.mubr.f32.gmra.mrb[0].mxu0 %v449
    %v532 = vpop.f32.mrb[0].mxu0
    %v533 = vadd.f32 0.0, %v532
    %v534 = vpop.f32.mrb[0].mxu0
    %535 = vdwg.mxu0
    %v536 = vlaneseq
    %v537 = vshrl.u32 %v536, 7
    %v538 = vsub.s32 0, %v537
    %v539 = vrot.slane %v533, %v538
    %v540 = vsub.f32 %v413, %v539
    %v541 = vsub.f32 %v414, %v539
    %v542 = vsub.f32 %v415, %v539
    %v543 = vsub.f32 %v416, %v539
    %v544 = vsub.f32 %v417, %v539
    %v545 = vsub.f32 %v418, %v539
    %v546 = vsub.f32 %v419, %v539
    %v547 = vsub.f32 %v420, %v539
    %v548 = vsub.f32 %v421, %v539
    %v549 = vsub.f32 %v422, %v539
    %v550 = vsub.f32 %v423, %v539
    %v551 = vsub.f32 %v424, %v539
    %v552 = vsub.f32 %v425, %v539
    %v553 = vsub.f32 %v426, %v539
    %v554 = vsub.f32 %v427, %v539
    %v555 = vsub.f32 %v428, %v539
    %v556 = vmul.f32 %v540, %v540
    %v557 = vmul.f32 %v541, %v541
    %v558 = vmul.f32 %v542, %v542
    %v559 = vmul.f32 %v543, %v543
    %v560 = vmul.f32 %v544, %v544
    %v561 = vmul.f32 %v545, %v545
    %v562 = vmul.f32 %v546, %v546
    %v563 = vmul.f32 %v547, %v547
    %v564 = vmul.f32 %v548, %v548
    %v565 = vmul.f32 %v549, %v549
    %v566 = vmul.f32 %v550, %v550
    %v567 = vmul.f32 %v551, %v551
    %v568 = vmul.f32 %v552, %v552
    %v569 = vmul.f32 %v553, %v553
    %v570 = vmul.f32 %v554, %v554
    %v571 = vmul.f32 %v555, %v555
    %v572 = vadd.f32 %v556, %v557
    %v573 = vadd.f32 %v572, %v558
    %v574 = vadd.f32 %v573, %v559
    %v575 = vadd.f32 %v574, %v560
    %v576 = vadd.f32 %v575, %v561
    %v577 = vadd.f32 %v576, %v562
    %v578 = vadd.f32 %v577, %v563
    %v579 = vadd.f32 %v578, %v564
    %v580 = vadd.f32 %v579, %v565
    %v581 = vadd.f32 %v580, %v566
    %v582 = vadd.f32 %v581, %v567
    %v583 = vadd.f32 %v582, %v568
    %v584 = vadd.f32 %v583, %v569
    %v585 = vadd.f32 %v584, %v570
    %v586 = vadd.f32 %v585, %v571
    %v587 = vrot.slane %v586, 4
    %v588 = vadd.f32 %v586, %v587
    %v589 = vrot.slane %v588, 2
    %v590 = vadd.f32 %v588, %v589
    %v591 = vrot.slane %v590, 1
    %v592 = vadd.f32 %v590, %v591
    %593 = vmatprep.subr.mxu0 0.0
    %594 = vmatpush1.msra.mxu0 %v450
    %595 = vmatprep.subr.mxu0 0.0
    %596 = vmatpush1.msra.mxu0 %v451
    %597 = vmatprep.subr.mxu0 0.0
    %598 = vmatpush1.msra.mxu0 %v452
    %599 = vmatprep.subr.mxu0 0.0
    %600 = vmatpush1.msra.mxu0 %v453
    %601 = vmatprep.subr.mxu0 0.0
    %602 = vmatpush1.msra.mxu0 %v454
    %603 = vmatprep.subr.mxu0 0.0
    %604 = vmatpush1.msra.mxu0 %v455
    %605 = vmatprep.subr.mxu0 0.0
    %606 = vmatpush1.msra.mxu0 %v456
    %607 = vmatprep.subr.mxu0 0.0
    %608 = vmatpush1.msra.mxu0 %v457
    %609 = vmatprep.subr.mxu0 0.0
    %610 = vmatpush1.msra.mxu0 %v458
    %611 = vmatprep.subr.mxu0 0.0
    %612 = vmatpush1.msra.mxu0 %v459
    %613 = vmatprep.subr.mxu0 0.0
    %614 = vmatpush1.msra.mxu0 %v460
    %615 = vmatprep.subr.mxu0 0.0
    %616 = vmatpush1.msra.mxu0 %v461
    %617 = vmatprep.subr.mxu0 0.0
    %618 = vmatpush1.msra.mxu0 %v462
    %619 = vmatprep.subr.mxu0 0.0
    %620 = vmatpush1.msra.mxu0 %v463
    %621 = vmatprep.subr.mxu0 0.0
    %622 = vmatpush1.msra.mxu0 %v464
    %623 = vmatprep.subr.mxu0 0.0
    %624 = vmatpush1.msra.mxu0 %v465
    %625 = vmatprep.subr.mxu0 0.0
    %626 = vmatpush1.msra.mxu0 0.0
    %627 = vmatprep.subr.mxu0 0.0
    %628 = vmatpush1.msra.mxu0 0.0
    %629 = vmatprep.subr.mxu0 0.0
    %630 = vmatpush1.msra.mxu0 0.0
    %631 = vmatprep.subr.mxu0 0.0
    %632 = vmatpush1.msra.mxu0 0.0
    %633 = vmatprep.subr.mxu0 0.0
    %634 = vmatpush1.msra.mxu0 0.0
    %635 = vmatprep.subr.mxu0 0.0
    %636 = vmatpush1.msra.mxu0 0.0
    %637 = vmatprep.subr.mxu0 0.0
    %638 = vmatpush1.msra.mxu0 0.0
    %639 = vmatprep.subr.mxu0 0.0
    %640 = vmatpush1.msra.mxu0 0.0
    %641 = vmatprep.subr.mxu0 0.0
    %642 = vmatpush1.msra.mxu0 0.0
    %643 = vmatprep.subr.mxu0 0.0
    %644 = vmatpush1.msra.mxu0 0.0
    %645 = vmatprep.subr.mxu0 0.0
    %646 = vmatpush1.msra.mxu0 0.0
    %647 = vmatprep.subr.mxu0 0.0
    %648 = vmatpush1.msra.mxu0 0.0
    %649 = vmatprep.subr.mxu0 0.0
    %650 = vmatpush1.msra.mxu0 0.0
    %651 = vmatprep.subr.mxu0 0.0
    %652 = vmatpush1.msra.mxu0 0.0
    %653 = vmatprep.subr.mxu0 0.0
    %654 = vmatpush1.msra.mxu0 0.0
    %655 = vmatprep.subr.mxu0 0.0
    %656 = vmatpush1.msra.mxu0 0.0
    %657 = vmatprep.mubr.f32.mxu0 0.0
    %658 = vmatmul.mubr.f32.gmra.mrb[0].mxu0 %v592
    %v659 = vpop.f32.mrb[0].mxu0
    %v660 = vadd.f32 1e-05, %v659
    %v661 = vpop.f32.mrb[0].mxu0
    %662 = vdwg.mxu0
    %v663 = vrsqrt.pop %v660
    %v664 = vlaneseq
    %v665 = vshrl.u32 %v664, 7
    %v666 = vsub.s32 0, %v665
    %v667 = vrot.slane %v663, %v666
    %v668 = vmul.f32 %v540, %v667
    %v669 = vmul.f32 %v541, %v667
    %v670 = vmul.f32 %v542, %v667
    %v671 = vmul.f32 %v543, %v667
    %v672 = vmul.f32 %v544, %v667
    %v673 = vmul.f32 %v545, %v667
    %v674 = vmul.f32 %v546, %v667
    %v675 = vmul.f32 %v547, %v667
    %v676 = vmul.f32 %v548, %v667
    %v677 = vmul.f32 %v549, %v667
    %v678 = vmul.f32 %v550, %v667
    %v679 = vmul.f32 %v551, %v667
    %v680 = vmul.f32 %v552, %v667
    %v681 = vmul.f32 %v553, %v667
    %v682 = vmul.f32 %v554, %v667
    %v683 = vmul.f32 %v555, %v667
    %v684 = vld [vmem:[%s2] sm:$0x1]
    %v686 = vlaneseq
    %v687 = vshrl.u32 %v686, 7
    %v688 = vsub.s32 0, %v687
    %v689 = vrot.slane %v684, %v688
    %v691 = vmul.f32 %v668, %v689
    %v692 = vmul.f32 %v669, %v689
    %v693 = vmul.f32 %v670, %v689
    %v694 = vmul.f32 %v671, %v689
    %v695 = vmul.f32 %v672, %v689
    %v696 = vmul.f32 %v673, %v689
    %v697 = vmul.f32 %v674, %v689
    %v698 = vmul.f32 %v675, %v689
    %v699 = vmul.f32 %v676, %v689
    %v700 = vmul.f32 %v677, %v689
    %v701 = vmul.f32 %v678, %v689
    %v702 = vmul.f32 %v679, %v689
    %v703 = vmul.f32 %v680, %v689
    %v704 = vmul.f32 %v681, %v689
    %v705 = vmul.f32 %v682, %v689
    %v706 = vmul.f32 %v683, %v689
    %v707 = vld [vmem:[%s3] sm:$0x1]
    %v709 = vlaneseq
    %v710 = vshrl.u32 %v709, 7
    %v711 = vsub.s32 0, %v710
    %v712 = vrot.slane %v707, %v711
    %v714 = vadd.f32 %v691, %v712
    %v715 = vadd.f32 %v692, %v712
    %v716 = vadd.f32 %v693, %v712
    %v717 = vadd.f32 %v694, %v712
    %v718 = vadd.f32 %v695, %v712
    %v719 = vadd.f32 %v696, %v712
    %v720 = vadd.f32 %v697, %v712
    %v721 = vadd.f32 %v698, %v712
    %v722 = vadd.f32 %v699, %v712
    %v723 = vadd.f32 %v700, %v712
    %v724 = vadd.f32 %v701, %v712
    %v725 = vadd.f32 %v702, %v712
    %v726 = vadd.f32 %v703, %v712
    %v727 = vadd.f32 %v704, %v712
    %v728 = vadd.f32 %v705, %v712
    %v729 = vadd.f32 %v706, %v712
    %v730 = vmax.f32 %v714, 0.0
    %v731 = vmax.f32 %v715, 0.0
    %v732 = vmax.f32 %v716, 0.0
    %v733 = vmax.f32 %v717, 0.0
    %v734 = vmax.f32 %v718, 0.0
    %v735 = vmax.f32 %v719, 0.0
    %v736 = vmax.f32 %v720, 0.0
    %v737 = vmax.f32 %v721, 0.0
    %v738 = vmax.f32 %v722, 0.0
    %v739 = vmax.f32 %v723, 0.0
    %v740 = vmax.f32 %v724, 0.0
    %v741 = vmax.f32 %v725, 0.0
    %v742 = vmax.f32 %v726, 0.0
    %v743 = vmax.f32 %v727, 0.0
    %v744 = vmax.f32 %v728, 0.0
    %v745 = vmax.f32 %v729, 0.0
    %746 = vst [vmem:[%s5] sm:$0xff] %v730
    %747 = vst [vmem:[%s5 + $0x8] sm:$0xff] %v731
    %748 = vst [vmem:[%s5 + $0x10] sm:$0xff] %v732
    %749 = vst [vmem:[%s5 + $0x18] sm:$0xff] %v733
    %750 = vst [vmem:[%s5 + $0x20] sm:$0xff] %v734
    %751 = vst [vmem:[%s5 + $0x28] sm:$0xff] %v735
    %752 = vst [vmem:[%s5 + $0x30] sm:$0xff] %v736
    %753 = vst [vmem:[%s5 + $0x38] sm:$0xff] %v737
    %754 = vst [vmem:[%s5 + $0x40] sm:$0xff] %v738
    %755 = vst [vmem:[%s5 + $0x48] sm:$0xff] %v739
    %756 = vst [vmem:[%s5 + $0x50] sm:$0xff] %v740
    %757 = vst [vmem:[%s5 + $0x58] sm:$0xff] %v741
    %758 = vst [vmem:[%s5 + $0x60] sm:$0xff] %v742
    %759 = vst [vmem:[%s5 + $0x68] sm:$0xff] %v743
    %760 = vst [vmem:[%s5 + $0x70] sm:$0xff] %v744
    %761 = vst [vmem:[%s5 + $0x78] sm:$0xff] %v745
  $region29: #{generator_forward.36} parent=0 // pred_fallthru
    _
  // Predicated region
  $region30: #{generator_forward.36} parent=0 // pred_check
    _
  $region31: #{generator_forward.36} parent=0 // pred_check_branch
    %763 = sbr.rel (0) target = $region33
  $region32: #{generator_forward.36} parent=0 // pred_region
    _
  $region33: #{generator_forward.36} parent=0 // pred_fallthru
    _
  // Predicated region
  $region34: #{generator_forward.36} parent=0 // pred_check
    _
  $region35: #{generator_forward.36} parent=0 // pred_check_branch
    %765 = sbr.rel (0) target = $region37
  $region36: #{generator_forward.36} parent=0 // pred_region
    _
  $region37: #{generator_forward.36} parent=0 // pred_fallthru
    _

// kernel: generator_forward.37
$region0: #{generator_forward.37}
  #allocation0 [shape = 'u32[]', space=smem, size = 0x4, offset = 0x4, fixed_abs, tag = 'smem constant byte address 0x4 - core index']
  #allocation1 [shape = 'u32[144,128]{1,0:T(1,128)}', space=vmem, size = 0x12000, scoped, tag = 'internal scratch']
  #allocation2 [shape = 'f32[512,128]{1,0:T(8,128)}', space=vmem, size = 0x40000, scoped, tag = 'scratch operand']
  %s0 = inlined_call_operand.vmem [shape: bf16[512,512], index: 0, kind: input, shape index: {}]
  %s1 = inlined_call_operand.vmem [shape: bf16[512,128], index: 1, kind: input, shape index: {}]
  %s2 = inlined_call_operand.vmem [shape: f32[1,128], index: 2, kind: input, shape index: {}]
  %s3 = inlined_call_operand.vmem [shape: f32[1,128], index: 3, kind: input, shape index: {}]
  %s4 = inlined_call_operand.vmem [shape: f32[128,128], index: 4, kind: input, shape index: {}]
  %s5 = inlined_call_operand.vmem [shape: f32[512,128], index: 5, kind: output, shape index: {}]
  %s6 = sld [smem:[#allocation0]]
  $region38: #{generator_forward.37} parent=0
    _
  %s8 = ssub.s32 1, %s6
  %s9 = scalar_select 0, %s8, %s6
  // Predicated region
  $region2: #{generator_forward.37} parent=0 // pred_check
    _
  $region3: #{generator_forward.37} parent=0 // pred_check_branch
    %11 = sbr.rel (0) target = $region5
  $region4: #{generator_forward.37} parent=0 // pred_region
    _
  $region5: #{generator_forward.37} parent=0 // pred_fallthru
    _
  // Predicated region
  $region6: #{generator_forward.37} parent=0 // pred_check
    _
  $region7: #{generator_forward.37} parent=0 // pred_check_branch
    %13 = sbr.rel (0) target = $region9
  $region8: #{generator_forward.37} parent=0 // pred_region
    _
  $region9: #{generator_forward.37} parent=0 // pred_fallthru
    _
  // Predicated region
  $region10: #{generator_forward.37} parent=0 // pred_check
    _
  $region11: #{generator_forward.37} parent=0 // pred_check_branch
    %15 = sbr.rel (0) target = $region13
  $region12: #{generator_forward.37} parent=0 // pred_region
    _
  $region13: #{generator_forward.37} parent=0 // pred_fallthru
    _
  // Predicated region
  $region14: #{generator_forward.37} parent=0 // pred_check
    _
  $region15: #{generator_forward.37} parent=0 // pred_check_branch
    %17 = sbr.rel (0) target = $region17
  $region16: #{generator_forward.37} parent=0 // pred_region
    _
  $region17: #{generator_forward.37} parent=0 // pred_fallthru
    _
  // Predicated region
  $region18: #{generator_forward.37} parent=0 // pred_check
    _
  $region19: #{generator_forward.37} parent=0 // pred_check_branch
    %19 = sbr.rel (0) target = $region21
  $region20: #{generator_forward.37} parent=0 // pred_region
    _
  $region21: #{generator_forward.37} parent=0 // pred_fallthru
    _
  %p21 = scmp.eq.s32.totalorder 0, 0
  // Predicated region
  $region22: #{generator_forward.37} parent=0 // pred_check
    %p22 = pneg %p21
  $region23: #{generator_forward.37} parent=0 // pred_check_branch
    %24 = sbr.rel (%p22) target = $region25
  $region24: #{generator_forward.37} parent=0 // pred_region
    %25 = vst [vmem:[#allocation2] sm:$0xff] 0.0
    %26 = vst [vmem:[#allocation2 + $0x8] sm:$0xff] 0.0
    %27 = vst [vmem:[#allocation2 + $0x10] sm:$0xff] 0.0
    %28 = vst [vmem:[#allocation2 + $0x18] sm:$0xff] 0.0
    %29 = vst [vmem:[#allocation2 + $0x20] sm:$0xff] 0.0
    %30 = vst [vmem:[#allocation2 + $0x28] sm:$0xff] 0.0
    %31 = vst [vmem:[#allocation2 + $0x30] sm:$0xff] 0.0
    %32 = vst [vmem:[#allocation2 + $0x38] sm:$0xff] 0.0
    %33 = vst [vmem:[#allocation2 + $0x40] sm:$0xff] 0.0
    %34 = vst [vmem:[#allocation2 + $0x48] sm:$0xff] 0.0
    %35 = vst [vmem:[#allocation2 + $0x50] sm:$0xff] 0.0
    %36 = vst [vmem:[#allocation2 + $0x58] sm:$0xff] 0.0
    %37 = vst [vmem:[#allocation2 + $0x60] sm:$0xff] 0.0
    %38 = vst [vmem:[#allocation2 + $0x68] sm:$0xff] 0.0
    %39 = vst [vmem:[#allocation2 + $0x70] sm:$0xff] 0.0
    %40 = vst [vmem:[#allocation2 + $0x78] sm:$0xff] 0.0
    %41 = vst [vmem:[#allocation2 + $0x80] sm:$0xff] 0.0
    %42 = vst [vmem:[#allocation2 + $0x88] sm:$0xff] 0.0
    %43 = vst [vmem:[#allocation2 + $0x90] sm:$0xff] 0.0
    %44 = vst [vmem:[#allocation2 + $0x98] sm:$0xff] 0.0
    %45 = vst [vmem:[#allocation2 + $0xa0] sm:$0xff] 0.0
    %46 = vst [vmem:[#allocation2 + $0xa8] sm:$0xff] 0.0
    %47 = vst [vmem:[#allocation2 + $0xb0] sm:$0xff] 0.0
    %48 = vst [vmem:[#allocation2 + $0xb8] sm:$0xff] 0.0
    %49 = vst [vmem:[#allocation2 + $0xc0] sm:$0xff] 0.0
    %50 = vst [vmem:[#allocation2 + $0xc8] sm:$0xff] 0.0
    %51 = vst [vmem:[#allocation2 + $0xd0] sm:$0xff] 0.0
    %52 = vst [vmem:[#allocation2 + $0xd8] sm:$0xff] 0.0
    %53 = vst [vmem:[#allocation2 + $0xe0] sm:$0xff] 0.0
    %54 = vst [vmem:[#allocation2 + $0xe8] sm:$0xff] 0.0
    %55 = vst [vmem:[#allocation2 + $0xf0] sm:$0xff] 0.0
    %56 = vst [vmem:[#allocation2 + $0xf8] sm:$0xff] 0.0
    %57 = vst [vmem:[#allocation2 + $0x100] sm:$0xff] 0.0
    %58 = vst [vmem:[#allocation2 + $0x108] sm:$0xff] 0.0
    %59 = vst [vmem:[#allocation2 + $0x110] sm:$0xff] 0.0
    %60 = vst [vmem:[#allocation2 + $0x118] sm:$0xff] 0.0
    %61 = vst [vmem:[#allocation2 + $0x120] sm:$0xff] 0.0
    %62 = vst [vmem:[#allocation2 + $0x128] sm:$0xff] 0.0
    %63 = vst [vmem:[#allocation2 + $0x130] sm:$0xff] 0.0
    %64 = vst [vmem:[#allocation2 + $0x138] sm:$0xff] 0.0
    %65 = vst [vmem:[#allocation2 + $0x140] sm:$0xff] 0.0
    %66 = vst [vmem:[#allocation2 + $0x148] sm:$0xff] 0.0
    %67 = vst [vmem:[#allocation2 + $0x150] sm:$0xff] 0.0
    %68 = vst [vmem:[#allocation2 + $0x158] sm:$0xff] 0.0
    %69 = vst [vmem:[#allocation2 + $0x160] sm:$0xff] 0.0
    %70 = vst [vmem:[#allocation2 + $0x168] sm:$0xff] 0.0
    %71 = vst [vmem:[#allocation2 + $0x170] sm:$0xff] 0.0
    %72 = vst [vmem:[#allocation2 + $0x178] sm:$0xff] 0.0
    %73 = vst [vmem:[#allocation2 + $0x180] sm:$0xff] 0.0
    %74 = vst [vmem:[#allocation2 + $0x188] sm:$0xff] 0.0
    %75 = vst [vmem:[#allocation2 + $0x190] sm:$0xff] 0.0
    %76 = vst [vmem:[#allocation2 + $0x198] sm:$0xff] 0.0
    %77 = vst [vmem:[#allocation2 + $0x1a0] sm:$0xff] 0.0
    %78 = vst [vmem:[#allocation2 + $0x1a8] sm:$0xff] 0.0
    %79 = vst [vmem:[#allocation2 + $0x1b0] sm:$0xff] 0.0
    %80 = vst [vmem:[#allocation2 + $0x1b8] sm:$0xff] 0.0
    %81 = vst [vmem:[#allocation2 + $0x1c0] sm:$0xff] 0.0
    %82 = vst [vmem:[#allocation2 + $0x1c8] sm:$0xff] 0.0
    %83 = vst [vmem:[#allocation2 + $0x1d0] sm:$0xff] 0.0
    %84 = vst [vmem:[#allocation2 + $0x1d8] sm:$0xff] 0.0
    %85 = vst [vmem:[#allocation2 + $0x1e0] sm:$0xff] 0.0
    %86 = vst [vmem:[#allocation2 + $0x1e8] sm:$0xff] 0.0
    %87 = vst [vmem:[#allocation2 + $0x1f0] sm:$0xff] 0.0
    %88 = vst [vmem:[#allocation2 + $0x1f8] sm:$0xff] 0.0
  $region25: #{generator_forward.37} parent=0 // pred_fallthru
    _
  %v89 = vld [vmem:[#allocation2] sm:$0xff]
  %v90 = vld [vmem:[#allocation2 + $0x8] sm:$0xff]
  %v91 = vld [vmem:[#allocation2 + $0x10] sm:$0xff]
  %v92 = vld [vmem:[#allocation2 + $0x18] sm:$0xff]
  %v93 = vld [vmem:[#allocation2 + $0x20] sm:$0xff]
  %v94 = vld [vmem:[#allocation2 + $0x28] sm:$0xff]
  %v95 = vld [vmem:[#allocation2 + $0x30] sm:$0xff]
  %v96 = vld [vmem:[#allocation2 + $0x38] sm:$0xff]
  %v97 = vld [vmem:[#allocation2 + $0x40] sm:$0xff]
  %v98 = vld [vmem:[#allocation2 + $0x48] sm:$0xff]
  %v99 = vld [vmem:[#allocation2 + $0x50] sm:$0xff]
  %v100 = vld [vmem:[#allocation2 + $0x58] sm:$0xff]
  %v101 = vld [vmem:[#allocation2 + $0x60] sm:$0xff]
  %v102 = vld [vmem:[#allocation2 + $0x68] sm:$0xff]
  %v103 = vld [vmem:[#allocation2 + $0x70] sm:$0xff]
  %v104 = vld [vmem:[#allocation2 + $0x78] sm:$0xff]
  %v105 = vld [vmem:[#allocation2 + $0x80] sm:$0xff]
  %v106 = vld [vmem:[#allocation2 + $0x88] sm:$0xff]
  %v107 = vld [vmem:[#allocation2 + $0x90] sm:$0xff]
  %v108 = vld [vmem:[#allocation2 + $0x98] sm:$0xff]
  %v109 = vld [vmem:[#allocation2 + $0xa0] sm:$0xff]
  %v110 = vld [vmem:[#allocation2 + $0xa8] sm:$0xff]
  %v111 = vld [vmem:[#allocation2 + $0xb0] sm:$0xff]
  %v112 = vld [vmem:[#allocation2 + $0xb8] sm:$0xff]
  %v113 = vld [vmem:[#allocation2 + $0xc0] sm:$0xff]
  %v114 = vld [vmem:[#allocation2 + $0xc8] sm:$0xff]
  %v115 = vld [vmem:[#allocation2 + $0xd0] sm:$0xff]
  %v116 = vld [vmem:[#allocation2 + $0xd8] sm:$0xff]
  %v117 = vld [vmem:[#allocation2 + $0xe0] sm:$0xff]
  %v118 = vld [vmem:[#allocation2 + $0xe8] sm:$0xff]
  %v119 = vld [vmem:[#allocation2 + $0xf0] sm:$0xff]
  %v120 = vld [vmem:[#allocation2 + $0xf8] sm:$0xff]
  %v121 = vld [vmem:[#allocation2 + $0x100] sm:$0xff]
  %v122 = vld [vmem:[#allocation2 + $0x108] sm:$0xff]
  %v123 = vld [vmem:[#allocation2 + $0x110] sm:$0xff]
  %v124 = vld [vmem:[#allocation2 + $0x118] sm:$0xff]
  %v125 = vld [vmem:[#allocation2 + $0x120] sm:$0xff]
  %v126 = vld [vmem:[#allocation2 + $0x128] sm:$0xff]
  %v127 = vld [vmem:[#allocation2 + $0x130] sm:$0xff]
  %v128 = vld [vmem:[#allocation2 + $0x138] sm:$0xff]
  %v129 = vld [vmem:[#allocation2 + $0x140] sm:$0xff]
  %v130 = vld [vmem:[#allocation2 + $0x148] sm:$0xff]
  %v131 = vld [vmem:[#allocation2 + $0x150] sm:$0xff]
  %v132 = vld [vmem:[#allocation2 + $0x158] sm:$0xff]
  %v133 = vld [vmem:[#allocation2 + $0x160] sm:$0xff]
  %v134 = vld [vmem:[#allocation2 + $0x168] sm:$0xff]
  %v135 = vld [vmem:[#allocation2 + $0x170] sm:$0xff]
  %v136 = vld [vmem:[#allocation2 + $0x178] sm:$0xff]
  %v137 = vld [vmem:[#allocation2 + $0x180] sm:$0xff]
  %v138 = vld [vmem:[#allocation2 + $0x188] sm:$0xff]
  %v139 = vld [vmem:[#allocation2 + $0x190] sm:$0xff]
  %v140 = vld [vmem:[#allocation2 + $0x198] sm:$0xff]
  %v141 = vld [vmem:[#allocation2 + $0x1a0] sm:$0xff]
  %v142 = vld [vmem:[#allocation2 + $0x1a8] sm:$0xff]
  %v143 = vld [vmem:[#allocation2 + $0x1b0] sm:$0xff]
  %v144 = vld [vmem:[#allocation2 + $0x1b8] sm:$0xff]
  %v145 = vld [vmem:[#allocation2 + $0x1c0] sm:$0xff]
  %v146 = vld [vmem:[#allocation2 + $0x1c8] sm:$0xff]
  %v147 = vld [vmem:[#allocation2 + $0x1d0] sm:$0xff]
  %v148 = vld [vmem:[#allocation2 + $0x1d8] sm:$0xff]
  %v149 = vld [vmem:[#allocation2 + $0x1e0] sm:$0xff]
  %v150 = vld [vmem:[#allocation2 + $0x1e8] sm:$0xff]
  %v151 = vld [vmem:[#allocation2 + $0x1f0] sm:$0xff]
  %v152 = vld [vmem:[#allocation2 + $0x1f8] sm:$0xff]
  %v153 = vld [vmem:[%s0] sm:$0xff]
  %v154 = vld [vmem:[%s0 + $0x8] sm:$0xff]
  %v155 = vld [vmem:[%s0 + $0x10] sm:$0xff]
  %v156 = vld [vmem:[%s0 + $0x18] sm:$0xff]
  %v157 = vld [vmem:[%s0 + $0x20] sm:$0xff]
  %v158 = vld [vmem:[%s0 + $0x28] sm:$0xff]
  %v159 = vld [vmem:[%s0 + $0x30] sm:$0xff]
  %v160 = vld [vmem:[%s0 + $0x38] sm:$0xff]
  %v161 = vld [vmem:[%s0 + $0x40] sm:$0xff]
  %v162 = vld [vmem:[%s0 + $0x48] sm:$0xff]
  %v163 = vld [vmem:[%s0 + $0x50] sm:$0xff]
  %v164 = vld [vmem:[%s0 + $0x58] sm:$0xff]
  %v165 = vld [vmem:[%s0 + $0x60] sm:$0xff]
  %v166 = vld [vmem:[%s0 + $0x68] sm:$0xff]
  %v167 = vld [vmem:[%s0 + $0x70] sm:$0xff]
  %v168 = vld [vmem:[%s0 + $0x78] sm:$0xff]
  %v169 = vld [vmem:[%s0 + $0x80] sm:$0xff]
  %v170 = vld [vmem:[%s0 + $0x88] sm:$0xff]
  %v171 = vld [vmem:[%s0 + $0x90] sm:$0xff]
  %v172 = vld [vmem:[%s0 + $0x98] sm:$0xff]
  %v173 = vld [vmem:[%s0 + $0xa0] sm:$0xff]
  %v174 = vld [vmem:[%s0 + $0xa8] sm:$0xff]
  %v175 = vld [vmem:[%s0 + $0xb0] sm:$0xff]
  %v176 = vld [vmem:[%s0 + $0xb8] sm:$0xff]
  %v177 = vld [vmem:[%s0 + $0xc0] sm:$0xff]
  %v178 = vld [vmem:[%s0 + $0xc8] sm:$0xff]
  %v179 = vld [vmem:[%s0 + $0xd0] sm:$0xff]
  %v180 = vld [vmem:[%s0 + $0xd8] sm:$0xff]
  %v181 = vld [vmem:[%s0 + $0xe0] sm:$0xff]
  %v182 = vld [vmem:[%s0 + $0xe8] sm:$0xff]
  %v183 = vld [vmem:[%s0 + $0xf0] sm:$0xff]
  %v184 = vld [vmem:[%s0 + $0xf8] sm:$0xff]
  %v185 = vld [vmem:[%s0 + $0x100] sm:$0xff]
  %v186 = vld [vmem:[%s0 + $0x108] sm:$0xff]
  %v187 = vld [vmem:[%s0 + $0x110] sm:$0xff]
  %v188 = vld [vmem:[%s0 + $0x118] sm:$0xff]
  %v189 = vld [vmem:[%s0 + $0x120] sm:$0xff]
  %v190 = vld [vmem:[%s0 + $0x128] sm:$0xff]
  %v191 = vld [vmem:[%s0 + $0x130] sm:$0xff]
  %v192 = vld [vmem:[%s0 + $0x138] sm:$0xff]
  %v193 = vld [vmem:[%s0 + $0x140] sm:$0xff]
  %v194 = vld [vmem:[%s0 + $0x148] sm:$0xff]
  %v195 = vld [vmem:[%s0 + $0x150] sm:$0xff]
  %v196 = vld [vmem:[%s0 + $0x158] sm:$0xff]
  %v197 = vld [vmem:[%s0 + $0x160] sm:$0xff]
  %v198 = vld [vmem:[%s0 + $0x168] sm:$0xff]
  %v199 = vld [vmem:[%s0 + $0x170] sm:$0xff]
  %v200 = vld [vmem:[%s0 + $0x178] sm:$0xff]
  %v201 = vld [vmem:[%s0 + $0x180] sm:$0xff]
  %v202 = vld [vmem:[%s0 + $0x188] sm:$0xff]
  %v203 = vld [vmem:[%s0 + $0x190] sm:$0xff]
  %v204 = vld [vmem:[%s0 + $0x198] sm:$0xff]
  %v205 = vld [vmem:[%s0 + $0x1a0] sm:$0xff]
  %v206 = vld [vmem:[%s0 + $0x1a8] sm:$0xff]
  %v207 = vld [vmem:[%s0 + $0x1b0] sm:$0xff]
  %v208 = vld [vmem:[%s0 + $0x1b8] sm:$0xff]
  %v209 = vld [vmem:[%s0 + $0x1c0] sm:$0xff]
  %v210 = vld [vmem:[%s0 + $0x1c8] sm:$0xff]
  %v211 = vld [vmem:[%s0 + $0x1d0] sm:$0xff]
  %v212 = vld [vmem:[%s0 + $0x1d8] sm:$0xff]
  %v213 = vld [vmem:[%s0 + $0x1e0] sm:$0xff]
  %v214 = vld [vmem:[%s0 + $0x1e8] sm:$0xff]
  %v215 = vld [vmem:[%s0 + $0x1f0] sm:$0xff]
  %v216 = vld [vmem:[%s0 + $0x1f8] sm:$0xff]
  %v217 = vld [vmem:[%s0 + $0x200] sm:$0xff]
  %v218 = vld [vmem:[%s0 + $0x208] sm:$0xff]
  %v219 = vld [vmem:[%s0 + $0x210] sm:$0xff]
  %v220 = vld [vmem:[%s0 + $0x218] sm:$0xff]
  %v221 = vld [vmem:[%s0 + $0x220] sm:$0xff]
  %v222 = vld [vmem:[%s0 + $0x228] sm:$0xff]
  %v223 = vld [vmem:[%s0 + $0x230] sm:$0xff]
  %v224 = vld [vmem:[%s0 + $0x238] sm:$0xff]
  %v225 = vld [vmem:[%s0 + $0x240] sm:$0xff]
  %v226 = vld [vmem:[%s0 + $0x248] sm:$0xff]
  %v227 = vld [vmem:[%s0 + $0x250] sm:$0xff]
  %v228 = vld [vmem:[%s0 + $0x258] sm:$0xff]
  %v229 = vld [vmem:[%s0 + $0x260] sm:$0xff]
  %v230 = vld [vmem:[%s0 + $0x268] sm:$0xff]
  %v231 = vld [vmem:[%s0 + $0x270] sm:$0xff]
  %v232 = vld [vmem:[%s0 + $0x278] sm:$0xff]
  %v233 = vld [vmem:[%s0 + $0x280] sm:$0xff]
  %v234 = vld [vmem:[%s0 + $0x288] sm:$0xff]
  %v235 = vld [vmem:[%s0 + $0x290] sm:$0xff]
  %v236 = vld [vmem:[%s0 + $0x298] sm:$0xff]
  %v237 = vld [vmem:[%s0 + $0x2a0] sm:$0xff]
  %v238 = vld [vmem:[%s0 + $0x2a8] sm:$0xff]
  %v239 = vld [vmem:[%s0 + $0x2b0] sm:$0xff]
  %v240 = vld [vmem:[%s0 + $0x2b8] sm:$0xff]
  %v241 = vld [vmem:[%s0 + $0x2c0] sm:$0xff]
  %v242 = vld [vmem:[%s0 + $0x2c8] sm:$0xff]
  %v243 = vld [vmem:[%s0 + $0x2d0] sm:$0xff]
  %v244 = vld [vmem:[%s0 + $0x2d8] sm:$0xff]
  %v245 = vld [vmem:[%s0 + $0x2e0] sm:$0xff]
  %v246 = vld [vmem:[%s0 + $0x2e8] sm:$0xff]
  %v247 = vld [vmem:[%s0 + $0x2f0] sm:$0xff]
  %v248 = vld [vmem:[%s0 + $0x2f8] sm:$0xff]
  %v249 = vld [vmem:[%s0 + $0x300] sm:$0xff]
  %v250 = vld [vmem:[%s0 + $0x308] sm:$0xff]
  %v251 = vld [vmem:[%s0 + $0x310] sm:$0xff]
  %v252 = vld [vmem:[%s0 + $0x318] sm:$0xff]
  %v253 = vld [vmem:[%s0 + $0x320] sm:$0xff]
  %v254 = vld [vmem:[%s0 + $0x328] sm:$0xff]
  %v255 = vld [vmem:[%s0 + $0x330] sm:$0xff]
  %v256 = vld [vmem:[%s0 + $0x338] sm:$0xff]
  %v257 = vld [vmem:[%s0 + $0x340] sm:$0xff]
  %v258 = vld [vmem:[%s0 + $0x348] sm:$0xff]
  %v259 = vld [vmem:[%s0 + $0x350] sm:$0xff]
  %v260 = vld [vmem:[%s0 + $0x358] sm:$0xff]
  %v261 = vld [vmem:[%s0 + $0x360] sm:$0xff]
  %v262 = vld [vmem:[%s0 + $0x368] sm:$0xff]
  %v263 = vld [vmem:[%s0 + $0x370] sm:$0xff]
  %v264 = vld [vmem:[%s0 + $0x378] sm:$0xff]
  %v265 = vld [vmem:[%s0 + $0x380] sm:$0xff]
  %v266 = vld [vmem:[%s0 + $0x388] sm:$0xff]
  %v267 = vld [vmem:[%s0 + $0x390] sm:$0xff]
  %v268 = vld [vmem:[%s0 + $0x398] sm:$0xff]
  %v269 = vld [vmem:[%s0 + $0x3a0] sm:$0xff]
  %v270 = vld [vmem:[%s0 + $0x3a8] sm:$0xff]
  %v271 = vld [vmem:[%s0 + $0x3b0] sm:$0xff]
  %v272 = vld [vmem:[%s0 + $0x3b8] sm:$0xff]
  %v273 = vld [vmem:[%s0 + $0x3c0] sm:$0xff]
  %v274 = vld [vmem:[%s0 + $0x3c8] sm:$0xff]
  %v275 = vld [vmem:[%s0 + $0x3d0] sm:$0xff]
  %v276 = vld [vmem:[%s0 + $0x3d8] sm:$0xff]
  %v277 = vld [vmem:[%s0 + $0x3e0] sm:$0xff]
  %v278 = vld [vmem:[%s0 + $0x3e8] sm:$0xff]
  %v279 = vld [vmem:[%s0 + $0x3f0] sm:$0xff]
  %v280 = vld [vmem:[%s0 + $0x3f8] sm:$0xff]
  %v281 = vld [vmem:[%s1] sm:$0xf]
  %v282 = vld [vmem:[%s1 + $0x4] sm:$0xf]
  %v283 = vld [vmem:[%s1 + $0x8] sm:$0xf]
  %v284 = vld [vmem:[%s1 + $0xc] sm:$0xf]
  %v285 = vld [vmem:[%s1 + $0x10] sm:$0xf]
  %v286 = vld [vmem:[%s1 + $0x14] sm:$0xf]
  %v287 = vld [vmem:[%s1 + $0x18] sm:$0xf]
  %v288 = vld [vmem:[%s1 + $0x1c] sm:$0xf]
  %v289 = vld [vmem:[%s1 + $0x20] sm:$0xf]
  %v290 = vld [vmem:[%s1 + $0x24] sm:$0xf]
  %v291 = vld [vmem:[%s1 + $0x28] sm:$0xf]
  %v292 = vld [vmem:[%s1 + $0x2c] sm:$0xf]
  %v293 = vld [vmem:[%s1 + $0x30] sm:$0xf]
  %v294 = vld [vmem:[%s1 + $0x34] sm:$0xf]
  %v295 = vld [vmem:[%s1 + $0x38] sm:$0xf]
  %v296 = vld [vmem:[%s1 + $0x3c] sm:$0xf]
  %v297 = vld [vmem:[%s1 + $0x40] sm:$0xf]
  %v298 = vld [vmem:[%s1 + $0x44] sm:$0xf]
  %v299 = vld [vmem:[%s1 + $0x48] sm:$0xf]
  %v300 = vld [vmem:[%s1 + $0x4c] sm:$0xf]
  %v301 = vld [vmem:[%s1 + $0x50] sm:$0xf]
  %v302 = vld [vmem:[%s1 + $0x54] sm:$0xf]
  %v303 = vld [vmem:[%s1 + $0x58] sm:$0xf]
  %v304 = vld [vmem:[%s1 + $0x5c] sm:$0xf]
  %v305 = vld [vmem:[%s1 + $0x60] sm:$0xf]
  %v306 = vld [vmem:[%s1 + $0x64] sm:$0xf]
  %v307 = vld [vmem:[%s1 + $0x68] sm:$0xf]
  %v308 = vld [vmem:[%s1 + $0x6c] sm:$0xf]
  %v309 = vld [vmem:[%s1 + $0x70] sm:$0xf]
  %v310 = vld [vmem:[%s1 + $0x74] sm:$0xf]
  %v311 = vld [vmem:[%s1 + $0x78] sm:$0xf]
  %v312 = vld [vmem:[%s1 + $0x7c] sm:$0xf]
  %v313 = vld [vmem:[%s1 + $0x80] sm:$0xf]
  %v314 = vld [vmem:[%s1 + $0x84] sm:$0xf]
  %v315 = vld [vmem:[%s1 + $0x88] sm:$0xf]
  %v316 = vld [vmem:[%s1 + $0x8c] sm:$0xf]
  %v317 = vld [vmem:[%s1 + $0x90] sm:$0xf]
  %v318 = vld [vmem:[%s1 + $0x94] sm:$0xf]
  %v319 = vld [vmem:[%s1 + $0x98] sm:$0xf]
  %v320 = vld [vmem:[%s1 + $0x9c] sm:$0xf]
  %v321 = vld [vmem:[%s1 + $0xa0] sm:$0xf]
  %v322 = vld [vmem:[%s1 + $0xa4] sm:$0xf]
  %v323 = vld [vmem:[%s1 + $0xa8] sm:$0xf]
  %v324 = vld [vmem:[%s1 + $0xac] sm:$0xf]
  %v325 = vld [vmem:[%s1 + $0xb0] sm:$0xf]
  %v326 = vld [vmem:[%s1 + $0xb4] sm:$0xf]
  %v327 = vld [vmem:[%s1 + $0xb8] sm:$0xf]
  %v328 = vld [vmem:[%s1 + $0xbc] sm:$0xf]
  %v329 = vld [vmem:[%s1 + $0xc0] sm:$0xf]
  %v330 = vld [vmem:[%s1 + $0xc4] sm:$0xf]
  %v331 = vld [vmem:[%s1 + $0xc8] sm:$0xf]
  %v332 = vld [vmem:[%s1 + $0xcc] sm:$0xf]
  %v333 = vld [vmem:[%s1 + $0xd0] sm:$0xf]
  %v334 = vld [vmem:[%s1 + $0xd4] sm:$0xf]
  %v335 = vld [vmem:[%s1 + $0xd8] sm:$0xf]
  %v336 = vld [vmem:[%s1 + $0xdc] sm:$0xf]
  %v337 = vld [vmem:[%s1 + $0xe0] sm:$0xf]
  %v338 = vld [vmem:[%s1 + $0xe4] sm:$0xf]
  %v339 = vld [vmem:[%s1 + $0xe8] sm:$0xf]
  %v340 = vld [vmem:[%s1 + $0xec] sm:$0xf]
  %v341 = vld [vmem:[%s1 + $0xf0] sm:$0xf]
  %v342 = vld [vmem:[%s1 + $0xf4] sm:$0xf]
  %v343 = vld [vmem:[%s1 + $0xf8] sm:$0xf]
  %v344 = vld [vmem:[%s1 + $0xfc] sm:$0xf]
  %v473 = vunpack.c.l.b16 %v153
  %v474 = vunpack.c.h.b16 %v153
  %v475 = vunpack.c.l.b16 %v154
  %v476 = vunpack.c.h.b16 %v154
  %v477 = vunpack.c.l.b16 %v155
  %v478 = vunpack.c.h.b16 %v155
  %v479 = vunpack.c.l.b16 %v156
  %v480 = vunpack.c.h.b16 %v156
  %v481 = vunpack.c.l.b16 %v157
  %v482 = vunpack.c.h.b16 %v157
  %v483 = vunpack.c.l.b16 %v158
  %v484 = vunpack.c.h.b16 %v158
  %v485 = vunpack.c.l.b16 %v159
  %v486 = vunpack.c.h.b16 %v159
  %v487 = vunpack.c.l.b16 %v160
  %v488 = vunpack.c.h.b16 %v160
  %v489 = vunpack.c.l.b16 %v161
  %v490 = vunpack.c.h.b16 %v161
  %v491 = vunpack.c.l.b16 %v162
  %v492 = vunpack.c.h.b16 %v162
  %v493 = vunpack.c.l.b16 %v163
  %v494 = vunpack.c.h.b16 %v163
  %v495 = vunpack.c.l.b16 %v164
  %v496 = vunpack.c.h.b16 %v164
  %v497 = vunpack.c.l.b16 %v165
  %v498 = vunpack.c.h.b16 %v165
  %v499 = vunpack.c.l.b16 %v166
  %v500 = vunpack.c.h.b16 %v166
  %v501 = vunpack.c.l.b16 %v167
  %v502 = vunpack.c.h.b16 %v167
  %v503 = vunpack.c.l.b16 %v168
  %v504 = vunpack.c.h.b16 %v168
  %v505 = vunpack.c.l.b16 %v169
  %v506 = vunpack.c.h.b16 %v169
  %v507 = vunpack.c.l.b16 %v170
  %v508 = vunpack.c.h.b16 %v170
  %v509 = vunpack.c.l.b16 %v171
  %v510 = vunpack.c.h.b16 %v171
  %v511 = vunpack.c.l.b16 %v172
  %v512 = vunpack.c.h.b16 %v172
  %v513 = vunpack.c.l.b16 %v173
  %v514 = vunpack.c.h.b16 %v173
  %v515 = vunpack.c.l.b16 %v174
  %v516 = vunpack.c.h.b16 %v174
  %v517 = vunpack.c.l.b16 %v175
  %v518 = vunpack.c.h.b16 %v175
  %v519 = vunpack.c.l.b16 %v176
  %v520 = vunpack.c.h.b16 %v176
  %v521 = vunpack.c.l.b16 %v177
  %v522 = vunpack.c.h.b16 %v177
  %v523 = vunpack.c.l.b16 %v178
  %v524 = vunpack.c.h.b16 %v178
  %v525 = vunpack.c.l.b16 %v179
  %v526 = vunpack.c.h.b16 %v179
  %v527 = vunpack.c.l.b16 %v180
  %v528 = vunpack.c.h.b16 %v180
  %v529 = vunpack.c.l.b16 %v181
  %v530 = vunpack.c.h.b16 %v181
  %v531 = vunpack.c.l.b16 %v182
  %v532 = vunpack.c.h.b16 %v182
  %v533 = vunpack.c.l.b16 %v183
  %v534 = vunpack.c.h.b16 %v183
  %v535 = vunpack.c.l.b16 %v184
  %v536 = vunpack.c.h.b16 %v184
  %v537 = vunpack.c.l.b16 %v185
  %v538 = vunpack.c.h.b16 %v185
  %v539 = vunpack.c.l.b16 %v186
  %v540 = vunpack.c.h.b16 %v186
  %v541 = vunpack.c.l.b16 %v187
  %v542 = vunpack.c.h.b16 %v187
  %v543 = vunpack.c.l.b16 %v188
  %v544 = vunpack.c.h.b16 %v188
  %v545 = vunpack.c.l.b16 %v189
  %v546 = vunpack.c.h.b16 %v189
  %v547 = vunpack.c.l.b16 %v190
  %v548 = vunpack.c.h.b16 %v190
  %v549 = vunpack.c.l.b16 %v191
  %v550 = vunpack.c.h.b16 %v191
  %v551 = vunpack.c.l.b16 %v192
  %v552 = vunpack.c.h.b16 %v192
  %v553 = vunpack.c.l.b16 %v193
  %v554 = vunpack.c.h.b16 %v193
  %v555 = vunpack.c.l.b16 %v194
  %v556 = vunpack.c.h.b16 %v194
  %v557 = vunpack.c.l.b16 %v195
  %v558 = vunpack.c.h.b16 %v195
  %v559 = vunpack.c.l.b16 %v196
  %v560 = vunpack.c.h.b16 %v196
  %v561 = vunpack.c.l.b16 %v197
  %v562 = vunpack.c.h.b16 %v197
  %v563 = vunpack.c.l.b16 %v198
  %v564 = vunpack.c.h.b16 %v198
  %v565 = vunpack.c.l.b16 %v199
  %v566 = vunpack.c.h.b16 %v199
  %v567 = vunpack.c.l.b16 %v200
  %v568 = vunpack.c.h.b16 %v200
  %v569 = vunpack.c.l.b16 %v201
  %v570 = vunpack.c.h.b16 %v201
  %v571 = vunpack.c.l.b16 %v202
  %v572 = vunpack.c.h.b16 %v202
  %v573 = vunpack.c.l.b16 %v203
  %v574 = vunpack.c.h.b16 %v203
  %v575 = vunpack.c.l.b16 %v204
  %v576 = vunpack.c.h.b16 %v204
  %v577 = vunpack.c.l.b16 %v205
  %v578 = vunpack.c.h.b16 %v205
  %v579 = vunpack.c.l.b16 %v206
  %v580 = vunpack.c.h.b16 %v206
  %v581 = vunpack.c.l.b16 %v207
  %v582 = vunpack.c.h.b16 %v207
  %v583 = vunpack.c.l.b16 %v208
  %v584 = vunpack.c.h.b16 %v208
  %v585 = vunpack.c.l.b16 %v209
  %v586 = vunpack.c.h.b16 %v209
  %v587 = vunpack.c.l.b16 %v210
  %v588 = vunpack.c.h.b16 %v210
  %v589 = vunpack.c.l.b16 %v211
  %v590 = vunpack.c.h.b16 %v211
  %v591 = vunpack.c.l.b16 %v212
  %v592 = vunpack.c.h.b16 %v212
  %v593 = vunpack.c.l.b16 %v213
  %v594 = vunpack.c.h.b16 %v213
  %v595 = vunpack.c.l.b16 %v214
  %v596 = vunpack.c.h.b16 %v214
  %v597 = vunpack.c.l.b16 %v215
  %v598 = vunpack.c.h.b16 %v215
  %v599 = vunpack.c.l.b16 %v216
  %v600 = vunpack.c.h.b16 %v216
  %v601 = vunpack.c.l.b16 %v217
  %v602 = vunpack.c.h.b16 %v217
  %v603 = vunpack.c.l.b16 %v218
  %v604 = vunpack.c.h.b16 %v218
  %v605 = vunpack.c.l.b16 %v219
  %v606 = vunpack.c.h.b16 %v219
  %v607 = vunpack.c.l.b16 %v220
  %v608 = vunpack.c.h.b16 %v220
  %v609 = vunpack.c.l.b16 %v221
  %v610 = vunpack.c.h.b16 %v221
  %v611 = vunpack.c.l.b16 %v222
  %v612 = vunpack.c.h.b16 %v222
  %v613 = vunpack.c.l.b16 %v223
  %v614 = vunpack.c.h.b16 %v223
  %v615 = vunpack.c.l.b16 %v224
  %v616 = vunpack.c.h.b16 %v224
  %v617 = vunpack.c.l.b16 %v225
  %v618 = vunpack.c.h.b16 %v225
  %v619 = vunpack.c.l.b16 %v226
  %v620 = vunpack.c.h.b16 %v226
  %v621 = vunpack.c.l.b16 %v227
  %v622 = vunpack.c.h.b16 %v227
  %v623 = vunpack.c.l.b16 %v228
  %v624 = vunpack.c.h.b16 %v228
  %v625 = vunpack.c.l.b16 %v229
  %v626 = vunpack.c.h.b16 %v229
  %v627 = vunpack.c.l.b16 %v230
  %v628 = vunpack.c.h.b16 %v230
  %v629 = vunpack.c.l.b16 %v231
  %v630 = vunpack.c.h.b16 %v231
  %v631 = vunpack.c.l.b16 %v232
  %v632 = vunpack.c.h.b16 %v232
  %v633 = vunpack.c.l.b16 %v233
  %v634 = vunpack.c.h.b16 %v233
  %v635 = vunpack.c.l.b16 %v234
  %v636 = vunpack.c.h.b16 %v234
  %v637 = vunpack.c.l.b16 %v235
  %v638 = vunpack.c.h.b16 %v235
  %v639 = vunpack.c.l.b16 %v236
  %v640 = vunpack.c.h.b16 %v236
  %v641 = vunpack.c.l.b16 %v237
  %v642 = vunpack.c.h.b16 %v237
  %v643 = vunpack.c.l.b16 %v238
  %v644 = vunpack.c.h.b16 %v238
  %v645 = vunpack.c.l.b16 %v239
  %v646 = vunpack.c.h.b16 %v239
  %v647 = vunpack.c.l.b16 %v240
  %v648 = vunpack.c.h.b16 %v240
  %v649 = vunpack.c.l.b16 %v241
  %v650 = vunpack.c.h.b16 %v241
  %v651 = vunpack.c.l.b16 %v242
  %v652 = vunpack.c.h.b16 %v242
  %v653 = vunpack.c.l.b16 %v243
  %v654 = vunpack.c.h.b16 %v243
  %v655 = vunpack.c.l.b16 %v244
  %v656 = vunpack.c.h.b16 %v244
  %v657 = vunpack.c.l.b16 %v245
  %v658 = vunpack.c.h.b16 %v245
  %v659 = vunpack.c.l.b16 %v246
  %v660 = vunpack.c.h.b16 %v246
  %v661 = vunpack.c.l.b16 %v247
  %v662 = vunpack.c.h.b16 %v247
  %v663 = vunpack.c.l.b16 %v248
  %v664 = vunpack.c.h.b16 %v248
  %v665 = vunpack.c.l.b16 %v249
  %v666 = vunpack.c.h.b16 %v249
  %v667 = vunpack.c.l.b16 %v250
  %v668 = vunpack.c.h.b16 %v250
  %v669 = vunpack.c.l.b16 %v251
  %v670 = vunpack.c.h.b16 %v251
  %v671 = vunpack.c.l.b16 %v252
  %v672 = vunpack.c.h.b16 %v252
  %v673 = vunpack.c.l.b16 %v253
  %v674 = vunpack.c.h.b16 %v253
  %v675 = vunpack.c.l.b16 %v254
  %v676 = vunpack.c.h.b16 %v254
  %v677 = vunpack.c.l.b16 %v255
  %v678 = vunpack.c.h.b16 %v255
  %v679 = vunpack.c.l.b16 %v256
  %v680 = vunpack.c.h.b16 %v256
  %v681 = vunpack.c.l.b16 %v257
  %v682 = vunpack.c.h.b16 %v257
  %v683 = vunpack.c.l.b16 %v258
  %v684 = vunpack.c.h.b16 %v258
  %v685 = vunpack.c.l.b16 %v259
  %v686 = vunpack.c.h.b16 %v259
  %v687 = vunpack.c.l.b16 %v260
  %v688 = vunpack.c.h.b16 %v260
  %v689 = vunpack.c.l.b16 %v261
  %v690 = vunpack.c.h.b16 %v261
  %v691 = vunpack.c.l.b16 %v262
  %v692 = vunpack.c.h.b16 %v262
  %v693 = vunpack.c.l.b16 %v263
  %v694 = vunpack.c.h.b16 %v263
  %v695 = vunpack.c.l.b16 %v264
  %v696 = vunpack.c.h.b16 %v264
  %v697 = vunpack.c.l.b16 %v265
  %v698 = vunpack.c.h.b16 %v265
  %v699 = vunpack.c.l.b16 %v266
  %v700 = vunpack.c.h.b16 %v266
  %v701 = vunpack.c.l.b16 %v267
  %v702 = vunpack.c.h.b16 %v267
  %v703 = vunpack.c.l.b16 %v268
  %v704 = vunpack.c.h.b16 %v268
  %v705 = vunpack.c.l.b16 %v269
  %v706 = vunpack.c.h.b16 %v269
  %v707 = vunpack.c.l.b16 %v270
  %v708 = vunpack.c.h.b16 %v270
  %v709 = vunpack.c.l.b16 %v271
  %v710 = vunpack.c.h.b16 %v271
  %v711 = vunpack.c.l.b16 %v272
  %v712 = vunpack.c.h.b16 %v272
  %v713 = vunpack.c.l.b16 %v273
  %v714 = vunpack.c.h.b16 %v273
  %v715 = vunpack.c.l.b16 %v274
  %v716 = vunpack.c.h.b16 %v274
  %v717 = vunpack.c.l.b16 %v275
  %v718 = vunpack.c.h.b16 %v275
  %v719 = vunpack.c.l.b16 %v276
  %v720 = vunpack.c.h.b16 %v276
  %v721 = vunpack.c.l.b16 %v277
  %v722 = vunpack.c.h.b16 %v277
  %v723 = vunpack.c.l.b16 %v278
  %v724 = vunpack.c.h.b16 %v278
  %v725 = vunpack.c.l.b16 %v279
  %v726 = vunpack.c.h.b16 %v279
  %v727 = vunpack.c.l.b16 %v280
  %v728 = vunpack.c.h.b16 %v280
  %v729 = vpack.c.b16 %v477, %v473
  %v730 = vpack.c.b16 %v478, %v474
  %v731 = vpack.c.b16 %v479, %v475
  %v732 = vpack.c.b16 %v480, %v476
  %v733 = vpack.c.b16 %v485, %v481
  %v734 = vpack.c.b16 %v486, %v482
  %v735 = vpack.c.b16 %v487, %v483
  %v736 = vpack.c.b16 %v488, %v484
  %v737 = vpack.c.b16 %v493, %v489
  %v738 = vpack.c.b16 %v494, %v490
  %v739 = vpack.c.b16 %v495, %v491
  %v740 = vpack.c.b16 %v496, %v492
  %v741 = vpack.c.b16 %v501, %v497
  %v742 = vpack.c.b16 %v502, %v498
  %v743 = vpack.c.b16 %v503, %v499
  %v744 = vpack.c.b16 %v504, %v500
  %v745 = vpack.c.b16 %v509, %v505
  %v746 = vpack.c.b16 %v510, %v506
  %v747 = vpack.c.b16 %v511, %v507
  %v748 = vpack.c.b16 %v512, %v508
  %v749 = vpack.c.b16 %v517, %v513
  %v750 = vpack.c.b16 %v518, %v514
  %v751 = vpack.c.b16 %v519, %v515
  %v752 = vpack.c.b16 %v520, %v516
  %v753 = vpack.c.b16 %v525, %v521
  %v754 = vpack.c.b16 %v526, %v522
  %v755 = vpack.c.b16 %v527, %v523
  %v756 = vpack.c.b16 %v528, %v524
  %v757 = vpack.c.b16 %v533, %v529
  %v758 = vpack.c.b16 %v534, %v530
  %v759 = vpack.c.b16 %v535, %v531
  %v760 = vpack.c.b16 %v536, %v532
  %v761 = vpack.c.b16 %v541, %v537
  %v762 = vpack.c.b16 %v542, %v538
  %v763 = vpack.c.b16 %v543, %v539
  %v764 = vpack.c.b16 %v544, %v540
  %v765 = vpack.c.b16 %v549, %v545
  %v766 = vpack.c.b16 %v550, %v546
  %v767 = vpack.c.b16 %v551, %v547
  %v768 = vpack.c.b16 %v552, %v548
  %v769 = vpack.c.b16 %v557, %v553
  %v770 = vpack.c.b16 %v558, %v554
  %v771 = vpack.c.b16 %v559, %v555
  %v772 = vpack.c.b16 %v560, %v556
  %v773 = vpack.c.b16 %v565, %v561
  %v774 = vpack.c.b16 %v566, %v562
  %v775 = vpack.c.b16 %v567, %v563
  %v776 = vpack.c.b16 %v568, %v564
  %v777 = vpack.c.b16 %v573, %v569
  %v778 = vpack.c.b16 %v574, %v570
  %v779 = vpack.c.b16 %v575, %v571
  %v780 = vpack.c.b16 %v576, %v572
  %v781 = vpack.c.b16 %v581, %v577
  %v782 = vpack.c.b16 %v582, %v578
  %v783 = vpack.c.b16 %v583, %v579
  %v784 = vpack.c.b16 %v584, %v580
  %v785 = vpack.c.b16 %v589, %v585
  %v786 = vpack.c.b16 %v590, %v586
  %v787 = vpack.c.b16 %v591, %v587
  %v788 = vpack.c.b16 %v592, %v588
  %v789 = vpack.c.b16 %v597, %v593
  %v790 = vpack.c.b16 %v598, %v594
  %v791 = vpack.c.b16 %v599, %v595
  %v792 = vpack.c.b16 %v600, %v596
  %v793 = vpack.c.b16 %v605, %v601
  %v794 = vpack.c.b16 %v606, %v602
  %v795 = vpack.c.b16 %v607, %v603
  %v796 = vpack.c.b16 %v608, %v604
  %v797 = vpack.c.b16 %v613, %v609
  %v798 = vpack.c.b16 %v614, %v610
  %v799 = vpack.c.b16 %v615, %v611
  %v800 = vpack.c.b16 %v616, %v612
  %v801 = vpack.c.b16 %v621, %v617
  %v802 = vpack.c.b16 %v622, %v618
  %v803 = vpack.c.b16 %v623, %v619
  %v804 = vpack.c.b16 %v624, %v620
  %v805 = vpack.c.b16 %v629, %v625
  %v806 = vpack.c.b16 %v630, %v626
  %v807 = vpack.c.b16 %v631, %v627
  %v808 = vpack.c.b16 %v632, %v628
  %v809 = vpack.c.b16 %v637, %v633
  %v810 = vpack.c.b16 %v638, %v634
  %v811 = vpack.c.b16 %v639, %v635
  %v812 = vpack.c.b16 %v640, %v636
  %v813 = vpack.c.b16 %v645, %v641
  %v814 = vpack.c.b16 %v646, %v642
  %v815 = vpack.c.b16 %v647, %v643
  %v816 = vpack.c.b16 %v648, %v644
  %v817 = vpack.c.b16 %v653, %v649
  %v818 = vpack.c.b16 %v654, %v650
  %v819 = vpack.c.b16 %v655, %v651
  %v820 = vpack.c.b16 %v656, %v652
  %v821 = vpack.c.b16 %v661, %v657
  %v822 = vpack.c.b16 %v662, %v658
  %v823 = vpack.c.b16 %v663, %v659
  %v824 = vpack.c.b16 %v664, %v660
  %v825 = vpack.c.b16 %v669, %v665
  %v826 = vpack.c.b16 %v670, %v666
  %v827 = vpack.c.b16 %v671, %v667
  %v828 = vpack.c.b16 %v672, %v668
  %v829 = vpack.c.b16 %v677, %v673
  %v830 = vpack.c.b16 %v678, %v674
  %v831 = vpack.c.b16 %v679, %v675
  %v832 = vpack.c.b16 %v680, %v676
  %v833 = vpack.c.b16 %v685, %v681
  %v834 = vpack.c.b16 %v686, %v682
  %v835 = vpack.c.b16 %v687, %v683
  %v836 = vpack.c.b16 %v688, %v684
  %v837 = vpack.c.b16 %v693, %v689
  %v838 = vpack.c.b16 %v694, %v690
  %v839 = vpack.c.b16 %v695, %v691
  %v840 = vpack.c.b16 %v696, %v692
  %v841 = vpack.c.b16 %v701, %v697
  %v842 = vpack.c.b16 %v702, %v698
  %v843 = vpack.c.b16 %v703, %v699
  %v844 = vpack.c.b16 %v704, %v700
  %v845 = vpack.c.b16 %v709, %v705
  %v846 = vpack.c.b16 %v710, %v706
  %v847 = vpack.c.b16 %v711, %v707
  %v848 = vpack.c.b16 %v712, %v708
  %v849 = vpack.c.b16 %v717, %v713
  %v850 = vpack.c.b16 %v718, %v714
  %v851 = vpack.c.b16 %v719, %v715
  %v852 = vpack.c.b16 %v720, %v716
  %v853 = vpack.c.b16 %v725, %v721
  %v854 = vpack.c.b16 %v726, %v722
  %v855 = vpack.c.b16 %v727, %v723
  %v856 = vpack.c.b16 %v728, %v724
  %v1049 = vunpack.c.l.b16 %v281
  %v1050 = vunpack.c.l.b16 %v282
  %v1051 = vunpack.c.l.b16 %v283
  %v1052 = vunpack.c.l.b16 %v284
  %v1053 = vunpack.c.l.b16 %v285
  %v1054 = vunpack.c.l.b16 %v286
  %v1055 = vunpack.c.l.b16 %v287
  %v1056 = vunpack.c.l.b16 %v288
  %v1057 = vunpack.c.l.b16 %v289
  %v1058 = vunpack.c.l.b16 %v290
  %v1059 = vunpack.c.l.b16 %v291
  %v1060 = vunpack.c.l.b16 %v292
  %v1061 = vunpack.c.l.b16 %v293
  %v1062 = vunpack.c.l.b16 %v294
  %v1063 = vunpack.c.l.b16 %v295
  %v1064 = vunpack.c.l.b16 %v296
  %v1065 = vunpack.c.l.b16 %v297
  %v1066 = vunpack.c.l.b16 %v298
  %v1067 = vunpack.c.l.b16 %v299
  %v1068 = vunpack.c.l.b16 %v300
  %v1069 = vunpack.c.l.b16 %v301
  %v1070 = vunpack.c.l.b16 %v302
  %v1071 = vunpack.c.l.b16 %v303
  %v1072 = vunpack.c.l.b16 %v304
  %v1073 = vunpack.c.l.b16 %v305
  %v1074 = vunpack.c.l.b16 %v306
  %v1075 = vunpack.c.l.b16 %v307
  %v1076 = vunpack.c.l.b16 %v308
  %v1077 = vunpack.c.l.b16 %v309
  %v1078 = vunpack.c.l.b16 %v310
  %v1079 = vunpack.c.l.b16 %v311
  %v1080 = vunpack.c.l.b16 %v312
  %v1081 = vunpack.c.l.b16 %v313
  %v1082 = vunpack.c.l.b16 %v314
  %v1083 = vunpack.c.l.b16 %v315
  %v1084 = vunpack.c.l.b16 %v316
  %v1085 = vunpack.c.l.b16 %v317
  %v1086 = vunpack.c.l.b16 %v318
  %v1087 = vunpack.c.l.b16 %v319
  %v1088 = vunpack.c.l.b16 %v320
  %v1089 = vunpack.c.l.b16 %v321
  %v1090 = vunpack.c.l.b16 %v322
  %v1091 = vunpack.c.l.b16 %v323
  %v1092 = vunpack.c.l.b16 %v324
  %v1093 = vunpack.c.l.b16 %v325
  %v1094 = vunpack.c.l.b16 %v326
  %v1095 = vunpack.c.l.b16 %v327
  %v1096 = vunpack.c.l.b16 %v328
  %v1097 = vunpack.c.l.b16 %v329
  %v1098 = vunpack.c.l.b16 %v330
  %v1099 = vunpack.c.l.b16 %v331
  %v1100 = vunpack.c.l.b16 %v332
  %v1101 = vunpack.c.l.b16 %v333
  %v1102 = vunpack.c.l.b16 %v334
  %v1103 = vunpack.c.l.b16 %v335
  %v1104 = vunpack.c.l.b16 %v336
  %v1105 = vunpack.c.l.b16 %v337
  %v1106 = vunpack.c.l.b16 %v338
  %v1107 = vunpack.c.l.b16 %v339
  %v1108 = vunpack.c.l.b16 %v340
  %v1109 = vunpack.c.l.b16 %v341
  %v1110 = vunpack.c.l.b16 %v342
  %v1111 = vunpack.c.l.b16 %v343
  %v1112 = vunpack.c.l.b16 %v344
  %v1113 = vpack.c.b16 %v1050, %v1049
  %v1114 = vpack.c.b16 %v1052, %v1051
  %v1115 = vpack.c.b16 %v1054, %v1053
  %v1116 = vpack.c.b16 %v1056, %v1055
  %v1117 = vpack.c.b16 %v1058, %v1057
  %v1118 = vpack.c.b16 %v1060, %v1059
  %v1119 = vpack.c.b16 %v1062, %v1061
  %v1120 = vpack.c.b16 %v1064, %v1063
  %v1121 = vpack.c.b16 %v1066, %v1065
  %v1122 = vpack.c.b16 %v1068, %v1067
  %v1123 = vpack.c.b16 %v1070, %v1069
  %v1124 = vpack.c.b16 %v1072, %v1071
  %v1125 = vpack.c.b16 %v1074, %v1073
  %v1126 = vpack.c.b16 %v1076, %v1075
  %v1127 = vpack.c.b16 %v1078, %v1077
  %v1128 = vpack.c.b16 %v1080, %v1079
  %v1129 = vpack.c.b16 %v1082, %v1081
  %v1130 = vpack.c.b16 %v1084, %v1083
  %v1131 = vpack.c.b16 %v1086, %v1085
  %v1132 = vpack.c.b16 %v1088, %v1087
  %v1133 = vpack.c.b16 %v1090, %v1089
  %v1134 = vpack.c.b16 %v1092, %v1091
  %v1135 = vpack.c.b16 %v1094, %v1093
  %v1136 = vpack.c.b16 %v1096, %v1095
  %v1137 = vpack.c.b16 %v1098, %v1097
  %v1138 = vpack.c.b16 %v1100, %v1099
  %v1139 = vpack.c.b16 %v1102, %v1101
  %v1140 = vpack.c.b16 %v1104, %v1103
  %v1141 = vpack.c.b16 %v1106, %v1105
  %v1142 = vpack.c.b16 %v1108, %v1107
  %v1143 = vpack.c.b16 %v1110, %v1109
  %v1144 = vpack.c.b16 %v1112, %v1111
  %1177 = vmatprep.subr.bf16.mxu0 0
  %1178 = vmatpush1.bf16.msra.mxu0 %v1113
  %1179 = vmatprep.subr.bf16.mxu0 0
  %1180 = vmatpush1.bf16.msra.mxu0 %v1114
  %1181 = vmatprep.subr.bf16.mxu0 0
  %1182 = vmatpush1.bf16.msra.mxu0 %v1115
  %1183 = vmatprep.subr.bf16.mxu0 0
  %1184 = vmatpush1.bf16.msra.mxu0 %v1116
  %1185 = vmatprep.subr.bf16.mxu0 0
  %1186 = vmatpush1.bf16.msra.mxu0 %v1117
  %1187 = vmatprep.subr.bf16.mxu0 0
  %1188 = vmatpush1.bf16.msra.mxu0 %v1118
  %1189 = vmatprep.subr.bf16.mxu0 0
  %1190 = vmatpush1.bf16.msra.mxu0 %v1119
  %1191 = vmatprep.subr.bf16.mxu0 0
  %1192 = vmatpush1.bf16.msra.mxu0 %v1120
  %1193 = vmatprep.subr.bf16.mxu0 0
  %1194 = vmatpush1.bf16.msra.mxu0 %v1121
  %1195 = vmatprep.subr.bf16.mxu0 0
  %1196 = vmatpush1.bf16.msra.mxu0 %v1122
  %1197 = vmatprep.subr.bf16.mxu0 0
  %1198 = vmatpush1.bf16.msra.mxu0 %v1123
  %1199 = vmatprep.subr.bf16.mxu0 0
  %1200 = vmatpush1.bf16.msra.mxu0 %v1124
  %1201 = vmatprep.subr.bf16.mxu0 0
  %1202 = vmatpush1.bf16.msra.mxu0 %v1125
  %1203 = vmatprep.subr.bf16.mxu0 0
  %1204 = vmatpush1.bf16.msra.mxu0 %v1126
  %1205 = vmatprep.subr.bf16.mxu0 0
  %1206 = vmatpush1.bf16.msra.mxu0 %v1127
  %1207 = vmatprep.subr.bf16.mxu0 0
  %1208 = vmatpush1.bf16.msra.mxu0 %v1128
  %1209 = vmatprep.mubr.bf16.mxu0 %v730
  %1210 = vmatmul.mubr.bf16.gmra.mrb[0].mxu0 %v729
  %v1211 = vpop.f32.mrb[0].mxu0
  %v1212 = vadd.f32 0.0, %v1211
  %v1213 = vpop.f32.mrb[0].mxu0
  %v1214 = vpop.f32.mrb[0].mxu0
  %v1215 = vadd.f32 0.0, %v1214
  %v1216 = vpop.f32.mrb[0].mxu0
  %1217 = vmatprep.mubr.bf16.mxu0 %v734
  %1218 = vmatmul.mubr.bf16.gmra.mrb[0].mxu0 %v733
  %v1219 = vpop.f32.mrb[0].mxu0
  %v1220 = vadd.f32 0.0, %v1219
  %v1221 = vpop.f32.mrb[0].mxu0
  %v1222 = vpop.f32.mrb[0].mxu0
  %v1223 = vadd.f32 0.0, %v1222
  %v1224 = vpop.f32.mrb[0].mxu0
  %1225 = vmatprep.mubr.bf16.mxu0 %v738
  %1226 = vmatmul.mubr.bf16.gmra.mrb[0].mxu0 %v737
  %v1227 = vpop.f32.mrb[0].mxu0
  %v1228 = vadd.f32 0.0, %v1227
  %v1229 = vpop.f32.mrb[0].mxu0
  %v1230 = vpop.f32.mrb[0].mxu0
  %v1231 = vadd.f32 0.0, %v1230
  %v1232 = vpop.f32.mrb[0].mxu0
  %1233 = vmatprep.mubr.bf16.mxu0 %v742
  %1234 = vmatmul.mubr.bf16.gmra.mrb[0].mxu0 %v741
  %v1235 = vpop.f32.mrb[0].mxu0
  %v1236 = vadd.f32 0.0, %v1235
  %v1237 = vpop.f32.mrb[0].mxu0
  %v1238 = vpop.f32.mrb[0].mxu0
  %v1239 = vadd.f32 0.0, %v1238
  %v1240 = vpop.f32.mrb[0].mxu0
  %1241 = vmatprep.mubr.bf16.mxu0 %v746
  %1242 = vmatmul.mubr.bf16.gmra.mrb[0].mxu0 %v745
  %v1243 = vpop.f32.mrb[0].mxu0
  %v1244 = vadd.f32 0.0, %v1243
  %v1245 = vpop.f32.mrb[0].mxu0
  %v1246 = vpop.f32.mrb[0].mxu0
  %v1247 = vadd.f32 0.0, %v1246
  %v1248 = vpop.f32.mrb[0].mxu0
  %1249 = vmatprep.mubr.bf16.mxu0 %v750
  %1250 = vmatmul.mubr.bf16.gmra.mrb[0].mxu0 %v749
  %v1251 = vpop.f32.mrb[0].mxu0
  %v1252 = vadd.f32 0.0, %v1251
  %v1253 = vpop.f32.mrb[0].mxu0
  %v1254 = vpop.f32.mrb[0].mxu0
  %v1255 = vadd.f32 0.0, %v1254
  %v1256 = vpop.f32.mrb[0].mxu0
  %1257 = vmatprep.mubr.bf16.mxu0 %v754
  %1258 = vmatmul.mubr.bf16.gmra.mrb[0].mxu0 %v753
  %v1259 = vpop.f32.mrb[0].mxu0
  %v1260 = vadd.f32 0.0, %v1259
  %v1261 = vpop.f32.mrb[0].mxu0
  %v1262 = vpop.f32.mrb[0].mxu0
  %v1263 = vadd.f32 0.0, %v1262
  %v1264 = vpop.f32.mrb[0].mxu0
  %1265 = vmatprep.mubr.bf16.mxu0 %v758
  %1266 = vmatmul.mubr.bf16.gmra.mrb[0].mxu0 %v757
  %v1267 = vpop.f32.mrb[0].mxu0
  %v1268 = vadd.f32 0.0, %v1267
  %v1269 = vpop.f32.mrb[0].mxu0
  %v1270 = vpop.f32.mrb[0].mxu0
  %v1271 = vadd.f32 0.0, %v1270
  %v1272 = vpop.f32.mrb[0].mxu0
  %1273 = vmatprep.mubr.bf16.mxu0 %v762
  %1274 = vmatmul.mubr.bf16.gmra.mrb[0].mxu0 %v761
  %v1275 = vpop.f32.mrb[0].mxu0
  %v1276 = vadd.f32 0.0, %v1275
  %v1277 = vpop.f32.mrb[0].mxu0
  %v1278 = vpop.f32.mrb[0].mxu0
  %v1279 = vadd.f32 0.0, %v1278
  %v1280 = vpop.f32.mrb[0].mxu0
  %1281 = vmatprep.mubr.bf16.mxu0 %v766
  %1282 = vmatmul.mubr.bf16.gmra.mrb[0].mxu0 %v765
  %v1283 = vpop.f32.mrb[0].mxu0
  %v1284 = vadd.f32 0.0, %v1283
  %v1285 = vpop.f32.mrb[0].mxu0
  %v1286 = vpop.f32.mrb[0].mxu0
  %v1287 = vadd.f32 0.0, %v1286
  %v1288 = vpop.f32.mrb[0].mxu0
  %1289 = vmatprep.mubr.bf16.mxu0 %v770
  %1290 = vmatmul.mubr.bf16.gmra.mrb[0].mxu0 %v769
  %v1291 = vpop.f32.mrb[0].mxu0
  %v1292 = vadd.f32 0.0, %v1291
  %v1293 = vpop.f32.mrb[0].mxu0
  %v1294 = vpop.f32.mrb[0].mxu0
  %v1295 = vadd.f32 0.0, %v1294
  %v1296 = vpop.f32.mrb[0].mxu0
  %1297 = vmatprep.mubr.bf16.mxu0 %v774
  %1298 = vmatmul.mubr.bf16.gmra.mrb[0].mxu0 %v773
  %v1299 = vpop.f32.mrb[0].mxu0
  %v1300 = vadd.f32 0.0, %v1299
  %v1301 = vpop.f32.mrb[0].mxu0
  %v1302 = vpop.f32.mrb[0].mxu0
  %v1303 = vadd.f32 0.0, %v1302
  %v1304 = vpop.f32.mrb[0].mxu0
  %1305 = vmatprep.mubr.bf16.mxu0 %v778
  %1306 = vmatmul.mubr.bf16.gmra.mrb[0].mxu0 %v777
  %v1307 = vpop.f32.mrb[0].mxu0
  %v1308 = vadd.f32 0.0, %v1307
  %v1309 = vpop.f32.mrb[0].mxu0
  %v1310 = vpop.f32.mrb[0].mxu0
  %v1311 = vadd.f32 0.0, %v1310
  %v1312 = vpop.f32.mrb[0].mxu0
  %1313 = vmatprep.mubr.bf16.mxu0 %v782
  %1314 = vmatmul.mubr.bf16.gmra.mrb[0].mxu0 %v781
  %v1315 = vpop.f32.mrb[0].mxu0
  %v1316 = vadd.f32 0.0, %v1315
  %v1317 = vpop.f32.mrb[0].mxu0
  %v1318 = vpop.f32.mrb[0].mxu0
  %v1319 = vadd.f32 0.0, %v1318
  %v1320 = vpop.f32.mrb[0].mxu0
  %1321 = vmatprep.mubr.bf16.mxu0 %v786
  %1322 = vmatmul.mubr.bf16.gmra.mrb[0].mxu0 %v785
  %v1323 = vpop.f32.mrb[0].mxu0
  %v1324 = vadd.f32 0.0, %v1323
  %v1325 = vpop.f32.mrb[0].mxu0
  %v1326 = vpop.f32.mrb[0].mxu0
  %v1327 = vadd.f32 0.0, %v1326
  %v1328 = vpop.f32.mrb[0].mxu0
  %1329 = vmatprep.mubr.bf16.mxu0 %v790
  %1330 = vmatmul.mubr.bf16.gmra.mrb[0].mxu0 %v789
  %v1331 = vpop.f32.mrb[0].mxu0
  %v1332 = vadd.f32 0.0, %v1331
  %v1333 = vpop.f32.mrb[0].mxu0
  %v1334 = vpop.f32.mrb[0].mxu0
  %v1335 = vadd.f32 0.0, %v1334
  %v1336 = vpop.f32.mrb[0].mxu0
  %1337 = vmatprep.mubr.bf16.mxu0 %v794
  %1338 = vmatmul.mubr.bf16.gmra.mrb[0].mxu0 %v793
  %v1339 = vpop.f32.mrb[0].mxu0
  %v1340 = vadd.f32 0.0, %v1339
  %v1341 = vpop.f32.mrb[0].mxu0
  %v1342 = vpop.f32.mrb[0].mxu0
  %v1343 = vadd.f32 0.0, %v1342
  %v1344 = vpop.f32.mrb[0].mxu0
  %1345 = vmatprep.mubr.bf16.mxu0 %v798
  %1346 = vmatmul.mubr.bf16.gmra.mrb[0].mxu0 %v797
  %v1347 = vpop.f32.mrb[0].mxu0
  %v1348 = vadd.f32 0.0, %v1347
  %v1349 = vpop.f32.mrb[0].mxu0
  %v1350 = vpop.f32.mrb[0].mxu0
  %v1351 = vadd.f32 0.0, %v1350
  %v1352 = vpop.f32.mrb[0].mxu0
  %1353 = vmatprep.mubr.bf16.mxu0 %v802
  %1354 = vmatmul.mubr.bf16.gmra.mrb[0].mxu0 %v801
  %v1355 = vpop.f32.mrb[0].mxu0
  %v1356 = vadd.f32 0.0, %v1355
  %v1357 = vpop.f32.mrb[0].mxu0
  %v1358 = vpop.f32.mrb[0].mxu0
  %v1359 = vadd.f32 0.0, %v1358
  %v1360 = vpop.f32.mrb[0].mxu0
  %1361 = vmatprep.mubr.bf16.mxu0 %v806
  %1362 = vmatmul.mubr.bf16.gmra.mrb[0].mxu0 %v805
  %v1363 = vpop.f32.mrb[0].mxu0
  %v1364 = vadd.f32 0.0, %v1363
  %v1365 = vpop.f32.mrb[0].mxu0
  %v1366 = vpop.f32.mrb[0].mxu0
  %v1367 = vadd.f32 0.0, %v1366
  %v1368 = vpop.f32.mrb[0].mxu0
  %1369 = vmatprep.mubr.bf16.mxu0 %v810
  %1370 = vmatmul.mubr.bf16.gmra.mrb[0].mxu0 %v809
  %v1371 = vpop.f32.mrb[0].mxu0
  %v1372 = vadd.f32 0.0, %v1371
  %v1373 = vpop.f32.mrb[0].mxu0
  %v1374 = vpop.f32.mrb[0].mxu0
  %v1375 = vadd.f32 0.0, %v1374
  %v1376 = vpop.f32.mrb[0].mxu0
  %1377 = vmatprep.mubr.bf16.mxu0 %v814
  %1378 = vmatmul.mubr.bf16.gmra.mrb[0].mxu0 %v813
  %v1379 = vpop.f32.mrb[0].mxu0
  %v1380 = vadd.f32 0.0, %v1379
  %v1381 = vpop.f32.mrb[0].mxu0
  %v1382 = vpop.f32.mrb[0].mxu0
  %v1383 = vadd.f32 0.0, %v1382
  %v1384 = vpop.f32.mrb[0].mxu0
  %1385 = vmatprep.mubr.bf16.mxu0 %v818
  %1386 = vmatmul.mubr.bf16.gmra.mrb[0].mxu0 %v817
  %v1387 = vpop.f32.mrb[0].mxu0
  %v1388 = vadd.f32 0.0, %v1387
  %v1389 = vpop.f32.mrb[0].mxu0
  %v1390 = vpop.f32.mrb[0].mxu0
  %v1391 = vadd.f32 0.0, %v1390
  %v1392 = vpop.f32.mrb[0].mxu0
  %1393 = vmatprep.mubr.bf16.mxu0 %v822
  %1394 = vmatmul.mubr.bf16.gmra.mrb[0].mxu0 %v821
  %v1395 = vpop.f32.mrb[0].mxu0
  %v1396 = vadd.f32 0.0, %v1395
  %v1397 = vpop.f32.mrb[0].mxu0
  %v1398 = vpop.f32.mrb[0].mxu0
  %v1399 = vadd.f32 0.0, %v1398
  %v1400 = vpop.f32.mrb[0].mxu0
  %1401 = vmatprep.mubr.bf16.mxu0 %v826
  %1402 = vmatmul.mubr.bf16.gmra.mrb[0].mxu0 %v825
  %v1403 = vpop.f32.mrb[0].mxu0
  %v1404 = vadd.f32 0.0, %v1403
  %v1405 = vpop.f32.mrb[0].mxu0
  %v1406 = vpop.f32.mrb[0].mxu0
  %v1407 = vadd.f32 0.0, %v1406
  %v1408 = vpop.f32.mrb[0].mxu0
  %1409 = vmatprep.mubr.bf16.mxu0 %v830
  %1410 = vmatmul.mubr.bf16.gmra.mrb[0].mxu0 %v829
  %v1411 = vpop.f32.mrb[0].mxu0
  %v1412 = vadd.f32 0.0, %v1411
  %v1413 = vpop.f32.mrb[0].mxu0
  %v1414 = vpop.f32.mrb[0].mxu0
  %v1415 = vadd.f32 0.0, %v1414
  %v1416 = vpop.f32.mrb[0].mxu0
  %1417 = vmatprep.mubr.bf16.mxu0 %v834
  %1418 = vmatmul.mubr.bf16.gmra.mrb[0].mxu0 %v833
  %v1419 = vpop.f32.mrb[0].mxu0
  %v1420 = vadd.f32 0.0, %v1419
  %v1421 = vpop.f32.mrb[0].mxu0
  %v1422 = vpop.f32.mrb[0].mxu0
  %v1423 = vadd.f32 0.0, %v1422
  %v1424 = vpop.f32.mrb[0].mxu0
  %1425 = vmatprep.mubr.bf16.mxu0 %v838
  %1426 = vmatmul.mubr.bf16.gmra.mrb[0].mxu0 %v837
  %v1427 = vpop.f32.mrb[0].mxu0
  %v1428 = vadd.f32 0.0, %v1427
  %v1429 = vpop.f32.mrb[0].mxu0
  %v1430 = vpop.f32.mrb[0].mxu0
  %v1431 = vadd.f32 0.0, %v1430
  %v1432 = vpop.f32.mrb[0].mxu0
  %1433 = vmatprep.mubr.bf16.mxu0 %v842
  %1434 = vmatmul.mubr.bf16.gmra.mrb[0].mxu0 %v841
  %v1435 = vpop.f32.mrb[0].mxu0
  %v1436 = vadd.f32 0.0, %v1435
  %v1437 = vpop.f32.mrb[0].mxu0
  %v1438 = vpop.f32.mrb[0].mxu0
  %v1439 = vadd.f32 0.0, %v1438
  %v1440 = vpop.f32.mrb[0].mxu0
  %1441 = vmatprep.mubr.bf16.mxu0 %v846
  %1442 = vmatmul.mubr.bf16.gmra.mrb[0].mxu0 %v845
  %v1443 = vpop.f32.mrb[0].mxu0
  %v1444 = vadd.f32 0.0, %v1443
  %v1445 = vpop.f32.mrb[0].mxu0
  %v1446 = vpop.f32.mrb[0].mxu0
  %v1447 = vadd.f32 0.0, %v1446
  %v1448 = vpop.f32.mrb[0].mxu0
  %1449 = vmatprep.mubr.bf16.mxu0 %v850
  %1450 = vmatmul.mubr.bf16.gmra.mrb[0].mxu0 %v849
  %v1451 = vpop.f32.mrb[0].mxu0
  %v1452 = vadd.f32 0.0, %v1451
  %v1453 = vpop.f32.mrb[0].mxu0
  %v1454 = vpop.f32.mrb[0].mxu0
  %v1455 = vadd.f32 0.0, %v1454
  %v1456 = vpop.f32.mrb[0].mxu0
  %1457 = vmatprep.mubr.bf16.mxu0 %v854
  %1458 = vmatmul.mubr.bf16.gmra.mrb[0].mxu0 %v853
  %v1459 = vpop.f32.mrb[0].mxu0
  %v1460 = vadd.f32 0.0, %v1459
  %v1461 = vpop.f32.mrb[0].mxu0
  %v1462 = vpop.f32.mrb[0].mxu0
  %v1463 = vadd.f32 0.0, %v1462
  %v1464 = vpop.f32.mrb[0].mxu0
  %1465 = vdwg.mxu0
  %1466 = vmatprep.subr.bf16.mxu0 0
  %1467 = vmatpush1.bf16.msra.mxu0 %v1129
  %1468 = vmatprep.subr.bf16.mxu0 0
  %1469 = vmatpush1.bf16.msra.mxu0 %v1130
  %1470 = vmatprep.subr.bf16.mxu0 0
  %1471 = vmatpush1.bf16.msra.mxu0 %v1131
  %1472 = vmatprep.subr.bf16.mxu0 0
  %1473 = vmatpush1.bf16.msra.mxu0 %v1132
  %1474 = vmatprep.subr.bf16.mxu0 0
  %1475 = vmatpush1.bf16.msra.mxu0 %v1133
  %1476 = vmatprep.subr.bf16.mxu0 0
  %1477 = vmatpush1.bf16.msra.mxu0 %v1134
  %1478 = vmatprep.subr.bf16.mxu0 0
  %1479 = vmatpush1.bf16.msra.mxu0 %v1135
  %1480 = vmatprep.subr.bf16.mxu0 0
  %1481 = vmatpush1.bf16.msra.mxu0 %v1136
  %1482 = vmatprep.subr.bf16.mxu0 0
  %1483 = vmatpush1.bf16.msra.mxu0 %v1137
  %1484 = vmatprep.subr.bf16.mxu0 0
  %1485 = vmatpush1.bf16.msra.mxu0 %v1138
  %1486 = vmatprep.subr.bf16.mxu0 0
  %1487 = vmatpush1.bf16.msra.mxu0 %v1139
  %1488 = vmatprep.subr.bf16.mxu0 0
  %1489 = vmatpush1.bf16.msra.mxu0 %v1140
  %1490 = vmatprep.subr.bf16.mxu0 0
  %1491 = vmatpush1.bf16.msra.mxu0 %v1141
  %1492 = vmatprep.subr.bf16.mxu0 0
  %1493 = vmatpush1.bf16.msra.mxu0 %v1142
  %1494 = vmatprep.subr.bf16.mxu0 0
  %1495 = vmatpush1.bf16.msra.mxu0 %v1143
  %1496 = vmatprep.subr.bf16.mxu0 0
  %1497 = vmatpush1.bf16.msra.mxu0 %v1144
  %1498 = vmatprep.mubr.bf16.mxu0 %v732
  %1499 = vmatmul.mubr.bf16.gmra.mrb[0].mxu0 %v731
  %v1500 = vpop.f32.mrb[0].mxu0
  %v1501 = vadd.f32 %v1212, %v1500
  %v1502 = vpop.f32.mrb[0].mxu0
  %v1503 = vpop.f32.mrb[0].mxu0
  %v1504 = vadd.f32 %v1215, %v1503
  %v1505 = vpop.f32.mrb[0].mxu0
  %1506 = vmatprep.mubr.bf16.mxu0 %v736
  %1507 = vmatmul.mubr.bf16.gmra.mrb[0].mxu0 %v735
  %v1508 = vpop.f32.mrb[0].mxu0
  %v1509 = vadd.f32 %v1220, %v1508
  %v1510 = vpop.f32.mrb[0].mxu0
  %v1511 = vpop.f32.mrb[0].mxu0
  %v1512 = vadd.f32 %v1223, %v1511
  %v1513 = vpop.f32.mrb[0].mxu0
  %1514 = vmatprep.mubr.bf16.mxu0 %v740
  %1515 = vmatmul.mubr.bf16.gmra.mrb[0].mxu0 %v739
  %v1516 = vpop.f32.mrb[0].mxu0
  %v1517 = vadd.f32 %v1228, %v1516
  %v1518 = vpop.f32.mrb[0].mxu0
  %v1519 = vpop.f32.mrb[0].mxu0
  %v1520 = vadd.f32 %v1231, %v1519
  %v1521 = vpop.f32.mrb[0].mxu0
  %1522 = vmatprep.mubr.bf16.mxu0 %v744
  %1523 = vmatmul.mubr.bf16.gmra.mrb[0].mxu0 %v743
  %v1524 = vpop.f32.mrb[0].mxu0
  %v1525 = vadd.f32 %v1236, %v1524
  %v1526 = vpop.f32.mrb[0].mxu0
  %v1527 = vpop.f32.mrb[0].mxu0
  %v1528 = vadd.f32 %v1239, %v1527
  %v1529 = vpop.f32.mrb[0].mxu0
  %1530 = vmatprep.mubr.bf16.mxu0 %v748
  %1531 = vmatmul.mubr.bf16.gmra.mrb[0].mxu0 %v747
  %v1532 = vpop.f32.mrb[0].mxu0
  %v1533 = vadd.f32 %v1244, %v1532
  %v1534 = vpop.f32.mrb[0].mxu0
  %v1535 = vpop.f32.mrb[0].mxu0
  %v1536 = vadd.f32 %v1247, %v1535
  %v1537 = vpop.f32.mrb[0].mxu0
  %1538 = vmatprep.mubr.bf16.mxu0 %v752
  %1539 = vmatmul.mubr.bf16.gmra.mrb[0].mxu0 %v751
  %v1540 = vpop.f32.mrb[0].mxu0
  %v1541 = vadd.f32 %v1252, %v1540
  %v1542 = vpop.f32.mrb[0].mxu0
  %v1543 = vpop.f32.mrb[0].mxu0
  %v1544 = vadd.f32 %v1255, %v1543
  %v1545 = vpop.f32.mrb[0].mxu0
  %1546 = vmatprep.mubr.bf16.mxu0 %v756
  %1547 = vmatmul.mubr.bf16.gmra.mrb[0].mxu0 %v755
  %v1548 = vpop.f32.mrb[0].mxu0
  %v1549 = vadd.f32 %v1260, %v1548
  %v1550 = vpop.f32.mrb[0].mxu0
  %v1551 = vpop.f32.mrb[0].mxu0
  %v1552 = vadd.f32 %v1263, %v1551
  %v1553 = vpop.f32.mrb[0].mxu0
  %1554 = vmatprep.mubr.bf16.mxu0 %v760
  %1555 = vmatmul.mubr.bf16.gmra.mrb[0].mxu0 %v759
  %v1556 = vpop.f32.mrb[0].mxu0
  %v1557 = vadd.f32 %v1268, %v1556
  %v1558 = vpop.f32.mrb[0].mxu0
  %v1559 = vpop.f32.mrb[0].mxu0
  %v1560 = vadd.f32 %v1271, %v1559
  %v1561 = vpop.f32.mrb[0].mxu0
  %1562 = vmatprep.mubr.bf16.mxu0 %v764
  %1563 = vmatmul.mubr.bf16.gmra.mrb[0].mxu0 %v763
  %v1564 = vpop.f32.mrb[0].mxu0
  %v1565 = vadd.f32 %v1276, %v1564
  %v1566 = vpop.f32.mrb[0].mxu0
  %v1567 = vpop.f32.mrb[0].mxu0
  %v1568 = vadd.f32 %v1279, %v1567
  %v1569 = vpop.f32.mrb[0].mxu0
  %1570 = vmatprep.mubr.bf16.mxu0 %v768
  %1571 = vmatmul.mubr.bf16.gmra.mrb[0].mxu0 %v767
  %v1572 = vpop.f32.mrb[0].mxu0
  %v1573 = vadd.f32 %v1284, %v1572
  %v1574 = vpop.f32.mrb[0].mxu0
  %v1575 = vpop.f32.mrb[0].mxu0
  %v1576 = vadd.f32 %v1287, %v1575
  %v1577 = vpop.f32.mrb[0].mxu0
  %1578 = vmatprep.mubr.bf16.mxu0 %v772
  %1579 = vmatmul.mubr.bf16.gmra.mrb[0].mxu0 %v771
  %v1580 = vpop.f32.mrb[0].mxu0
  %v1581 = vadd.f32 %v1292, %v1580
  %v1582 = vpop.f32.mrb[0].mxu0
  %v1583 = vpop.f32.mrb[0].mxu0
  %v1584 = vadd.f32 %v1295, %v1583
  %v1585 = vpop.f32.mrb[0].mxu0
  %1586 = vmatprep.mubr.bf16.mxu0 %v776
  %1587 = vmatmul.mubr.bf16.gmra.mrb[0].mxu0 %v775
  %v1588 = vpop.f32.mrb[0].mxu0
  %v1589 = vadd.f32 %v1300, %v1588
  %v1590 = vpop.f32.mrb[0].mxu0
  %v1591 = vpop.f32.mrb[0].mxu0
  %v1592 = vadd.f32 %v1303, %v1591
  %v1593 = vpop.f32.mrb[0].mxu0
  %1594 = vmatprep.mubr.bf16.mxu0 %v780
  %1595 = vmatmul.mubr.bf16.gmra.mrb[0].mxu0 %v779
  %v1596 = vpop.f32.mrb[0].mxu0
  %v1597 = vadd.f32 %v1308, %v1596
  %v1598 = vpop.f32.mrb[0].mxu0
  %v1599 = vpop.f32.mrb[0].mxu0
  %v1600 = vadd.f32 %v1311, %v1599
  %v1601 = vpop.f32.mrb[0].mxu0
  %1602 = vmatprep.mubr.bf16.mxu0 %v784
  %1603 = vmatmul.mubr.bf16.gmra.mrb[0].mxu0 %v783
  %v1604 = vpop.f32.mrb[0].mxu0
  %v1605 = vadd.f32 %v1316, %v1604
  %v1606 = vpop.f32.mrb[0].mxu0
  %v1607 = vpop.f32.mrb[0].mxu0
  %v1608 = vadd.f32 %v1319, %v1607
  %v1609 = vpop.f32.mrb[0].mxu0
  %1610 = vmatprep.mubr.bf16.mxu0 %v788
  %1611 = vmatmul.mubr.bf16.gmra.mrb[0].mxu0 %v787
  %v1612 = vpop.f32.mrb[0].mxu0
  %v1613 = vadd.f32 %v1324, %v1612
  %v1614 = vpop.f32.mrb[0].mxu0
  %v1615 = vpop.f32.mrb[0].mxu0
  %v1616 = vadd.f32 %v1327, %v1615
  %v1617 = vpop.f32.mrb[0].mxu0
  %1618 = vmatprep.mubr.bf16.mxu0 %v792
  %1619 = vmatmul.mubr.bf16.gmra.mrb[0].mxu0 %v791
  %v1620 = vpop.f32.mrb[0].mxu0
  %v1621 = vadd.f32 %v1332, %v1620
  %v1622 = vpop.f32.mrb[0].mxu0
  %v1623 = vpop.f32.mrb[0].mxu0
  %v1624 = vadd.f32 %v1335, %v1623
  %v1625 = vpop.f32.mrb[0].mxu0
  %1626 = vmatprep.mubr.bf16.mxu0 %v796
  %1627 = vmatmul.mubr.bf16.gmra.mrb[0].mxu0 %v795
  %v1628 = vpop.f32.mrb[0].mxu0
  %v1629 = vadd.f32 %v1340, %v1628
  %v1630 = vpop.f32.mrb[0].mxu0
  %v1631 = vpop.f32.mrb[0].mxu0
  %v1632 = vadd.f32 %v1343, %v1631
  %v1633 = vpop.f32.mrb[0].mxu0
  %1634 = vmatprep.mubr.bf16.mxu0 %v800
  %1635 = vmatmul.mubr.bf16.gmra.mrb[0].mxu0 %v799
  %v1636 = vpop.f32.mrb[0].mxu0
  %v1637 = vadd.f32 %v1348, %v1636
  %v1638 = vpop.f32.mrb[0].mxu0
  %v1639 = vpop.f32.mrb[0].mxu0
  %v1640 = vadd.f32 %v1351, %v1639
  %v1641 = vpop.f32.mrb[0].mxu0
  %1642 = vmatprep.mubr.bf16.mxu0 %v804
  %1643 = vmatmul.mubr.bf16.gmra.mrb[0].mxu0 %v803
  %v1644 = vpop.f32.mrb[0].mxu0
  %v1645 = vadd.f32 %v1356, %v1644
  %v1646 = vpop.f32.mrb[0].mxu0
  %v1647 = vpop.f32.mrb[0].mxu0
  %v1648 = vadd.f32 %v1359, %v1647
  %v1649 = vpop.f32.mrb[0].mxu0
  %1650 = vmatprep.mubr.bf16.mxu0 %v808
  %1651 = vmatmul.mubr.bf16.gmra.mrb[0].mxu0 %v807
  %v1652 = vpop.f32.mrb[0].mxu0
  %v1653 = vadd.f32 %v1364, %v1652
  %v1654 = vpop.f32.mrb[0].mxu0
  %v1655 = vpop.f32.mrb[0].mxu0
  %v1656 = vadd.f32 %v1367, %v1655
  %v1657 = vpop.f32.mrb[0].mxu0
  %1658 = vmatprep.mubr.bf16.mxu0 %v812
  %1659 = vmatmul.mubr.bf16.gmra.mrb[0].mxu0 %v811
  %v1660 = vpop.f32.mrb[0].mxu0
  %v1661 = vadd.f32 %v1372, %v1660
  %v1662 = vpop.f32.mrb[0].mxu0
  %v1663 = vpop.f32.mrb[0].mxu0
  %v1664 = vadd.f32 %v1375, %v1663
  %v1665 = vpop.f32.mrb[0].mxu0
  %1666 = vmatprep.mubr.bf16.mxu0 %v816
  %1667 = vmatmul.mubr.bf16.gmra.mrb[0].mxu0 %v815
  %v1668 = vpop.f32.mrb[0].mxu0
  %v1669 = vadd.f32 %v1380, %v1668
  %v1670 = vpop.f32.mrb[0].mxu0
  %v1671 = vpop.f32.mrb[0].mxu0
  %v1672 = vadd.f32 %v1383, %v1671
  %v1673 = vpop.f32.mrb[0].mxu0
  %1674 = vmatprep.mubr.bf16.mxu0 %v820
  %1675 = vmatmul.mubr.bf16.gmra.mrb[0].mxu0 %v819
  %v1676 = vpop.f32.mrb[0].mxu0
  %v1677 = vadd.f32 %v1388, %v1676
  %v1678 = vpop.f32.mrb[0].mxu0
  %v1679 = vpop.f32.mrb[0].mxu0
  %v1680 = vadd.f32 %v1391, %v1679
  %v1681 = vpop.f32.mrb[0].mxu0
  %1682 = vmatprep.mubr.bf16.mxu0 %v824
  %1683 = vmatmul.mubr.bf16.gmra.mrb[0].mxu0 %v823
  %v1684 = vpop.f32.mrb[0].mxu0
  %v1685 = vadd.f32 %v1396, %v1684
  %v1686 = vpop.f32.mrb[0].mxu0
  %v1687 = vpop.f32.mrb[0].mxu0
  %v1688 = vadd.f32 %v1399, %v1687
  %v1689 = vpop.f32.mrb[0].mxu0
  %1690 = vmatprep.mubr.bf16.mxu0 %v828
  %1691 = vmatmul.mubr.bf16.gmra.mrb[0].mxu0 %v827
  %v1692 = vpop.f32.mrb[0].mxu0
  %v1693 = vadd.f32 %v1404, %v1692
  %v1694 = vpop.f32.mrb[0].mxu0
  %v1695 = vpop.f32.mrb[0].mxu0
  %v1696 = vadd.f32 %v1407, %v1695
  %v1697 = vpop.f32.mrb[0].mxu0
  %1698 = vmatprep.mubr.bf16.mxu0 %v832
  %1699 = vmatmul.mubr.bf16.gmra.mrb[0].mxu0 %v831
  %v1700 = vpop.f32.mrb[0].mxu0
  %v1701 = vadd.f32 %v1412, %v1700
  %v1702 = vpop.f32.mrb[0].mxu0
  %v1703 = vpop.f32.mrb[0].mxu0
  %v1704 = vadd.f32 %v1415, %v1703
  %v1705 = vpop.f32.mrb[0].mxu0
  %1706 = vmatprep.mubr.bf16.mxu0 %v836
  %1707 = vmatmul.mubr.bf16.gmra.mrb[0].mxu0 %v835
  %v1708 = vpop.f32.mrb[0].mxu0
  %v1709 = vadd.f32 %v1420, %v1708
  %v1710 = vpop.f32.mrb[0].mxu0
  %v1711 = vpop.f32.mrb[0].mxu0
  %v1712 = vadd.f32 %v1423, %v1711
  %v1713 = vpop.f32.mrb[0].mxu0
  %1714 = vmatprep.mubr.bf16.mxu0 %v840
  %1715 = vmatmul.mubr.bf16.gmra.mrb[0].mxu0 %v839
  %v1716 = vpop.f32.mrb[0].mxu0
  %v1717 = vadd.f32 %v1428, %v1716
  %v1718 = vpop.f32.mrb[0].mxu0
  %v1719 = vpop.f32.mrb[0].mxu0
  %v1720 = vadd.f32 %v1431, %v1719
  %v1721 = vpop.f32.mrb[0].mxu0
  %1722 = vmatprep.mubr.bf16.mxu0 %v844
  %1723 = vmatmul.mubr.bf16.gmra.mrb[0].mxu0 %v843
  %v1724 = vpop.f32.mrb[0].mxu0
  %v1725 = vadd.f32 %v1436, %v1724
  %v1726 = vpop.f32.mrb[0].mxu0
  %v1727 = vpop.f32.mrb[0].mxu0
  %v1728 = vadd.f32 %v1439, %v1727
  %v1729 = vpop.f32.mrb[0].mxu0
  %1730 = vmatprep.mubr.bf16.mxu0 %v848
  %1731 = vmatmul.mubr.bf16.gmra.mrb[0].mxu0 %v847
  %v1732 = vpop.f32.mrb[0].mxu0
  %v1733 = vadd.f32 %v1444, %v1732
  %v1734 = vpop.f32.mrb[0].mxu0
  %v1735 = vpop.f32.mrb[0].mxu0
  %v1736 = vadd.f32 %v1447, %v1735
  %v1737 = vpop.f32.mrb[0].mxu0
  %1738 = vmatprep.mubr.bf16.mxu0 %v852
  %1739 = vmatmul.mubr.bf16.gmra.mrb[0].mxu0 %v851
  %v1740 = vpop.f32.mrb[0].mxu0
  %v1741 = vadd.f32 %v1452, %v1740
  %v1742 = vpop.f32.mrb[0].mxu0
  %v1743 = vpop.f32.mrb[0].mxu0
  %v1744 = vadd.f32 %v1455, %v1743
  %v1745 = vpop.f32.mrb[0].mxu0
  %1746 = vmatprep.mubr.bf16.mxu0 %v856
  %1747 = vmatmul.mubr.bf16.gmra.mrb[0].mxu0 %v855
  %v1748 = vpop.f32.mrb[0].mxu0
  %v1749 = vadd.f32 %v1460, %v1748
  %v1750 = vpop.f32.mrb[0].mxu0
  %v1751 = vpop.f32.mrb[0].mxu0
  %v1752 = vadd.f32 %v1463, %v1751
  %v1753 = vpop.f32.mrb[0].mxu0
  %1754 = vdwg.mxu0
  %v1755 = vadd.f32 %v89, %v1501
  %v1756 = vadd.f32 %v90, %v1504
  %v1757 = vadd.f32 %v91, %v1509
  %v1758 = vadd.f32 %v92, %v1512
  %v1759 = vadd.f32 %v93, %v1517
  %v1760 = vadd.f32 %v94, %v1520
  %v1761 = vadd.f32 %v95, %v1525
  %v1762 = vadd.f32 %v96, %v1528
  %v1763 = vadd.f32 %v97, %v1533
  %v1764 = vadd.f32 %v98, %v1536
  %v1765 = vadd.f32 %v99, %v1541
  %v1766 = vadd.f32 %v100, %v1544
  %v1767 = vadd.f32 %v101, %v1549
  %v1768 = vadd.f32 %v102, %v1552
  %v1769 = vadd.f32 %v103, %v1557
  %v1770 = vadd.f32 %v104, %v1560
  %v1771 = vadd.f32 %v105, %v1565
  %v1772 = vadd.f32 %v106, %v1568
  %v1773 = vadd.f32 %v107, %v1573
  %v1774 = vadd.f32 %v108, %v1576
  %v1775 = vadd.f32 %v109, %v1581
  %v1776 = vadd.f32 %v110, %v1584
  %v1777 = vadd.f32 %v111, %v1589
  %v1778 = vadd.f32 %v112, %v1592
  %v1779 = vadd.f32 %v113, %v1597
  %v1780 = vadd.f32 %v114, %v1600
  %v1781 = vadd.f32 %v115, %v1605
  %v1782 = vadd.f32 %v116, %v1608
  %v1783 = vadd.f32 %v117, %v1613
  %v1784 = vadd.f32 %v118, %v1616
  %v1785 = vadd.f32 %v119, %v1621
  %v1786 = vadd.f32 %v120, %v1624
  %v1787 = vadd.f32 %v121, %v1629
  %v1788 = vadd.f32 %v122, %v1632
  %v1789 = vadd.f32 %v123, %v1637
  %v1790 = vadd.f32 %v124, %v1640
  %v1791 = vadd.f32 %v125, %v1645
  %v1792 = vadd.f32 %v126, %v1648
  %v1793 = vadd.f32 %v127, %v1653
  %v1794 = vadd.f32 %v128, %v1656
  %v1795 = vadd.f32 %v129, %v1661
  %v1796 = vadd.f32 %v130, %v1664
  %v1797 = vadd.f32 %v131, %v1669
  %v1798 = vadd.f32 %v132, %v1672
  %v1799 = vadd.f32 %v133, %v1677
  %v1800 = vadd.f32 %v134, %v1680
  %v1801 = vadd.f32 %v135, %v1685
  %v1802 = vadd.f32 %v136, %v1688
  %v1803 = vadd.f32 %v137, %v1693
  %v1804 = vadd.f32 %v138, %v1696
  %v1805 = vadd.f32 %v139, %v1701
  %v1806 = vadd.f32 %v140, %v1704
  %v1807 = vadd.f32 %v141, %v1709
  %v1808 = vadd.f32 %v142, %v1712
  %v1809 = vadd.f32 %v143, %v1717
  %v1810 = vadd.f32 %v144, %v1720
  %v1811 = vadd.f32 %v145, %v1725
  %v1812 = vadd.f32 %v146, %v1728
  %v1813 = vadd.f32 %v147, %v1733
  %v1814 = vadd.f32 %v148, %v1736
  %v1815 = vadd.f32 %v149, %v1741
  %v1816 = vadd.f32 %v150, %v1744
  %v1817 = vadd.f32 %v151, %v1749
  %v1818 = vadd.f32 %v152, %v1752
  %1819 = vst [vmem:[#allocation2] sm:$0xff] %v1755
  %1820 = vst [vmem:[#allocation2 + $0x8] sm:$0xff] %v1756
  %1821 = vst [vmem:[#allocation2 + $0x10] sm:$0xff] %v1757
  %1822 = vst [vmem:[#allocation2 + $0x18] sm:$0xff] %v1758
  %1823 = vst [vmem:[#allocation2 + $0x20] sm:$0xff] %v1759
  %1824 = vst [vmem:[#allocation2 + $0x28] sm:$0xff] %v1760
  %1825 = vst [vmem:[#allocation2 + $0x30] sm:$0xff] %v1761
  %1826 = vst [vmem:[#allocation2 + $0x38] sm:$0xff] %v1762
  %1827 = vst [vmem:[#allocation2 + $0x40] sm:$0xff] %v1763
  %1828 = vst [vmem:[#allocation2 + $0x48] sm:$0xff] %v1764
  %1829 = vst [vmem:[#allocation2 + $0x50] sm:$0xff] %v1765
  %1830 = vst [vmem:[#allocation2 + $0x58] sm:$0xff] %v1766
  %1831 = vst [vmem:[#allocation2 + $0x60] sm:$0xff] %v1767
  %1832 = vst [vmem:[#allocation2 + $0x68] sm:$0xff] %v1768
  %1833 = vst [vmem:[#allocation2 + $0x70] sm:$0xff] %v1769
  %1834 = vst [vmem:[#allocation2 + $0x78] sm:$0xff] %v1770
  %1835 = vst [vmem:[#allocation2 + $0x80] sm:$0xff] %v1771
  %1836 = vst [vmem:[#allocation2 + $0x88] sm:$0xff] %v1772
  %1837 = vst [vmem:[#allocation2 + $0x90] sm:$0xff] %v1773
  %1838 = vst [vmem:[#allocation2 + $0x98] sm:$0xff] %v1774
  %1839 = vst [vmem:[#allocation2 + $0xa0] sm:$0xff] %v1775
  %1840 = vst [vmem:[#allocation2 + $0xa8] sm:$0xff] %v1776
  %1841 = vst [vmem:[#allocation2 + $0xb0] sm:$0xff] %v1777
  %1842 = vst [vmem:[#allocation2 + $0xb8] sm:$0xff] %v1778
  %1843 = vst [vmem:[#allocation2 + $0xc0] sm:$0xff] %v1779
  %1844 = vst [vmem:[#allocation2 + $0xc8] sm:$0xff] %v1780
  %1845 = vst [vmem:[#allocation2 + $0xd0] sm:$0xff] %v1781
  %1846 = vst [vmem:[#allocation2 + $0xd8] sm:$0xff] %v1782
  %1847 = vst [vmem:[#allocation2 + $0xe0] sm:$0xff] %v1783
  %1848 = vst [vmem:[#allocation2 + $0xe8] sm:$0xff] %v1784
  %1849 = vst [vmem:[#allocation2 + $0xf0] sm:$0xff] %v1785
  %1850 = vst [vmem:[#allocation2 + $0xf8] sm:$0xff] %v1786
  %1851 = vst [vmem:[#allocation2 + $0x100] sm:$0xff] %v1787
  %1852 = vst [vmem:[#allocation2 + $0x108] sm:$0xff] %v1788
  %1853 = vst [vmem:[#allocation2 + $0x110] sm:$0xff] %v1789
  %1854 = vst [vmem:[#allocation2 + $0x118] sm:$0xff] %v1790
  %1855 = vst [vmem:[#allocation2 + $0x120] sm:$0xff] %v1791
  %1856 = vst [vmem:[#allocation2 + $0x128] sm:$0xff] %v1792
  %1857 = vst [vmem:[#allocation2 + $0x130] sm:$0xff] %v1793
  %1858 = vst [vmem:[#allocation2 + $0x138] sm:$0xff] %v1794
  %1859 = vst [vmem:[#allocation2 + $0x140] sm:$0xff] %v1795
  %1860 = vst [vmem:[#allocation2 + $0x148] sm:$0xff] %v1796
  %1861 = vst [vmem:[#allocation2 + $0x150] sm:$0xff] %v1797
  %1862 = vst [vmem:[#allocation2 + $0x158] sm:$0xff] %v1798
  %1863 = vst [vmem:[#allocation2 + $0x160] sm:$0xff] %v1799
  %1864 = vst [vmem:[#allocation2 + $0x168] sm:$0xff] %v1800
  %1865 = vst [vmem:[#allocation2 + $0x170] sm:$0xff] %v1801
  %1866 = vst [vmem:[#allocation2 + $0x178] sm:$0xff] %v1802
  %1867 = vst [vmem:[#allocation2 + $0x180] sm:$0xff] %v1803
  %1868 = vst [vmem:[#allocation2 + $0x188] sm:$0xff] %v1804
  %1869 = vst [vmem:[#allocation2 + $0x190] sm:$0xff] %v1805
  %1870 = vst [vmem:[#allocation2 + $0x198] sm:$0xff] %v1806
  %1871 = vst [vmem:[#allocation2 + $0x1a0] sm:$0xff] %v1807
  %1872 = vst [vmem:[#allocation2 + $0x1a8] sm:$0xff] %v1808
  %1873 = vst [vmem:[#allocation2 + $0x1b0] sm:$0xff] %v1809
  %1874 = vst [vmem:[#allocation2 + $0x1b8] sm:$0xff] %v1810
  %1875 = vst [vmem:[#allocation2 + $0x1c0] sm:$0xff] %v1811
  %1876 = vst [vmem:[#allocation2 + $0x1c8] sm:$0xff] %v1812
  %1877 = vst [vmem:[#allocation2 + $0x1d0] sm:$0xff] %v1813
  %1878 = vst [vmem:[#allocation2 + $0x1d8] sm:$0xff] %v1814
  %1879 = vst [vmem:[#allocation2 + $0x1e0] sm:$0xff] %v1815
  %1880 = vst [vmem:[#allocation2 + $0x1e8] sm:$0xff] %v1816
  %1881 = vst [vmem:[#allocation2 + $0x1f0] sm:$0xff] %v1817
  %1882 = vst [vmem:[#allocation2 + $0x1f8] sm:$0xff] %v1818
  // Predicated region
  $region26: #{generator_forward.37} parent=0 // pred_check
    %p1883 = pneg %p21
  $region27: #{generator_forward.37} parent=0 // pred_check_branch
    %1885 = sbr.rel (%p1883) target = $region29
  $region28: #{generator_forward.37} parent=0 // pred_region
    %v1886 = vld [vmem:[#allocation2] sm:$0xff]
    %v1887 = vld [vmem:[#allocation2 + $0x8] sm:$0xff]
    %v1888 = vld [vmem:[#allocation2 + $0x10] sm:$0xff]
    %v1889 = vld [vmem:[#allocation2 + $0x18] sm:$0xff]
    %v1890 = vld [vmem:[#allocation2 + $0x20] sm:$0xff]
    %v1891 = vld [vmem:[#allocation2 + $0x28] sm:$0xff]
    %v1892 = vld [vmem:[#allocation2 + $0x30] sm:$0xff]
    %v1893 = vld [vmem:[#allocation2 + $0x38] sm:$0xff]
    %v1894 = vld [vmem:[#allocation2 + $0x40] sm:$0xff]
    %v1895 = vld [vmem:[#allocation2 + $0x48] sm:$0xff]
    %v1896 = vld [vmem:[#allocation2 + $0x50] sm:$0xff]
    %v1897 = vld [vmem:[#allocation2 + $0x58] sm:$0xff]
    %v1898 = vld [vmem:[#allocation2 + $0x60] sm:$0xff]
    %v1899 = vld [vmem:[#allocation2 + $0x68] sm:$0xff]
    %v1900 = vld [vmem:[#allocation2 + $0x70] sm:$0xff]
    %v1901 = vld [vmem:[#allocation2 + $0x78] sm:$0xff]
    %v1902 = vld [vmem:[#allocation2 + $0x80] sm:$0xff]
    %v1903 = vld [vmem:[#allocation2 + $0x88] sm:$0xff]
    %v1904 = vld [vmem:[#allocation2 + $0x90] sm:$0xff]
    %v1905 = vld [vmem:[#allocation2 + $0x98] sm:$0xff]
    %v1906 = vld [vmem:[#allocation2 + $0xa0] sm:$0xff]
    %v1907 = vld [vmem:[#allocation2 + $0xa8] sm:$0xff]
    %v1908 = vld [vmem:[#allocation2 + $0xb0] sm:$0xff]
    %v1909 = vld [vmem:[#allocation2 + $0xb8] sm:$0xff]
    %v1910 = vld [vmem:[#allocation2 + $0xc0] sm:$0xff]
    %v1911 = vld [vmem:[#allocation2 + $0xc8] sm:$0xff]
    %v1912 = vld [vmem:[#allocation2 + $0xd0] sm:$0xff]
    %v1913 = vld [vmem:[#allocation2 + $0xd8] sm:$0xff]
    %v1914 = vld [vmem:[#allocation2 + $0xe0] sm:$0xff]
    %v1915 = vld [vmem:[#allocation2 + $0xe8] sm:$0xff]
    %v1916 = vld [vmem:[#allocation2 + $0xf0] sm:$0xff]
    %v1917 = vld [vmem:[#allocation2 + $0xf8] sm:$0xff]
    %v1918 = vld [vmem:[#allocation2 + $0x100] sm:$0xff]
    %v1919 = vld [vmem:[#allocation2 + $0x108] sm:$0xff]
    %v1920 = vld [vmem:[#allocation2 + $0x110] sm:$0xff]
    %v1921 = vld [vmem:[#allocation2 + $0x118] sm:$0xff]
    %v1922 = vld [vmem:[#allocation2 + $0x120] sm:$0xff]
    %v1923 = vld [vmem:[#allocation2 + $0x128] sm:$0xff]
    %v1924 = vld [vmem:[#allocation2 + $0x130] sm:$0xff]
    %v1925 = vld [vmem:[#allocation2 + $0x138] sm:$0xff]
    %v1926 = vld [vmem:[#allocation2 + $0x140] sm:$0xff]
    %v1927 = vld [vmem:[#allocation2 + $0x148] sm:$0xff]
    %v1928 = vld [vmem:[#allocation2 + $0x150] sm:$0xff]
    %v1929 = vld [vmem:[#allocation2 + $0x158] sm:$0xff]
    %v1930 = vld [vmem:[#allocation2 + $0x160] sm:$0xff]
    %v1931 = vld [vmem:[#allocation2 + $0x168] sm:$0xff]
    %v1932 = vld [vmem:[#allocation2 + $0x170] sm:$0xff]
    %v1933 = vld [vmem:[#allocation2 + $0x178] sm:$0xff]
    %v1934 = vld [vmem:[#allocation2 + $0x180] sm:$0xff]
    %v1935 = vld [vmem:[#allocation2 + $0x188] sm:$0xff]
    %v1936 = vld [vmem:[#allocation2 + $0x190] sm:$0xff]
    %v1937 = vld [vmem:[#allocation2 + $0x198] sm:$0xff]
    %v1938 = vld [vmem:[#allocation2 + $0x1a0] sm:$0xff]
    %v1939 = vld [vmem:[#allocation2 + $0x1a8] sm:$0xff]
    %v1940 = vld [vmem:[#allocation2 + $0x1b0] sm:$0xff]
    %v1941 = vld [vmem:[#allocation2 + $0x1b8] sm:$0xff]
    %v1942 = vld [vmem:[#allocation2 + $0x1c0] sm:$0xff]
    %v1943 = vld [vmem:[#allocation2 + $0x1c8] sm:$0xff]
    %v1944 = vld [vmem:[#allocation2 + $0x1d0] sm:$0xff]
    %v1945 = vld [vmem:[#allocation2 + $0x1d8] sm:$0xff]
    %v1946 = vld [vmem:[#allocation2 + $0x1e0] sm:$0xff]
    %v1947 = vld [vmem:[#allocation2 + $0x1e8] sm:$0xff]
    %v1948 = vld [vmem:[#allocation2 + $0x1f0] sm:$0xff]
    %v1949 = vld [vmem:[#allocation2 + $0x1f8] sm:$0xff]
    %v1950 = vtanh.pop %v1886
    %v1951 = vtanh.pop %v1887
    %v1952 = vtanh.pop %v1888
    %v1953 = vtanh.pop %v1889
    %v1954 = vtanh.pop %v1890
    %v1955 = vtanh.pop %v1891
    %v1956 = vtanh.pop %v1892
    %v1957 = vtanh.pop %v1893
    %v1958 = vtanh.pop %v1894
    %v1959 = vtanh.pop %v1895
    %v1960 = vtanh.pop %v1896
    %v1961 = vtanh.pop %v1897
    %v1962 = vtanh.pop %v1898
    %v1963 = vtanh.pop %v1899
    %v1964 = vtanh.pop %v1900
    %v1965 = vtanh.pop %v1901
    %v1966 = vtanh.pop %v1902
    %v1967 = vtanh.pop %v1903
    %v1968 = vtanh.pop %v1904
    %v1969 = vtanh.pop %v1905
    %v1970 = vtanh.pop %v1906
    %v1971 = vtanh.pop %v1907
    %v1972 = vtanh.pop %v1908
    %v1973 = vtanh.pop %v1909
    %v1974 = vtanh.pop %v1910
    %v1975 = vtanh.pop %v1911
    %v1976 = vtanh.pop %v1912
    %v1977 = vtanh.pop %v1913
    %v1978 = vtanh.pop %v1914
    %v1979 = vtanh.pop %v1915
    %v1980 = vtanh.pop %v1916
    %v1981 = vtanh.pop %v1917
    %v1982 = vtanh.pop %v1918
    %v1983 = vtanh.pop %v1919
    %v1984 = vtanh.pop %v1920
    %v1985 = vtanh.pop %v1921
    %v1986 = vtanh.pop %v1922
    %v1987 = vtanh.pop %v1923
    %v1988 = vtanh.pop %v1924
    %v1989 = vtanh.pop %v1925
    %v1990 = vtanh.pop %v1926
    %v1991 = vtanh.pop %v1927
    %v1992 = vtanh.pop %v1928
    %v1993 = vtanh.pop %v1929
    %v1994 = vtanh.pop %v1930
    %v1995 = vtanh.pop %v1931
    %v1996 = vtanh.pop %v1932
    %v1997 = vtanh.pop %v1933
    %v1998 = vtanh.pop %v1934
    %v1999 = vtanh.pop %v1935
    %v2000 = vtanh.pop %v1936
    %v2001 = vtanh.pop %v1937
    %v2002 = vtanh.pop %v1938
    %v2003 = vtanh.pop %v1939
    %v2004 = vtanh.pop %v1940
    %v2005 = vtanh.pop %v1941
    %v2006 = vtanh.pop %v1942
    %v2007 = vtanh.pop %v1943
    %v2008 = vtanh.pop %v1944
    %v2009 = vtanh.pop %v1945
    %v2010 = vtanh.pop %v1946
    %v2011 = vtanh.pop %v1947
    %v2012 = vtanh.pop %v1948
    %v2013 = vtanh.pop %v1949
    %2014 = vst [vmem:[%s5] sm:$0xff] %v1950
    %2015 = vst [vmem:[%s5 + $0x8] sm:$0xff] %v1951
    %2016 = vst [vmem:[%s5 + $0x10] sm:$0xff] %v1952
    %2017 = vst [vmem:[%s5 + $0x18] sm:$0xff] %v1953
    %2018 = vst [vmem:[%s5 + $0x20] sm:$0xff] %v1954
    %2019 = vst [vmem:[%s5 + $0x28] sm:$0xff] %v1955
    %2020 = vst [vmem:[%s5 + $0x30] sm:$0xff] %v1956
    %2021 = vst [vmem:[%s5 + $0x38] sm:$0xff] %v1957
    %2022 = vst [vmem:[%s5 + $0x40] sm:$0xff] %v1958
    %2023 = vst [vmem:[%s5 + $0x48] sm:$0xff] %v1959
    %2024 = vst [vmem:[%s5 + $0x50] sm:$0xff] %v1960
    %2025 = vst [vmem:[%s5 + $0x58] sm:$0xff] %v1961
    %2026 = vst [vmem:[%s5 + $0x60] sm:$0xff] %v1962
    %2027 = vst [vmem:[%s5 + $0x68] sm:$0xff] %v1963
    %2028 = vst [vmem:[%s5 + $0x70] sm:$0xff] %v1964
    %2029 = vst [vmem:[%s5 + $0x78] sm:$0xff] %v1965
    %2030 = vst [vmem:[%s5 + $0x80] sm:$0xff] %v1966
    %2031 = vst [vmem:[%s5 + $0x88] sm:$0xff] %v1967
    %2032 = vst [vmem:[%s5 + $0x90] sm:$0xff] %v1968
    %2033 = vst [vmem:[%s5 + $0x98] sm:$0xff] %v1969
    %2034 = vst [vmem:[%s5 + $0xa0] sm:$0xff] %v1970
    %2035 = vst [vmem:[%s5 + $0xa8] sm:$0xff] %v1971
    %2036 = vst [vmem:[%s5 + $0xb0] sm:$0xff] %v1972
    %2037 = vst [vmem:[%s5 + $0xb8] sm:$0xff] %v1973
    %2038 = vst [vmem:[%s5 + $0xc0] sm:$0xff] %v1974
    %2039 = vst [vmem:[%s5 + $0xc8] sm:$0xff] %v1975
    %2040 = vst [vmem:[%s5 + $0xd0] sm:$0xff] %v1976
    %2041 = vst [vmem:[%s5 + $0xd8] sm:$0xff] %v1977
    %2042 = vst [vmem:[%s5 + $0xe0] sm:$0xff] %v1978
    %2043 = vst [vmem:[%s5 + $0xe8] sm:$0xff] %v1979
    %2044 = vst [vmem:[%s5 + $0xf0] sm:$0xff] %v1980
    %2045 = vst [vmem:[%s5 + $0xf8] sm:$0xff] %v1981
    %2046 = vst [vmem:[%s5 + $0x100] sm:$0xff] %v1982
    %2047 = vst [vmem:[%s5 + $0x108] sm:$0xff] %v1983
    %2048 = vst [vmem:[%s5 + $0x110] sm:$0xff] %v1984
    %2049 = vst [vmem:[%s5 + $0x118] sm:$0xff] %v1985
    %2050 = vst [vmem:[%s5 + $0x120] sm:$0xff] %v1986
    %2051 = vst [vmem:[%s5 + $0x128] sm:$0xff] %v1987
    %2052 = vst [vmem:[%s5 + $0x130] sm:$0xff] %v1988
    %2053 = vst [vmem:[%s5 + $0x138] sm:$0xff] %v1989
    %2054 = vst [vmem:[%s5 + $0x140] sm:$0xff] %v1990
    %2055 = vst [vmem:[%s5 + $0x148] sm:$0xff] %v1991
    %2056 = vst [vmem:[%s5 + $0x150] sm:$0xff] %v1992
    %2057 = vst [vmem:[%s5 + $0x158] sm:$0xff] %v1993
    %2058 = vst [vmem:[%s5 + $0x160] sm:$0xff] %v1994
    %2059 = vst [vmem:[%s5 + $0x168] sm:$0xff] %v1995
    %2060 = vst [vmem:[%s5 + $0x170] sm:$0xff] %v1996
    %2061 = vst [vmem:[%s5 + $0x178] sm:$0xff] %v1997
    %2062 = vst [vmem:[%s5 + $0x180] sm:$0xff] %v1998
    %2063 = vst [vmem:[%s5 + $0x188] sm:$0xff] %v1999
    %2064 = vst [vmem:[%s5 + $0x190] sm:$0xff] %v2000
    %2065 = vst [vmem:[%s5 + $0x198] sm:$0xff] %v2001
    %2066 = vst [vmem:[%s5 + $0x1a0] sm:$0xff] %v2002
    %2067 = vst [vmem:[%s5 + $0x1a8] sm:$0xff] %v2003
    %2068 = vst [vmem:[%s5 + $0x1b0] sm:$0xff] %v2004
    %2069 = vst [vmem:[%s5 + $0x1b8] sm:$0xff] %v2005
    %2070 = vst [vmem:[%s5 + $0x1c0] sm:$0xff] %v2006
    %2071 = vst [vmem:[%s5 + $0x1c8] sm:$0xff] %v2007
    %2072 = vst [vmem:[%s5 + $0x1d0] sm:$0xff] %v2008
    %2073 = vst [vmem:[%s5 + $0x1d8] sm:$0xff] %v2009
    %2074 = vst [vmem:[%s5 + $0x1e0] sm:$0xff] %v2010
    %2075 = vst [vmem:[%s5 + $0x1e8] sm:$0xff] %v2011
    %2076 = vst [vmem:[%s5 + $0x1f0] sm:$0xff] %v2012
    %2077 = vst [vmem:[%s5 + $0x1f8] sm:$0xff] %v2013
  $region29: #{generator_forward.37} parent=0 // pred_fallthru
    _
  // Predicated region
  $region30: #{generator_forward.37} parent=0 // pred_check
    _
  $region31: #{generator_forward.37} parent=0 // pred_check_branch
    %2079 = sbr.rel (0) target = $region33
  $region32: #{generator_forward.37} parent=0 // pred_region
    _
  $region33: #{generator_forward.37} parent=0 // pred_fallthru
    _
  // Predicated region
  $region34: #{generator_forward.37} parent=0 // pred_check
    _
  $region35: #{generator_forward.37} parent=0 // pred_check_branch
    %2081 = sbr.rel (0) target = $region37
  $region36: #{generator_forward.37} parent=0 // pred_region
    _
  $region37: #{generator_forward.37} parent=0 // pred_fallthru
    _

</llo_original>
